<compile_context>
chip_gen: v7x
topology: tpu7x:2x2x1
jax: 0.10.0
libtpu: 0.0.40
codegen_flags: <defaults>
</compile_context>

<pallas_src>
import math
import functools

import jax
import jax.numpy as jnp
from jax import lax
from jax.experimental import pallas as pl
from jax.experimental.pallas import tpu as pltpu

BN_EPS = 1e-5
SQRT_HALF = math.sqrt(0.5)
# Explicit precision choice: bf16 MXU operands, f32 accumulation. Set to
# jnp.float32 for exact parity with the f32 PyTorch reference.
MXU_DTYPE = jnp.bfloat16


def _round_up(n, m):
    return ((n + m - 1) // m) * m


def _num_tensorcores():
    """Best-effort TensorCore count per chip (1 on v5e/v6e, 2 on v7x)."""
    try:
        info = pltpu.get_tpu_info()
        for name in ("num_cores", "core_count", "num_tensorcores"):
            v = getattr(info, name, None)
            if isinstance(v, int) and v > 0:
                return v
    except Exception:
        pass
    try:
        v = getattr(jax.devices()[0], "num_cores", None)
        if isinstance(v, int) and v > 0:
            return v
    except Exception:
        pass
    return 1


def _vmem_capacity_bytes():
    try:
        v = getattr(pltpu.get_tpu_info(), "vmem_capacity_bytes", None)
        if v:
            return int(v)
    except Exception:
        pass
    return None


# --------------------------------------------------------------------------
# Fused TabNet encoder kernel (initial BN + all steps + final mapping)
# --------------------------------------------------------------------------

def _tabnet_encoder_kernel(*refs, n_steps, n_layers, gamma, eps, vbs,
                           vb_per_block, nda, output_dim, fuse_glu,
                           first_idx, rest_idx):
    f32 = jnp.float32
    if fuse_glu:
        (x_ref, s0_ref, t0_ref,
         wf_ref, wr_ref, g_ref, b_ref,
         attw_ref, attg_ref, attb_ref, finw_ref, out_ref) = refs
    else:
        (x_ref, s0_ref, t0_ref,
         wfv_ref, wfg_ref, wrv_ref, wrg_ref,
         gv_ref, bv_ref, gg_ref, bg_ref,
         attw_ref, attg_ref, attb_ref, finw_ref, out_ref) = refs

    # Fused initial BatchNorm1d: full-batch stats were folded into scale/shift
    # host-side, so this is a single VPU multiply-add (no HBM round trip).
    x = x_ref[...] * s0_ref[...] + t0_ref[...]        # (rows, D) f32
    rows, feat_dim = x.shape
    out_pad = out_ref.shape[-1]

    def ghost_bn(y, g, b):
        """GhostBatchNorm, training mode, single-pass E[y]/E[y^2] statistics."""
        if vb_per_block == 1:
            mean = jnp.mean(y, axis=0, keepdims=True)
            msq = jnp.mean(y * y, axis=0, keepdims=True)
            var = jnp.maximum(msq - mean * mean, 0.0)
            yn = (y - mean) * lax.rsqrt(var + BN_EPS)
        else:
            # vbs is kept a multiple of 8 host-side so this reshape stays
            # sublane-aligned (no relayout copy).
            # TODO(synk): optionally move these reductions onto the MXU via a
            # constant segment-mean matmul if they ever become the bottleneck.
            y3 = y.reshape(vb_per_block, vbs, y.shape[-1])
            mean = jnp.mean(y3, axis=1, keepdims=True)
            msq = jnp.mean(y3 * y3, axis=1, keepdims=True)
            var = jnp.maximum(msq - mean * mean, 0.0)
            yn = ((y3 - mean) * lax.rsqrt(var + BN_EPS)).reshape(y.shape)
        return yn * g + b

    def glu(h, w_slot, bn_slot, first):
        hb = h.astype(MXU_DTYPE)
        if fuse_glu:
            # nda % 128 == 0: one N = 2*nda dot fills the 256-wide MXU on
            # v6e/v7x; the value|gate split below is lane-aligned.
            w = wf_ref[w_slot] if first else wr_ref[w_slot]
            y = ghost_bn(jnp.dot(hb, w, preferred_element_type=f32),
                         g_ref[bn_slot], b_ref[bn_slot])
            return y[:, :nda] * jax.nn.sigmoid(y[:, nda:])
        # Narrow nda: keep the pre-split value/gate halves (no sub-128-lane
        # slicing of the 2*nda activation).
        wv = wfv_ref[w_slot] if first else wrv_ref[w_slot]
        wg = wfg_ref[w_slot] if first else wrg_ref[w_slot]
        yv = jnp.dot(hb, wv, preferred_element_type=f32)
        yg = jnp.dot(hb, wg, preferred_element_type=f32)
        return (ghost_bn(yv, gv_ref[bn_slot], bv_ref[bn_slot]) *
                jax.nn.sigmoid(ghost_bn(yg, gg_ref[bn_slot], bg_ref[bn_slot])))

    def feat_transformer(h, t):
        h = glu(h, first_idx[t], t * n_layers, True)
        for l in range(1, n_layers):
            g = glu(h, rest_idx[t][l - 1], t * n_layers + l, False)
            h = (h + g) * SQRT_HALF
        return h

    def sparsemax(z):
        # Exact sparsemax via rank/prefix sums computed with O(D) lane
        # rotations (pltpu.roll -> XLU) instead of O(D) lane extractions.
        # TODO(synk): for very large input_dim switch to a sort+cumsum
        # formulation (O(D log D)) once lax.sort lowering is available here.
        z = z - jnp.max(z, axis=-1, keepdims=True)    # stability shift (no-op)
        cnt = jnp.ones_like(z)                        # self comparison
        ssum = z                                      # self contribution
        for s in range(1, feat_dim):
            zr = pltpu.roll(z, shift=s, axis=1)
            ge = (zr >= z).astype(z.dtype)
            cnt = cnt + ge
            ssum = ssum + ge * zr
        support = (1.0 + cnt * z > ssum).astype(z.dtype)
        k = jnp.sum(support, axis=-1, keepdims=True)
        tau = (jnp.sum(z * support, axis=-1, keepdims=True) - 1.0) / k
        return jnp.maximum(z - tau, 0.0)

    # Initial splitter (transformer 0).  Keep the full (rows, nda) output: the
    # attention fc weight is zero-padded over the n_d rows, so no n_a slice is
    # needed.
    att_full = feat_transformer(x, 0)

    prior = jnp.ones_like(x)
    res_full = jnp.zeros((rows, nda), f32)
    mloss_rows = jnp.zeros((rows, 1), f32)

    for step in range(n_steps):
        # Attentive transformer: fc + GhostBN + prior mul + sparsemax
        y = jnp.dot(att_full.astype(MXU_DTYPE), attw_ref[step],
                    preferred_element_type=f32)
        y = ghost_bn(y, attg_ref[step], attb_ref[step])
        M = sparsemax(y * prior)
        mloss_rows = mloss_rows + jnp.sum(M * jnp.log(M + eps),
                                          axis=-1, keepdims=True)
        prior = (gamma - M) * prior

        # Feature transformer for this step (transformer index step + 1)
        out_t = feat_transformer(M * x, step + 1)
        # finw's zero rows for the n_a columns make an explicit d-mask redundant.
        res_full = res_full + jax.nn.relu(out_t)
        att_full = out_t

    # Final mapping into a lane-dense (>=128-wide) padded output slab; the
    # per-row M_loss partial is folded into column `output_dim` (finw is zero
    # there), so the store is a full-width unmasked vst.
    result = jnp.dot(res_full.astype(MXU_DTYPE), finw_ref[...],
                     preferred_element_type=f32)
    col = lax.broadcasted_iota(jnp.int32, (1, out_pad), 1)
    mloss_col = (col == output_dim).astype(f32)
    out_ref[...] = result + mloss_rows * mloss_col


# --------------------------------------------------------------------------
# Parameter init (mirrors the PyTorch __init__ shapes / xavier gains)
# --------------------------------------------------------------------------

def _glu_gain(in_dim, out_dim):
    return math.sqrt((in_dim + out_dim) / math.sqrt(in_dim))


def _nonglu_gain(in_dim, out_dim):
    return math.sqrt((in_dim + out_dim) / math.sqrt(4 * in_dim))


def _xavier_normal_t(key, in_dim, out_dim, gain):
    """nn.Linear(in,out).weight (out,in), xavier_normal, returned transposed (in,out)."""
    std = gain * math.sqrt(2.0 / (in_dim + out_dim))
    w = jax.random.normal(key, (out_dim, in_dim), jnp.float32) * std
    return w.T


def init_tabnet_params(key, input_dim, output_dim, n_d, n_a, n_steps,
                       n_independent, n_shared):
    f32 = jnp.float32
    nda = n_d + n_a
    two = 2 * nda
    n_layers = n_shared + n_independent
    T = n_steps + 1
    n_keys = max(64, n_shared + T * n_independent + n_steps + 2)
    keys = iter(jax.random.split(key, n_keys))

    params = {'initial_bn': (jnp.ones((input_dim,), f32),
                             jnp.zeros((input_dim,), f32))}

    # Shared fc weights (created ONCE, reused by every transformer).
    params['shared_w'] = [
        _xavier_normal_t(next(keys), input_dim if i == 0 else nda, two,
                         _glu_gain(input_dim if i == 0 else nda, two))
        for i in range(n_shared)]

    transformers = []
    for _t in range(T):
        spec_w = []
        for j in range(n_independent):
            in_dim = input_dim if (n_shared == 0 and j == 0) else nda
            spec_w.append(_xavier_normal_t(next(keys), in_dim, two,
                                           _glu_gain(in_dim, two)))
        transformers.append({
            'spec_w': spec_w,
            'bn_g': [jnp.ones((two,), f32) for _ in range(n_layers)],
            'bn_b': [jnp.zeros((two,), f32) for _ in range(n_layers)],
        })
    params['transformers'] = transformers

    params['att'] = [{'w': _xavier_normal_t(next(keys), n_a, input_dim,
                                            _nonglu_gain(n_a, input_dim)),
                      'g': jnp.ones((input_dim,), f32),
                      'b': jnp.zeros((input_dim,), f32)}
                     for _ in range(n_steps)]
    params['final_w'] = _xavier_normal_t(next(keys), n_d, output_dim,
                                         _nonglu_gain(n_d, output_dim))
    return params


def pack_params(params, *, input_dim, output_dim, n_d, n_a, n_steps,
                n_shared, n_independent, mxu_dtype=MXU_DTYPE):
    """One-time host-side prep: de-duplicate shared fc weights, split / fuse
    GLU halves, zero-pad attention & final-mapping weights, cast matmul
    operands to the MXU dtype.  Returns (packed arrays, static metadata)."""
    f32 = jnp.float32
    nda = n_d + n_a
    two = 2 * nda
    T = n_steps + 1
    n_layers = n_shared + n_independent
    fuse_glu = (nda % 128 == 0)
    # TODO(synk): for production configs also zero-pad input_dim / nda /
    # output_dim to multiples of 128 (sparsemax needs -inf masking of padded
    # feature columns, so it is not done here).

    # ---- fc weights: shared layers stored once, indexed via slot tables ----
    first_w, rest_w = [], []                 # in_dim = input_dim / nda
    first_idx, rest_idx = [], []
    shared_w = params['shared_w']
    shared_first_slot = None
    shared_rest_slots = []
    if n_shared > 0:
        shared_first_slot = len(first_w)
        first_w.append(shared_w[0])
        for i in range(1, n_shared):
            shared_rest_slots.append(len(rest_w))
            rest_w.append(shared_w[i])
    for t in range(T):
        tr = params['transformers'][t]
        r_idx = []
        if n_shared > 0:
            first_idx.append(shared_first_slot)
            r_idx.extend(shared_rest_slots)
            for w in tr['spec_w']:
                r_idx.append(len(rest_w))
                rest_w.append(w)
        else:
            first_idx.append(len(first_w))
            first_w.append(tr['spec_w'][0])
            for w in tr['spec_w'][1:]:
                r_idx.append(len(rest_w))
                rest_w.append(w)
        rest_idx.append(tuple(r_idx))
    if not rest_w:   # n_layers == 1: dummy never-indexed slot
        rest_w = [jnp.zeros((nda, two), f32)]

    # ---- per-(transformer, layer) BN params (not shared, even for shared fc)
    bn_g, bn_b = [], []
    for t in range(T):
        tr = params['transformers'][t]
        for l in range(n_layers):
            bn_g.append(tr['bn_g'][l].reshape(1, two))
            bn_b.append(tr['bn_b'][l].reshape(1, two))

    packed = {}
    if fuse_glu:
        packed['wfirst'] = jnp.stack(first_w).astype(mxu_dtype)
        packed['wrest'] = jnp.stack(rest_w).astype(mxu_dtype)
        packed['g'] = jnp.stack(bn_g)
        packed['b'] = jnp.stack(bn_b)
        order = ('wfirst', 'wrest', 'g', 'b', 'attw', 'attg', 'attb', 'finw')
    else:
        packed['wfv'] = jnp.stack([w[:, :nda] for w in first_w]).astype(mxu_dtype)
        packed['wfg'] = jnp.stack([w[:, nda:] for w in first_w]).astype(mxu_dtype)
        packed['wrv'] = jnp.stack([w[:, :nda] for w in rest_w]).astype(mxu_dtype)
        packed['wrg'] = jnp.stack([w[:, nda:] for w in rest_w]).astype(mxu_dtype)
        packed['gv'] = jnp.stack([a[:, :nda] for a in bn_g])
        packed['gg'] = jnp.stack([a[:, nda:] for a in bn_g])
        packed['bv'] = jnp.stack([a[:, :nda] for a in bn_b])
        packed['bg'] = jnp.stack([a[:, nda:] for a in bn_b])
        order = ('wfv', 'wfg', 'wrv', 'wrg', 'gv', 'bv', 'gg', 'bg',
                 'attw', 'attg', 'attb', 'finw')

    # ---- attention fc zero-padded over the n_d rows ----
    packed['attw'] = jnp.stack(
        [jnp.concatenate([jnp.zeros((n_d, input_dim), f32), at['w']], axis=0)
         for at in params['att']]).astype(mxu_dtype)
    packed['attg'] = jnp.stack([at['g'].reshape(1, input_dim) for at in params['att']])
    packed['attb'] = jnp.stack([at['b'].reshape(1, input_dim) for at in params['att']])

    # ---- final mapping: zero-padded rows (n_a part) AND columns (lane-dense
    # output; column `output_dim` is reserved for the M_loss partial) ----
    out_pad = _round_up(output_dim + 1, 128)
    finw = jnp.zeros((nda, out_pad), f32)
    finw = finw.at[:n_d, :output_dim].set(params['final_w'])
    packed['finw'] = finw.astype(mxu_dtype)

    g0, b0 = params['initial_bn']
    packed['bn0_g'] = g0.reshape(1, input_dim)
    packed['bn0_b'] = b0.reshape(1, input_dim)

    meta = {'fuse_glu': fuse_glu,
            'first_idx': tuple(first_idx),
            'rest_idx': tuple(rest_idx),
            'out_pad': out_pad,
            'weight_order': order}
    return packed, meta


# --------------------------------------------------------------------------
# TabNet forward
# --------------------------------------------------------------------------

def tabnet_forward(packed, x, *, meta, n_d, n_a, n_steps, n_shared,
                   n_independent, output_dim, gamma, eps, vbs):
    # Embedder: no categorical features -> skip_embedding path (identity).
    # TODO(synk): categorical EmbeddingGenerator gather path not implemented (cat_idxs=[]).
    x = x.astype(jnp.float32)
    B, D = x.shape
    nda = n_d + n_a
    n_layers = n_shared + n_independent
    out_pad = meta['out_pad']
    # TODO(synk): pytorch-tabnet allows a ragged last virtual batch; not handled.
    assert B % vbs == 0, "batch must be divisible by virtual_batch_size"
    nvb = B // vbs

    # ---- initial BatchNorm1d (training mode, full-batch stats): computed as a
    # plain-JAX single-pass reduction and folded into scale/shift applied
    # inside the fused encoder kernel (no xbn HBM round trip). ----
    mean = jnp.mean(x, axis=0, keepdims=True)
    var = jnp.maximum(jnp.mean(x * x, axis=0, keepdims=True) - mean * mean, 0.0)
    rstd = lax.rsqrt(var + BN_EPS)
    bn0_scale = packed['bn0_g'] * rstd
    bn0_shift = packed['bn0_b'] - mean * packed['bn0_g'] * rstd

    weight_list = [packed[k] for k in meta['weight_order']]
    weight_bytes = sum(int(w.size) * w.dtype.itemsize for w in weight_list)

    # ---- rows-per-block: biggest VMEM-fitting tile; only force a multi-block
    # split when the chip has >1 TensorCore (v7x megacore). ----
    budget = 40 << 20
    cap = _vmem_capacity_bytes()
    if cap:
        budget = min(cap // 2, 48 << 20)
    per_row_bytes = 4 * (8 * D + 16 * nda + 2 * out_pad)   # rough live bytes/row
    avail = max(budget - 2 * weight_bytes, 1 << 20)
    target_rows = int(min(2048, max(vbs, avail // per_row_bytes)))
    vb_per_block = max(1, min(nvb, target_rows // max(vbs, 1)))

    n_tc = _num_tensorcores()
    if n_tc >= 2 and nvb >= n_tc:
        vb_per_block = min(vb_per_block, max(1, nvb // n_tc))

    def _ok(vpb):
        if vpb < 1 or nvb % vpb:
            return False
        # when multi-block, the row tile must stay sublane (8) aligned
        return (nvb // vpb == 1) or ((vpb * vbs) % 8 == 0)

    if vbs % 8 != 0:
        vb_per_block = nvb            # single block; avoid unaligned row tiles
    while vb_per_block > 1 and not _ok(vb_per_block):
        vb_per_block -= 1
    if not _ok(vb_per_block):
        vb_per_block = nvb
    rows = vb_per_block * vbs
    num_blocks = nvb // vb_per_block

    est_vmem = 2 * weight_bytes + rows * per_row_bytes
    vmem_limit = None
    if est_vmem > (16 << 20):
        vmem_limit = int(min(max(est_vmem * 3 // 2, 32 << 20), 56 << 20))

    kernel = functools.partial(
        _tabnet_encoder_kernel,
        n_steps=n_steps, n_layers=n_layers, gamma=gamma, eps=eps, vbs=vbs,
        vb_per_block=vb_per_block, nda=nda, output_dim=output_dim,
        fuse_glu=meta['fuse_glu'], first_idx=meta['first_idx'],
        rest_idx=meta['rest_idx'])

    def full(a):
        # whole-array block, constant index map -> weights stay VMEM-resident
        # TODO(synk): pipeline_mode=pl.Buffered(1) on these constant-index
        # specs would halve their VMEM footprint on v7x once broadly supported.
        return pl.BlockSpec(a.shape, lambda i, _nd=a.ndim: (0,) * _nd)

    in_specs = ([pl.BlockSpec((rows, D), lambda i: (i, 0)),
                 full(bn0_scale), full(bn0_shift)]
                + [full(w) for w in weight_list])
    out_specs = pl.BlockSpec((rows, out_pad), lambda i: (i, 0))
    out_shape = jax.ShapeDtypeStruct((B, out_pad), jnp.float32)

    big = pl.pallas_call(
        kernel,
        grid=(num_blocks,),
        out_shape=out_shape,
        in_specs=in_specs,
        out_specs=out_specs,
        compiler_params=pltpu.CompilerParams(
            dimension_semantics=("parallel",),
            vmem_limit_bytes=vmem_limit),
    )(x, bn0_scale, bn0_shift, *weight_list)

    out = big[:, :output_dim]
    m_loss = jnp.sum(big[:, output_dim]) / (B * n_steps)
    return out, m_loss


# --------------------------------------------------------------------------
# Main
# --------------------------------------------------------------------------

if __name__ == "__main__":
    # Small config (no categorical features -> embedder is identity).
    B = 16
    input_dim = 16
    output_dim = 4
    n_d, n_a = 8, 8
    n_steps = 3
    gamma = 1.3
    n_independent, n_shared = 2, 2
    virtual_batch_size = 8
    epsilon = 1e-15
    # momentum only affects BN running-stat updates; training-mode forward uses
    # batch statistics, so it does not influence the output here.

    key = jax.random.PRNGKey(0)
    k_params, k_x = jax.random.split(key)
    params = init_tabnet_params(k_params, input_dim, output_dim, n_d, n_a,
                                n_steps, n_independent, n_shared)
    packed, meta = pack_params(params, input_dim=input_dim, output_dim=output_dim,
                               n_d=n_d, n_a=n_a, n_steps=n_steps,
                               n_shared=n_shared, n_independent=n_independent)
    x = jax.random.normal(k_x, (B, input_dim), jnp.float32)

    @jax.jit
    def fwd(packed_arrays, xin):
        return tabnet_forward(packed_arrays, xin, meta=meta, n_d=n_d, n_a=n_a,
                              n_steps=n_steps, n_shared=n_shared,
                              n_independent=n_independent,
                              output_dim=output_dim, gamma=gamma, eps=epsilon,
                              vbs=virtual_batch_size)

    out, m_loss = fwd(packed, x)
    out = jax.block_until_ready(out)
    m_loss = jax.block_until_ready(jnp.asarray(m_loss))
    assert out.shape == (B, output_dim)
    assert bool(jnp.all(jnp.isfinite(out))) and bool(jnp.isfinite(m_loss))
    print("KERNEL_OK")
</pallas_src>

<mosaic_0001>
module attributes {stable_mosaic.version = 11 : i64} {
  func.func @_tabnet_encoder_kernel(%arg0: i32, %arg1: memref<16x16xf32, #tpu.memory_space<vmem>>, %arg2: memref<1x16xf32, #tpu.memory_space<vmem>>, %arg3: memref<1x16xf32, #tpu.memory_space<vmem>>, %arg4: memref<1x16x16xbf16, #tpu.memory_space<vmem>>, %arg5: memref<1x16x16xbf16, #tpu.memory_space<vmem>>, %arg6: memref<9x16x16xbf16, #tpu.memory_space<vmem>>, %arg7: memref<9x16x16xbf16, #tpu.memory_space<vmem>>, %arg8: memref<16x1x16xf32, #tpu.memory_space<vmem>>, %arg9: memref<16x1x16xf32, #tpu.memory_space<vmem>>, %arg10: memref<16x1x16xf32, #tpu.memory_space<vmem>>, %arg11: memref<16x1x16xf32, #tpu.memory_space<vmem>>, %arg12: memref<3x16x16xbf16, #tpu.memory_space<vmem>>, %arg13: memref<3x1x16xf32, #tpu.memory_space<vmem>>, %arg14: memref<3x1x16xf32, #tpu.memory_space<vmem>>, %arg15: memref<16x128xbf16, #tpu.memory_space<vmem>>, %arg16: memref<16x128xf32, #tpu.memory_space<vmem>>) attributes {dimension_semantics = [#tpu.dimension_semantics<parallel>], iteration_bounds = array<i64: 1>, scalar_prefetch = 0 : i64, scratch_operands = 0 : i64, tpu.core_type = #tpu.core_type<tc>, window_params = [{transform_indices = @transform_0, window_bounds = array<i64: 16, 16>}, {pipeline_mode = #tpu.pipeline_mode<synchronous>, transform_indices = @transform_1, window_bounds = array<i64: 1, 16>}, {pipeline_mode = #tpu.pipeline_mode<synchronous>, transform_indices = @transform_2, window_bounds = array<i64: 1, 16>}, {pipeline_mode = #tpu.pipeline_mode<synchronous>, transform_indices = @transform_3, window_bounds = array<i64: 1, 16, 16>}, {pipeline_mode = #tpu.pipeline_mode<synchronous>, transform_indices = @transform_4, window_bounds = array<i64: 1, 16, 16>}, {pipeline_mode = #tpu.pipeline_mode<synchronous>, transform_indices = @transform_5, window_bounds = array<i64: 9, 16, 16>}, {pipeline_mode = #tpu.pipeline_mode<synchronous>, transform_indices = @transform_6, window_bounds = array<i64: 9, 16, 16>}, {pipeline_mode = #tpu.pipeline_mode<synchronous>, transform_indices = @transform_7, window_bounds = array<i64: 16, 1, 16>}, {pipeline_mode = #tpu.pipeline_mode<synchronous>, transform_indices = @transform_8, window_bounds = array<i64: 16, 1, 16>}, {pipeline_mode = #tpu.pipeline_mode<synchronous>, transform_indices = @transform_9, window_bounds = array<i64: 16, 1, 16>}, {pipeline_mode = #tpu.pipeline_mode<synchronous>, transform_indices = @transform_10, window_bounds = array<i64: 16, 1, 16>}, {pipeline_mode = #tpu.pipeline_mode<synchronous>, transform_indices = @transform_11, window_bounds = array<i64: 3, 16, 16>}, {pipeline_mode = #tpu.pipeline_mode<synchronous>, transform_indices = @transform_12, window_bounds = array<i64: 3, 1, 16>}, {pipeline_mode = #tpu.pipeline_mode<synchronous>, transform_indices = @transform_13, window_bounds = array<i64: 3, 1, 16>}, {pipeline_mode = #tpu.pipeline_mode<synchronous>, transform_indices = @transform_14, window_bounds = array<i64: 16, 128>}, {transform_indices = @transform_15, window_bounds = array<i64: 16, 128>}]} {
    %c0 = arith.constant 0 : index
    %c0_0 = arith.constant 0 : index
    %0 = vector.load %arg1[%c0, %c0_0] : memref<16x16xf32, #tpu.memory_space<vmem>>, vector<16x16xf32>
    %c0_1 = arith.constant 0 : index
    %c0_2 = arith.constant 0 : index
    %1 = vector.load %arg2[%c0_1, %c0_2] : memref<1x16xf32, #tpu.memory_space<vmem>>, vector<1x16xf32>
    %2 = vector.broadcast %1 : vector<1x16xf32> to vector<16x16xf32>
    %3 = arith.mulf %0, %2 : vector<16x16xf32>
    %c0_3 = arith.constant 0 : index
    %c0_4 = arith.constant 0 : index
    %4 = vector.load %arg3[%c0_3, %c0_4] : memref<1x16xf32, #tpu.memory_space<vmem>>, vector<1x16xf32>
    %5 = vector.broadcast %4 : vector<1x16xf32> to vector<16x16xf32>
    %6 = arith.addf %3, %5 : vector<16x16xf32>
    %7 = arith.truncf %6 : vector<16x16xf32> to vector<16x16xbf16>
    %c0_5 = arith.constant 0 : index
    %c0_6 = arith.constant 0 : index
    %c0_7 = arith.constant 0 : index
    %8 = vector.load %arg4[%c0_5, %c0_6, %c0_7] : memref<1x16x16xbf16, #tpu.memory_space<vmem>>, vector<1x16x16xbf16>
    %9 = vector.shape_cast %8 : vector<1x16x16xbf16> to vector<16x16xbf16>
    %c0_8 = arith.constant 0 : index
    %c0_9 = arith.constant 0 : index
    %c0_10 = arith.constant 0 : index
    %10 = vector.load %arg5[%c0_8, %c0_9, %c0_10] : memref<1x16x16xbf16, #tpu.memory_space<vmem>>, vector<1x16x16xbf16>
    %11 = vector.shape_cast %10 : vector<1x16x16xbf16> to vector<16x16xbf16>
    %cst = arith.constant dense<0.000000e+00> : vector<16x16xf32>
    %12 = tpu.matmul %7, %9, %cst {dimension_numbers = #tpu.dot_dimension_numbers<[1], [0], [0], [1], [0, 0, 1, 1], [], []>} : vector<16x16xbf16>, vector<16x16xbf16>, vector<16x16xf32> -> vector<16x16xf32>
    %cst_11 = arith.constant dense<0.000000e+00> : vector<16x16xf32>
    %13 = tpu.matmul %7, %11, %cst_11 {dimension_numbers = #tpu.dot_dimension_numbers<[1], [0], [0], [1], [0, 0, 1, 1], [], []>} : vector<16x16xbf16>, vector<16x16xbf16>, vector<16x16xf32> -> vector<16x16xf32>
    %c0_12 = arith.constant 0 : index
    %c0_13 = arith.constant 0 : index
    %c0_14 = arith.constant 0 : index
    %14 = vector.load %arg8[%c0_12, %c0_13, %c0_14] : memref<16x1x16xf32, #tpu.memory_space<vmem>>, vector<1x1x16xf32>
    %15 = vector.shape_cast %14 : vector<1x1x16xf32> to vector<1x16xf32>
    %c0_15 = arith.constant 0 : index
    %c0_16 = arith.constant 0 : index
    %c0_17 = arith.constant 0 : index
    %16 = vector.load %arg9[%c0_15, %c0_16, %c0_17] : memref<16x1x16xf32, #tpu.memory_space<vmem>>, vector<1x1x16xf32>
    %17 = vector.shape_cast %16 : vector<1x1x16xf32> to vector<1x16xf32>
    %18 = vector.shape_cast %12 : vector<16x16xf32> to vector<2x8x16xf32>
    %cst_18 = arith.constant dense<0.000000e+00> : vector<2x16xf32>
    %19 = vector.multi_reduction <add>, %18, %cst_18 [1] : vector<2x8x16xf32> to vector<2x16xf32>
    %20 = vector.shape_cast %19 : vector<2x16xf32> to vector<2x1x16xf32>
    %cst_19 = arith.constant 8.000000e+00 : f32
    %21 = vector.broadcast %cst_19 : f32 to vector<2x1x16xf32>
    %22 = arith.divf %20, %21 : vector<2x1x16xf32>
    %23 = arith.mulf %18, %18 : vector<2x8x16xf32>
    %cst_20 = arith.constant dense<0.000000e+00> : vector<2x16xf32>
    %24 = vector.multi_reduction <add>, %23, %cst_20 [1] : vector<2x8x16xf32> to vector<2x16xf32>
    %25 = vector.shape_cast %24 : vector<2x16xf32> to vector<2x1x16xf32>
    %cst_21 = arith.constant 8.000000e+00 : f32
    %26 = vector.broadcast %cst_21 : f32 to vector<2x1x16xf32>
    %27 = arith.divf %25, %26 : vector<2x1x16xf32>
    %28 = arith.mulf %22, %22 : vector<2x1x16xf32>
    %29 = arith.subf %27, %28 : vector<2x1x16xf32>
    %cst_22 = arith.constant 0.000000e+00 : f32
    %30 = vector.broadcast %cst_22 : f32 to vector<2x1x16xf32>
    %31 = arith.maximumf %29, %30 : vector<2x1x16xf32>
    %32 = vector.broadcast %22 : vector<2x1x16xf32> to vector<2x8x16xf32>
    %33 = arith.subf %18, %32 : vector<2x8x16xf32>
    %cst_23 = arith.constant 9.99999974E-6 : f32
    %34 = vector.broadcast %cst_23 : f32 to vector<2x1x16xf32>
    %35 = arith.addf %31, %34 : vector<2x1x16xf32>
    %36 = math.rsqrt %35 : vector<2x1x16xf32>
    %37 = vector.broadcast %36 : vector<2x1x16xf32> to vector<2x8x16xf32>
    %38 = arith.mulf %33, %37 : vector<2x8x16xf32>
    %39 = vector.shape_cast %38 : vector<2x8x16xf32> to vector<16x16xf32>
    %40 = vector.broadcast %15 : vector<1x16xf32> to vector<16x16xf32>
    %41 = arith.mulf %39, %40 : vector<16x16xf32>
    %42 = vector.broadcast %17 : vector<1x16xf32> to vector<16x16xf32>
    %43 = arith.addf %41, %42 : vector<16x16xf32>
    %c0_24 = arith.constant 0 : index
    %c0_25 = arith.constant 0 : index
    %c0_26 = arith.constant 0 : index
    %44 = vector.load %arg10[%c0_24, %c0_25, %c0_26] : memref<16x1x16xf32, #tpu.memory_space<vmem>>, vector<1x1x16xf32>
    %45 = vector.shape_cast %44 : vector<1x1x16xf32> to vector<1x16xf32>
    %c0_27 = arith.constant 0 : index
    %c0_28 = arith.constant 0 : index
    %c0_29 = arith.constant 0 : index
    %46 = vector.load %arg11[%c0_27, %c0_28, %c0_29] : memref<16x1x16xf32, #tpu.memory_space<vmem>>, vector<1x1x16xf32>
    %47 = vector.shape_cast %46 : vector<1x1x16xf32> to vector<1x16xf32>
    %48 = vector.shape_cast %13 : vector<16x16xf32> to vector<2x8x16xf32>
    %cst_30 = arith.constant dense<0.000000e+00> : vector<2x16xf32>
    %49 = vector.multi_reduction <add>, %48, %cst_30 [1] : vector<2x8x16xf32> to vector<2x16xf32>
    %50 = vector.shape_cast %49 : vector<2x16xf32> to vector<2x1x16xf32>
    %cst_31 = arith.constant 8.000000e+00 : f32
    %51 = vector.broadcast %cst_31 : f32 to vector<2x1x16xf32>
    %52 = arith.divf %50, %51 : vector<2x1x16xf32>
    %53 = arith.mulf %48, %48 : vector<2x8x16xf32>
    %cst_32 = arith.constant dense<0.000000e+00> : vector<2x16xf32>
    %54 = vector.multi_reduction <add>, %53, %cst_32 [1] : vector<2x8x16xf32> to vector<2x16xf32>
    %55 = vector.shape_cast %54 : vector<2x16xf32> to vector<2x1x16xf32>
    %cst_33 = arith.constant 8.000000e+00 : f32
    %56 = vector.broadcast %cst_33 : f32 to vector<2x1x16xf32>
    %57 = arith.divf %55, %56 : vector<2x1x16xf32>
    %58 = arith.mulf %52, %52 : vector<2x1x16xf32>
    %59 = arith.subf %57, %58 : vector<2x1x16xf32>
    %cst_34 = arith.constant 0.000000e+00 : f32
    %60 = vector.broadcast %cst_34 : f32 to vector<2x1x16xf32>
    %61 = arith.maximumf %59, %60 : vector<2x1x16xf32>
    %62 = vector.broadcast %52 : vector<2x1x16xf32> to vector<2x8x16xf32>
    %63 = arith.subf %48, %62 : vector<2x8x16xf32>
    %cst_35 = arith.constant 9.99999974E-6 : f32
    %64 = vector.broadcast %cst_35 : f32 to vector<2x1x16xf32>
    %65 = arith.addf %61, %64 : vector<2x1x16xf32>
    %66 = math.rsqrt %65 : vector<2x1x16xf32>
    %67 = vector.broadcast %66 : vector<2x1x16xf32> to vector<2x8x16xf32>
    %68 = arith.mulf %63, %67 : vector<2x8x16xf32>
    %69 = vector.shape_cast %68 : vector<2x8x16xf32> to vector<16x16xf32>
    %70 = vector.broadcast %45 : vector<1x16xf32> to vector<16x16xf32>
    %71 = arith.mulf %69, %70 : vector<16x16xf32>
    %72 = vector.broadcast %47 : vector<1x16xf32> to vector<16x16xf32>
    %73 = arith.addf %71, %72 : vector<16x16xf32>
    %74 = arith.negf %73 : vector<16x16xf32>
    %75 = math.exp %74 : vector<16x16xf32>
    %cst_36 = arith.constant 1.000000e+00 : f32
    %76 = vector.broadcast %cst_36 : f32 to vector<16x16xf32>
    %77 = arith.addf %76, %75 : vector<16x16xf32>
    %78 = arith.divf %76, %77 : vector<16x16xf32>
    %79 = arith.mulf %43, %78 : vector<16x16xf32>
    %80 = arith.truncf %79 : vector<16x16xf32> to vector<16x16xbf16>
    %c0_37 = arith.constant 0 : index
    %c0_38 = arith.constant 0 : index
    %c0_39 = arith.constant 0 : index
    %81 = vector.load %arg6[%c0_37, %c0_38, %c0_39] : memref<9x16x16xbf16, #tpu.memory_space<vmem>>, vector<1x16x16xbf16>
    %82 = vector.shape_cast %81 : vector<1x16x16xbf16> to vector<16x16xbf16>
    %c0_40 = arith.constant 0 : index
    %c0_41 = arith.constant 0 : index
    %c0_42 = arith.constant 0 : index
    %83 = vector.load %arg7[%c0_40, %c0_41, %c0_42] : memref<9x16x16xbf16, #tpu.memory_space<vmem>>, vector<1x16x16xbf16>
    %84 = vector.shape_cast %83 : vector<1x16x16xbf16> to vector<16x16xbf16>
    %cst_43 = arith.constant dense<0.000000e+00> : vector<16x16xf32>
    %85 = tpu.matmul %80, %82, %cst_43 {dimension_numbers = #tpu.dot_dimension_numbers<[1], [0], [0], [1], [0, 0, 1, 1], [], []>} : vector<16x16xbf16>, vector<16x16xbf16>, vector<16x16xf32> -> vector<16x16xf32>
    %cst_44 = arith.constant dense<0.000000e+00> : vector<16x16xf32>
    %86 = tpu.matmul %80, %84, %cst_44 {dimension_numbers = #tpu.dot_dimension_numbers<[1], [0], [0], [1], [0, 0, 1, 1], [], []>} : vector<16x16xbf16>, vector<16x16xbf16>, vector<16x16xf32> -> vector<16x16xf32>
    %c1 = arith.constant 1 : index
    %c0_45 = arith.constant 0 : index
    %c0_46 = arith.constant 0 : index
    %87 = vector.load %arg8[%c1, %c0_45, %c0_46] : memref<16x1x16xf32, #tpu.memory_space<vmem>>, vector<1x1x16xf32>
    %88 = vector.shape_cast %87 : vector<1x1x16xf32> to vector<1x16xf32>
    %c1_47 = arith.constant 1 : index
    %c0_48 = arith.constant 0 : index
    %c0_49 = arith.constant 0 : index
    %89 = vector.load %arg9[%c1_47, %c0_48, %c0_49] : memref<16x1x16xf32, #tpu.memory_space<vmem>>, vector<1x1x16xf32>
    %90 = vector.shape_cast %89 : vector<1x1x16xf32> to vector<1x16xf32>
    %91 = vector.shape_cast %85 : vector<16x16xf32> to vector<2x8x16xf32>
    %cst_50 = arith.constant dense<0.000000e+00> : vector<2x16xf32>
    %92 = vector.multi_reduction <add>, %91, %cst_50 [1] : vector<2x8x16xf32> to vector<2x16xf32>
    %93 = vector.shape_cast %92 : vector<2x16xf32> to vector<2x1x16xf32>
    %cst_51 = arith.constant 8.000000e+00 : f32
    %94 = vector.broadcast %cst_51 : f32 to vector<2x1x16xf32>
    %95 = arith.divf %93, %94 : vector<2x1x16xf32>
    %96 = arith.mulf %91, %91 : vector<2x8x16xf32>
    %cst_52 = arith.constant dense<0.000000e+00> : vector<2x16xf32>
    %97 = vector.multi_reduction <add>, %96, %cst_52 [1] : vector<2x8x16xf32> to vector<2x16xf32>
    %98 = vector.shape_cast %97 : vector<2x16xf32> to vector<2x1x16xf32>
    %cst_53 = arith.constant 8.000000e+00 : f32
    %99 = vector.broadcast %cst_53 : f32 to vector<2x1x16xf32>
    %100 = arith.divf %98, %99 : vector<2x1x16xf32>
    %101 = arith.mulf %95, %95 : vector<2x1x16xf32>
    %102 = arith.subf %100, %101 : vector<2x1x16xf32>
    %cst_54 = arith.constant 0.000000e+00 : f32
    %103 = vector.broadcast %cst_54 : f32 to vector<2x1x16xf32>
    %104 = arith.maximumf %102, %103 : vector<2x1x16xf32>
    %105 = vector.broadcast %95 : vector<2x1x16xf32> to vector<2x8x16xf32>
    %106 = arith.subf %91, %105 : vector<2x8x16xf32>
    %cst_55 = arith.constant 9.99999974E-6 : f32
    %107 = vector.broadcast %cst_55 : f32 to vector<2x1x16xf32>
    %108 = arith.addf %104, %107 : vector<2x1x16xf32>
    %109 = math.rsqrt %108 : vector<2x1x16xf32>
    %110 = vector.broadcast %109 : vector<2x1x16xf32> to vector<2x8x16xf32>
    %111 = arith.mulf %106, %110 : vector<2x8x16xf32>
    %112 = vector.shape_cast %111 : vector<2x8x16xf32> to vector<16x16xf32>
    %113 = vector.broadcast %88 : vector<1x16xf32> to vector<16x16xf32>
    %114 = arith.mulf %112, %113 : vector<16x16xf32>
    %115 = vector.broadcast %90 : vector<1x16xf32> to vector<16x16xf32>
    %116 = arith.addf %114, %115 : vector<16x16xf32>
    %c1_56 = arith.constant 1 : index
    %c0_57 = arith.constant 0 : index
    %c0_58 = arith.constant 0 : index
    %117 = vector.load %arg10[%c1_56, %c0_57, %c0_58] : memref<16x1x16xf32, #tpu.memory_space<vmem>>, vector<1x1x16xf32>
    %118 = vector.shape_cast %117 : vector<1x1x16xf32> to vector<1x16xf32>
    %c1_59 = arith.constant 1 : index
    %c0_60 = arith.constant 0 : index
    %c0_61 = arith.constant 0 : index
    %119 = vector.load %arg11[%c1_59, %c0_60, %c0_61] : memref<16x1x16xf32, #tpu.memory_space<vmem>>, vector<1x1x16xf32>
    %120 = vector.shape_cast %119 : vector<1x1x16xf32> to vector<1x16xf32>
    %121 = vector.shape_cast %86 : vector<16x16xf32> to vector<2x8x16xf32>
    %cst_62 = arith.constant dense<0.000000e+00> : vector<2x16xf32>
    %122 = vector.multi_reduction <add>, %121, %cst_62 [1] : vector<2x8x16xf32> to vector<2x16xf32>
    %123 = vector.shape_cast %122 : vector<2x16xf32> to vector<2x1x16xf32>
    %cst_63 = arith.constant 8.000000e+00 : f32
    %124 = vector.broadcast %cst_63 : f32 to vector<2x1x16xf32>
    %125 = arith.divf %123, %124 : vector<2x1x16xf32>
    %126 = arith.mulf %121, %121 : vector<2x8x16xf32>
    %cst_64 = arith.constant dense<0.000000e+00> : vector<2x16xf32>
    %127 = vector.multi_reduction <add>, %126, %cst_64 [1] : vector<2x8x16xf32> to vector<2x16xf32>
    %128 = vector.shape_cast %127 : vector<2x16xf32> to vector<2x1x16xf32>
    %cst_65 = arith.constant 8.000000e+00 : f32
    %129 = vector.broadcast %cst_65 : f32 to vector<2x1x16xf32>
    %130 = arith.divf %128, %129 : vector<2x1x16xf32>
    %131 = arith.mulf %125, %125 : vector<2x1x16xf32>
    %132 = arith.subf %130, %131 : vector<2x1x16xf32>
    %cst_66 = arith.constant 0.000000e+00 : f32
    %133 = vector.broadcast %cst_66 : f32 to vector<2x1x16xf32>
    %134 = arith.maximumf %132, %133 : vector<2x1x16xf32>
    %135 = vector.broadcast %125 : vector<2x1x16xf32> to vector<2x8x16xf32>
    %136 = arith.subf %121, %135 : vector<2x8x16xf32>
    %cst_67 = arith.constant 9.99999974E-6 : f32
    %137 = vector.broadcast %cst_67 : f32 to vector<2x1x16xf32>
    %138 = arith.addf %134, %137 : vector<2x1x16xf32>
    %139 = math.rsqrt %138 : vector<2x1x16xf32>
    %140 = vector.broadcast %139 : vector<2x1x16xf32> to vector<2x8x16xf32>
    %141 = arith.mulf %136, %140 : vector<2x8x16xf32>
    %142 = vector.shape_cast %141 : vector<2x8x16xf32> to vector<16x16xf32>
    %143 = vector.broadcast %118 : vector<1x16xf32> to vector<16x16xf32>
    %144 = arith.mulf %142, %143 : vector<16x16xf32>
    %145 = vector.broadcast %120 : vector<1x16xf32> to vector<16x16xf32>
    %146 = arith.addf %144, %145 : vector<16x16xf32>
    %147 = arith.negf %146 : vector<16x16xf32>
    %148 = math.exp %147 : vector<16x16xf32>
    %cst_68 = arith.constant 1.000000e+00 : f32
    %149 = vector.broadcast %cst_68 : f32 to vector<16x16xf32>
    %150 = arith.addf %149, %148 : vector<16x16xf32>
    %151 = arith.divf %149, %150 : vector<16x16xf32>
    %152 = arith.mulf %116, %151 : vector<16x16xf32>
    %153 = arith.addf %79, %152 : vector<16x16xf32>
    %cst_69 = arith.constant 0.707106769 : f32
    %154 = vector.broadcast %cst_69 : f32 to vector<16x16xf32>
    %155 = arith.mulf %153, %154 : vector<16x16xf32>
    %156 = arith.truncf %155 : vector<16x16xf32> to vector<16x16xbf16>
    %c1_70 = arith.constant 1 : index
    %c0_71 = arith.constant 0 : index
    %c0_72 = arith.constant 0 : index
    %157 = vector.load %arg6[%c1_70, %c0_71, %c0_72] : memref<9x16x16xbf16, #tpu.memory_space<vmem>>, vector<1x16x16xbf16>
    %158 = vector.shape_cast %157 : vector<1x16x16xbf16> to vector<16x16xbf16>
    %c1_73 = arith.constant 1 : index
    %c0_74 = arith.constant 0 : index
    %c0_75 = arith.constant 0 : index
    %159 = vector.load %arg7[%c1_73, %c0_74, %c0_75] : memref<9x16x16xbf16, #tpu.memory_space<vmem>>, vector<1x16x16xbf16>
    %160 = vector.shape_cast %159 : vector<1x16x16xbf16> to vector<16x16xbf16>
    %cst_76 = arith.constant dense<0.000000e+00> : vector<16x16xf32>
    %161 = tpu.matmul %156, %158, %cst_76 {dimension_numbers = #tpu.dot_dimension_numbers<[1], [0], [0], [1], [0, 0, 1, 1], [], []>} : vector<16x16xbf16>, vector<16x16xbf16>, vector<16x16xf32> -> vector<16x16xf32>
    %cst_77 = arith.constant dense<0.000000e+00> : vector<16x16xf32>
    %162 = tpu.matmul %156, %160, %cst_77 {dimension_numbers = #tpu.dot_dimension_numbers<[1], [0], [0], [1], [0, 0, 1, 1], [], []>} : vector<16x16xbf16>, vector<16x16xbf16>, vector<16x16xf32> -> vector<16x16xf32>
    %c2 = arith.constant 2 : index
    %c0_78 = arith.constant 0 : index
    %c0_79 = arith.constant 0 : index
    %163 = vector.load %arg8[%c2, %c0_78, %c0_79] : memref<16x1x16xf32, #tpu.memory_space<vmem>>, vector<1x1x16xf32>
    %164 = vector.shape_cast %163 : vector<1x1x16xf32> to vector<1x16xf32>
    %c2_80 = arith.constant 2 : index
    %c0_81 = arith.constant 0 : index
    %c0_82 = arith.constant 0 : index
    %165 = vector.load %arg9[%c2_80, %c0_81, %c0_82] : memref<16x1x16xf32, #tpu.memory_space<vmem>>, vector<1x1x16xf32>
    %166 = vector.shape_cast %165 : vector<1x1x16xf32> to vector<1x16xf32>
    %167 = vector.shape_cast %161 : vector<16x16xf32> to vector<2x8x16xf32>
    %cst_83 = arith.constant dense<0.000000e+00> : vector<2x16xf32>
    %168 = vector.multi_reduction <add>, %167, %cst_83 [1] : vector<2x8x16xf32> to vector<2x16xf32>
    %169 = vector.shape_cast %168 : vector<2x16xf32> to vector<2x1x16xf32>
    %cst_84 = arith.constant 8.000000e+00 : f32
    %170 = vector.broadcast %cst_84 : f32 to vector<2x1x16xf32>
    %171 = arith.divf %169, %170 : vector<2x1x16xf32>
    %172 = arith.mulf %167, %167 : vector<2x8x16xf32>
    %cst_85 = arith.constant dense<0.000000e+00> : vector<2x16xf32>
    %173 = vector.multi_reduction <add>, %172, %cst_85 [1] : vector<2x8x16xf32> to vector<2x16xf32>
    %174 = vector.shape_cast %173 : vector<2x16xf32> to vector<2x1x16xf32>
    %cst_86 = arith.constant 8.000000e+00 : f32
    %175 = vector.broadcast %cst_86 : f32 to vector<2x1x16xf32>
    %176 = arith.divf %174, %175 : vector<2x1x16xf32>
    %177 = arith.mulf %171, %171 : vector<2x1x16xf32>
    %178 = arith.subf %176, %177 : vector<2x1x16xf32>
    %cst_87 = arith.constant 0.000000e+00 : f32
    %179 = vector.broadcast %cst_87 : f32 to vector<2x1x16xf32>
    %180 = arith.maximumf %178, %179 : vector<2x1x16xf32>
    %181 = vector.broadcast %171 : vector<2x1x16xf32> to vector<2x8x16xf32>
    %182 = arith.subf %167, %181 : vector<2x8x16xf32>
    %cst_88 = arith.constant 9.99999974E-6 : f32
    %183 = vector.broadcast %cst_88 : f32 to vector<2x1x16xf32>
    %184 = arith.addf %180, %183 : vector<2x1x16xf32>
    %185 = math.rsqrt %184 : vector<2x1x16xf32>
    %186 = vector.broadcast %185 : vector<2x1x16xf32> to vector<2x8x16xf32>
    %187 = arith.mulf %182, %186 : vector<2x8x16xf32>
    %188 = vector.shape_cast %187 : vector<2x8x16xf32> to vector<16x16xf32>
    %189 = vector.broadcast %164 : vector<1x16xf32> to vector<16x16xf32>
    %190 = arith.mulf %188, %189 : vector<16x16xf32>
    %191 = vector.broadcast %166 : vector<1x16xf32> to vector<16x16xf32>
    %192 = arith.addf %190, %191 : vector<16x16xf32>
    %c2_89 = arith.constant 2 : index
    %c0_90 = arith.constant 0 : index
    %c0_91 = arith.constant 0 : index
    %193 = vector.load %arg10[%c2_89, %c0_90, %c0_91] : memref<16x1x16xf32, #tpu.memory_space<vmem>>, vector<1x1x16xf32>
    %194 = vector.shape_cast %193 : vector<1x1x16xf32> to vector<1x16xf32>
    %c2_92 = arith.constant 2 : index
    %c0_93 = arith.constant 0 : index
    %c0_94 = arith.constant 0 : index
    %195 = vector.load %arg11[%c2_92, %c0_93, %c0_94] : memref<16x1x16xf32, #tpu.memory_space<vmem>>, vector<1x1x16xf32>
    %196 = vector.shape_cast %195 : vector<1x1x16xf32> to vector<1x16xf32>
    %197 = vector.shape_cast %162 : vector<16x16xf32> to vector<2x8x16xf32>
    %cst_95 = arith.constant dense<0.000000e+00> : vector<2x16xf32>
    %198 = vector.multi_reduction <add>, %197, %cst_95 [1] : vector<2x8x16xf32> to vector<2x16xf32>
    %199 = vector.shape_cast %198 : vector<2x16xf32> to vector<2x1x16xf32>
    %cst_96 = arith.constant 8.000000e+00 : f32
    %200 = vector.broadcast %cst_96 : f32 to vector<2x1x16xf32>
    %201 = arith.divf %199, %200 : vector<2x1x16xf32>
    %202 = arith.mulf %197, %197 : vector<2x8x16xf32>
    %cst_97 = arith.constant dense<0.000000e+00> : vector<2x16xf32>
    %203 = vector.multi_reduction <add>, %202, %cst_97 [1] : vector<2x8x16xf32> to vector<2x16xf32>
    %204 = vector.shape_cast %203 : vector<2x16xf32> to vector<2x1x16xf32>
    %cst_98 = arith.constant 8.000000e+00 : f32
    %205 = vector.broadcast %cst_98 : f32 to vector<2x1x16xf32>
    %206 = arith.divf %204, %205 : vector<2x1x16xf32>
    %207 = arith.mulf %201, %201 : vector<2x1x16xf32>
    %208 = arith.subf %206, %207 : vector<2x1x16xf32>
    %cst_99 = arith.constant 0.000000e+00 : f32
    %209 = vector.broadcast %cst_99 : f32 to vector<2x1x16xf32>
    %210 = arith.maximumf %208, %209 : vector<2x1x16xf32>
    %211 = vector.broadcast %201 : vector<2x1x16xf32> to vector<2x8x16xf32>
    %212 = arith.subf %197, %211 : vector<2x8x16xf32>
    %cst_100 = arith.constant 9.99999974E-6 : f32
    %213 = vector.broadcast %cst_100 : f32 to vector<2x1x16xf32>
    %214 = arith.addf %210, %213 : vector<2x1x16xf32>
    %215 = math.rsqrt %214 : vector<2x1x16xf32>
    %216 = vector.broadcast %215 : vector<2x1x16xf32> to vector<2x8x16xf32>
    %217 = arith.mulf %212, %216 : vector<2x8x16xf32>
    %218 = vector.shape_cast %217 : vector<2x8x16xf32> to vector<16x16xf32>
    %219 = vector.broadcast %194 : vector<1x16xf32> to vector<16x16xf32>
    %220 = arith.mulf %218, %219 : vector<16x16xf32>
    %221 = vector.broadcast %196 : vector<1x16xf32> to vector<16x16xf32>
    %222 = arith.addf %220, %221 : vector<16x16xf32>
    %223 = arith.negf %222 : vector<16x16xf32>
    %224 = math.exp %223 : vector<16x16xf32>
    %cst_101 = arith.constant 1.000000e+00 : f32
    %225 = vector.broadcast %cst_101 : f32 to vector<16x16xf32>
    %226 = arith.addf %225, %224 : vector<16x16xf32>
    %227 = arith.divf %225, %226 : vector<16x16xf32>
    %228 = arith.mulf %192, %227 : vector<16x16xf32>
    %229 = arith.addf %155, %228 : vector<16x16xf32>
    %cst_102 = arith.constant 0.707106769 : f32
    %230 = vector.broadcast %cst_102 : f32 to vector<16x16xf32>
    %231 = arith.mulf %229, %230 : vector<16x16xf32>
    %232 = arith.truncf %231 : vector<16x16xf32> to vector<16x16xbf16>
    %c2_103 = arith.constant 2 : index
    %c0_104 = arith.constant 0 : index
    %c0_105 = arith.constant 0 : index
    %233 = vector.load %arg6[%c2_103, %c0_104, %c0_105] : memref<9x16x16xbf16, #tpu.memory_space<vmem>>, vector<1x16x16xbf16>
    %234 = vector.shape_cast %233 : vector<1x16x16xbf16> to vector<16x16xbf16>
    %c2_106 = arith.constant 2 : index
    %c0_107 = arith.constant 0 : index
    %c0_108 = arith.constant 0 : index
    %235 = vector.load %arg7[%c2_106, %c0_107, %c0_108] : memref<9x16x16xbf16, #tpu.memory_space<vmem>>, vector<1x16x16xbf16>
    %236 = vector.shape_cast %235 : vector<1x16x16xbf16> to vector<16x16xbf16>
    %cst_109 = arith.constant dense<0.000000e+00> : vector<16x16xf32>
    %237 = tpu.matmul %232, %234, %cst_109 {dimension_numbers = #tpu.dot_dimension_numbers<[1], [0], [0], [1], [0, 0, 1, 1], [], []>} : vector<16x16xbf16>, vector<16x16xbf16>, vector<16x16xf32> -> vector<16x16xf32>
    %cst_110 = arith.constant dense<0.000000e+00> : vector<16x16xf32>
    %238 = tpu.matmul %232, %236, %cst_110 {dimension_numbers = #tpu.dot_dimension_numbers<[1], [0], [0], [1], [0, 0, 1, 1], [], []>} : vector<16x16xbf16>, vector<16x16xbf16>, vector<16x16xf32> -> vector<16x16xf32>
    %c3 = arith.constant 3 : index
    %c0_111 = arith.constant 0 : index
    %c0_112 = arith.constant 0 : index
    %239 = vector.load %arg8[%c3, %c0_111, %c0_112] : memref<16x1x16xf32, #tpu.memory_space<vmem>>, vector<1x1x16xf32>
    %240 = vector.shape_cast %239 : vector<1x1x16xf32> to vector<1x16xf32>
    %c3_113 = arith.constant 3 : index
    %c0_114 = arith.constant 0 : index
    %c0_115 = arith.constant 0 : index
    %241 = vector.load %arg9[%c3_113, %c0_114, %c0_115] : memref<16x1x16xf32, #tpu.memory_space<vmem>>, vector<1x1x16xf32>
    %242 = vector.shape_cast %241 : vector<1x1x16xf32> to vector<1x16xf32>
    %243 = vector.shape_cast %237 : vector<16x16xf32> to vector<2x8x16xf32>
    %cst_116 = arith.constant dense<0.000000e+00> : vector<2x16xf32>
    %244 = vector.multi_reduction <add>, %243, %cst_116 [1] : vector<2x8x16xf32> to vector<2x16xf32>
    %245 = vector.shape_cast %244 : vector<2x16xf32> to vector<2x1x16xf32>
    %cst_117 = arith.constant 8.000000e+00 : f32
    %246 = vector.broadcast %cst_117 : f32 to vector<2x1x16xf32>
    %247 = arith.divf %245, %246 : vector<2x1x16xf32>
    %248 = arith.mulf %243, %243 : vector<2x8x16xf32>
    %cst_118 = arith.constant dense<0.000000e+00> : vector<2x16xf32>
    %249 = vector.multi_reduction <add>, %248, %cst_118 [1] : vector<2x8x16xf32> to vector<2x16xf32>
    %250 = vector.shape_cast %249 : vector<2x16xf32> to vector<2x1x16xf32>
    %cst_119 = arith.constant 8.000000e+00 : f32
    %251 = vector.broadcast %cst_119 : f32 to vector<2x1x16xf32>
    %252 = arith.divf %250, %251 : vector<2x1x16xf32>
    %253 = arith.mulf %247, %247 : vector<2x1x16xf32>
    %254 = arith.subf %252, %253 : vector<2x1x16xf32>
    %cst_120 = arith.constant 0.000000e+00 : f32
    %255 = vector.broadcast %cst_120 : f32 to vector<2x1x16xf32>
    %256 = arith.maximumf %254, %255 : vector<2x1x16xf32>
    %257 = vector.broadcast %247 : vector<2x1x16xf32> to vector<2x8x16xf32>
    %258 = arith.subf %243, %257 : vector<2x8x16xf32>
    %cst_121 = arith.constant 9.99999974E-6 : f32
    %259 = vector.broadcast %cst_121 : f32 to vector<2x1x16xf32>
    %260 = arith.addf %256, %259 : vector<2x1x16xf32>
    %261 = math.rsqrt %260 : vector<2x1x16xf32>
    %262 = vector.broadcast %261 : vector<2x1x16xf32> to vector<2x8x16xf32>
    %263 = arith.mulf %258, %262 : vector<2x8x16xf32>
    %264 = vector.shape_cast %263 : vector<2x8x16xf32> to vector<16x16xf32>
    %265 = vector.broadcast %240 : vector<1x16xf32> to vector<16x16xf32>
    %266 = arith.mulf %264, %265 : vector<16x16xf32>
    %267 = vector.broadcast %242 : vector<1x16xf32> to vector<16x16xf32>
    %268 = arith.addf %266, %267 : vector<16x16xf32>
    %c3_122 = arith.constant 3 : index
    %c0_123 = arith.constant 0 : index
    %c0_124 = arith.constant 0 : index
    %269 = vector.load %arg10[%c3_122, %c0_123, %c0_124] : memref<16x1x16xf32, #tpu.memory_space<vmem>>, vector<1x1x16xf32>
    %270 = vector.shape_cast %269 : vector<1x1x16xf32> to vector<1x16xf32>
    %c3_125 = arith.constant 3 : index
    %c0_126 = arith.constant 0 : index
    %c0_127 = arith.constant 0 : index
    %271 = vector.load %arg11[%c3_125, %c0_126, %c0_127] : memref<16x1x16xf32, #tpu.memory_space<vmem>>, vector<1x1x16xf32>
    %272 = vector.shape_cast %271 : vector<1x1x16xf32> to vector<1x16xf32>
    %273 = vector.shape_cast %238 : vector<16x16xf32> to vector<2x8x16xf32>
    %cst_128 = arith.constant dense<0.000000e+00> : vector<2x16xf32>
    %274 = vector.multi_reduction <add>, %273, %cst_128 [1] : vector<2x8x16xf32> to vector<2x16xf32>
    %275 = vector.shape_cast %274 : vector<2x16xf32> to vector<2x1x16xf32>
    %cst_129 = arith.constant 8.000000e+00 : f32
    %276 = vector.broadcast %cst_129 : f32 to vector<2x1x16xf32>
    %277 = arith.divf %275, %276 : vector<2x1x16xf32>
    %278 = arith.mulf %273, %273 : vector<2x8x16xf32>
    %cst_130 = arith.constant dense<0.000000e+00> : vector<2x16xf32>
    %279 = vector.multi_reduction <add>, %278, %cst_130 [1] : vector<2x8x16xf32> to vector<2x16xf32>
    %280 = vector.shape_cast %279 : vector<2x16xf32> to vector<2x1x16xf32>
    %cst_131 = arith.constant 8.000000e+00 : f32
    %281 = vector.broadcast %cst_131 : f32 to vector<2x1x16xf32>
    %282 = arith.divf %280, %281 : vector<2x1x16xf32>
    %283 = arith.mulf %277, %277 : vector<2x1x16xf32>
    %284 = arith.subf %282, %283 : vector<2x1x16xf32>
    %cst_132 = arith.constant 0.000000e+00 : f32
    %285 = vector.broadcast %cst_132 : f32 to vector<2x1x16xf32>
    %286 = arith.maximumf %284, %285 : vector<2x1x16xf32>
    %287 = vector.broadcast %277 : vector<2x1x16xf32> to vector<2x8x16xf32>
    %288 = arith.subf %273, %287 : vector<2x8x16xf32>
    %cst_133 = arith.constant 9.99999974E-6 : f32
    %289 = vector.broadcast %cst_133 : f32 to vector<2x1x16xf32>
    %290 = arith.addf %286, %289 : vector<2x1x16xf32>
    %291 = math.rsqrt %290 : vector<2x1x16xf32>
    %292 = vector.broadcast %291 : vector<2x1x16xf32> to vector<2x8x16xf32>
    %293 = arith.mulf %288, %292 : vector<2x8x16xf32>
    %294 = vector.shape_cast %293 : vector<2x8x16xf32> to vector<16x16xf32>
    %295 = vector.broadcast %270 : vector<1x16xf32> to vector<16x16xf32>
    %296 = arith.mulf %294, %295 : vector<16x16xf32>
    %297 = vector.broadcast %272 : vector<1x16xf32> to vector<16x16xf32>
    %298 = arith.addf %296, %297 : vector<16x16xf32>
    %299 = arith.negf %298 : vector<16x16xf32>
    %300 = math.exp %299 : vector<16x16xf32>
    %cst_134 = arith.constant 1.000000e+00 : f32
    %301 = vector.broadcast %cst_134 : f32 to vector<16x16xf32>
    %302 = arith.addf %301, %300 : vector<16x16xf32>
    %303 = arith.divf %301, %302 : vector<16x16xf32>
    %304 = arith.mulf %268, %303 : vector<16x16xf32>
    %305 = arith.addf %231, %304 : vector<16x16xf32>
    %cst_135 = arith.constant 0.707106769 : f32
    %306 = vector.broadcast %cst_135 : f32 to vector<16x16xf32>
    %307 = arith.mulf %305, %306 : vector<16x16xf32>
    %cst_136 = arith.constant 1.000000e+00 : f32
    %308 = vector.broadcast %cst_136 : f32 to vector<16x16xf32>
    %cst_137 = arith.constant 0.000000e+00 : f32
    %309 = vector.broadcast %cst_137 : f32 to vector<16x16xf32>
    %cst_138 = arith.constant 0.000000e+00 : f32
    %310 = vector.broadcast %cst_138 : f32 to vector<16x1xf32>
    %311 = arith.truncf %307 : vector<16x16xf32> to vector<16x16xbf16>
    %c0_139 = arith.constant 0 : index
    %c0_140 = arith.constant 0 : index
    %c0_141 = arith.constant 0 : index
    %312 = vector.load %arg12[%c0_139, %c0_140, %c0_141] : memref<3x16x16xbf16, #tpu.memory_space<vmem>>, vector<1x16x16xbf16>
    %313 = vector.shape_cast %312 : vector<1x16x16xbf16> to vector<16x16xbf16>
    %cst_142 = arith.constant dense<0.000000e+00> : vector<16x16xf32>
    %314 = tpu.matmul %311, %313, %cst_142 {dimension_numbers = #tpu.dot_dimension_numbers<[1], [0], [0], [1], [0, 0, 1, 1], [], []>} : vector<16x16xbf16>, vector<16x16xbf16>, vector<16x16xf32> -> vector<16x16xf32>
    %c0_143 = arith.constant 0 : index
    %c0_144 = arith.constant 0 : index
    %c0_145 = arith.constant 0 : index
    %315 = vector.load %arg13[%c0_143, %c0_144, %c0_145] : memref<3x1x16xf32, #tpu.memory_space<vmem>>, vector<1x1x16xf32>
    %316 = vector.shape_cast %315 : vector<1x1x16xf32> to vector<1x16xf32>
    %c0_146 = arith.constant 0 : index
    %c0_147 = arith.constant 0 : index
    %c0_148 = arith.constant 0 : index
    %317 = vector.load %arg14[%c0_146, %c0_147, %c0_148] : memref<3x1x16xf32, #tpu.memory_space<vmem>>, vector<1x1x16xf32>
    %318 = vector.shape_cast %317 : vector<1x1x16xf32> to vector<1x16xf32>
    %319 = vector.shape_cast %314 : vector<16x16xf32> to vector<2x8x16xf32>
    %cst_149 = arith.constant dense<0.000000e+00> : vector<2x16xf32>
    %320 = vector.multi_reduction <add>, %319, %cst_149 [1] : vector<2x8x16xf32> to vector<2x16xf32>
    %321 = vector.shape_cast %320 : vector<2x16xf32> to vector<2x1x16xf32>
    %cst_150 = arith.constant 8.000000e+00 : f32
    %322 = vector.broadcast %cst_150 : f32 to vector<2x1x16xf32>
    %323 = arith.divf %321, %322 : vector<2x1x16xf32>
    %324 = arith.mulf %319, %319 : vector<2x8x16xf32>
    %cst_151 = arith.constant dense<0.000000e+00> : vector<2x16xf32>
    %325 = vector.multi_reduction <add>, %324, %cst_151 [1] : vector<2x8x16xf32> to vector<2x16xf32>
    %326 = vector.shape_cast %325 : vector<2x16xf32> to vector<2x1x16xf32>
    %cst_152 = arith.constant 8.000000e+00 : f32
    %327 = vector.broadcast %cst_152 : f32 to vector<2x1x16xf32>
    %328 = arith.divf %326, %327 : vector<2x1x16xf32>
    %329 = arith.mulf %323, %323 : vector<2x1x16xf32>
    %330 = arith.subf %328, %329 : vector<2x1x16xf32>
    %cst_153 = arith.constant 0.000000e+00 : f32
    %331 = vector.broadcast %cst_153 : f32 to vector<2x1x16xf32>
    %332 = arith.maximumf %330, %331 : vector<2x1x16xf32>
    %333 = vector.broadcast %323 : vector<2x1x16xf32> to vector<2x8x16xf32>
    %334 = arith.subf %319, %333 : vector<2x8x16xf32>
    %cst_154 = arith.constant 9.99999974E-6 : f32
    %335 = vector.broadcast %cst_154 : f32 to vector<2x1x16xf32>
    %336 = arith.addf %332, %335 : vector<2x1x16xf32>
    %337 = math.rsqrt %336 : vector<2x1x16xf32>
    %338 = vector.broadcast %337 : vector<2x1x16xf32> to vector<2x8x16xf32>
    %339 = arith.mulf %334, %338 : vector<2x8x16xf32>
    %340 = vector.shape_cast %339 : vector<2x8x16xf32> to vector<16x16xf32>
    %341 = vector.broadcast %316 : vector<1x16xf32> to vector<16x16xf32>
    %342 = arith.mulf %340, %341 : vector<16x16xf32>
    %343 = vector.broadcast %318 : vector<1x16xf32> to vector<16x16xf32>
    %344 = arith.addf %342, %343 : vector<16x16xf32>
    %345 = arith.mulf %344, %308 : vector<16x16xf32>
    %cst_155 = arith.constant dense<0xFF800000> : vector<16xf32>
    %346 = vector.multi_reduction <maximumf>, %345, %cst_155 [1] : vector<16x16xf32> to vector<16xf32>
    %347 = vector.shape_cast %346 : vector<16xf32> to vector<16x1xf32>
    %348 = vector.broadcast %347 : vector<16x1xf32> to vector<16x16xf32>
    %349 = arith.subf %345, %348 : vector<16x16xf32>
    %cst_156 = arith.constant 1.000000e+00 : f32
    %350 = vector.broadcast %cst_156 : f32 to vector<16x16xf32>
    %c1_i32 = arith.constant 1 : i32
    %351 = tpu.dynamic_rotate %349 by %c1_i32 dim 1 : vector<16x16xf32>, i32 -> vector<16x16xf32>
    %352 = arith.cmpf oge, %351, %349 : vector<16x16xf32>
    %353 = arith.extui %352 : vector<16x16xi1> to vector<16x16xi32>
    %354 = arith.sitofp %353 : vector<16x16xi32> to vector<16x16xf32>
    %355 = arith.addf %350, %354 : vector<16x16xf32>
    %356 = arith.mulf %354, %351 : vector<16x16xf32>
    %357 = arith.addf %349, %356 : vector<16x16xf32>
    %c2_i32 = arith.constant 2 : i32
    %358 = tpu.dynamic_rotate %349 by %c2_i32 dim 1 : vector<16x16xf32>, i32 -> vector<16x16xf32>
    %359 = arith.cmpf oge, %358, %349 : vector<16x16xf32>
    %360 = arith.extui %359 : vector<16x16xi1> to vector<16x16xi32>
    %361 = arith.sitofp %360 : vector<16x16xi32> to vector<16x16xf32>
    %362 = arith.addf %355, %361 : vector<16x16xf32>
    %363 = arith.mulf %361, %358 : vector<16x16xf32>
    %364 = arith.addf %357, %363 : vector<16x16xf32>
    %c3_i32 = arith.constant 3 : i32
    %365 = tpu.dynamic_rotate %349 by %c3_i32 dim 1 : vector<16x16xf32>, i32 -> vector<16x16xf32>
    %366 = arith.cmpf oge, %365, %349 : vector<16x16xf32>
    %367 = arith.extui %366 : vector<16x16xi1> to vector<16x16xi32>
    %368 = arith.sitofp %367 : vector<16x16xi32> to vector<16x16xf32>
    %369 = arith.addf %362, %368 : vector<16x16xf32>
    %370 = arith.mulf %368, %365 : vector<16x16xf32>
    %371 = arith.addf %364, %370 : vector<16x16xf32>
    %c4_i32 = arith.constant 4 : i32
    %372 = tpu.dynamic_rotate %349 by %c4_i32 dim 1 : vector<16x16xf32>, i32 -> vector<16x16xf32>
    %373 = arith.cmpf oge, %372, %349 : vector<16x16xf32>
    %374 = arith.extui %373 : vector<16x16xi1> to vector<16x16xi32>
    %375 = arith.sitofp %374 : vector<16x16xi32> to vector<16x16xf32>
    %376 = arith.addf %369, %375 : vector<16x16xf32>
    %377 = arith.mulf %375, %372 : vector<16x16xf32>
    %378 = arith.addf %371, %377 : vector<16x16xf32>
    %c5_i32 = arith.constant 5 : i32
    %379 = tpu.dynamic_rotate %349 by %c5_i32 dim 1 : vector<16x16xf32>, i32 -> vector<16x16xf32>
    %380 = arith.cmpf oge, %379, %349 : vector<16x16xf32>
    %381 = arith.extui %380 : vector<16x16xi1> to vector<16x16xi32>
    %382 = arith.sitofp %381 : vector<16x16xi32> to vector<16x16xf32>
    %383 = arith.addf %376, %382 : vector<16x16xf32>
    %384 = arith.mulf %382, %379 : vector<16x16xf32>
    %385 = arith.addf %378, %384 : vector<16x16xf32>
    %c6_i32 = arith.constant 6 : i32
    %386 = tpu.dynamic_rotate %349 by %c6_i32 dim 1 : vector<16x16xf32>, i32 -> vector<16x16xf32>
    %387 = arith.cmpf oge, %386, %349 : vector<16x16xf32>
    %388 = arith.extui %387 : vector<16x16xi1> to vector<16x16xi32>
    %389 = arith.sitofp %388 : vector<16x16xi32> to vector<16x16xf32>
    %390 = arith.addf %383, %389 : vector<16x16xf32>
    %391 = arith.mulf %389, %386 : vector<16x16xf32>
    %392 = arith.addf %385, %391 : vector<16x16xf32>
    %c7_i32 = arith.constant 7 : i32
    %393 = tpu.dynamic_rotate %349 by %c7_i32 dim 1 : vector<16x16xf32>, i32 -> vector<16x16xf32>
    %394 = arith.cmpf oge, %393, %349 : vector<16x16xf32>
    %395 = arith.extui %394 : vector<16x16xi1> to vector<16x16xi32>
    %396 = arith.sitofp %395 : vector<16x16xi32> to vector<16x16xf32>
    %397 = arith.addf %390, %396 : vector<16x16xf32>
    %398 = arith.mulf %396, %393 : vector<16x16xf32>
    %399 = arith.addf %392, %398 : vector<16x16xf32>
    %c8_i32 = arith.constant 8 : i32
    %400 = tpu.dynamic_rotate %349 by %c8_i32 dim 1 : vector<16x16xf32>, i32 -> vector<16x16xf32>
    %401 = arith.cmpf oge, %400, %349 : vector<16x16xf32>
    %402 = arith.extui %401 : vector<16x16xi1> to vector<16x16xi32>
    %403 = arith.sitofp %402 : vector<16x16xi32> to vector<16x16xf32>
    %404 = arith.addf %397, %403 : vector<16x16xf32>
    %405 = arith.mulf %403, %400 : vector<16x16xf32>
    %406 = arith.addf %399, %405 : vector<16x16xf32>
    %c9_i32 = arith.constant 9 : i32
    %407 = tpu.dynamic_rotate %349 by %c9_i32 dim 1 : vector<16x16xf32>, i32 -> vector<16x16xf32>
    %408 = arith.cmpf oge, %407, %349 : vector<16x16xf32>
    %409 = arith.extui %408 : vector<16x16xi1> to vector<16x16xi32>
    %410 = arith.sitofp %409 : vector<16x16xi32> to vector<16x16xf32>
    %411 = arith.addf %404, %410 : vector<16x16xf32>
    %412 = arith.mulf %410, %407 : vector<16x16xf32>
    %413 = arith.addf %406, %412 : vector<16x16xf32>
    %c10_i32 = arith.constant 10 : i32
    %414 = tpu.dynamic_rotate %349 by %c10_i32 dim 1 : vector<16x16xf32>, i32 -> vector<16x16xf32>
    %415 = arith.cmpf oge, %414, %349 : vector<16x16xf32>
    %416 = arith.extui %415 : vector<16x16xi1> to vector<16x16xi32>
    %417 = arith.sitofp %416 : vector<16x16xi32> to vector<16x16xf32>
    %418 = arith.addf %411, %417 : vector<16x16xf32>
    %419 = arith.mulf %417, %414 : vector<16x16xf32>
    %420 = arith.addf %413, %419 : vector<16x16xf32>
    %c11_i32 = arith.constant 11 : i32
    %421 = tpu.dynamic_rotate %349 by %c11_i32 dim 1 : vector<16x16xf32>, i32 -> vector<16x16xf32>
    %422 = arith.cmpf oge, %421, %349 : vector<16x16xf32>
    %423 = arith.extui %422 : vector<16x16xi1> to vector<16x16xi32>
    %424 = arith.sitofp %423 : vector<16x16xi32> to vector<16x16xf32>
    %425 = arith.addf %418, %424 : vector<16x16xf32>
    %426 = arith.mulf %424, %421 : vector<16x16xf32>
    %427 = arith.addf %420, %426 : vector<16x16xf32>
    %c12_i32 = arith.constant 12 : i32
    %428 = tpu.dynamic_rotate %349 by %c12_i32 dim 1 : vector<16x16xf32>, i32 -> vector<16x16xf32>
    %429 = arith.cmpf oge, %428, %349 : vector<16x16xf32>
    %430 = arith.extui %429 : vector<16x16xi1> to vector<16x16xi32>
    %431 = arith.sitofp %430 : vector<16x16xi32> to vector<16x16xf32>
    %432 = arith.addf %425, %431 : vector<16x16xf32>
    %433 = arith.mulf %431, %428 : vector<16x16xf32>
    %434 = arith.addf %427, %433 : vector<16x16xf32>
    %c13_i32 = arith.constant 13 : i32
    %435 = tpu.dynamic_rotate %349 by %c13_i32 dim 1 : vector<16x16xf32>, i32 -> vector<16x16xf32>
    %436 = arith.cmpf oge, %435, %349 : vector<16x16xf32>
    %437 = arith.extui %436 : vector<16x16xi1> to vector<16x16xi32>
    %438 = arith.sitofp %437 : vector<16x16xi32> to vector<16x16xf32>
    %439 = arith.addf %432, %438 : vector<16x16xf32>
    %440 = arith.mulf %438, %435 : vector<16x16xf32>
    %441 = arith.addf %434, %440 : vector<16x16xf32>
    %c14_i32 = arith.constant 14 : i32
    %442 = tpu.dynamic_rotate %349 by %c14_i32 dim 1 : vector<16x16xf32>, i32 -> vector<16x16xf32>
    %443 = arith.cmpf oge, %442, %349 : vector<16x16xf32>
    %444 = arith.extui %443 : vector<16x16xi1> to vector<16x16xi32>
    %445 = arith.sitofp %444 : vector<16x16xi32> to vector<16x16xf32>
    %446 = arith.addf %439, %445 : vector<16x16xf32>
    %447 = arith.mulf %445, %442 : vector<16x16xf32>
    %448 = arith.addf %441, %447 : vector<16x16xf32>
    %c15_i32 = arith.constant 15 : i32
    %449 = tpu.dynamic_rotate %349 by %c15_i32 dim 1 : vector<16x16xf32>, i32 -> vector<16x16xf32>
    %450 = arith.cmpf oge, %449, %349 : vector<16x16xf32>
    %451 = arith.extui %450 : vector<16x16xi1> to vector<16x16xi32>
    %452 = arith.sitofp %451 : vector<16x16xi32> to vector<16x16xf32>
    %453 = arith.addf %446, %452 : vector<16x16xf32>
    %454 = arith.mulf %452, %449 : vector<16x16xf32>
    %455 = arith.addf %448, %454 : vector<16x16xf32>
    %456 = arith.mulf %453, %349 : vector<16x16xf32>
    %cst_157 = arith.constant 1.000000e+00 : f32
    %457 = vector.broadcast %cst_157 : f32 to vector<16x16xf32>
    %458 = arith.addf %457, %456 : vector<16x16xf32>
    %459 = arith.cmpf ogt, %458, %455 : vector<16x16xf32>
    %460 = arith.extui %459 : vector<16x16xi1> to vector<16x16xi32>
    %461 = arith.sitofp %460 : vector<16x16xi32> to vector<16x16xf32>
    %cst_158 = arith.constant dense<0.000000e+00> : vector<16xf32>
    %462 = vector.multi_reduction <add>, %461, %cst_158 [1] : vector<16x16xf32> to vector<16xf32>
    %463 = vector.shape_cast %462 : vector<16xf32> to vector<16x1xf32>
    %464 = arith.mulf %349, %461 : vector<16x16xf32>
    %cst_159 = arith.constant dense<0.000000e+00> : vector<16xf32>
    %465 = vector.multi_reduction <add>, %464, %cst_159 [1] : vector<16x16xf32> to vector<16xf32>
    %466 = vector.shape_cast %465 : vector<16xf32> to vector<16x1xf32>
    %cst_160 = arith.constant 1.000000e+00 : f32
    %467 = vector.broadcast %cst_160 : f32 to vector<16x1xf32>
    %468 = arith.subf %466, %467 : vector<16x1xf32>
    %469 = arith.divf %468, %463 : vector<16x1xf32>
    %470 = vector.broadcast %469 : vector<16x1xf32> to vector<16x16xf32>
    %471 = arith.subf %349, %470 : vector<16x16xf32>
    %cst_161 = arith.constant 0.000000e+00 : f32
    %472 = vector.broadcast %cst_161 : f32 to vector<16x16xf32>
    %473 = arith.maximumf %471, %472 : vector<16x16xf32>
    %cst_162 = arith.constant 1.000000e-15 : f32
    %474 = vector.broadcast %cst_162 : f32 to vector<16x16xf32>
    %475 = arith.addf %473, %474 : vector<16x16xf32>
    %476 = math.log %475 : vector<16x16xf32>
    %477 = arith.mulf %473, %476 : vector<16x16xf32>
    %cst_163 = arith.constant dense<0.000000e+00> : vector<16xf32>
    %478 = vector.multi_reduction <add>, %477, %cst_163 [1] : vector<16x16xf32> to vector<16xf32>
    %479 = vector.shape_cast %478 : vector<16xf32> to vector<16x1xf32>
    %480 = arith.addf %310, %479 : vector<16x1xf32>
    %cst_164 = arith.constant 1.300000e+00 : f32
    %481 = vector.broadcast %cst_164 : f32 to vector<16x16xf32>
    %482 = arith.subf %481, %473 : vector<16x16xf32>
    %483 = arith.mulf %482, %308 : vector<16x16xf32>
    %484 = arith.mulf %473, %6 : vector<16x16xf32>
    %485 = arith.truncf %484 : vector<16x16xf32> to vector<16x16xbf16>
    %c0_165 = arith.constant 0 : index
    %c0_166 = arith.constant 0 : index
    %c0_167 = arith.constant 0 : index
    %486 = vector.load %arg4[%c0_165, %c0_166, %c0_167] : memref<1x16x16xbf16, #tpu.memory_space<vmem>>, vector<1x16x16xbf16>
    %487 = vector.shape_cast %486 : vector<1x16x16xbf16> to vector<16x16xbf16>
    %c0_168 = arith.constant 0 : index
    %c0_169 = arith.constant 0 : index
    %c0_170 = arith.constant 0 : index
    %488 = vector.load %arg5[%c0_168, %c0_169, %c0_170] : memref<1x16x16xbf16, #tpu.memory_space<vmem>>, vector<1x16x16xbf16>
    %489 = vector.shape_cast %488 : vector<1x16x16xbf16> to vector<16x16xbf16>
    %cst_171 = arith.constant dense<0.000000e+00> : vector<16x16xf32>
    %490 = tpu.matmul %485, %487, %cst_171 {dimension_numbers = #tpu.dot_dimension_numbers<[1], [0], [0], [1], [0, 0, 1, 1], [], []>} : vector<16x16xbf16>, vector<16x16xbf16>, vector<16x16xf32> -> vector<16x16xf32>
    %cst_172 = arith.constant dense<0.000000e+00> : vector<16x16xf32>
    %491 = tpu.matmul %485, %489, %cst_172 {dimension_numbers = #tpu.dot_dimension_numbers<[1], [0], [0], [1], [0, 0, 1, 1], [], []>} : vector<16x16xbf16>, vector<16x16xbf16>, vector<16x16xf32> -> vector<16x16xf32>
    %c4 = arith.constant 4 : index
    %c0_173 = arith.constant 0 : index
    %c0_174 = arith.constant 0 : index
    %492 = vector.load %arg8[%c4, %c0_173, %c0_174] : memref<16x1x16xf32, #tpu.memory_space<vmem>>, vector<1x1x16xf32>
    %493 = vector.shape_cast %492 : vector<1x1x16xf32> to vector<1x16xf32>
    %c4_175 = arith.constant 4 : index
    %c0_176 = arith.constant 0 : index
    %c0_177 = arith.constant 0 : index
    %494 = vector.load %arg9[%c4_175, %c0_176, %c0_177] : memref<16x1x16xf32, #tpu.memory_space<vmem>>, vector<1x1x16xf32>
    %495 = vector.shape_cast %494 : vector<1x1x16xf32> to vector<1x16xf32>
    %496 = vector.shape_cast %490 : vector<16x16xf32> to vector<2x8x16xf32>
    %cst_178 = arith.constant dense<0.000000e+00> : vector<2x16xf32>
    %497 = vector.multi_reduction <add>, %496, %cst_178 [1] : vector<2x8x16xf32> to vector<2x16xf32>
    %498 = vector.shape_cast %497 : vector<2x16xf32> to vector<2x1x16xf32>
    %cst_179 = arith.constant 8.000000e+00 : f32
    %499 = vector.broadcast %cst_179 : f32 to vector<2x1x16xf32>
    %500 = arith.divf %498, %499 : vector<2x1x16xf32>
    %501 = arith.mulf %496, %496 : vector<2x8x16xf32>
    %cst_180 = arith.constant dense<0.000000e+00> : vector<2x16xf32>
    %502 = vector.multi_reduction <add>, %501, %cst_180 [1] : vector<2x8x16xf32> to vector<2x16xf32>
    %503 = vector.shape_cast %502 : vector<2x16xf32> to vector<2x1x16xf32>
    %cst_181 = arith.constant 8.000000e+00 : f32
    %504 = vector.broadcast %cst_181 : f32 to vector<2x1x16xf32>
    %505 = arith.divf %503, %504 : vector<2x1x16xf32>
    %506 = arith.mulf %500, %500 : vector<2x1x16xf32>
    %507 = arith.subf %505, %506 : vector<2x1x16xf32>
    %cst_182 = arith.constant 0.000000e+00 : f32
    %508 = vector.broadcast %cst_182 : f32 to vector<2x1x16xf32>
    %509 = arith.maximumf %507, %508 : vector<2x1x16xf32>
    %510 = vector.broadcast %500 : vector<2x1x16xf32> to vector<2x8x16xf32>
    %511 = arith.subf %496, %510 : vector<2x8x16xf32>
    %cst_183 = arith.constant 9.99999974E-6 : f32
    %512 = vector.broadcast %cst_183 : f32 to vector<2x1x16xf32>
    %513 = arith.addf %509, %512 : vector<2x1x16xf32>
    %514 = math.rsqrt %513 : vector<2x1x16xf32>
    %515 = vector.broadcast %514 : vector<2x1x16xf32> to vector<2x8x16xf32>
    %516 = arith.mulf %511, %515 : vector<2x8x16xf32>
    %517 = vector.shape_cast %516 : vector<2x8x16xf32> to vector<16x16xf32>
    %518 = vector.broadcast %493 : vector<1x16xf32> to vector<16x16xf32>
    %519 = arith.mulf %517, %518 : vector<16x16xf32>
    %520 = vector.broadcast %495 : vector<1x16xf32> to vector<16x16xf32>
    %521 = arith.addf %519, %520 : vector<16x16xf32>
    %c4_184 = arith.constant 4 : index
    %c0_185 = arith.constant 0 : index
    %c0_186 = arith.constant 0 : index
    %522 = vector.load %arg10[%c4_184, %c0_185, %c0_186] : memref<16x1x16xf32, #tpu.memory_space<vmem>>, vector<1x1x16xf32>
    %523 = vector.shape_cast %522 : vector<1x1x16xf32> to vector<1x16xf32>
    %c4_187 = arith.constant 4 : index
    %c0_188 = arith.constant 0 : index
    %c0_189 = arith.constant 0 : index
    %524 = vector.load %arg11[%c4_187, %c0_188, %c0_189] : memref<16x1x16xf32, #tpu.memory_space<vmem>>, vector<1x1x16xf32>
    %525 = vector.shape_cast %524 : vector<1x1x16xf32> to vector<1x16xf32>
    %526 = vector.shape_cast %491 : vector<16x16xf32> to vector<2x8x16xf32>
    %cst_190 = arith.constant dense<0.000000e+00> : vector<2x16xf32>
    %527 = vector.multi_reduction <add>, %526, %cst_190 [1] : vector<2x8x16xf32> to vector<2x16xf32>
    %528 = vector.shape_cast %527 : vector<2x16xf32> to vector<2x1x16xf32>
    %cst_191 = arith.constant 8.000000e+00 : f32
    %529 = vector.broadcast %cst_191 : f32 to vector<2x1x16xf32>
    %530 = arith.divf %528, %529 : vector<2x1x16xf32>
    %531 = arith.mulf %526, %526 : vector<2x8x16xf32>
    %cst_192 = arith.constant dense<0.000000e+00> : vector<2x16xf32>
    %532 = vector.multi_reduction <add>, %531, %cst_192 [1] : vector<2x8x16xf32> to vector<2x16xf32>
    %533 = vector.shape_cast %532 : vector<2x16xf32> to vector<2x1x16xf32>
    %cst_193 = arith.constant 8.000000e+00 : f32
    %534 = vector.broadcast %cst_193 : f32 to vector<2x1x16xf32>
    %535 = arith.divf %533, %534 : vector<2x1x16xf32>
    %536 = arith.mulf %530, %530 : vector<2x1x16xf32>
    %537 = arith.subf %535, %536 : vector<2x1x16xf32>
    %cst_194 = arith.constant 0.000000e+00 : f32
    %538 = vector.broadcast %cst_194 : f32 to vector<2x1x16xf32>
    %539 = arith.maximumf %537, %538 : vector<2x1x16xf32>
    %540 = vector.broadcast %530 : vector<2x1x16xf32> to vector<2x8x16xf32>
    %541 = arith.subf %526, %540 : vector<2x8x16xf32>
    %cst_195 = arith.constant 9.99999974E-6 : f32
    %542 = vector.broadcast %cst_195 : f32 to vector<2x1x16xf32>
    %543 = arith.addf %539, %542 : vector<2x1x16xf32>
    %544 = math.rsqrt %543 : vector<2x1x16xf32>
    %545 = vector.broadcast %544 : vector<2x1x16xf32> to vector<2x8x16xf32>
    %546 = arith.mulf %541, %545 : vector<2x8x16xf32>
    %547 = vector.shape_cast %546 : vector<2x8x16xf32> to vector<16x16xf32>
    %548 = vector.broadcast %523 : vector<1x16xf32> to vector<16x16xf32>
    %549 = arith.mulf %547, %548 : vector<16x16xf32>
    %550 = vector.broadcast %525 : vector<1x16xf32> to vector<16x16xf32>
    %551 = arith.addf %549, %550 : vector<16x16xf32>
    %552 = arith.negf %551 : vector<16x16xf32>
    %553 = math.exp %552 : vector<16x16xf32>
    %cst_196 = arith.constant 1.000000e+00 : f32
    %554 = vector.broadcast %cst_196 : f32 to vector<16x16xf32>
    %555 = arith.addf %554, %553 : vector<16x16xf32>
    %556 = arith.divf %554, %555 : vector<16x16xf32>
    %557 = arith.mulf %521, %556 : vector<16x16xf32>
    %558 = arith.truncf %557 : vector<16x16xf32> to vector<16x16xbf16>
    %c0_197 = arith.constant 0 : index
    %c0_198 = arith.constant 0 : index
    %c0_199 = arith.constant 0 : index
    %559 = vector.load %arg6[%c0_197, %c0_198, %c0_199] : memref<9x16x16xbf16, #tpu.memory_space<vmem>>, vector<1x16x16xbf16>
    %560 = vector.shape_cast %559 : vector<1x16x16xbf16> to vector<16x16xbf16>
    %c0_200 = arith.constant 0 : index
    %c0_201 = arith.constant 0 : index
    %c0_202 = arith.constant 0 : index
    %561 = vector.load %arg7[%c0_200, %c0_201, %c0_202] : memref<9x16x16xbf16, #tpu.memory_space<vmem>>, vector<1x16x16xbf16>
    %562 = vector.shape_cast %561 : vector<1x16x16xbf16> to vector<16x16xbf16>
    %cst_203 = arith.constant dense<0.000000e+00> : vector<16x16xf32>
    %563 = tpu.matmul %558, %560, %cst_203 {dimension_numbers = #tpu.dot_dimension_numbers<[1], [0], [0], [1], [0, 0, 1, 1], [], []>} : vector<16x16xbf16>, vector<16x16xbf16>, vector<16x16xf32> -> vector<16x16xf32>
    %cst_204 = arith.constant dense<0.000000e+00> : vector<16x16xf32>
    %564 = tpu.matmul %558, %562, %cst_204 {dimension_numbers = #tpu.dot_dimension_numbers<[1], [0], [0], [1], [0, 0, 1, 1], [], []>} : vector<16x16xbf16>, vector<16x16xbf16>, vector<16x16xf32> -> vector<16x16xf32>
    %c5 = arith.constant 5 : index
    %c0_205 = arith.constant 0 : index
    %c0_206 = arith.constant 0 : index
    %565 = vector.load %arg8[%c5, %c0_205, %c0_206] : memref<16x1x16xf32, #tpu.memory_space<vmem>>, vector<1x1x16xf32>
    %566 = vector.shape_cast %565 : vector<1x1x16xf32> to vector<1x16xf32>
    %c5_207 = arith.constant 5 : index
    %c0_208 = arith.constant 0 : index
    %c0_209 = arith.constant 0 : index
    %567 = vector.load %arg9[%c5_207, %c0_208, %c0_209] : memref<16x1x16xf32, #tpu.memory_space<vmem>>, vector<1x1x16xf32>
    %568 = vector.shape_cast %567 : vector<1x1x16xf32> to vector<1x16xf32>
    %569 = vector.shape_cast %563 : vector<16x16xf32> to vector<2x8x16xf32>
    %cst_210 = arith.constant dense<0.000000e+00> : vector<2x16xf32>
    %570 = vector.multi_reduction <add>, %569, %cst_210 [1] : vector<2x8x16xf32> to vector<2x16xf32>
    %571 = vector.shape_cast %570 : vector<2x16xf32> to vector<2x1x16xf32>
    %cst_211 = arith.constant 8.000000e+00 : f32
    %572 = vector.broadcast %cst_211 : f32 to vector<2x1x16xf32>
    %573 = arith.divf %571, %572 : vector<2x1x16xf32>
    %574 = arith.mulf %569, %569 : vector<2x8x16xf32>
    %cst_212 = arith.constant dense<0.000000e+00> : vector<2x16xf32>
    %575 = vector.multi_reduction <add>, %574, %cst_212 [1] : vector<2x8x16xf32> to vector<2x16xf32>
    %576 = vector.shape_cast %575 : vector<2x16xf32> to vector<2x1x16xf32>
    %cst_213 = arith.constant 8.000000e+00 : f32
    %577 = vector.broadcast %cst_213 : f32 to vector<2x1x16xf32>
    %578 = arith.divf %576, %577 : vector<2x1x16xf32>
    %579 = arith.mulf %573, %573 : vector<2x1x16xf32>
    %580 = arith.subf %578, %579 : vector<2x1x16xf32>
    %cst_214 = arith.constant 0.000000e+00 : f32
    %581 = vector.broadcast %cst_214 : f32 to vector<2x1x16xf32>
    %582 = arith.maximumf %580, %581 : vector<2x1x16xf32>
    %583 = vector.broadcast %573 : vector<2x1x16xf32> to vector<2x8x16xf32>
    %584 = arith.subf %569, %583 : vector<2x8x16xf32>
    %cst_215 = arith.constant 9.99999974E-6 : f32
    %585 = vector.broadcast %cst_215 : f32 to vector<2x1x16xf32>
    %586 = arith.addf %582, %585 : vector<2x1x16xf32>
    %587 = math.rsqrt %586 : vector<2x1x16xf32>
    %588 = vector.broadcast %587 : vector<2x1x16xf32> to vector<2x8x16xf32>
    %589 = arith.mulf %584, %588 : vector<2x8x16xf32>
    %590 = vector.shape_cast %589 : vector<2x8x16xf32> to vector<16x16xf32>
    %591 = vector.broadcast %566 : vector<1x16xf32> to vector<16x16xf32>
    %592 = arith.mulf %590, %591 : vector<16x16xf32>
    %593 = vector.broadcast %568 : vector<1x16xf32> to vector<16x16xf32>
    %594 = arith.addf %592, %593 : vector<16x16xf32>
    %c5_216 = arith.constant 5 : index
    %c0_217 = arith.constant 0 : index
    %c0_218 = arith.constant 0 : index
    %595 = vector.load %arg10[%c5_216, %c0_217, %c0_218] : memref<16x1x16xf32, #tpu.memory_space<vmem>>, vector<1x1x16xf32>
    %596 = vector.shape_cast %595 : vector<1x1x16xf32> to vector<1x16xf32>
    %c5_219 = arith.constant 5 : index
    %c0_220 = arith.constant 0 : index
    %c0_221 = arith.constant 0 : index
    %597 = vector.load %arg11[%c5_219, %c0_220, %c0_221] : memref<16x1x16xf32, #tpu.memory_space<vmem>>, vector<1x1x16xf32>
    %598 = vector.shape_cast %597 : vector<1x1x16xf32> to vector<1x16xf32>
    %599 = vector.shape_cast %564 : vector<16x16xf32> to vector<2x8x16xf32>
    %cst_222 = arith.constant dense<0.000000e+00> : vector<2x16xf32>
    %600 = vector.multi_reduction <add>, %599, %cst_222 [1] : vector<2x8x16xf32> to vector<2x16xf32>
    %601 = vector.shape_cast %600 : vector<2x16xf32> to vector<2x1x16xf32>
    %cst_223 = arith.constant 8.000000e+00 : f32
    %602 = vector.broadcast %cst_223 : f32 to vector<2x1x16xf32>
    %603 = arith.divf %601, %602 : vector<2x1x16xf32>
    %604 = arith.mulf %599, %599 : vector<2x8x16xf32>
    %cst_224 = arith.constant dense<0.000000e+00> : vector<2x16xf32>
    %605 = vector.multi_reduction <add>, %604, %cst_224 [1] : vector<2x8x16xf32> to vector<2x16xf32>
    %606 = vector.shape_cast %605 : vector<2x16xf32> to vector<2x1x16xf32>
    %cst_225 = arith.constant 8.000000e+00 : f32
    %607 = vector.broadcast %cst_225 : f32 to vector<2x1x16xf32>
    %608 = arith.divf %606, %607 : vector<2x1x16xf32>
    %609 = arith.mulf %603, %603 : vector<2x1x16xf32>
    %610 = arith.subf %608, %609 : vector<2x1x16xf32>
    %cst_226 = arith.constant 0.000000e+00 : f32
    %611 = vector.broadcast %cst_226 : f32 to vector<2x1x16xf32>
    %612 = arith.maximumf %610, %611 : vector<2x1x16xf32>
    %613 = vector.broadcast %603 : vector<2x1x16xf32> to vector<2x8x16xf32>
    %614 = arith.subf %599, %613 : vector<2x8x16xf32>
    %cst_227 = arith.constant 9.99999974E-6 : f32
    %615 = vector.broadcast %cst_227 : f32 to vector<2x1x16xf32>
    %616 = arith.addf %612, %615 : vector<2x1x16xf32>
    %617 = math.rsqrt %616 : vector<2x1x16xf32>
    %618 = vector.broadcast %617 : vector<2x1x16xf32> to vector<2x8x16xf32>
    %619 = arith.mulf %614, %618 : vector<2x8x16xf32>
    %620 = vector.shape_cast %619 : vector<2x8x16xf32> to vector<16x16xf32>
    %621 = vector.broadcast %596 : vector<1x16xf32> to vector<16x16xf32>
    %622 = arith.mulf %620, %621 : vector<16x16xf32>
    %623 = vector.broadcast %598 : vector<1x16xf32> to vector<16x16xf32>
    %624 = arith.addf %622, %623 : vector<16x16xf32>
    %625 = arith.negf %624 : vector<16x16xf32>
    %626 = math.exp %625 : vector<16x16xf32>
    %cst_228 = arith.constant 1.000000e+00 : f32
    %627 = vector.broadcast %cst_228 : f32 to vector<16x16xf32>
    %628 = arith.addf %627, %626 : vector<16x16xf32>
    %629 = arith.divf %627, %628 : vector<16x16xf32>
    %630 = arith.mulf %594, %629 : vector<16x16xf32>
    %631 = arith.addf %557, %630 : vector<16x16xf32>
    %cst_229 = arith.constant 0.707106769 : f32
    %632 = vector.broadcast %cst_229 : f32 to vector<16x16xf32>
    %633 = arith.mulf %631, %632 : vector<16x16xf32>
    %634 = arith.truncf %633 : vector<16x16xf32> to vector<16x16xbf16>
    %c3_230 = arith.constant 3 : index
    %c0_231 = arith.constant 0 : index
    %c0_232 = arith.constant 0 : index
    %635 = vector.load %arg6[%c3_230, %c0_231, %c0_232] : memref<9x16x16xbf16, #tpu.memory_space<vmem>>, vector<1x16x16xbf16>
    %636 = vector.shape_cast %635 : vector<1x16x16xbf16> to vector<16x16xbf16>
    %c3_233 = arith.constant 3 : index
    %c0_234 = arith.constant 0 : index
    %c0_235 = arith.constant 0 : index
    %637 = vector.load %arg7[%c3_233, %c0_234, %c0_235] : memref<9x16x16xbf16, #tpu.memory_space<vmem>>, vector<1x16x16xbf16>
    %638 = vector.shape_cast %637 : vector<1x16x16xbf16> to vector<16x16xbf16>
    %cst_236 = arith.constant dense<0.000000e+00> : vector<16x16xf32>
    %639 = tpu.matmul %634, %636, %cst_236 {dimension_numbers = #tpu.dot_dimension_numbers<[1], [0], [0], [1], [0, 0, 1, 1], [], []>} : vector<16x16xbf16>, vector<16x16xbf16>, vector<16x16xf32> -> vector<16x16xf32>
    %cst_237 = arith.constant dense<0.000000e+00> : vector<16x16xf32>
    %640 = tpu.matmul %634, %638, %cst_237 {dimension_numbers = #tpu.dot_dimension_numbers<[1], [0], [0], [1], [0, 0, 1, 1], [], []>} : vector<16x16xbf16>, vector<16x16xbf16>, vector<16x16xf32> -> vector<16x16xf32>
    %c6 = arith.constant 6 : index
    %c0_238 = arith.constant 0 : index
    %c0_239 = arith.constant 0 : index
    %641 = vector.load %arg8[%c6, %c0_238, %c0_239] : memref<16x1x16xf32, #tpu.memory_space<vmem>>, vector<1x1x16xf32>
    %642 = vector.shape_cast %641 : vector<1x1x16xf32> to vector<1x16xf32>
    %c6_240 = arith.constant 6 : index
    %c0_241 = arith.constant 0 : index
    %c0_242 = arith.constant 0 : index
    %643 = vector.load %arg9[%c6_240, %c0_241, %c0_242] : memref<16x1x16xf32, #tpu.memory_space<vmem>>, vector<1x1x16xf32>
    %644 = vector.shape_cast %643 : vector<1x1x16xf32> to vector<1x16xf32>
    %645 = vector.shape_cast %639 : vector<16x16xf32> to vector<2x8x16xf32>
    %cst_243 = arith.constant dense<0.000000e+00> : vector<2x16xf32>
    %646 = vector.multi_reduction <add>, %645, %cst_243 [1] : vector<2x8x16xf32> to vector<2x16xf32>
    %647 = vector.shape_cast %646 : vector<2x16xf32> to vector<2x1x16xf32>
    %cst_244 = arith.constant 8.000000e+00 : f32
    %648 = vector.broadcast %cst_244 : f32 to vector<2x1x16xf32>
    %649 = arith.divf %647, %648 : vector<2x1x16xf32>
    %650 = arith.mulf %645, %645 : vector<2x8x16xf32>
    %cst_245 = arith.constant dense<0.000000e+00> : vector<2x16xf32>
    %651 = vector.multi_reduction <add>, %650, %cst_245 [1] : vector<2x8x16xf32> to vector<2x16xf32>
    %652 = vector.shape_cast %651 : vector<2x16xf32> to vector<2x1x16xf32>
    %cst_246 = arith.constant 8.000000e+00 : f32
    %653 = vector.broadcast %cst_246 : f32 to vector<2x1x16xf32>
    %654 = arith.divf %652, %653 : vector<2x1x16xf32>
    %655 = arith.mulf %649, %649 : vector<2x1x16xf32>
    %656 = arith.subf %654, %655 : vector<2x1x16xf32>
    %cst_247 = arith.constant 0.000000e+00 : f32
    %657 = vector.broadcast %cst_247 : f32 to vector<2x1x16xf32>
    %658 = arith.maximumf %656, %657 : vector<2x1x16xf32>
    %659 = vector.broadcast %649 : vector<2x1x16xf32> to vector<2x8x16xf32>
    %660 = arith.subf %645, %659 : vector<2x8x16xf32>
    %cst_248 = arith.constant 9.99999974E-6 : f32
    %661 = vector.broadcast %cst_248 : f32 to vector<2x1x16xf32>
    %662 = arith.addf %658, %661 : vector<2x1x16xf32>
    %663 = math.rsqrt %662 : vector<2x1x16xf32>
    %664 = vector.broadcast %663 : vector<2x1x16xf32> to vector<2x8x16xf32>
    %665 = arith.mulf %660, %664 : vector<2x8x16xf32>
    %666 = vector.shape_cast %665 : vector<2x8x16xf32> to vector<16x16xf32>
    %667 = vector.broadcast %642 : vector<1x16xf32> to vector<16x16xf32>
    %668 = arith.mulf %666, %667 : vector<16x16xf32>
    %669 = vector.broadcast %644 : vector<1x16xf32> to vector<16x16xf32>
    %670 = arith.addf %668, %669 : vector<16x16xf32>
    %c6_249 = arith.constant 6 : index
    %c0_250 = arith.constant 0 : index
    %c0_251 = arith.constant 0 : index
    %671 = vector.load %arg10[%c6_249, %c0_250, %c0_251] : memref<16x1x16xf32, #tpu.memory_space<vmem>>, vector<1x1x16xf32>
    %672 = vector.shape_cast %671 : vector<1x1x16xf32> to vector<1x16xf32>
    %c6_252 = arith.constant 6 : index
    %c0_253 = arith.constant 0 : index
    %c0_254 = arith.constant 0 : index
    %673 = vector.load %arg11[%c6_252, %c0_253, %c0_254] : memref<16x1x16xf32, #tpu.memory_space<vmem>>, vector<1x1x16xf32>
    %674 = vector.shape_cast %673 : vector<1x1x16xf32> to vector<1x16xf32>
    %675 = vector.shape_cast %640 : vector<16x16xf32> to vector<2x8x16xf32>
    %cst_255 = arith.constant dense<0.000000e+00> : vector<2x16xf32>
    %676 = vector.multi_reduction <add>, %675, %cst_255 [1] : vector<2x8x16xf32> to vector<2x16xf32>
    %677 = vector.shape_cast %676 : vector<2x16xf32> to vector<2x1x16xf32>
    %cst_256 = arith.constant 8.000000e+00 : f32
    %678 = vector.broadcast %cst_256 : f32 to vector<2x1x16xf32>
    %679 = arith.divf %677, %678 : vector<2x1x16xf32>
    %680 = arith.mulf %675, %675 : vector<2x8x16xf32>
    %cst_257 = arith.constant dense<0.000000e+00> : vector<2x16xf32>
    %681 = vector.multi_reduction <add>, %680, %cst_257 [1] : vector<2x8x16xf32> to vector<2x16xf32>
    %682 = vector.shape_cast %681 : vector<2x16xf32> to vector<2x1x16xf32>
    %cst_258 = arith.constant 8.000000e+00 : f32
    %683 = vector.broadcast %cst_258 : f32 to vector<2x1x16xf32>
    %684 = arith.divf %682, %683 : vector<2x1x16xf32>
    %685 = arith.mulf %679, %679 : vector<2x1x16xf32>
    %686 = arith.subf %684, %685 : vector<2x1x16xf32>
    %cst_259 = arith.constant 0.000000e+00 : f32
    %687 = vector.broadcast %cst_259 : f32 to vector<2x1x16xf32>
    %688 = arith.maximumf %686, %687 : vector<2x1x16xf32>
    %689 = vector.broadcast %679 : vector<2x1x16xf32> to vector<2x8x16xf32>
    %690 = arith.subf %675, %689 : vector<2x8x16xf32>
    %cst_260 = arith.constant 9.99999974E-6 : f32
    %691 = vector.broadcast %cst_260 : f32 to vector<2x1x16xf32>
    %692 = arith.addf %688, %691 : vector<2x1x16xf32>
    %693 = math.rsqrt %692 : vector<2x1x16xf32>
    %694 = vector.broadcast %693 : vector<2x1x16xf32> to vector<2x8x16xf32>
    %695 = arith.mulf %690, %694 : vector<2x8x16xf32>
    %696 = vector.shape_cast %695 : vector<2x8x16xf32> to vector<16x16xf32>
    %697 = vector.broadcast %672 : vector<1x16xf32> to vector<16x16xf32>
    %698 = arith.mulf %696, %697 : vector<16x16xf32>
    %699 = vector.broadcast %674 : vector<1x16xf32> to vector<16x16xf32>
    %700 = arith.addf %698, %699 : vector<16x16xf32>
    %701 = arith.negf %700 : vector<16x16xf32>
    %702 = math.exp %701 : vector<16x16xf32>
    %cst_261 = arith.constant 1.000000e+00 : f32
    %703 = vector.broadcast %cst_261 : f32 to vector<16x16xf32>
    %704 = arith.addf %703, %702 : vector<16x16xf32>
    %705 = arith.divf %703, %704 : vector<16x16xf32>
    %706 = arith.mulf %670, %705 : vector<16x16xf32>
    %707 = arith.addf %633, %706 : vector<16x16xf32>
    %cst_262 = arith.constant 0.707106769 : f32
    %708 = vector.broadcast %cst_262 : f32 to vector<16x16xf32>
    %709 = arith.mulf %707, %708 : vector<16x16xf32>
    %710 = arith.truncf %709 : vector<16x16xf32> to vector<16x16xbf16>
    %c4_263 = arith.constant 4 : index
    %c0_264 = arith.constant 0 : index
    %c0_265 = arith.constant 0 : index
    %711 = vector.load %arg6[%c4_263, %c0_264, %c0_265] : memref<9x16x16xbf16, #tpu.memory_space<vmem>>, vector<1x16x16xbf16>
    %712 = vector.shape_cast %711 : vector<1x16x16xbf16> to vector<16x16xbf16>
    %c4_266 = arith.constant 4 : index
    %c0_267 = arith.constant 0 : index
    %c0_268 = arith.constant 0 : index
    %713 = vector.load %arg7[%c4_266, %c0_267, %c0_268] : memref<9x16x16xbf16, #tpu.memory_space<vmem>>, vector<1x16x16xbf16>
    %714 = vector.shape_cast %713 : vector<1x16x16xbf16> to vector<16x16xbf16>
    %cst_269 = arith.constant dense<0.000000e+00> : vector<16x16xf32>
    %715 = tpu.matmul %710, %712, %cst_269 {dimension_numbers = #tpu.dot_dimension_numbers<[1], [0], [0], [1], [0, 0, 1, 1], [], []>} : vector<16x16xbf16>, vector<16x16xbf16>, vector<16x16xf32> -> vector<16x16xf32>
    %cst_270 = arith.constant dense<0.000000e+00> : vector<16x16xf32>
    %716 = tpu.matmul %710, %714, %cst_270 {dimension_numbers = #tpu.dot_dimension_numbers<[1], [0], [0], [1], [0, 0, 1, 1], [], []>} : vector<16x16xbf16>, vector<16x16xbf16>, vector<16x16xf32> -> vector<16x16xf32>
    %c7 = arith.constant 7 : index
    %c0_271 = arith.constant 0 : index
    %c0_272 = arith.constant 0 : index
    %717 = vector.load %arg8[%c7, %c0_271, %c0_272] : memref<16x1x16xf32, #tpu.memory_space<vmem>>, vector<1x1x16xf32>
    %718 = vector.shape_cast %717 : vector<1x1x16xf32> to vector<1x16xf32>
    %c7_273 = arith.constant 7 : index
    %c0_274 = arith.constant 0 : index
    %c0_275 = arith.constant 0 : index
    %719 = vector.load %arg9[%c7_273, %c0_274, %c0_275] : memref<16x1x16xf32, #tpu.memory_space<vmem>>, vector<1x1x16xf32>
    %720 = vector.shape_cast %719 : vector<1x1x16xf32> to vector<1x16xf32>
    %721 = vector.shape_cast %715 : vector<16x16xf32> to vector<2x8x16xf32>
    %cst_276 = arith.constant dense<0.000000e+00> : vector<2x16xf32>
    %722 = vector.multi_reduction <add>, %721, %cst_276 [1] : vector<2x8x16xf32> to vector<2x16xf32>
    %723 = vector.shape_cast %722 : vector<2x16xf32> to vector<2x1x16xf32>
    %cst_277 = arith.constant 8.000000e+00 : f32
    %724 = vector.broadcast %cst_277 : f32 to vector<2x1x16xf32>
    %725 = arith.divf %723, %724 : vector<2x1x16xf32>
    %726 = arith.mulf %721, %721 : vector<2x8x16xf32>
    %cst_278 = arith.constant dense<0.000000e+00> : vector<2x16xf32>
    %727 = vector.multi_reduction <add>, %726, %cst_278 [1] : vector<2x8x16xf32> to vector<2x16xf32>
    %728 = vector.shape_cast %727 : vector<2x16xf32> to vector<2x1x16xf32>
    %cst_279 = arith.constant 8.000000e+00 : f32
    %729 = vector.broadcast %cst_279 : f32 to vector<2x1x16xf32>
    %730 = arith.divf %728, %729 : vector<2x1x16xf32>
    %731 = arith.mulf %725, %725 : vector<2x1x16xf32>
    %732 = arith.subf %730, %731 : vector<2x1x16xf32>
    %cst_280 = arith.constant 0.000000e+00 : f32
    %733 = vector.broadcast %cst_280 : f32 to vector<2x1x16xf32>
    %734 = arith.maximumf %732, %733 : vector<2x1x16xf32>
    %735 = vector.broadcast %725 : vector<2x1x16xf32> to vector<2x8x16xf32>
    %736 = arith.subf %721, %735 : vector<2x8x16xf32>
    %cst_281 = arith.constant 9.99999974E-6 : f32
    %737 = vector.broadcast %cst_281 : f32 to vector<2x1x16xf32>
    %738 = arith.addf %734, %737 : vector<2x1x16xf32>
    %739 = math.rsqrt %738 : vector<2x1x16xf32>
    %740 = vector.broadcast %739 : vector<2x1x16xf32> to vector<2x8x16xf32>
    %741 = arith.mulf %736, %740 : vector<2x8x16xf32>
    %742 = vector.shape_cast %741 : vector<2x8x16xf32> to vector<16x16xf32>
    %743 = vector.broadcast %718 : vector<1x16xf32> to vector<16x16xf32>
    %744 = arith.mulf %742, %743 : vector<16x16xf32>
    %745 = vector.broadcast %720 : vector<1x16xf32> to vector<16x16xf32>
    %746 = arith.addf %744, %745 : vector<16x16xf32>
    %c7_282 = arith.constant 7 : index
    %c0_283 = arith.constant 0 : index
    %c0_284 = arith.constant 0 : index
    %747 = vector.load %arg10[%c7_282, %c0_283, %c0_284] : memref<16x1x16xf32, #tpu.memory_space<vmem>>, vector<1x1x16xf32>
    %748 = vector.shape_cast %747 : vector<1x1x16xf32> to vector<1x16xf32>
    %c7_285 = arith.constant 7 : index
    %c0_286 = arith.constant 0 : index
    %c0_287 = arith.constant 0 : index
    %749 = vector.load %arg11[%c7_285, %c0_286, %c0_287] : memref<16x1x16xf32, #tpu.memory_space<vmem>>, vector<1x1x16xf32>
    %750 = vector.shape_cast %749 : vector<1x1x16xf32> to vector<1x16xf32>
    %751 = vector.shape_cast %716 : vector<16x16xf32> to vector<2x8x16xf32>
    %cst_288 = arith.constant dense<0.000000e+00> : vector<2x16xf32>
    %752 = vector.multi_reduction <add>, %751, %cst_288 [1] : vector<2x8x16xf32> to vector<2x16xf32>
    %753 = vector.shape_cast %752 : vector<2x16xf32> to vector<2x1x16xf32>
    %cst_289 = arith.constant 8.000000e+00 : f32
    %754 = vector.broadcast %cst_289 : f32 to vector<2x1x16xf32>
    %755 = arith.divf %753, %754 : vector<2x1x16xf32>
    %756 = arith.mulf %751, %751 : vector<2x8x16xf32>
    %cst_290 = arith.constant dense<0.000000e+00> : vector<2x16xf32>
    %757 = vector.multi_reduction <add>, %756, %cst_290 [1] : vector<2x8x16xf32> to vector<2x16xf32>
    %758 = vector.shape_cast %757 : vector<2x16xf32> to vector<2x1x16xf32>
    %cst_291 = arith.constant 8.000000e+00 : f32
    %759 = vector.broadcast %cst_291 : f32 to vector<2x1x16xf32>
    %760 = arith.divf %758, %759 : vector<2x1x16xf32>
    %761 = arith.mulf %755, %755 : vector<2x1x16xf32>
    %762 = arith.subf %760, %761 : vector<2x1x16xf32>
    %cst_292 = arith.constant 0.000000e+00 : f32
    %763 = vector.broadcast %cst_292 : f32 to vector<2x1x16xf32>
    %764 = arith.maximumf %762, %763 : vector<2x1x16xf32>
    %765 = vector.broadcast %755 : vector<2x1x16xf32> to vector<2x8x16xf32>
    %766 = arith.subf %751, %765 : vector<2x8x16xf32>
    %cst_293 = arith.constant 9.99999974E-6 : f32
    %767 = vector.broadcast %cst_293 : f32 to vector<2x1x16xf32>
    %768 = arith.addf %764, %767 : vector<2x1x16xf32>
    %769 = math.rsqrt %768 : vector<2x1x16xf32>
    %770 = vector.broadcast %769 : vector<2x1x16xf32> to vector<2x8x16xf32>
    %771 = arith.mulf %766, %770 : vector<2x8x16xf32>
    %772 = vector.shape_cast %771 : vector<2x8x16xf32> to vector<16x16xf32>
    %773 = vector.broadcast %748 : vector<1x16xf32> to vector<16x16xf32>
    %774 = arith.mulf %772, %773 : vector<16x16xf32>
    %775 = vector.broadcast %750 : vector<1x16xf32> to vector<16x16xf32>
    %776 = arith.addf %774, %775 : vector<16x16xf32>
    %777 = arith.negf %776 : vector<16x16xf32>
    %778 = math.exp %777 : vector<16x16xf32>
    %cst_294 = arith.constant 1.000000e+00 : f32
    %779 = vector.broadcast %cst_294 : f32 to vector<16x16xf32>
    %780 = arith.addf %779, %778 : vector<16x16xf32>
    %781 = arith.divf %779, %780 : vector<16x16xf32>
    %782 = arith.mulf %746, %781 : vector<16x16xf32>
    %783 = arith.addf %709, %782 : vector<16x16xf32>
    %cst_295 = arith.constant 0.707106769 : f32
    %784 = vector.broadcast %cst_295 : f32 to vector<16x16xf32>
    %785 = arith.mulf %783, %784 : vector<16x16xf32>
    %cst_296 = arith.constant 0.000000e+00 : f32
    %786 = vector.broadcast %cst_296 : f32 to vector<16x16xf32>
    %787 = arith.maximumf %785, %786 : vector<16x16xf32>
    %788 = arith.addf %309, %787 : vector<16x16xf32>
    %789 = arith.truncf %785 : vector<16x16xf32> to vector<16x16xbf16>
    %c1_297 = arith.constant 1 : index
    %c0_298 = arith.constant 0 : index
    %c0_299 = arith.constant 0 : index
    %790 = vector.load %arg12[%c1_297, %c0_298, %c0_299] : memref<3x16x16xbf16, #tpu.memory_space<vmem>>, vector<1x16x16xbf16>
    %791 = vector.shape_cast %790 : vector<1x16x16xbf16> to vector<16x16xbf16>
    %cst_300 = arith.constant dense<0.000000e+00> : vector<16x16xf32>
    %792 = tpu.matmul %789, %791, %cst_300 {dimension_numbers = #tpu.dot_dimension_numbers<[1], [0], [0], [1], [0, 0, 1, 1], [], []>} : vector<16x16xbf16>, vector<16x16xbf16>, vector<16x16xf32> -> vector<16x16xf32>
    %c1_301 = arith.constant 1 : index
    %c0_302 = arith.constant 0 : index
    %c0_303 = arith.constant 0 : index
    %793 = vector.load %arg13[%c1_301, %c0_302, %c0_303] : memref<3x1x16xf32, #tpu.memory_space<vmem>>, vector<1x1x16xf32>
    %794 = vector.shape_cast %793 : vector<1x1x16xf32> to vector<1x16xf32>
    %c1_304 = arith.constant 1 : index
    %c0_305 = arith.constant 0 : index
    %c0_306 = arith.constant 0 : index
    %795 = vector.load %arg14[%c1_304, %c0_305, %c0_306] : memref<3x1x16xf32, #tpu.memory_space<vmem>>, vector<1x1x16xf32>
    %796 = vector.shape_cast %795 : vector<1x1x16xf32> to vector<1x16xf32>
    %797 = vector.shape_cast %792 : vector<16x16xf32> to vector<2x8x16xf32>
    %cst_307 = arith.constant dense<0.000000e+00> : vector<2x16xf32>
    %798 = vector.multi_reduction <add>, %797, %cst_307 [1] : vector<2x8x16xf32> to vector<2x16xf32>
    %799 = vector.shape_cast %798 : vector<2x16xf32> to vector<2x1x16xf32>
    %cst_308 = arith.constant 8.000000e+00 : f32
    %800 = vector.broadcast %cst_308 : f32 to vector<2x1x16xf32>
    %801 = arith.divf %799, %800 : vector<2x1x16xf32>
    %802 = arith.mulf %797, %797 : vector<2x8x16xf32>
    %cst_309 = arith.constant dense<0.000000e+00> : vector<2x16xf32>
    %803 = vector.multi_reduction <add>, %802, %cst_309 [1] : vector<2x8x16xf32> to vector<2x16xf32>
    %804 = vector.shape_cast %803 : vector<2x16xf32> to vector<2x1x16xf32>
    %cst_310 = arith.constant 8.000000e+00 : f32
    %805 = vector.broadcast %cst_310 : f32 to vector<2x1x16xf32>
    %806 = arith.divf %804, %805 : vector<2x1x16xf32>
    %807 = arith.mulf %801, %801 : vector<2x1x16xf32>
    %808 = arith.subf %806, %807 : vector<2x1x16xf32>
    %cst_311 = arith.constant 0.000000e+00 : f32
    %809 = vector.broadcast %cst_311 : f32 to vector<2x1x16xf32>
    %810 = arith.maximumf %808, %809 : vector<2x1x16xf32>
    %811 = vector.broadcast %801 : vector<2x1x16xf32> to vector<2x8x16xf32>
    %812 = arith.subf %797, %811 : vector<2x8x16xf32>
    %cst_312 = arith.constant 9.99999974E-6 : f32
    %813 = vector.broadcast %cst_312 : f32 to vector<2x1x16xf32>
    %814 = arith.addf %810, %813 : vector<2x1x16xf32>
    %815 = math.rsqrt %814 : vector<2x1x16xf32>
    %816 = vector.broadcast %815 : vector<2x1x16xf32> to vector<2x8x16xf32>
    %817 = arith.mulf %812, %816 : vector<2x8x16xf32>
    %818 = vector.shape_cast %817 : vector<2x8x16xf32> to vector<16x16xf32>
    %819 = vector.broadcast %794 : vector<1x16xf32> to vector<16x16xf32>
    %820 = arith.mulf %818, %819 : vector<16x16xf32>
    %821 = vector.broadcast %796 : vector<1x16xf32> to vector<16x16xf32>
    %822 = arith.addf %820, %821 : vector<16x16xf32>
    %823 = arith.mulf %822, %483 : vector<16x16xf32>
    %cst_313 = arith.constant dense<0xFF800000> : vector<16xf32>
    %824 = vector.multi_reduction <maximumf>, %823, %cst_313 [1] : vector<16x16xf32> to vector<16xf32>
    %825 = vector.shape_cast %824 : vector<16xf32> to vector<16x1xf32>
    %826 = vector.broadcast %825 : vector<16x1xf32> to vector<16x16xf32>
    %827 = arith.subf %823, %826 : vector<16x16xf32>
    %cst_314 = arith.constant 1.000000e+00 : f32
    %828 = vector.broadcast %cst_314 : f32 to vector<16x16xf32>
    %c1_i32_315 = arith.constant 1 : i32
    %829 = tpu.dynamic_rotate %827 by %c1_i32_315 dim 1 : vector<16x16xf32>, i32 -> vector<16x16xf32>
    %830 = arith.cmpf oge, %829, %827 : vector<16x16xf32>
    %831 = arith.extui %830 : vector<16x16xi1> to vector<16x16xi32>
    %832 = arith.sitofp %831 : vector<16x16xi32> to vector<16x16xf32>
    %833 = arith.addf %828, %832 : vector<16x16xf32>
    %834 = arith.mulf %832, %829 : vector<16x16xf32>
    %835 = arith.addf %827, %834 : vector<16x16xf32>
    %c2_i32_316 = arith.constant 2 : i32
    %836 = tpu.dynamic_rotate %827 by %c2_i32_316 dim 1 : vector<16x16xf32>, i32 -> vector<16x16xf32>
    %837 = arith.cmpf oge, %836, %827 : vector<16x16xf32>
    %838 = arith.extui %837 : vector<16x16xi1> to vector<16x16xi32>
    %839 = arith.sitofp %838 : vector<16x16xi32> to vector<16x16xf32>
    %840 = arith.addf %833, %839 : vector<16x16xf32>
    %841 = arith.mulf %839, %836 : vector<16x16xf32>
    %842 = arith.addf %835, %841 : vector<16x16xf32>
    %c3_i32_317 = arith.constant 3 : i32
    %843 = tpu.dynamic_rotate %827 by %c3_i32_317 dim 1 : vector<16x16xf32>, i32 -> vector<16x16xf32>
    %844 = arith.cmpf oge, %843, %827 : vector<16x16xf32>
    %845 = arith.extui %844 : vector<16x16xi1> to vector<16x16xi32>
    %846 = arith.sitofp %845 : vector<16x16xi32> to vector<16x16xf32>
    %847 = arith.addf %840, %846 : vector<16x16xf32>
    %848 = arith.mulf %846, %843 : vector<16x16xf32>
    %849 = arith.addf %842, %848 : vector<16x16xf32>
    %c4_i32_318 = arith.constant 4 : i32
    %850 = tpu.dynamic_rotate %827 by %c4_i32_318 dim 1 : vector<16x16xf32>, i32 -> vector<16x16xf32>
    %851 = arith.cmpf oge, %850, %827 : vector<16x16xf32>
    %852 = arith.extui %851 : vector<16x16xi1> to vector<16x16xi32>
    %853 = arith.sitofp %852 : vector<16x16xi32> to vector<16x16xf32>
    %854 = arith.addf %847, %853 : vector<16x16xf32>
    %855 = arith.mulf %853, %850 : vector<16x16xf32>
    %856 = arith.addf %849, %855 : vector<16x16xf32>
    %c5_i32_319 = arith.constant 5 : i32
    %857 = tpu.dynamic_rotate %827 by %c5_i32_319 dim 1 : vector<16x16xf32>, i32 -> vector<16x16xf32>
    %858 = arith.cmpf oge, %857, %827 : vector<16x16xf32>
    %859 = arith.extui %858 : vector<16x16xi1> to vector<16x16xi32>
    %860 = arith.sitofp %859 : vector<16x16xi32> to vector<16x16xf32>
    %861 = arith.addf %854, %860 : vector<16x16xf32>
    %862 = arith.mulf %860, %857 : vector<16x16xf32>
    %863 = arith.addf %856, %862 : vector<16x16xf32>
    %c6_i32_320 = arith.constant 6 : i32
    %864 = tpu.dynamic_rotate %827 by %c6_i32_320 dim 1 : vector<16x16xf32>, i32 -> vector<16x16xf32>
    %865 = arith.cmpf oge, %864, %827 : vector<16x16xf32>
    %866 = arith.extui %865 : vector<16x16xi1> to vector<16x16xi32>
    %867 = arith.sitofp %866 : vector<16x16xi32> to vector<16x16xf32>
    %868 = arith.addf %861, %867 : vector<16x16xf32>
    %869 = arith.mulf %867, %864 : vector<16x16xf32>
    %870 = arith.addf %863, %869 : vector<16x16xf32>
    %c7_i32_321 = arith.constant 7 : i32
    %871 = tpu.dynamic_rotate %827 by %c7_i32_321 dim 1 : vector<16x16xf32>, i32 -> vector<16x16xf32>
    %872 = arith.cmpf oge, %871, %827 : vector<16x16xf32>
    %873 = arith.extui %872 : vector<16x16xi1> to vector<16x16xi32>
    %874 = arith.sitofp %873 : vector<16x16xi32> to vector<16x16xf32>
    %875 = arith.addf %868, %874 : vector<16x16xf32>
    %876 = arith.mulf %874, %871 : vector<16x16xf32>
    %877 = arith.addf %870, %876 : vector<16x16xf32>
    %c8_i32_322 = arith.constant 8 : i32
    %878 = tpu.dynamic_rotate %827 by %c8_i32_322 dim 1 : vector<16x16xf32>, i32 -> vector<16x16xf32>
    %879 = arith.cmpf oge, %878, %827 : vector<16x16xf32>
    %880 = arith.extui %879 : vector<16x16xi1> to vector<16x16xi32>
    %881 = arith.sitofp %880 : vector<16x16xi32> to vector<16x16xf32>
    %882 = arith.addf %875, %881 : vector<16x16xf32>
    %883 = arith.mulf %881, %878 : vector<16x16xf32>
    %884 = arith.addf %877, %883 : vector<16x16xf32>
    %c9_i32_323 = arith.constant 9 : i32
    %885 = tpu.dynamic_rotate %827 by %c9_i32_323 dim 1 : vector<16x16xf32>, i32 -> vector<16x16xf32>
    %886 = arith.cmpf oge, %885, %827 : vector<16x16xf32>
    %887 = arith.extui %886 : vector<16x16xi1> to vector<16x16xi32>
    %888 = arith.sitofp %887 : vector<16x16xi32> to vector<16x16xf32>
    %889 = arith.addf %882, %888 : vector<16x16xf32>
    %890 = arith.mulf %888, %885 : vector<16x16xf32>
    %891 = arith.addf %884, %890 : vector<16x16xf32>
    %c10_i32_324 = arith.constant 10 : i32
    %892 = tpu.dynamic_rotate %827 by %c10_i32_324 dim 1 : vector<16x16xf32>, i32 -> vector<16x16xf32>
    %893 = arith.cmpf oge, %892, %827 : vector<16x16xf32>
    %894 = arith.extui %893 : vector<16x16xi1> to vector<16x16xi32>
    %895 = arith.sitofp %894 : vector<16x16xi32> to vector<16x16xf32>
    %896 = arith.addf %889, %895 : vector<16x16xf32>
    %897 = arith.mulf %895, %892 : vector<16x16xf32>
    %898 = arith.addf %891, %897 : vector<16x16xf32>
    %c11_i32_325 = arith.constant 11 : i32
    %899 = tpu.dynamic_rotate %827 by %c11_i32_325 dim 1 : vector<16x16xf32>, i32 -> vector<16x16xf32>
    %900 = arith.cmpf oge, %899, %827 : vector<16x16xf32>
    %901 = arith.extui %900 : vector<16x16xi1> to vector<16x16xi32>
    %902 = arith.sitofp %901 : vector<16x16xi32> to vector<16x16xf32>
    %903 = arith.addf %896, %902 : vector<16x16xf32>
    %904 = arith.mulf %902, %899 : vector<16x16xf32>
    %905 = arith.addf %898, %904 : vector<16x16xf32>
    %c12_i32_326 = arith.constant 12 : i32
    %906 = tpu.dynamic_rotate %827 by %c12_i32_326 dim 1 : vector<16x16xf32>, i32 -> vector<16x16xf32>
    %907 = arith.cmpf oge, %906, %827 : vector<16x16xf32>
    %908 = arith.extui %907 : vector<16x16xi1> to vector<16x16xi32>
    %909 = arith.sitofp %908 : vector<16x16xi32> to vector<16x16xf32>
    %910 = arith.addf %903, %909 : vector<16x16xf32>
    %911 = arith.mulf %909, %906 : vector<16x16xf32>
    %912 = arith.addf %905, %911 : vector<16x16xf32>
    %c13_i32_327 = arith.constant 13 : i32
    %913 = tpu.dynamic_rotate %827 by %c13_i32_327 dim 1 : vector<16x16xf32>, i32 -> vector<16x16xf32>
    %914 = arith.cmpf oge, %913, %827 : vector<16x16xf32>
    %915 = arith.extui %914 : vector<16x16xi1> to vector<16x16xi32>
    %916 = arith.sitofp %915 : vector<16x16xi32> to vector<16x16xf32>
    %917 = arith.addf %910, %916 : vector<16x16xf32>
    %918 = arith.mulf %916, %913 : vector<16x16xf32>
    %919 = arith.addf %912, %918 : vector<16x16xf32>
    %c14_i32_328 = arith.constant 14 : i32
    %920 = tpu.dynamic_rotate %827 by %c14_i32_328 dim 1 : vector<16x16xf32>, i32 -> vector<16x16xf32>
    %921 = arith.cmpf oge, %920, %827 : vector<16x16xf32>
    %922 = arith.extui %921 : vector<16x16xi1> to vector<16x16xi32>
    %923 = arith.sitofp %922 : vector<16x16xi32> to vector<16x16xf32>
    %924 = arith.addf %917, %923 : vector<16x16xf32>
    %925 = arith.mulf %923, %920 : vector<16x16xf32>
    %926 = arith.addf %919, %925 : vector<16x16xf32>
    %c15_i32_329 = arith.constant 15 : i32
    %927 = tpu.dynamic_rotate %827 by %c15_i32_329 dim 1 : vector<16x16xf32>, i32 -> vector<16x16xf32>
    %928 = arith.cmpf oge, %927, %827 : vector<16x16xf32>
    %929 = arith.extui %928 : vector<16x16xi1> to vector<16x16xi32>
    %930 = arith.sitofp %929 : vector<16x16xi32> to vector<16x16xf32>
    %931 = arith.addf %924, %930 : vector<16x16xf32>
    %932 = arith.mulf %930, %927 : vector<16x16xf32>
    %933 = arith.addf %926, %932 : vector<16x16xf32>
    %934 = arith.mulf %931, %827 : vector<16x16xf32>
    %cst_330 = arith.constant 1.000000e+00 : f32
    %935 = vector.broadcast %cst_330 : f32 to vector<16x16xf32>
    %936 = arith.addf %935, %934 : vector<16x16xf32>
    %937 = arith.cmpf ogt, %936, %933 : vector<16x16xf32>
    %938 = arith.extui %937 : vector<16x16xi1> to vector<16x16xi32>
    %939 = arith.sitofp %938 : vector<16x16xi32> to vector<16x16xf32>
    %cst_331 = arith.constant dense<0.000000e+00> : vector<16xf32>
    %940 = vector.multi_reduction <add>, %939, %cst_331 [1] : vector<16x16xf32> to vector<16xf32>
    %941 = vector.shape_cast %940 : vector<16xf32> to vector<16x1xf32>
    %942 = arith.mulf %827, %939 : vector<16x16xf32>
    %cst_332 = arith.constant dense<0.000000e+00> : vector<16xf32>
    %943 = vector.multi_reduction <add>, %942, %cst_332 [1] : vector<16x16xf32> to vector<16xf32>
    %944 = vector.shape_cast %943 : vector<16xf32> to vector<16x1xf32>
    %cst_333 = arith.constant 1.000000e+00 : f32
    %945 = vector.broadcast %cst_333 : f32 to vector<16x1xf32>
    %946 = arith.subf %944, %945 : vector<16x1xf32>
    %947 = arith.divf %946, %941 : vector<16x1xf32>
    %948 = vector.broadcast %947 : vector<16x1xf32> to vector<16x16xf32>
    %949 = arith.subf %827, %948 : vector<16x16xf32>
    %cst_334 = arith.constant 0.000000e+00 : f32
    %950 = vector.broadcast %cst_334 : f32 to vector<16x16xf32>
    %951 = arith.maximumf %949, %950 : vector<16x16xf32>
    %cst_335 = arith.constant 1.000000e-15 : f32
    %952 = vector.broadcast %cst_335 : f32 to vector<16x16xf32>
    %953 = arith.addf %951, %952 : vector<16x16xf32>
    %954 = math.log %953 : vector<16x16xf32>
    %955 = arith.mulf %951, %954 : vector<16x16xf32>
    %cst_336 = arith.constant dense<0.000000e+00> : vector<16xf32>
    %956 = vector.multi_reduction <add>, %955, %cst_336 [1] : vector<16x16xf32> to vector<16xf32>
    %957 = vector.shape_cast %956 : vector<16xf32> to vector<16x1xf32>
    %958 = arith.addf %480, %957 : vector<16x1xf32>
    %cst_337 = arith.constant 1.300000e+00 : f32
    %959 = vector.broadcast %cst_337 : f32 to vector<16x16xf32>
    %960 = arith.subf %959, %951 : vector<16x16xf32>
    %961 = arith.mulf %960, %483 : vector<16x16xf32>
    %962 = arith.mulf %951, %6 : vector<16x16xf32>
    %963 = arith.truncf %962 : vector<16x16xf32> to vector<16x16xbf16>
    %c0_338 = arith.constant 0 : index
    %c0_339 = arith.constant 0 : index
    %c0_340 = arith.constant 0 : index
    %964 = vector.load %arg4[%c0_338, %c0_339, %c0_340] : memref<1x16x16xbf16, #tpu.memory_space<vmem>>, vector<1x16x16xbf16>
    %965 = vector.shape_cast %964 : vector<1x16x16xbf16> to vector<16x16xbf16>
    %c0_341 = arith.constant 0 : index
    %c0_342 = arith.constant 0 : index
    %c0_343 = arith.constant 0 : index
    %966 = vector.load %arg5[%c0_341, %c0_342, %c0_343] : memref<1x16x16xbf16, #tpu.memory_space<vmem>>, vector<1x16x16xbf16>
    %967 = vector.shape_cast %966 : vector<1x16x16xbf16> to vector<16x16xbf16>
    %cst_344 = arith.constant dense<0.000000e+00> : vector<16x16xf32>
    %968 = tpu.matmul %963, %965, %cst_344 {dimension_numbers = #tpu.dot_dimension_numbers<[1], [0], [0], [1], [0, 0, 1, 1], [], []>} : vector<16x16xbf16>, vector<16x16xbf16>, vector<16x16xf32> -> vector<16x16xf32>
    %cst_345 = arith.constant dense<0.000000e+00> : vector<16x16xf32>
    %969 = tpu.matmul %963, %967, %cst_345 {dimension_numbers = #tpu.dot_dimension_numbers<[1], [0], [0], [1], [0, 0, 1, 1], [], []>} : vector<16x16xbf16>, vector<16x16xbf16>, vector<16x16xf32> -> vector<16x16xf32>
    %c8 = arith.constant 8 : index
    %c0_346 = arith.constant 0 : index
    %c0_347 = arith.constant 0 : index
    %970 = vector.load %arg8[%c8, %c0_346, %c0_347] : memref<16x1x16xf32, #tpu.memory_space<vmem>>, vector<1x1x16xf32>
    %971 = vector.shape_cast %970 : vector<1x1x16xf32> to vector<1x16xf32>
    %c8_348 = arith.constant 8 : index
    %c0_349 = arith.constant 0 : index
    %c0_350 = arith.constant 0 : index
    %972 = vector.load %arg9[%c8_348, %c0_349, %c0_350] : memref<16x1x16xf32, #tpu.memory_space<vmem>>, vector<1x1x16xf32>
    %973 = vector.shape_cast %972 : vector<1x1x16xf32> to vector<1x16xf32>
    %974 = vector.shape_cast %968 : vector<16x16xf32> to vector<2x8x16xf32>
    %cst_351 = arith.constant dense<0.000000e+00> : vector<2x16xf32>
    %975 = vector.multi_reduction <add>, %974, %cst_351 [1] : vector<2x8x16xf32> to vector<2x16xf32>
    %976 = vector.shape_cast %975 : vector<2x16xf32> to vector<2x1x16xf32>
    %cst_352 = arith.constant 8.000000e+00 : f32
    %977 = vector.broadcast %cst_352 : f32 to vector<2x1x16xf32>
    %978 = arith.divf %976, %977 : vector<2x1x16xf32>
    %979 = arith.mulf %974, %974 : vector<2x8x16xf32>
    %cst_353 = arith.constant dense<0.000000e+00> : vector<2x16xf32>
    %980 = vector.multi_reduction <add>, %979, %cst_353 [1] : vector<2x8x16xf32> to vector<2x16xf32>
    %981 = vector.shape_cast %980 : vector<2x16xf32> to vector<2x1x16xf32>
    %cst_354 = arith.constant 8.000000e+00 : f32
    %982 = vector.broadcast %cst_354 : f32 to vector<2x1x16xf32>
    %983 = arith.divf %981, %982 : vector<2x1x16xf32>
    %984 = arith.mulf %978, %978 : vector<2x1x16xf32>
    %985 = arith.subf %983, %984 : vector<2x1x16xf32>
    %cst_355 = arith.constant 0.000000e+00 : f32
    %986 = vector.broadcast %cst_355 : f32 to vector<2x1x16xf32>
    %987 = arith.maximumf %985, %986 : vector<2x1x16xf32>
    %988 = vector.broadcast %978 : vector<2x1x16xf32> to vector<2x8x16xf32>
    %989 = arith.subf %974, %988 : vector<2x8x16xf32>
    %cst_356 = arith.constant 9.99999974E-6 : f32
    %990 = vector.broadcast %cst_356 : f32 to vector<2x1x16xf32>
    %991 = arith.addf %987, %990 : vector<2x1x16xf32>
    %992 = math.rsqrt %991 : vector<2x1x16xf32>
    %993 = vector.broadcast %992 : vector<2x1x16xf32> to vector<2x8x16xf32>
    %994 = arith.mulf %989, %993 : vector<2x8x16xf32>
    %995 = vector.shape_cast %994 : vector<2x8x16xf32> to vector<16x16xf32>
    %996 = vector.broadcast %971 : vector<1x16xf32> to vector<16x16xf32>
    %997 = arith.mulf %995, %996 : vector<16x16xf32>
    %998 = vector.broadcast %973 : vector<1x16xf32> to vector<16x16xf32>
    %999 = arith.addf %997, %998 : vector<16x16xf32>
    %c8_357 = arith.constant 8 : index
    %c0_358 = arith.constant 0 : index
    %c0_359 = arith.constant 0 : index
    %1000 = vector.load %arg10[%c8_357, %c0_358, %c0_359] : memref<16x1x16xf32, #tpu.memory_space<vmem>>, vector<1x1x16xf32>
    %1001 = vector.shape_cast %1000 : vector<1x1x16xf32> to vector<1x16xf32>
    %c8_360 = arith.constant 8 : index
    %c0_361 = arith.constant 0 : index
    %c0_362 = arith.constant 0 : index
    %1002 = vector.load %arg11[%c8_360, %c0_361, %c0_362] : memref<16x1x16xf32, #tpu.memory_space<vmem>>, vector<1x1x16xf32>
    %1003 = vector.shape_cast %1002 : vector<1x1x16xf32> to vector<1x16xf32>
    %1004 = vector.shape_cast %969 : vector<16x16xf32> to vector<2x8x16xf32>
    %cst_363 = arith.constant dense<0.000000e+00> : vector<2x16xf32>
    %1005 = vector.multi_reduction <add>, %1004, %cst_363 [1] : vector<2x8x16xf32> to vector<2x16xf32>
    %1006 = vector.shape_cast %1005 : vector<2x16xf32> to vector<2x1x16xf32>
    %cst_364 = arith.constant 8.000000e+00 : f32
    %1007 = vector.broadcast %cst_364 : f32 to vector<2x1x16xf32>
    %1008 = arith.divf %1006, %1007 : vector<2x1x16xf32>
    %1009 = arith.mulf %1004, %1004 : vector<2x8x16xf32>
    %cst_365 = arith.constant dense<0.000000e+00> : vector<2x16xf32>
    %1010 = vector.multi_reduction <add>, %1009, %cst_365 [1] : vector<2x8x16xf32> to vector<2x16xf32>
    %1011 = vector.shape_cast %1010 : vector<2x16xf32> to vector<2x1x16xf32>
    %cst_366 = arith.constant 8.000000e+00 : f32
    %1012 = vector.broadcast %cst_366 : f32 to vector<2x1x16xf32>
    %1013 = arith.divf %1011, %1012 : vector<2x1x16xf32>
    %1014 = arith.mulf %1008, %1008 : vector<2x1x16xf32>
    %1015 = arith.subf %1013, %1014 : vector<2x1x16xf32>
    %cst_367 = arith.constant 0.000000e+00 : f32
    %1016 = vector.broadcast %cst_367 : f32 to vector<2x1x16xf32>
    %1017 = arith.maximumf %1015, %1016 : vector<2x1x16xf32>
    %1018 = vector.broadcast %1008 : vector<2x1x16xf32> to vector<2x8x16xf32>
    %1019 = arith.subf %1004, %1018 : vector<2x8x16xf32>
    %cst_368 = arith.constant 9.99999974E-6 : f32
    %1020 = vector.broadcast %cst_368 : f32 to vector<2x1x16xf32>
    %1021 = arith.addf %1017, %1020 : vector<2x1x16xf32>
    %1022 = math.rsqrt %1021 : vector<2x1x16xf32>
    %1023 = vector.broadcast %1022 : vector<2x1x16xf32> to vector<2x8x16xf32>
    %1024 = arith.mulf %1019, %1023 : vector<2x8x16xf32>
    %1025 = vector.shape_cast %1024 : vector<2x8x16xf32> to vector<16x16xf32>
    %1026 = vector.broadcast %1001 : vector<1x16xf32> to vector<16x16xf32>
    %1027 = arith.mulf %1025, %1026 : vector<16x16xf32>
    %1028 = vector.broadcast %1003 : vector<1x16xf32> to vector<16x16xf32>
    %1029 = arith.addf %1027, %1028 : vector<16x16xf32>
    %1030 = arith.negf %1029 : vector<16x16xf32>
    %1031 = math.exp %1030 : vector<16x16xf32>
    %cst_369 = arith.constant 1.000000e+00 : f32
    %1032 = vector.broadcast %cst_369 : f32 to vector<16x16xf32>
    %1033 = arith.addf %1032, %1031 : vector<16x16xf32>
    %1034 = arith.divf %1032, %1033 : vector<16x16xf32>
    %1035 = arith.mulf %999, %1034 : vector<16x16xf32>
    %1036 = arith.truncf %1035 : vector<16x16xf32> to vector<16x16xbf16>
    %c0_370 = arith.constant 0 : index
    %c0_371 = arith.constant 0 : index
    %c0_372 = arith.constant 0 : index
    %1037 = vector.load %arg6[%c0_370, %c0_371, %c0_372] : memref<9x16x16xbf16, #tpu.memory_space<vmem>>, vector<1x16x16xbf16>
    %1038 = vector.shape_cast %1037 : vector<1x16x16xbf16> to vector<16x16xbf16>
    %c0_373 = arith.constant 0 : index
    %c0_374 = arith.constant 0 : index
    %c0_375 = arith.constant 0 : index
    %1039 = vector.load %arg7[%c0_373, %c0_374, %c0_375] : memref<9x16x16xbf16, #tpu.memory_space<vmem>>, vector<1x16x16xbf16>
    %1040 = vector.shape_cast %1039 : vector<1x16x16xbf16> to vector<16x16xbf16>
    %cst_376 = arith.constant dense<0.000000e+00> : vector<16x16xf32>
    %1041 = tpu.matmul %1036, %1038, %cst_376 {dimension_numbers = #tpu.dot_dimension_numbers<[1], [0], [0], [1], [0, 0, 1, 1], [], []>} : vector<16x16xbf16>, vector<16x16xbf16>, vector<16x16xf32> -> vector<16x16xf32>
    %cst_377 = arith.constant dense<0.000000e+00> : vector<16x16xf32>
    %1042 = tpu.matmul %1036, %1040, %cst_377 {dimension_numbers = #tpu.dot_dimension_numbers<[1], [0], [0], [1], [0, 0, 1, 1], [], []>} : vector<16x16xbf16>, vector<16x16xbf16>, vector<16x16xf32> -> vector<16x16xf32>
    %c9 = arith.constant 9 : index
    %c0_378 = arith.constant 0 : index
    %c0_379 = arith.constant 0 : index
    %1043 = vector.load %arg8[%c9, %c0_378, %c0_379] : memref<16x1x16xf32, #tpu.memory_space<vmem>>, vector<1x1x16xf32>
    %1044 = vector.shape_cast %1043 : vector<1x1x16xf32> to vector<1x16xf32>
    %c9_380 = arith.constant 9 : index
    %c0_381 = arith.constant 0 : index
    %c0_382 = arith.constant 0 : index
    %1045 = vector.load %arg9[%c9_380, %c0_381, %c0_382] : memref<16x1x16xf32, #tpu.memory_space<vmem>>, vector<1x1x16xf32>
    %1046 = vector.shape_cast %1045 : vector<1x1x16xf32> to vector<1x16xf32>
    %1047 = vector.shape_cast %1041 : vector<16x16xf32> to vector<2x8x16xf32>
    %cst_383 = arith.constant dense<0.000000e+00> : vector<2x16xf32>
    %1048 = vector.multi_reduction <add>, %1047, %cst_383 [1] : vector<2x8x16xf32> to vector<2x16xf32>
    %1049 = vector.shape_cast %1048 : vector<2x16xf32> to vector<2x1x16xf32>
    %cst_384 = arith.constant 8.000000e+00 : f32
    %1050 = vector.broadcast %cst_384 : f32 to vector<2x1x16xf32>
    %1051 = arith.divf %1049, %1050 : vector<2x1x16xf32>
    %1052 = arith.mulf %1047, %1047 : vector<2x8x16xf32>
    %cst_385 = arith.constant dense<0.000000e+00> : vector<2x16xf32>
    %1053 = vector.multi_reduction <add>, %1052, %cst_385 [1] : vector<2x8x16xf32> to vector<2x16xf32>
    %1054 = vector.shape_cast %1053 : vector<2x16xf32> to vector<2x1x16xf32>
    %cst_386 = arith.constant 8.000000e+00 : f32
    %1055 = vector.broadcast %cst_386 : f32 to vector<2x1x16xf32>
    %1056 = arith.divf %1054, %1055 : vector<2x1x16xf32>
    %1057 = arith.mulf %1051, %1051 : vector<2x1x16xf32>
    %1058 = arith.subf %1056, %1057 : vector<2x1x16xf32>
    %cst_387 = arith.constant 0.000000e+00 : f32
    %1059 = vector.broadcast %cst_387 : f32 to vector<2x1x16xf32>
    %1060 = arith.maximumf %1058, %1059 : vector<2x1x16xf32>
    %1061 = vector.broadcast %1051 : vector<2x1x16xf32> to vector<2x8x16xf32>
    %1062 = arith.subf %1047, %1061 : vector<2x8x16xf32>
    %cst_388 = arith.constant 9.99999974E-6 : f32
    %1063 = vector.broadcast %cst_388 : f32 to vector<2x1x16xf32>
    %1064 = arith.addf %1060, %1063 : vector<2x1x16xf32>
    %1065 = math.rsqrt %1064 : vector<2x1x16xf32>
    %1066 = vector.broadcast %1065 : vector<2x1x16xf32> to vector<2x8x16xf32>
    %1067 = arith.mulf %1062, %1066 : vector<2x8x16xf32>
    %1068 = vector.shape_cast %1067 : vector<2x8x16xf32> to vector<16x16xf32>
    %1069 = vector.broadcast %1044 : vector<1x16xf32> to vector<16x16xf32>
    %1070 = arith.mulf %1068, %1069 : vector<16x16xf32>
    %1071 = vector.broadcast %1046 : vector<1x16xf32> to vector<16x16xf32>
    %1072 = arith.addf %1070, %1071 : vector<16x16xf32>
    %c9_389 = arith.constant 9 : index
    %c0_390 = arith.constant 0 : index
    %c0_391 = arith.constant 0 : index
    %1073 = vector.load %arg10[%c9_389, %c0_390, %c0_391] : memref<16x1x16xf32, #tpu.memory_space<vmem>>, vector<1x1x16xf32>
    %1074 = vector.shape_cast %1073 : vector<1x1x16xf32> to vector<1x16xf32>
    %c9_392 = arith.constant 9 : index
    %c0_393 = arith.constant 0 : index
    %c0_394 = arith.constant 0 : index
    %1075 = vector.load %arg11[%c9_392, %c0_393, %c0_394] : memref<16x1x16xf32, #tpu.memory_space<vmem>>, vector<1x1x16xf32>
    %1076 = vector.shape_cast %1075 : vector<1x1x16xf32> to vector<1x16xf32>
    %1077 = vector.shape_cast %1042 : vector<16x16xf32> to vector<2x8x16xf32>
    %cst_395 = arith.constant dense<0.000000e+00> : vector<2x16xf32>
    %1078 = vector.multi_reduction <add>, %1077, %cst_395 [1] : vector<2x8x16xf32> to vector<2x16xf32>
    %1079 = vector.shape_cast %1078 : vector<2x16xf32> to vector<2x1x16xf32>
    %cst_396 = arith.constant 8.000000e+00 : f32
    %1080 = vector.broadcast %cst_396 : f32 to vector<2x1x16xf32>
    %1081 = arith.divf %1079, %1080 : vector<2x1x16xf32>
    %1082 = arith.mulf %1077, %1077 : vector<2x8x16xf32>
    %cst_397 = arith.constant dense<0.000000e+00> : vector<2x16xf32>
    %1083 = vector.multi_reduction <add>, %1082, %cst_397 [1] : vector<2x8x16xf32> to vector<2x16xf32>
    %1084 = vector.shape_cast %1083 : vector<2x16xf32> to vector<2x1x16xf32>
    %cst_398 = arith.constant 8.000000e+00 : f32
    %1085 = vector.broadcast %cst_398 : f32 to vector<2x1x16xf32>
    %1086 = arith.divf %1084, %1085 : vector<2x1x16xf32>
    %1087 = arith.mulf %1081, %1081 : vector<2x1x16xf32>
    %1088 = arith.subf %1086, %1087 : vector<2x1x16xf32>
    %cst_399 = arith.constant 0.000000e+00 : f32
    %1089 = vector.broadcast %cst_399 : f32 to vector<2x1x16xf32>
    %1090 = arith.maximumf %1088, %1089 : vector<2x1x16xf32>
    %1091 = vector.broadcast %1081 : vector<2x1x16xf32> to vector<2x8x16xf32>
    %1092 = arith.subf %1077, %1091 : vector<2x8x16xf32>
    %cst_400 = arith.constant 9.99999974E-6 : f32
    %1093 = vector.broadcast %cst_400 : f32 to vector<2x1x16xf32>
    %1094 = arith.addf %1090, %1093 : vector<2x1x16xf32>
    %1095 = math.rsqrt %1094 : vector<2x1x16xf32>
    %1096 = vector.broadcast %1095 : vector<2x1x16xf32> to vector<2x8x16xf32>
    %1097 = arith.mulf %1092, %1096 : vector<2x8x16xf32>
    %1098 = vector.shape_cast %1097 : vector<2x8x16xf32> to vector<16x16xf32>
    %1099 = vector.broadcast %1074 : vector<1x16xf32> to vector<16x16xf32>
    %1100 = arith.mulf %1098, %1099 : vector<16x16xf32>
    %1101 = vector.broadcast %1076 : vector<1x16xf32> to vector<16x16xf32>
    %1102 = arith.addf %1100, %1101 : vector<16x16xf32>
    %1103 = arith.negf %1102 : vector<16x16xf32>
    %1104 = math.exp %1103 : vector<16x16xf32>
    %cst_401 = arith.constant 1.000000e+00 : f32
    %1105 = vector.broadcast %cst_401 : f32 to vector<16x16xf32>
    %1106 = arith.addf %1105, %1104 : vector<16x16xf32>
    %1107 = arith.divf %1105, %1106 : vector<16x16xf32>
    %1108 = arith.mulf %1072, %1107 : vector<16x16xf32>
    %1109 = arith.addf %1035, %1108 : vector<16x16xf32>
    %cst_402 = arith.constant 0.707106769 : f32
    %1110 = vector.broadcast %cst_402 : f32 to vector<16x16xf32>
    %1111 = arith.mulf %1109, %1110 : vector<16x16xf32>
    %1112 = arith.truncf %1111 : vector<16x16xf32> to vector<16x16xbf16>
    %c5_403 = arith.constant 5 : index
    %c0_404 = arith.constant 0 : index
    %c0_405 = arith.constant 0 : index
    %1113 = vector.load %arg6[%c5_403, %c0_404, %c0_405] : memref<9x16x16xbf16, #tpu.memory_space<vmem>>, vector<1x16x16xbf16>
    %1114 = vector.shape_cast %1113 : vector<1x16x16xbf16> to vector<16x16xbf16>
    %c5_406 = arith.constant 5 : index
    %c0_407 = arith.constant 0 : index
    %c0_408 = arith.constant 0 : index
    %1115 = vector.load %arg7[%c5_406, %c0_407, %c0_408] : memref<9x16x16xbf16, #tpu.memory_space<vmem>>, vector<1x16x16xbf16>
    %1116 = vector.shape_cast %1115 : vector<1x16x16xbf16> to vector<16x16xbf16>
    %cst_409 = arith.constant dense<0.000000e+00> : vector<16x16xf32>
    %1117 = tpu.matmul %1112, %1114, %cst_409 {dimension_numbers = #tpu.dot_dimension_numbers<[1], [0], [0], [1], [0, 0, 1, 1], [], []>} : vector<16x16xbf16>, vector<16x16xbf16>, vector<16x16xf32> -> vector<16x16xf32>
    %cst_410 = arith.constant dense<0.000000e+00> : vector<16x16xf32>
    %1118 = tpu.matmul %1112, %1116, %cst_410 {dimension_numbers = #tpu.dot_dimension_numbers<[1], [0], [0], [1], [0, 0, 1, 1], [], []>} : vector<16x16xbf16>, vector<16x16xbf16>, vector<16x16xf32> -> vector<16x16xf32>
    %c10 = arith.constant 10 : index
    %c0_411 = arith.constant 0 : index
    %c0_412 = arith.constant 0 : index
    %1119 = vector.load %arg8[%c10, %c0_411, %c0_412] : memref<16x1x16xf32, #tpu.memory_space<vmem>>, vector<1x1x16xf32>
    %1120 = vector.shape_cast %1119 : vector<1x1x16xf32> to vector<1x16xf32>
    %c10_413 = arith.constant 10 : index
    %c0_414 = arith.constant 0 : index
    %c0_415 = arith.constant 0 : index
    %1121 = vector.load %arg9[%c10_413, %c0_414, %c0_415] : memref<16x1x16xf32, #tpu.memory_space<vmem>>, vector<1x1x16xf32>
    %1122 = vector.shape_cast %1121 : vector<1x1x16xf32> to vector<1x16xf32>
    %1123 = vector.shape_cast %1117 : vector<16x16xf32> to vector<2x8x16xf32>
    %cst_416 = arith.constant dense<0.000000e+00> : vector<2x16xf32>
    %1124 = vector.multi_reduction <add>, %1123, %cst_416 [1] : vector<2x8x16xf32> to vector<2x16xf32>
    %1125 = vector.shape_cast %1124 : vector<2x16xf32> to vector<2x1x16xf32>
    %cst_417 = arith.constant 8.000000e+00 : f32
    %1126 = vector.broadcast %cst_417 : f32 to vector<2x1x16xf32>
    %1127 = arith.divf %1125, %1126 : vector<2x1x16xf32>
    %1128 = arith.mulf %1123, %1123 : vector<2x8x16xf32>
    %cst_418 = arith.constant dense<0.000000e+00> : vector<2x16xf32>
    %1129 = vector.multi_reduction <add>, %1128, %cst_418 [1] : vector<2x8x16xf32> to vector<2x16xf32>
    %1130 = vector.shape_cast %1129 : vector<2x16xf32> to vector<2x1x16xf32>
    %cst_419 = arith.constant 8.000000e+00 : f32
    %1131 = vector.broadcast %cst_419 : f32 to vector<2x1x16xf32>
    %1132 = arith.divf %1130, %1131 : vector<2x1x16xf32>
    %1133 = arith.mulf %1127, %1127 : vector<2x1x16xf32>
    %1134 = arith.subf %1132, %1133 : vector<2x1x16xf32>
    %cst_420 = arith.constant 0.000000e+00 : f32
    %1135 = vector.broadcast %cst_420 : f32 to vector<2x1x16xf32>
    %1136 = arith.maximumf %1134, %1135 : vector<2x1x16xf32>
    %1137 = vector.broadcast %1127 : vector<2x1x16xf32> to vector<2x8x16xf32>
    %1138 = arith.subf %1123, %1137 : vector<2x8x16xf32>
    %cst_421 = arith.constant 9.99999974E-6 : f32
    %1139 = vector.broadcast %cst_421 : f32 to vector<2x1x16xf32>
    %1140 = arith.addf %1136, %1139 : vector<2x1x16xf32>
    %1141 = math.rsqrt %1140 : vector<2x1x16xf32>
    %1142 = vector.broadcast %1141 : vector<2x1x16xf32> to vector<2x8x16xf32>
    %1143 = arith.mulf %1138, %1142 : vector<2x8x16xf32>
    %1144 = vector.shape_cast %1143 : vector<2x8x16xf32> to vector<16x16xf32>
    %1145 = vector.broadcast %1120 : vector<1x16xf32> to vector<16x16xf32>
    %1146 = arith.mulf %1144, %1145 : vector<16x16xf32>
    %1147 = vector.broadcast %1122 : vector<1x16xf32> to vector<16x16xf32>
    %1148 = arith.addf %1146, %1147 : vector<16x16xf32>
    %c10_422 = arith.constant 10 : index
    %c0_423 = arith.constant 0 : index
    %c0_424 = arith.constant 0 : index
    %1149 = vector.load %arg10[%c10_422, %c0_423, %c0_424] : memref<16x1x16xf32, #tpu.memory_space<vmem>>, vector<1x1x16xf32>
    %1150 = vector.shape_cast %1149 : vector<1x1x16xf32> to vector<1x16xf32>
    %c10_425 = arith.constant 10 : index
    %c0_426 = arith.constant 0 : index
    %c0_427 = arith.constant 0 : index
    %1151 = vector.load %arg11[%c10_425, %c0_426, %c0_427] : memref<16x1x16xf32, #tpu.memory_space<vmem>>, vector<1x1x16xf32>
    %1152 = vector.shape_cast %1151 : vector<1x1x16xf32> to vector<1x16xf32>
    %1153 = vector.shape_cast %1118 : vector<16x16xf32> to vector<2x8x16xf32>
    %cst_428 = arith.constant dense<0.000000e+00> : vector<2x16xf32>
    %1154 = vector.multi_reduction <add>, %1153, %cst_428 [1] : vector<2x8x16xf32> to vector<2x16xf32>
    %1155 = vector.shape_cast %1154 : vector<2x16xf32> to vector<2x1x16xf32>
    %cst_429 = arith.constant 8.000000e+00 : f32
    %1156 = vector.broadcast %cst_429 : f32 to vector<2x1x16xf32>
    %1157 = arith.divf %1155, %1156 : vector<2x1x16xf32>
    %1158 = arith.mulf %1153, %1153 : vector<2x8x16xf32>
    %cst_430 = arith.constant dense<0.000000e+00> : vector<2x16xf32>
    %1159 = vector.multi_reduction <add>, %1158, %cst_430 [1] : vector<2x8x16xf32> to vector<2x16xf32>
    %1160 = vector.shape_cast %1159 : vector<2x16xf32> to vector<2x1x16xf32>
    %cst_431 = arith.constant 8.000000e+00 : f32
    %1161 = vector.broadcast %cst_431 : f32 to vector<2x1x16xf32>
    %1162 = arith.divf %1160, %1161 : vector<2x1x16xf32>
    %1163 = arith.mulf %1157, %1157 : vector<2x1x16xf32>
    %1164 = arith.subf %1162, %1163 : vector<2x1x16xf32>
    %cst_432 = arith.constant 0.000000e+00 : f32
    %1165 = vector.broadcast %cst_432 : f32 to vector<2x1x16xf32>
    %1166 = arith.maximumf %1164, %1165 : vector<2x1x16xf32>
    %1167 = vector.broadcast %1157 : vector<2x1x16xf32> to vector<2x8x16xf32>
    %1168 = arith.subf %1153, %1167 : vector<2x8x16xf32>
    %cst_433 = arith.constant 9.99999974E-6 : f32
    %1169 = vector.broadcast %cst_433 : f32 to vector<2x1x16xf32>
    %1170 = arith.addf %1166, %1169 : vector<2x1x16xf32>
    %1171 = math.rsqrt %1170 : vector<2x1x16xf32>
    %1172 = vector.broadcast %1171 : vector<2x1x16xf32> to vector<2x8x16xf32>
    %1173 = arith.mulf %1168, %1172 : vector<2x8x16xf32>
    %1174 = vector.shape_cast %1173 : vector<2x8x16xf32> to vector<16x16xf32>
    %1175 = vector.broadcast %1150 : vector<1x16xf32> to vector<16x16xf32>
    %1176 = arith.mulf %1174, %1175 : vector<16x16xf32>
    %1177 = vector.broadcast %1152 : vector<1x16xf32> to vector<16x16xf32>
    %1178 = arith.addf %1176, %1177 : vector<16x16xf32>
    %1179 = arith.negf %1178 : vector<16x16xf32>
    %1180 = math.exp %1179 : vector<16x16xf32>
    %cst_434 = arith.constant 1.000000e+00 : f32
    %1181 = vector.broadcast %cst_434 : f32 to vector<16x16xf32>
    %1182 = arith.addf %1181, %1180 : vector<16x16xf32>
    %1183 = arith.divf %1181, %1182 : vector<16x16xf32>
    %1184 = arith.mulf %1148, %1183 : vector<16x16xf32>
    %1185 = arith.addf %1111, %1184 : vector<16x16xf32>
    %cst_435 = arith.constant 0.707106769 : f32
    %1186 = vector.broadcast %cst_435 : f32 to vector<16x16xf32>
    %1187 = arith.mulf %1185, %1186 : vector<16x16xf32>
    %1188 = arith.truncf %1187 : vector<16x16xf32> to vector<16x16xbf16>
    %c6_436 = arith.constant 6 : index
    %c0_437 = arith.constant 0 : index
    %c0_438 = arith.constant 0 : index
    %1189 = vector.load %arg6[%c6_436, %c0_437, %c0_438] : memref<9x16x16xbf16, #tpu.memory_space<vmem>>, vector<1x16x16xbf16>
    %1190 = vector.shape_cast %1189 : vector<1x16x16xbf16> to vector<16x16xbf16>
    %c6_439 = arith.constant 6 : index
    %c0_440 = arith.constant 0 : index
    %c0_441 = arith.constant 0 : index
    %1191 = vector.load %arg7[%c6_439, %c0_440, %c0_441] : memref<9x16x16xbf16, #tpu.memory_space<vmem>>, vector<1x16x16xbf16>
    %1192 = vector.shape_cast %1191 : vector<1x16x16xbf16> to vector<16x16xbf16>
    %cst_442 = arith.constant dense<0.000000e+00> : vector<16x16xf32>
    %1193 = tpu.matmul %1188, %1190, %cst_442 {dimension_numbers = #tpu.dot_dimension_numbers<[1], [0], [0], [1], [0, 0, 1, 1], [], []>} : vector<16x16xbf16>, vector<16x16xbf16>, vector<16x16xf32> -> vector<16x16xf32>
    %cst_443 = arith.constant dense<0.000000e+00> : vector<16x16xf32>
    %1194 = tpu.matmul %1188, %1192, %cst_443 {dimension_numbers = #tpu.dot_dimension_numbers<[1], [0], [0], [1], [0, 0, 1, 1], [], []>} : vector<16x16xbf16>, vector<16x16xbf16>, vector<16x16xf32> -> vector<16x16xf32>
    %c11 = arith.constant 11 : index
    %c0_444 = arith.constant 0 : index
    %c0_445 = arith.constant 0 : index
    %1195 = vector.load %arg8[%c11, %c0_444, %c0_445] : memref<16x1x16xf32, #tpu.memory_space<vmem>>, vector<1x1x16xf32>
    %1196 = vector.shape_cast %1195 : vector<1x1x16xf32> to vector<1x16xf32>
    %c11_446 = arith.constant 11 : index
    %c0_447 = arith.constant 0 : index
    %c0_448 = arith.constant 0 : index
    %1197 = vector.load %arg9[%c11_446, %c0_447, %c0_448] : memref<16x1x16xf32, #tpu.memory_space<vmem>>, vector<1x1x16xf32>
    %1198 = vector.shape_cast %1197 : vector<1x1x16xf32> to vector<1x16xf32>
    %1199 = vector.shape_cast %1193 : vector<16x16xf32> to vector<2x8x16xf32>
    %cst_449 = arith.constant dense<0.000000e+00> : vector<2x16xf32>
    %1200 = vector.multi_reduction <add>, %1199, %cst_449 [1] : vector<2x8x16xf32> to vector<2x16xf32>
    %1201 = vector.shape_cast %1200 : vector<2x16xf32> to vector<2x1x16xf32>
    %cst_450 = arith.constant 8.000000e+00 : f32
    %1202 = vector.broadcast %cst_450 : f32 to vector<2x1x16xf32>
    %1203 = arith.divf %1201, %1202 : vector<2x1x16xf32>
    %1204 = arith.mulf %1199, %1199 : vector<2x8x16xf32>
    %cst_451 = arith.constant dense<0.000000e+00> : vector<2x16xf32>
    %1205 = vector.multi_reduction <add>, %1204, %cst_451 [1] : vector<2x8x16xf32> to vector<2x16xf32>
    %1206 = vector.shape_cast %1205 : vector<2x16xf32> to vector<2x1x16xf32>
    %cst_452 = arith.constant 8.000000e+00 : f32
    %1207 = vector.broadcast %cst_452 : f32 to vector<2x1x16xf32>
    %1208 = arith.divf %1206, %1207 : vector<2x1x16xf32>
    %1209 = arith.mulf %1203, %1203 : vector<2x1x16xf32>
    %1210 = arith.subf %1208, %1209 : vector<2x1x16xf32>
    %cst_453 = arith.constant 0.000000e+00 : f32
    %1211 = vector.broadcast %cst_453 : f32 to vector<2x1x16xf32>
    %1212 = arith.maximumf %1210, %1211 : vector<2x1x16xf32>
    %1213 = vector.broadcast %1203 : vector<2x1x16xf32> to vector<2x8x16xf32>
    %1214 = arith.subf %1199, %1213 : vector<2x8x16xf32>
    %cst_454 = arith.constant 9.99999974E-6 : f32
    %1215 = vector.broadcast %cst_454 : f32 to vector<2x1x16xf32>
    %1216 = arith.addf %1212, %1215 : vector<2x1x16xf32>
    %1217 = math.rsqrt %1216 : vector<2x1x16xf32>
    %1218 = vector.broadcast %1217 : vector<2x1x16xf32> to vector<2x8x16xf32>
    %1219 = arith.mulf %1214, %1218 : vector<2x8x16xf32>
    %1220 = vector.shape_cast %1219 : vector<2x8x16xf32> to vector<16x16xf32>
    %1221 = vector.broadcast %1196 : vector<1x16xf32> to vector<16x16xf32>
    %1222 = arith.mulf %1220, %1221 : vector<16x16xf32>
    %1223 = vector.broadcast %1198 : vector<1x16xf32> to vector<16x16xf32>
    %1224 = arith.addf %1222, %1223 : vector<16x16xf32>
    %c11_455 = arith.constant 11 : index
    %c0_456 = arith.constant 0 : index
    %c0_457 = arith.constant 0 : index
    %1225 = vector.load %arg10[%c11_455, %c0_456, %c0_457] : memref<16x1x16xf32, #tpu.memory_space<vmem>>, vector<1x1x16xf32>
    %1226 = vector.shape_cast %1225 : vector<1x1x16xf32> to vector<1x16xf32>
    %c11_458 = arith.constant 11 : index
    %c0_459 = arith.constant 0 : index
    %c0_460 = arith.constant 0 : index
    %1227 = vector.load %arg11[%c11_458, %c0_459, %c0_460] : memref<16x1x16xf32, #tpu.memory_space<vmem>>, vector<1x1x16xf32>
    %1228 = vector.shape_cast %1227 : vector<1x1x16xf32> to vector<1x16xf32>
    %1229 = vector.shape_cast %1194 : vector<16x16xf32> to vector<2x8x16xf32>
    %cst_461 = arith.constant dense<0.000000e+00> : vector<2x16xf32>
    %1230 = vector.multi_reduction <add>, %1229, %cst_461 [1] : vector<2x8x16xf32> to vector<2x16xf32>
    %1231 = vector.shape_cast %1230 : vector<2x16xf32> to vector<2x1x16xf32>
    %cst_462 = arith.constant 8.000000e+00 : f32
    %1232 = vector.broadcast %cst_462 : f32 to vector<2x1x16xf32>
    %1233 = arith.divf %1231, %1232 : vector<2x1x16xf32>
    %1234 = arith.mulf %1229, %1229 : vector<2x8x16xf32>
    %cst_463 = arith.constant dense<0.000000e+00> : vector<2x16xf32>
    %1235 = vector.multi_reduction <add>, %1234, %cst_463 [1] : vector<2x8x16xf32> to vector<2x16xf32>
    %1236 = vector.shape_cast %1235 : vector<2x16xf32> to vector<2x1x16xf32>
    %cst_464 = arith.constant 8.000000e+00 : f32
    %1237 = vector.broadcast %cst_464 : f32 to vector<2x1x16xf32>
    %1238 = arith.divf %1236, %1237 : vector<2x1x16xf32>
    %1239 = arith.mulf %1233, %1233 : vector<2x1x16xf32>
    %1240 = arith.subf %1238, %1239 : vector<2x1x16xf32>
    %cst_465 = arith.constant 0.000000e+00 : f32
    %1241 = vector.broadcast %cst_465 : f32 to vector<2x1x16xf32>
    %1242 = arith.maximumf %1240, %1241 : vector<2x1x16xf32>
    %1243 = vector.broadcast %1233 : vector<2x1x16xf32> to vector<2x8x16xf32>
    %1244 = arith.subf %1229, %1243 : vector<2x8x16xf32>
    %cst_466 = arith.constant 9.99999974E-6 : f32
    %1245 = vector.broadcast %cst_466 : f32 to vector<2x1x16xf32>
    %1246 = arith.addf %1242, %1245 : vector<2x1x16xf32>
    %1247 = math.rsqrt %1246 : vector<2x1x16xf32>
    %1248 = vector.broadcast %1247 : vector<2x1x16xf32> to vector<2x8x16xf32>
    %1249 = arith.mulf %1244, %1248 : vector<2x8x16xf32>
    %1250 = vector.shape_cast %1249 : vector<2x8x16xf32> to vector<16x16xf32>
    %1251 = vector.broadcast %1226 : vector<1x16xf32> to vector<16x16xf32>
    %1252 = arith.mulf %1250, %1251 : vector<16x16xf32>
    %1253 = vector.broadcast %1228 : vector<1x16xf32> to vector<16x16xf32>
    %1254 = arith.addf %1252, %1253 : vector<16x16xf32>
    %1255 = arith.negf %1254 : vector<16x16xf32>
    %1256 = math.exp %1255 : vector<16x16xf32>
    %cst_467 = arith.constant 1.000000e+00 : f32
    %1257 = vector.broadcast %cst_467 : f32 to vector<16x16xf32>
    %1258 = arith.addf %1257, %1256 : vector<16x16xf32>
    %1259 = arith.divf %1257, %1258 : vector<16x16xf32>
    %1260 = arith.mulf %1224, %1259 : vector<16x16xf32>
    %1261 = arith.addf %1187, %1260 : vector<16x16xf32>
    %cst_468 = arith.constant 0.707106769 : f32
    %1262 = vector.broadcast %cst_468 : f32 to vector<16x16xf32>
    %1263 = arith.mulf %1261, %1262 : vector<16x16xf32>
    %cst_469 = arith.constant 0.000000e+00 : f32
    %1264 = vector.broadcast %cst_469 : f32 to vector<16x16xf32>
    %1265 = arith.maximumf %1263, %1264 : vector<16x16xf32>
    %1266 = arith.addf %788, %1265 : vector<16x16xf32>
    %1267 = arith.truncf %1263 : vector<16x16xf32> to vector<16x16xbf16>
    %c2_470 = arith.constant 2 : index
    %c0_471 = arith.constant 0 : index
    %c0_472 = arith.constant 0 : index
    %1268 = vector.load %arg12[%c2_470, %c0_471, %c0_472] : memref<3x16x16xbf16, #tpu.memory_space<vmem>>, vector<1x16x16xbf16>
    %1269 = vector.shape_cast %1268 : vector<1x16x16xbf16> to vector<16x16xbf16>
    %cst_473 = arith.constant dense<0.000000e+00> : vector<16x16xf32>
    %1270 = tpu.matmul %1267, %1269, %cst_473 {dimension_numbers = #tpu.dot_dimension_numbers<[1], [0], [0], [1], [0, 0, 1, 1], [], []>} : vector<16x16xbf16>, vector<16x16xbf16>, vector<16x16xf32> -> vector<16x16xf32>
    %c2_474 = arith.constant 2 : index
    %c0_475 = arith.constant 0 : index
    %c0_476 = arith.constant 0 : index
    %1271 = vector.load %arg13[%c2_474, %c0_475, %c0_476] : memref<3x1x16xf32, #tpu.memory_space<vmem>>, vector<1x1x16xf32>
    %1272 = vector.shape_cast %1271 : vector<1x1x16xf32> to vector<1x16xf32>
    %c2_477 = arith.constant 2 : index
    %c0_478 = arith.constant 0 : index
    %c0_479 = arith.constant 0 : index
    %1273 = vector.load %arg14[%c2_477, %c0_478, %c0_479] : memref<3x1x16xf32, #tpu.memory_space<vmem>>, vector<1x1x16xf32>
    %1274 = vector.shape_cast %1273 : vector<1x1x16xf32> to vector<1x16xf32>
    %1275 = vector.shape_cast %1270 : vector<16x16xf32> to vector<2x8x16xf32>
    %cst_480 = arith.constant dense<0.000000e+00> : vector<2x16xf32>
    %1276 = vector.multi_reduction <add>, %1275, %cst_480 [1] : vector<2x8x16xf32> to vector<2x16xf32>
    %1277 = vector.shape_cast %1276 : vector<2x16xf32> to vector<2x1x16xf32>
    %cst_481 = arith.constant 8.000000e+00 : f32
    %1278 = vector.broadcast %cst_481 : f32 to vector<2x1x16xf32>
    %1279 = arith.divf %1277, %1278 : vector<2x1x16xf32>
    %1280 = arith.mulf %1275, %1275 : vector<2x8x16xf32>
    %cst_482 = arith.constant dense<0.000000e+00> : vector<2x16xf32>
    %1281 = vector.multi_reduction <add>, %1280, %cst_482 [1] : vector<2x8x16xf32> to vector<2x16xf32>
    %1282 = vector.shape_cast %1281 : vector<2x16xf32> to vector<2x1x16xf32>
    %cst_483 = arith.constant 8.000000e+00 : f32
    %1283 = vector.broadcast %cst_483 : f32 to vector<2x1x16xf32>
    %1284 = arith.divf %1282, %1283 : vector<2x1x16xf32>
    %1285 = arith.mulf %1279, %1279 : vector<2x1x16xf32>
    %1286 = arith.subf %1284, %1285 : vector<2x1x16xf32>
    %cst_484 = arith.constant 0.000000e+00 : f32
    %1287 = vector.broadcast %cst_484 : f32 to vector<2x1x16xf32>
    %1288 = arith.maximumf %1286, %1287 : vector<2x1x16xf32>
    %1289 = vector.broadcast %1279 : vector<2x1x16xf32> to vector<2x8x16xf32>
    %1290 = arith.subf %1275, %1289 : vector<2x8x16xf32>
    %cst_485 = arith.constant 9.99999974E-6 : f32
    %1291 = vector.broadcast %cst_485 : f32 to vector<2x1x16xf32>
    %1292 = arith.addf %1288, %1291 : vector<2x1x16xf32>
    %1293 = math.rsqrt %1292 : vector<2x1x16xf32>
    %1294 = vector.broadcast %1293 : vector<2x1x16xf32> to vector<2x8x16xf32>
    %1295 = arith.mulf %1290, %1294 : vector<2x8x16xf32>
    %1296 = vector.shape_cast %1295 : vector<2x8x16xf32> to vector<16x16xf32>
    %1297 = vector.broadcast %1272 : vector<1x16xf32> to vector<16x16xf32>
    %1298 = arith.mulf %1296, %1297 : vector<16x16xf32>
    %1299 = vector.broadcast %1274 : vector<1x16xf32> to vector<16x16xf32>
    %1300 = arith.addf %1298, %1299 : vector<16x16xf32>
    %1301 = arith.mulf %1300, %961 : vector<16x16xf32>
    %cst_486 = arith.constant dense<0xFF800000> : vector<16xf32>
    %1302 = vector.multi_reduction <maximumf>, %1301, %cst_486 [1] : vector<16x16xf32> to vector<16xf32>
    %1303 = vector.shape_cast %1302 : vector<16xf32> to vector<16x1xf32>
    %1304 = vector.broadcast %1303 : vector<16x1xf32> to vector<16x16xf32>
    %1305 = arith.subf %1301, %1304 : vector<16x16xf32>
    %cst_487 = arith.constant 1.000000e+00 : f32
    %1306 = vector.broadcast %cst_487 : f32 to vector<16x16xf32>
    %c1_i32_488 = arith.constant 1 : i32
    %1307 = tpu.dynamic_rotate %1305 by %c1_i32_488 dim 1 : vector<16x16xf32>, i32 -> vector<16x16xf32>
    %1308 = arith.cmpf oge, %1307, %1305 : vector<16x16xf32>
    %1309 = arith.extui %1308 : vector<16x16xi1> to vector<16x16xi32>
    %1310 = arith.sitofp %1309 : vector<16x16xi32> to vector<16x16xf32>
    %1311 = arith.addf %1306, %1310 : vector<16x16xf32>
    %1312 = arith.mulf %1310, %1307 : vector<16x16xf32>
    %1313 = arith.addf %1305, %1312 : vector<16x16xf32>
    %c2_i32_489 = arith.constant 2 : i32
    %1314 = tpu.dynamic_rotate %1305 by %c2_i32_489 dim 1 : vector<16x16xf32>, i32 -> vector<16x16xf32>
    %1315 = arith.cmpf oge, %1314, %1305 : vector<16x16xf32>
    %1316 = arith.extui %1315 : vector<16x16xi1> to vector<16x16xi32>
    %1317 = arith.sitofp %1316 : vector<16x16xi32> to vector<16x16xf32>
    %1318 = arith.addf %1311, %1317 : vector<16x16xf32>
    %1319 = arith.mulf %1317, %1314 : vector<16x16xf32>
    %1320 = arith.addf %1313, %1319 : vector<16x16xf32>
    %c3_i32_490 = arith.constant 3 : i32
    %1321 = tpu.dynamic_rotate %1305 by %c3_i32_490 dim 1 : vector<16x16xf32>, i32 -> vector<16x16xf32>
    %1322 = arith.cmpf oge, %1321, %1305 : vector<16x16xf32>
    %1323 = arith.extui %1322 : vector<16x16xi1> to vector<16x16xi32>
    %1324 = arith.sitofp %1323 : vector<16x16xi32> to vector<16x16xf32>
    %1325 = arith.addf %1318, %1324 : vector<16x16xf32>
    %1326 = arith.mulf %1324, %1321 : vector<16x16xf32>
    %1327 = arith.addf %1320, %1326 : vector<16x16xf32>
    %c4_i32_491 = arith.constant 4 : i32
    %1328 = tpu.dynamic_rotate %1305 by %c4_i32_491 dim 1 : vector<16x16xf32>, i32 -> vector<16x16xf32>
    %1329 = arith.cmpf oge, %1328, %1305 : vector<16x16xf32>
    %1330 = arith.extui %1329 : vector<16x16xi1> to vector<16x16xi32>
    %1331 = arith.sitofp %1330 : vector<16x16xi32> to vector<16x16xf32>
    %1332 = arith.addf %1325, %1331 : vector<16x16xf32>
    %1333 = arith.mulf %1331, %1328 : vector<16x16xf32>
    %1334 = arith.addf %1327, %1333 : vector<16x16xf32>
    %c5_i32_492 = arith.constant 5 : i32
    %1335 = tpu.dynamic_rotate %1305 by %c5_i32_492 dim 1 : vector<16x16xf32>, i32 -> vector<16x16xf32>
    %1336 = arith.cmpf oge, %1335, %1305 : vector<16x16xf32>
    %1337 = arith.extui %1336 : vector<16x16xi1> to vector<16x16xi32>
    %1338 = arith.sitofp %1337 : vector<16x16xi32> to vector<16x16xf32>
    %1339 = arith.addf %1332, %1338 : vector<16x16xf32>
    %1340 = arith.mulf %1338, %1335 : vector<16x16xf32>
    %1341 = arith.addf %1334, %1340 : vector<16x16xf32>
    %c6_i32_493 = arith.constant 6 : i32
    %1342 = tpu.dynamic_rotate %1305 by %c6_i32_493 dim 1 : vector<16x16xf32>, i32 -> vector<16x16xf32>
    %1343 = arith.cmpf oge, %1342, %1305 : vector<16x16xf32>
    %1344 = arith.extui %1343 : vector<16x16xi1> to vector<16x16xi32>
    %1345 = arith.sitofp %1344 : vector<16x16xi32> to vector<16x16xf32>
    %1346 = arith.addf %1339, %1345 : vector<16x16xf32>
    %1347 = arith.mulf %1345, %1342 : vector<16x16xf32>
    %1348 = arith.addf %1341, %1347 : vector<16x16xf32>
    %c7_i32_494 = arith.constant 7 : i32
    %1349 = tpu.dynamic_rotate %1305 by %c7_i32_494 dim 1 : vector<16x16xf32>, i32 -> vector<16x16xf32>
    %1350 = arith.cmpf oge, %1349, %1305 : vector<16x16xf32>
    %1351 = arith.extui %1350 : vector<16x16xi1> to vector<16x16xi32>
    %1352 = arith.sitofp %1351 : vector<16x16xi32> to vector<16x16xf32>
    %1353 = arith.addf %1346, %1352 : vector<16x16xf32>
    %1354 = arith.mulf %1352, %1349 : vector<16x16xf32>
    %1355 = arith.addf %1348, %1354 : vector<16x16xf32>
    %c8_i32_495 = arith.constant 8 : i32
    %1356 = tpu.dynamic_rotate %1305 by %c8_i32_495 dim 1 : vector<16x16xf32>, i32 -> vector<16x16xf32>
    %1357 = arith.cmpf oge, %1356, %1305 : vector<16x16xf32>
    %1358 = arith.extui %1357 : vector<16x16xi1> to vector<16x16xi32>
    %1359 = arith.sitofp %1358 : vector<16x16xi32> to vector<16x16xf32>
    %1360 = arith.addf %1353, %1359 : vector<16x16xf32>
    %1361 = arith.mulf %1359, %1356 : vector<16x16xf32>
    %1362 = arith.addf %1355, %1361 : vector<16x16xf32>
    %c9_i32_496 = arith.constant 9 : i32
    %1363 = tpu.dynamic_rotate %1305 by %c9_i32_496 dim 1 : vector<16x16xf32>, i32 -> vector<16x16xf32>
    %1364 = arith.cmpf oge, %1363, %1305 : vector<16x16xf32>
    %1365 = arith.extui %1364 : vector<16x16xi1> to vector<16x16xi32>
    %1366 = arith.sitofp %1365 : vector<16x16xi32> to vector<16x16xf32>
    %1367 = arith.addf %1360, %1366 : vector<16x16xf32>
    %1368 = arith.mulf %1366, %1363 : vector<16x16xf32>
    %1369 = arith.addf %1362, %1368 : vector<16x16xf32>
    %c10_i32_497 = arith.constant 10 : i32
    %1370 = tpu.dynamic_rotate %1305 by %c10_i32_497 dim 1 : vector<16x16xf32>, i32 -> vector<16x16xf32>
    %1371 = arith.cmpf oge, %1370, %1305 : vector<16x16xf32>
    %1372 = arith.extui %1371 : vector<16x16xi1> to vector<16x16xi32>
    %1373 = arith.sitofp %1372 : vector<16x16xi32> to vector<16x16xf32>
    %1374 = arith.addf %1367, %1373 : vector<16x16xf32>
    %1375 = arith.mulf %1373, %1370 : vector<16x16xf32>
    %1376 = arith.addf %1369, %1375 : vector<16x16xf32>
    %c11_i32_498 = arith.constant 11 : i32
    %1377 = tpu.dynamic_rotate %1305 by %c11_i32_498 dim 1 : vector<16x16xf32>, i32 -> vector<16x16xf32>
    %1378 = arith.cmpf oge, %1377, %1305 : vector<16x16xf32>
    %1379 = arith.extui %1378 : vector<16x16xi1> to vector<16x16xi32>
    %1380 = arith.sitofp %1379 : vector<16x16xi32> to vector<16x16xf32>
    %1381 = arith.addf %1374, %1380 : vector<16x16xf32>
    %1382 = arith.mulf %1380, %1377 : vector<16x16xf32>
    %1383 = arith.addf %1376, %1382 : vector<16x16xf32>
    %c12_i32_499 = arith.constant 12 : i32
    %1384 = tpu.dynamic_rotate %1305 by %c12_i32_499 dim 1 : vector<16x16xf32>, i32 -> vector<16x16xf32>
    %1385 = arith.cmpf oge, %1384, %1305 : vector<16x16xf32>
    %1386 = arith.extui %1385 : vector<16x16xi1> to vector<16x16xi32>
    %1387 = arith.sitofp %1386 : vector<16x16xi32> to vector<16x16xf32>
    %1388 = arith.addf %1381, %1387 : vector<16x16xf32>
    %1389 = arith.mulf %1387, %1384 : vector<16x16xf32>
    %1390 = arith.addf %1383, %1389 : vector<16x16xf32>
    %c13_i32_500 = arith.constant 13 : i32
    %1391 = tpu.dynamic_rotate %1305 by %c13_i32_500 dim 1 : vector<16x16xf32>, i32 -> vector<16x16xf32>
    %1392 = arith.cmpf oge, %1391, %1305 : vector<16x16xf32>
    %1393 = arith.extui %1392 : vector<16x16xi1> to vector<16x16xi32>
    %1394 = arith.sitofp %1393 : vector<16x16xi32> to vector<16x16xf32>
    %1395 = arith.addf %1388, %1394 : vector<16x16xf32>
    %1396 = arith.mulf %1394, %1391 : vector<16x16xf32>
    %1397 = arith.addf %1390, %1396 : vector<16x16xf32>
    %c14_i32_501 = arith.constant 14 : i32
    %1398 = tpu.dynamic_rotate %1305 by %c14_i32_501 dim 1 : vector<16x16xf32>, i32 -> vector<16x16xf32>
    %1399 = arith.cmpf oge, %1398, %1305 : vector<16x16xf32>
    %1400 = arith.extui %1399 : vector<16x16xi1> to vector<16x16xi32>
    %1401 = arith.sitofp %1400 : vector<16x16xi32> to vector<16x16xf32>
    %1402 = arith.addf %1395, %1401 : vector<16x16xf32>
    %1403 = arith.mulf %1401, %1398 : vector<16x16xf32>
    %1404 = arith.addf %1397, %1403 : vector<16x16xf32>
    %c15_i32_502 = arith.constant 15 : i32
    %1405 = tpu.dynamic_rotate %1305 by %c15_i32_502 dim 1 : vector<16x16xf32>, i32 -> vector<16x16xf32>
    %1406 = arith.cmpf oge, %1405, %1305 : vector<16x16xf32>
    %1407 = arith.extui %1406 : vector<16x16xi1> to vector<16x16xi32>
    %1408 = arith.sitofp %1407 : vector<16x16xi32> to vector<16x16xf32>
    %1409 = arith.addf %1402, %1408 : vector<16x16xf32>
    %1410 = arith.mulf %1408, %1405 : vector<16x16xf32>
    %1411 = arith.addf %1404, %1410 : vector<16x16xf32>
    %1412 = arith.mulf %1409, %1305 : vector<16x16xf32>
    %cst_503 = arith.constant 1.000000e+00 : f32
    %1413 = vector.broadcast %cst_503 : f32 to vector<16x16xf32>
    %1414 = arith.addf %1413, %1412 : vector<16x16xf32>
    %1415 = arith.cmpf ogt, %1414, %1411 : vector<16x16xf32>
    %1416 = arith.extui %1415 : vector<16x16xi1> to vector<16x16xi32>
    %1417 = arith.sitofp %1416 : vector<16x16xi32> to vector<16x16xf32>
    %cst_504 = arith.constant dense<0.000000e+00> : vector<16xf32>
    %1418 = vector.multi_reduction <add>, %1417, %cst_504 [1] : vector<16x16xf32> to vector<16xf32>
    %1419 = vector.shape_cast %1418 : vector<16xf32> to vector<16x1xf32>
    %1420 = arith.mulf %1305, %1417 : vector<16x16xf32>
    %cst_505 = arith.constant dense<0.000000e+00> : vector<16xf32>
    %1421 = vector.multi_reduction <add>, %1420, %cst_505 [1] : vector<16x16xf32> to vector<16xf32>
    %1422 = vector.shape_cast %1421 : vector<16xf32> to vector<16x1xf32>
    %cst_506 = arith.constant 1.000000e+00 : f32
    %1423 = vector.broadcast %cst_506 : f32 to vector<16x1xf32>
    %1424 = arith.subf %1422, %1423 : vector<16x1xf32>
    %1425 = arith.divf %1424, %1419 : vector<16x1xf32>
    %1426 = vector.broadcast %1425 : vector<16x1xf32> to vector<16x16xf32>
    %1427 = arith.subf %1305, %1426 : vector<16x16xf32>
    %cst_507 = arith.constant 0.000000e+00 : f32
    %1428 = vector.broadcast %cst_507 : f32 to vector<16x16xf32>
    %1429 = arith.maximumf %1427, %1428 : vector<16x16xf32>
    %cst_508 = arith.constant 1.000000e-15 : f32
    %1430 = vector.broadcast %cst_508 : f32 to vector<16x16xf32>
    %1431 = arith.addf %1429, %1430 : vector<16x16xf32>
    %1432 = math.log %1431 : vector<16x16xf32>
    %1433 = arith.mulf %1429, %1432 : vector<16x16xf32>
    %cst_509 = arith.constant dense<0.000000e+00> : vector<16xf32>
    %1434 = vector.multi_reduction <add>, %1433, %cst_509 [1] : vector<16x16xf32> to vector<16xf32>
    %1435 = vector.shape_cast %1434 : vector<16xf32> to vector<16x1xf32>
    %1436 = arith.addf %958, %1435 : vector<16x1xf32>
    %1437 = arith.mulf %1429, %6 : vector<16x16xf32>
    %1438 = arith.truncf %1437 : vector<16x16xf32> to vector<16x16xbf16>
    %c0_510 = arith.constant 0 : index
    %c0_511 = arith.constant 0 : index
    %c0_512 = arith.constant 0 : index
    %1439 = vector.load %arg4[%c0_510, %c0_511, %c0_512] : memref<1x16x16xbf16, #tpu.memory_space<vmem>>, vector<1x16x16xbf16>
    %1440 = vector.shape_cast %1439 : vector<1x16x16xbf16> to vector<16x16xbf16>
    %c0_513 = arith.constant 0 : index
    %c0_514 = arith.constant 0 : index
    %c0_515 = arith.constant 0 : index
    %1441 = vector.load %arg5[%c0_513, %c0_514, %c0_515] : memref<1x16x16xbf16, #tpu.memory_space<vmem>>, vector<1x16x16xbf16>
    %1442 = vector.shape_cast %1441 : vector<1x16x16xbf16> to vector<16x16xbf16>
    %cst_516 = arith.constant dense<0.000000e+00> : vector<16x16xf32>
    %1443 = tpu.matmul %1438, %1440, %cst_516 {dimension_numbers = #tpu.dot_dimension_numbers<[1], [0], [0], [1], [0, 0, 1, 1], [], []>} : vector<16x16xbf16>, vector<16x16xbf16>, vector<16x16xf32> -> vector<16x16xf32>
    %cst_517 = arith.constant dense<0.000000e+00> : vector<16x16xf32>
    %1444 = tpu.matmul %1438, %1442, %cst_517 {dimension_numbers = #tpu.dot_dimension_numbers<[1], [0], [0], [1], [0, 0, 1, 1], [], []>} : vector<16x16xbf16>, vector<16x16xbf16>, vector<16x16xf32> -> vector<16x16xf32>
    %c12 = arith.constant 12 : index
    %c0_518 = arith.constant 0 : index
    %c0_519 = arith.constant 0 : index
    %1445 = vector.load %arg8[%c12, %c0_518, %c0_519] : memref<16x1x16xf32, #tpu.memory_space<vmem>>, vector<1x1x16xf32>
    %1446 = vector.shape_cast %1445 : vector<1x1x16xf32> to vector<1x16xf32>
    %c12_520 = arith.constant 12 : index
    %c0_521 = arith.constant 0 : index
    %c0_522 = arith.constant 0 : index
    %1447 = vector.load %arg9[%c12_520, %c0_521, %c0_522] : memref<16x1x16xf32, #tpu.memory_space<vmem>>, vector<1x1x16xf32>
    %1448 = vector.shape_cast %1447 : vector<1x1x16xf32> to vector<1x16xf32>
    %1449 = vector.shape_cast %1443 : vector<16x16xf32> to vector<2x8x16xf32>
    %cst_523 = arith.constant dense<0.000000e+00> : vector<2x16xf32>
    %1450 = vector.multi_reduction <add>, %1449, %cst_523 [1] : vector<2x8x16xf32> to vector<2x16xf32>
    %1451 = vector.shape_cast %1450 : vector<2x16xf32> to vector<2x1x16xf32>
    %cst_524 = arith.constant 8.000000e+00 : f32
    %1452 = vector.broadcast %cst_524 : f32 to vector<2x1x16xf32>
    %1453 = arith.divf %1451, %1452 : vector<2x1x16xf32>
    %1454 = arith.mulf %1449, %1449 : vector<2x8x16xf32>
    %cst_525 = arith.constant dense<0.000000e+00> : vector<2x16xf32>
    %1455 = vector.multi_reduction <add>, %1454, %cst_525 [1] : vector<2x8x16xf32> to vector<2x16xf32>
    %1456 = vector.shape_cast %1455 : vector<2x16xf32> to vector<2x1x16xf32>
    %cst_526 = arith.constant 8.000000e+00 : f32
    %1457 = vector.broadcast %cst_526 : f32 to vector<2x1x16xf32>
    %1458 = arith.divf %1456, %1457 : vector<2x1x16xf32>
    %1459 = arith.mulf %1453, %1453 : vector<2x1x16xf32>
    %1460 = arith.subf %1458, %1459 : vector<2x1x16xf32>
    %cst_527 = arith.constant 0.000000e+00 : f32
    %1461 = vector.broadcast %cst_527 : f32 to vector<2x1x16xf32>
    %1462 = arith.maximumf %1460, %1461 : vector<2x1x16xf32>
    %1463 = vector.broadcast %1453 : vector<2x1x16xf32> to vector<2x8x16xf32>
    %1464 = arith.subf %1449, %1463 : vector<2x8x16xf32>
    %cst_528 = arith.constant 9.99999974E-6 : f32
    %1465 = vector.broadcast %cst_528 : f32 to vector<2x1x16xf32>
    %1466 = arith.addf %1462, %1465 : vector<2x1x16xf32>
    %1467 = math.rsqrt %1466 : vector<2x1x16xf32>
    %1468 = vector.broadcast %1467 : vector<2x1x16xf32> to vector<2x8x16xf32>
    %1469 = arith.mulf %1464, %1468 : vector<2x8x16xf32>
    %1470 = vector.shape_cast %1469 : vector<2x8x16xf32> to vector<16x16xf32>
    %1471 = vector.broadcast %1446 : vector<1x16xf32> to vector<16x16xf32>
    %1472 = arith.mulf %1470, %1471 : vector<16x16xf32>
    %1473 = vector.broadcast %1448 : vector<1x16xf32> to vector<16x16xf32>
    %1474 = arith.addf %1472, %1473 : vector<16x16xf32>
    %c12_529 = arith.constant 12 : index
    %c0_530 = arith.constant 0 : index
    %c0_531 = arith.constant 0 : index
    %1475 = vector.load %arg10[%c12_529, %c0_530, %c0_531] : memref<16x1x16xf32, #tpu.memory_space<vmem>>, vector<1x1x16xf32>
    %1476 = vector.shape_cast %1475 : vector<1x1x16xf32> to vector<1x16xf32>
    %c12_532 = arith.constant 12 : index
    %c0_533 = arith.constant 0 : index
    %c0_534 = arith.constant 0 : index
    %1477 = vector.load %arg11[%c12_532, %c0_533, %c0_534] : memref<16x1x16xf32, #tpu.memory_space<vmem>>, vector<1x1x16xf32>
    %1478 = vector.shape_cast %1477 : vector<1x1x16xf32> to vector<1x16xf32>
    %1479 = vector.shape_cast %1444 : vector<16x16xf32> to vector<2x8x16xf32>
    %cst_535 = arith.constant dense<0.000000e+00> : vector<2x16xf32>
    %1480 = vector.multi_reduction <add>, %1479, %cst_535 [1] : vector<2x8x16xf32> to vector<2x16xf32>
    %1481 = vector.shape_cast %1480 : vector<2x16xf32> to vector<2x1x16xf32>
    %cst_536 = arith.constant 8.000000e+00 : f32
    %1482 = vector.broadcast %cst_536 : f32 to vector<2x1x16xf32>
    %1483 = arith.divf %1481, %1482 : vector<2x1x16xf32>
    %1484 = arith.mulf %1479, %1479 : vector<2x8x16xf32>
    %cst_537 = arith.constant dense<0.000000e+00> : vector<2x16xf32>
    %1485 = vector.multi_reduction <add>, %1484, %cst_537 [1] : vector<2x8x16xf32> to vector<2x16xf32>
    %1486 = vector.shape_cast %1485 : vector<2x16xf32> to vector<2x1x16xf32>
    %cst_538 = arith.constant 8.000000e+00 : f32
    %1487 = vector.broadcast %cst_538 : f32 to vector<2x1x16xf32>
    %1488 = arith.divf %1486, %1487 : vector<2x1x16xf32>
    %1489 = arith.mulf %1483, %1483 : vector<2x1x16xf32>
    %1490 = arith.subf %1488, %1489 : vector<2x1x16xf32>
    %cst_539 = arith.constant 0.000000e+00 : f32
    %1491 = vector.broadcast %cst_539 : f32 to vector<2x1x16xf32>
    %1492 = arith.maximumf %1490, %1491 : vector<2x1x16xf32>
    %1493 = vector.broadcast %1483 : vector<2x1x16xf32> to vector<2x8x16xf32>
    %1494 = arith.subf %1479, %1493 : vector<2x8x16xf32>
    %cst_540 = arith.constant 9.99999974E-6 : f32
    %1495 = vector.broadcast %cst_540 : f32 to vector<2x1x16xf32>
    %1496 = arith.addf %1492, %1495 : vector<2x1x16xf32>
    %1497 = math.rsqrt %1496 : vector<2x1x16xf32>
    %1498 = vector.broadcast %1497 : vector<2x1x16xf32> to vector<2x8x16xf32>
    %1499 = arith.mulf %1494, %1498 : vector<2x8x16xf32>
    %1500 = vector.shape_cast %1499 : vector<2x8x16xf32> to vector<16x16xf32>
    %1501 = vector.broadcast %1476 : vector<1x16xf32> to vector<16x16xf32>
    %1502 = arith.mulf %1500, %1501 : vector<16x16xf32>
    %1503 = vector.broadcast %1478 : vector<1x16xf32> to vector<16x16xf32>
    %1504 = arith.addf %1502, %1503 : vector<16x16xf32>
    %1505 = arith.negf %1504 : vector<16x16xf32>
    %1506 = math.exp %1505 : vector<16x16xf32>
    %cst_541 = arith.constant 1.000000e+00 : f32
    %1507 = vector.broadcast %cst_541 : f32 to vector<16x16xf32>
    %1508 = arith.addf %1507, %1506 : vector<16x16xf32>
    %1509 = arith.divf %1507, %1508 : vector<16x16xf32>
    %1510 = arith.mulf %1474, %1509 : vector<16x16xf32>
    %1511 = arith.truncf %1510 : vector<16x16xf32> to vector<16x16xbf16>
    %c0_542 = arith.constant 0 : index
    %c0_543 = arith.constant 0 : index
    %c0_544 = arith.constant 0 : index
    %1512 = vector.load %arg6[%c0_542, %c0_543, %c0_544] : memref<9x16x16xbf16, #tpu.memory_space<vmem>>, vector<1x16x16xbf16>
    %1513 = vector.shape_cast %1512 : vector<1x16x16xbf16> to vector<16x16xbf16>
    %c0_545 = arith.constant 0 : index
    %c0_546 = arith.constant 0 : index
    %c0_547 = arith.constant 0 : index
    %1514 = vector.load %arg7[%c0_545, %c0_546, %c0_547] : memref<9x16x16xbf16, #tpu.memory_space<vmem>>, vector<1x16x16xbf16>
    %1515 = vector.shape_cast %1514 : vector<1x16x16xbf16> to vector<16x16xbf16>
    %cst_548 = arith.constant dense<0.000000e+00> : vector<16x16xf32>
    %1516 = tpu.matmul %1511, %1513, %cst_548 {dimension_numbers = #tpu.dot_dimension_numbers<[1], [0], [0], [1], [0, 0, 1, 1], [], []>} : vector<16x16xbf16>, vector<16x16xbf16>, vector<16x16xf32> -> vector<16x16xf32>
    %cst_549 = arith.constant dense<0.000000e+00> : vector<16x16xf32>
    %1517 = tpu.matmul %1511, %1515, %cst_549 {dimension_numbers = #tpu.dot_dimension_numbers<[1], [0], [0], [1], [0, 0, 1, 1], [], []>} : vector<16x16xbf16>, vector<16x16xbf16>, vector<16x16xf32> -> vector<16x16xf32>
    %c13 = arith.constant 13 : index
    %c0_550 = arith.constant 0 : index
    %c0_551 = arith.constant 0 : index
    %1518 = vector.load %arg8[%c13, %c0_550, %c0_551] : memref<16x1x16xf32, #tpu.memory_space<vmem>>, vector<1x1x16xf32>
    %1519 = vector.shape_cast %1518 : vector<1x1x16xf32> to vector<1x16xf32>
    %c13_552 = arith.constant 13 : index
    %c0_553 = arith.constant 0 : index
    %c0_554 = arith.constant 0 : index
    %1520 = vector.load %arg9[%c13_552, %c0_553, %c0_554] : memref<16x1x16xf32, #tpu.memory_space<vmem>>, vector<1x1x16xf32>
    %1521 = vector.shape_cast %1520 : vector<1x1x16xf32> to vector<1x16xf32>
    %1522 = vector.shape_cast %1516 : vector<16x16xf32> to vector<2x8x16xf32>
    %cst_555 = arith.constant dense<0.000000e+00> : vector<2x16xf32>
    %1523 = vector.multi_reduction <add>, %1522, %cst_555 [1] : vector<2x8x16xf32> to vector<2x16xf32>
    %1524 = vector.shape_cast %1523 : vector<2x16xf32> to vector<2x1x16xf32>
    %cst_556 = arith.constant 8.000000e+00 : f32
    %1525 = vector.broadcast %cst_556 : f32 to vector<2x1x16xf32>
    %1526 = arith.divf %1524, %1525 : vector<2x1x16xf32>
    %1527 = arith.mulf %1522, %1522 : vector<2x8x16xf32>
    %cst_557 = arith.constant dense<0.000000e+00> : vector<2x16xf32>
    %1528 = vector.multi_reduction <add>, %1527, %cst_557 [1] : vector<2x8x16xf32> to vector<2x16xf32>
    %1529 = vector.shape_cast %1528 : vector<2x16xf32> to vector<2x1x16xf32>
    %cst_558 = arith.constant 8.000000e+00 : f32
    %1530 = vector.broadcast %cst_558 : f32 to vector<2x1x16xf32>
    %1531 = arith.divf %1529, %1530 : vector<2x1x16xf32>
    %1532 = arith.mulf %1526, %1526 : vector<2x1x16xf32>
    %1533 = arith.subf %1531, %1532 : vector<2x1x16xf32>
    %cst_559 = arith.constant 0.000000e+00 : f32
    %1534 = vector.broadcast %cst_559 : f32 to vector<2x1x16xf32>
    %1535 = arith.maximumf %1533, %1534 : vector<2x1x16xf32>
    %1536 = vector.broadcast %1526 : vector<2x1x16xf32> to vector<2x8x16xf32>
    %1537 = arith.subf %1522, %1536 : vector<2x8x16xf32>
    %cst_560 = arith.constant 9.99999974E-6 : f32
    %1538 = vector.broadcast %cst_560 : f32 to vector<2x1x16xf32>
    %1539 = arith.addf %1535, %1538 : vector<2x1x16xf32>
    %1540 = math.rsqrt %1539 : vector<2x1x16xf32>
    %1541 = vector.broadcast %1540 : vector<2x1x16xf32> to vector<2x8x16xf32>
    %1542 = arith.mulf %1537, %1541 : vector<2x8x16xf32>
    %1543 = vector.shape_cast %1542 : vector<2x8x16xf32> to vector<16x16xf32>
    %1544 = vector.broadcast %1519 : vector<1x16xf32> to vector<16x16xf32>
    %1545 = arith.mulf %1543, %1544 : vector<16x16xf32>
    %1546 = vector.broadcast %1521 : vector<1x16xf32> to vector<16x16xf32>
    %1547 = arith.addf %1545, %1546 : vector<16x16xf32>
    %c13_561 = arith.constant 13 : index
    %c0_562 = arith.constant 0 : index
    %c0_563 = arith.constant 0 : index
    %1548 = vector.load %arg10[%c13_561, %c0_562, %c0_563] : memref<16x1x16xf32, #tpu.memory_space<vmem>>, vector<1x1x16xf32>
    %1549 = vector.shape_cast %1548 : vector<1x1x16xf32> to vector<1x16xf32>
    %c13_564 = arith.constant 13 : index
    %c0_565 = arith.constant 0 : index
    %c0_566 = arith.constant 0 : index
    %1550 = vector.load %arg11[%c13_564, %c0_565, %c0_566] : memref<16x1x16xf32, #tpu.memory_space<vmem>>, vector<1x1x16xf32>
    %1551 = vector.shape_cast %1550 : vector<1x1x16xf32> to vector<1x16xf32>
    %1552 = vector.shape_cast %1517 : vector<16x16xf32> to vector<2x8x16xf32>
    %cst_567 = arith.constant dense<0.000000e+00> : vector<2x16xf32>
    %1553 = vector.multi_reduction <add>, %1552, %cst_567 [1] : vector<2x8x16xf32> to vector<2x16xf32>
    %1554 = vector.shape_cast %1553 : vector<2x16xf32> to vector<2x1x16xf32>
    %cst_568 = arith.constant 8.000000e+00 : f32
    %1555 = vector.broadcast %cst_568 : f32 to vector<2x1x16xf32>
    %1556 = arith.divf %1554, %1555 : vector<2x1x16xf32>
    %1557 = arith.mulf %1552, %1552 : vector<2x8x16xf32>
    %cst_569 = arith.constant dense<0.000000e+00> : vector<2x16xf32>
    %1558 = vector.multi_reduction <add>, %1557, %cst_569 [1] : vector<2x8x16xf32> to vector<2x16xf32>
    %1559 = vector.shape_cast %1558 : vector<2x16xf32> to vector<2x1x16xf32>
    %cst_570 = arith.constant 8.000000e+00 : f32
    %1560 = vector.broadcast %cst_570 : f32 to vector<2x1x16xf32>
    %1561 = arith.divf %1559, %1560 : vector<2x1x16xf32>
    %1562 = arith.mulf %1556, %1556 : vector<2x1x16xf32>
    %1563 = arith.subf %1561, %1562 : vector<2x1x16xf32>
    %cst_571 = arith.constant 0.000000e+00 : f32
    %1564 = vector.broadcast %cst_571 : f32 to vector<2x1x16xf32>
    %1565 = arith.maximumf %1563, %1564 : vector<2x1x16xf32>
    %1566 = vector.broadcast %1556 : vector<2x1x16xf32> to vector<2x8x16xf32>
    %1567 = arith.subf %1552, %1566 : vector<2x8x16xf32>
    %cst_572 = arith.constant 9.99999974E-6 : f32
    %1568 = vector.broadcast %cst_572 : f32 to vector<2x1x16xf32>
    %1569 = arith.addf %1565, %1568 : vector<2x1x16xf32>
    %1570 = math.rsqrt %1569 : vector<2x1x16xf32>
    %1571 = vector.broadcast %1570 : vector<2x1x16xf32> to vector<2x8x16xf32>
    %1572 = arith.mulf %1567, %1571 : vector<2x8x16xf32>
    %1573 = vector.shape_cast %1572 : vector<2x8x16xf32> to vector<16x16xf32>
    %1574 = vector.broadcast %1549 : vector<1x16xf32> to vector<16x16xf32>
    %1575 = arith.mulf %1573, %1574 : vector<16x16xf32>
    %1576 = vector.broadcast %1551 : vector<1x16xf32> to vector<16x16xf32>
    %1577 = arith.addf %1575, %1576 : vector<16x16xf32>
    %1578 = arith.negf %1577 : vector<16x16xf32>
    %1579 = math.exp %1578 : vector<16x16xf32>
    %cst_573 = arith.constant 1.000000e+00 : f32
    %1580 = vector.broadcast %cst_573 : f32 to vector<16x16xf32>
    %1581 = arith.addf %1580, %1579 : vector<16x16xf32>
    %1582 = arith.divf %1580, %1581 : vector<16x16xf32>
    %1583 = arith.mulf %1547, %1582 : vector<16x16xf32>
    %1584 = arith.addf %1510, %1583 : vector<16x16xf32>
    %cst_574 = arith.constant 0.707106769 : f32
    %1585 = vector.broadcast %cst_574 : f32 to vector<16x16xf32>
    %1586 = arith.mulf %1584, %1585 : vector<16x16xf32>
    %1587 = arith.truncf %1586 : vector<16x16xf32> to vector<16x16xbf16>
    %c7_575 = arith.constant 7 : index
    %c0_576 = arith.constant 0 : index
    %c0_577 = arith.constant 0 : index
    %1588 = vector.load %arg6[%c7_575, %c0_576, %c0_577] : memref<9x16x16xbf16, #tpu.memory_space<vmem>>, vector<1x16x16xbf16>
    %1589 = vector.shape_cast %1588 : vector<1x16x16xbf16> to vector<16x16xbf16>
    %c7_578 = arith.constant 7 : index
    %c0_579 = arith.constant 0 : index
    %c0_580 = arith.constant 0 : index
    %1590 = vector.load %arg7[%c7_578, %c0_579, %c0_580] : memref<9x16x16xbf16, #tpu.memory_space<vmem>>, vector<1x16x16xbf16>
    %1591 = vector.shape_cast %1590 : vector<1x16x16xbf16> to vector<16x16xbf16>
    %cst_581 = arith.constant dense<0.000000e+00> : vector<16x16xf32>
    %1592 = tpu.matmul %1587, %1589, %cst_581 {dimension_numbers = #tpu.dot_dimension_numbers<[1], [0], [0], [1], [0, 0, 1, 1], [], []>} : vector<16x16xbf16>, vector<16x16xbf16>, vector<16x16xf32> -> vector<16x16xf32>
    %cst_582 = arith.constant dense<0.000000e+00> : vector<16x16xf32>
    %1593 = tpu.matmul %1587, %1591, %cst_582 {dimension_numbers = #tpu.dot_dimension_numbers<[1], [0], [0], [1], [0, 0, 1, 1], [], []>} : vector<16x16xbf16>, vector<16x16xbf16>, vector<16x16xf32> -> vector<16x16xf32>
    %c14 = arith.constant 14 : index
    %c0_583 = arith.constant 0 : index
    %c0_584 = arith.constant 0 : index
    %1594 = vector.load %arg8[%c14, %c0_583, %c0_584] : memref<16x1x16xf32, #tpu.memory_space<vmem>>, vector<1x1x16xf32>
    %1595 = vector.shape_cast %1594 : vector<1x1x16xf32> to vector<1x16xf32>
    %c14_585 = arith.constant 14 : index
    %c0_586 = arith.constant 0 : index
    %c0_587 = arith.constant 0 : index
    %1596 = vector.load %arg9[%c14_585, %c0_586, %c0_587] : memref<16x1x16xf32, #tpu.memory_space<vmem>>, vector<1x1x16xf32>
    %1597 = vector.shape_cast %1596 : vector<1x1x16xf32> to vector<1x16xf32>
    %1598 = vector.shape_cast %1592 : vector<16x16xf32> to vector<2x8x16xf32>
    %cst_588 = arith.constant dense<0.000000e+00> : vector<2x16xf32>
    %1599 = vector.multi_reduction <add>, %1598, %cst_588 [1] : vector<2x8x16xf32> to vector<2x16xf32>
    %1600 = vector.shape_cast %1599 : vector<2x16xf32> to vector<2x1x16xf32>
    %cst_589 = arith.constant 8.000000e+00 : f32
    %1601 = vector.broadcast %cst_589 : f32 to vector<2x1x16xf32>
    %1602 = arith.divf %1600, %1601 : vector<2x1x16xf32>
    %1603 = arith.mulf %1598, %1598 : vector<2x8x16xf32>
    %cst_590 = arith.constant dense<0.000000e+00> : vector<2x16xf32>
    %1604 = vector.multi_reduction <add>, %1603, %cst_590 [1] : vector<2x8x16xf32> to vector<2x16xf32>
    %1605 = vector.shape_cast %1604 : vector<2x16xf32> to vector<2x1x16xf32>
    %cst_591 = arith.constant 8.000000e+00 : f32
    %1606 = vector.broadcast %cst_591 : f32 to vector<2x1x16xf32>
    %1607 = arith.divf %1605, %1606 : vector<2x1x16xf32>
    %1608 = arith.mulf %1602, %1602 : vector<2x1x16xf32>
    %1609 = arith.subf %1607, %1608 : vector<2x1x16xf32>
    %cst_592 = arith.constant 0.000000e+00 : f32
    %1610 = vector.broadcast %cst_592 : f32 to vector<2x1x16xf32>
    %1611 = arith.maximumf %1609, %1610 : vector<2x1x16xf32>
    %1612 = vector.broadcast %1602 : vector<2x1x16xf32> to vector<2x8x16xf32>
    %1613 = arith.subf %1598, %1612 : vector<2x8x16xf32>
    %cst_593 = arith.constant 9.99999974E-6 : f32
    %1614 = vector.broadcast %cst_593 : f32 to vector<2x1x16xf32>
    %1615 = arith.addf %1611, %1614 : vector<2x1x16xf32>
    %1616 = math.rsqrt %1615 : vector<2x1x16xf32>
    %1617 = vector.broadcast %1616 : vector<2x1x16xf32> to vector<2x8x16xf32>
    %1618 = arith.mulf %1613, %1617 : vector<2x8x16xf32>
    %1619 = vector.shape_cast %1618 : vector<2x8x16xf32> to vector<16x16xf32>
    %1620 = vector.broadcast %1595 : vector<1x16xf32> to vector<16x16xf32>
    %1621 = arith.mulf %1619, %1620 : vector<16x16xf32>
    %1622 = vector.broadcast %1597 : vector<1x16xf32> to vector<16x16xf32>
    %1623 = arith.addf %1621, %1622 : vector<16x16xf32>
    %c14_594 = arith.constant 14 : index
    %c0_595 = arith.constant 0 : index
    %c0_596 = arith.constant 0 : index
    %1624 = vector.load %arg10[%c14_594, %c0_595, %c0_596] : memref<16x1x16xf32, #tpu.memory_space<vmem>>, vector<1x1x16xf32>
    %1625 = vector.shape_cast %1624 : vector<1x1x16xf32> to vector<1x16xf32>
    %c14_597 = arith.constant 14 : index
    %c0_598 = arith.constant 0 : index
    %c0_599 = arith.constant 0 : index
    %1626 = vector.load %arg11[%c14_597, %c0_598, %c0_599] : memref<16x1x16xf32, #tpu.memory_space<vmem>>, vector<1x1x16xf32>
    %1627 = vector.shape_cast %1626 : vector<1x1x16xf32> to vector<1x16xf32>
    %1628 = vector.shape_cast %1593 : vector<16x16xf32> to vector<2x8x16xf32>
    %cst_600 = arith.constant dense<0.000000e+00> : vector<2x16xf32>
    %1629 = vector.multi_reduction <add>, %1628, %cst_600 [1] : vector<2x8x16xf32> to vector<2x16xf32>
    %1630 = vector.shape_cast %1629 : vector<2x16xf32> to vector<2x1x16xf32>
    %cst_601 = arith.constant 8.000000e+00 : f32
    %1631 = vector.broadcast %cst_601 : f32 to vector<2x1x16xf32>
    %1632 = arith.divf %1630, %1631 : vector<2x1x16xf32>
    %1633 = arith.mulf %1628, %1628 : vector<2x8x16xf32>
    %cst_602 = arith.constant dense<0.000000e+00> : vector<2x16xf32>
    %1634 = vector.multi_reduction <add>, %1633, %cst_602 [1] : vector<2x8x16xf32> to vector<2x16xf32>
    %1635 = vector.shape_cast %1634 : vector<2x16xf32> to vector<2x1x16xf32>
    %cst_603 = arith.constant 8.000000e+00 : f32
    %1636 = vector.broadcast %cst_603 : f32 to vector<2x1x16xf32>
    %1637 = arith.divf %1635, %1636 : vector<2x1x16xf32>
    %1638 = arith.mulf %1632, %1632 : vector<2x1x16xf32>
    %1639 = arith.subf %1637, %1638 : vector<2x1x16xf32>
    %cst_604 = arith.constant 0.000000e+00 : f32
    %1640 = vector.broadcast %cst_604 : f32 to vector<2x1x16xf32>
    %1641 = arith.maximumf %1639, %1640 : vector<2x1x16xf32>
    %1642 = vector.broadcast %1632 : vector<2x1x16xf32> to vector<2x8x16xf32>
    %1643 = arith.subf %1628, %1642 : vector<2x8x16xf32>
    %cst_605 = arith.constant 9.99999974E-6 : f32
    %1644 = vector.broadcast %cst_605 : f32 to vector<2x1x16xf32>
    %1645 = arith.addf %1641, %1644 : vector<2x1x16xf32>
    %1646 = math.rsqrt %1645 : vector<2x1x16xf32>
    %1647 = vector.broadcast %1646 : vector<2x1x16xf32> to vector<2x8x16xf32>
    %1648 = arith.mulf %1643, %1647 : vector<2x8x16xf32>
    %1649 = vector.shape_cast %1648 : vector<2x8x16xf32> to vector<16x16xf32>
    %1650 = vector.broadcast %1625 : vector<1x16xf32> to vector<16x16xf32>
    %1651 = arith.mulf %1649, %1650 : vector<16x16xf32>
    %1652 = vector.broadcast %1627 : vector<1x16xf32> to vector<16x16xf32>
    %1653 = arith.addf %1651, %1652 : vector<16x16xf32>
    %1654 = arith.negf %1653 : vector<16x16xf32>
    %1655 = math.exp %1654 : vector<16x16xf32>
    %cst_606 = arith.constant 1.000000e+00 : f32
    %1656 = vector.broadcast %cst_606 : f32 to vector<16x16xf32>
    %1657 = arith.addf %1656, %1655 : vector<16x16xf32>
    %1658 = arith.divf %1656, %1657 : vector<16x16xf32>
    %1659 = arith.mulf %1623, %1658 : vector<16x16xf32>
    %1660 = arith.addf %1586, %1659 : vector<16x16xf32>
    %cst_607 = arith.constant 0.707106769 : f32
    %1661 = vector.broadcast %cst_607 : f32 to vector<16x16xf32>
    %1662 = arith.mulf %1660, %1661 : vector<16x16xf32>
    %1663 = arith.truncf %1662 : vector<16x16xf32> to vector<16x16xbf16>
    %c8_608 = arith.constant 8 : index
    %c0_609 = arith.constant 0 : index
    %c0_610 = arith.constant 0 : index
    %1664 = vector.load %arg6[%c8_608, %c0_609, %c0_610] : memref<9x16x16xbf16, #tpu.memory_space<vmem>>, vector<1x16x16xbf16>
    %1665 = vector.shape_cast %1664 : vector<1x16x16xbf16> to vector<16x16xbf16>
    %c8_611 = arith.constant 8 : index
    %c0_612 = arith.constant 0 : index
    %c0_613 = arith.constant 0 : index
    %1666 = vector.load %arg7[%c8_611, %c0_612, %c0_613] : memref<9x16x16xbf16, #tpu.memory_space<vmem>>, vector<1x16x16xbf16>
    %1667 = vector.shape_cast %1666 : vector<1x16x16xbf16> to vector<16x16xbf16>
    %cst_614 = arith.constant dense<0.000000e+00> : vector<16x16xf32>
    %1668 = tpu.matmul %1663, %1665, %cst_614 {dimension_numbers = #tpu.dot_dimension_numbers<[1], [0], [0], [1], [0, 0, 1, 1], [], []>} : vector<16x16xbf16>, vector<16x16xbf16>, vector<16x16xf32> -> vector<16x16xf32>
    %cst_615 = arith.constant dense<0.000000e+00> : vector<16x16xf32>
    %1669 = tpu.matmul %1663, %1667, %cst_615 {dimension_numbers = #tpu.dot_dimension_numbers<[1], [0], [0], [1], [0, 0, 1, 1], [], []>} : vector<16x16xbf16>, vector<16x16xbf16>, vector<16x16xf32> -> vector<16x16xf32>
    %c15 = arith.constant 15 : index
    %c0_616 = arith.constant 0 : index
    %c0_617 = arith.constant 0 : index
    %1670 = vector.load %arg8[%c15, %c0_616, %c0_617] : memref<16x1x16xf32, #tpu.memory_space<vmem>>, vector<1x1x16xf32>
    %1671 = vector.shape_cast %1670 : vector<1x1x16xf32> to vector<1x16xf32>
    %c15_618 = arith.constant 15 : index
    %c0_619 = arith.constant 0 : index
    %c0_620 = arith.constant 0 : index
    %1672 = vector.load %arg9[%c15_618, %c0_619, %c0_620] : memref<16x1x16xf32, #tpu.memory_space<vmem>>, vector<1x1x16xf32>
    %1673 = vector.shape_cast %1672 : vector<1x1x16xf32> to vector<1x16xf32>
    %1674 = vector.shape_cast %1668 : vector<16x16xf32> to vector<2x8x16xf32>
    %cst_621 = arith.constant dense<0.000000e+00> : vector<2x16xf32>
    %1675 = vector.multi_reduction <add>, %1674, %cst_621 [1] : vector<2x8x16xf32> to vector<2x16xf32>
    %1676 = vector.shape_cast %1675 : vector<2x16xf32> to vector<2x1x16xf32>
    %cst_622 = arith.constant 8.000000e+00 : f32
    %1677 = vector.broadcast %cst_622 : f32 to vector<2x1x16xf32>
    %1678 = arith.divf %1676, %1677 : vector<2x1x16xf32>
    %1679 = arith.mulf %1674, %1674 : vector<2x8x16xf32>
    %cst_623 = arith.constant dense<0.000000e+00> : vector<2x16xf32>
    %1680 = vector.multi_reduction <add>, %1679, %cst_623 [1] : vector<2x8x16xf32> to vector<2x16xf32>
    %1681 = vector.shape_cast %1680 : vector<2x16xf32> to vector<2x1x16xf32>
    %cst_624 = arith.constant 8.000000e+00 : f32
    %1682 = vector.broadcast %cst_624 : f32 to vector<2x1x16xf32>
    %1683 = arith.divf %1681, %1682 : vector<2x1x16xf32>
    %1684 = arith.mulf %1678, %1678 : vector<2x1x16xf32>
    %1685 = arith.subf %1683, %1684 : vector<2x1x16xf32>
    %cst_625 = arith.constant 0.000000e+00 : f32
    %1686 = vector.broadcast %cst_625 : f32 to vector<2x1x16xf32>
    %1687 = arith.maximumf %1685, %1686 : vector<2x1x16xf32>
    %1688 = vector.broadcast %1678 : vector<2x1x16xf32> to vector<2x8x16xf32>
    %1689 = arith.subf %1674, %1688 : vector<2x8x16xf32>
    %cst_626 = arith.constant 9.99999974E-6 : f32
    %1690 = vector.broadcast %cst_626 : f32 to vector<2x1x16xf32>
    %1691 = arith.addf %1687, %1690 : vector<2x1x16xf32>
    %1692 = math.rsqrt %1691 : vector<2x1x16xf32>
    %1693 = vector.broadcast %1692 : vector<2x1x16xf32> to vector<2x8x16xf32>
    %1694 = arith.mulf %1689, %1693 : vector<2x8x16xf32>
    %1695 = vector.shape_cast %1694 : vector<2x8x16xf32> to vector<16x16xf32>
    %1696 = vector.broadcast %1671 : vector<1x16xf32> to vector<16x16xf32>
    %1697 = arith.mulf %1695, %1696 : vector<16x16xf32>
    %1698 = vector.broadcast %1673 : vector<1x16xf32> to vector<16x16xf32>
    %1699 = arith.addf %1697, %1698 : vector<16x16xf32>
    %c15_627 = arith.constant 15 : index
    %c0_628 = arith.constant 0 : index
    %c0_629 = arith.constant 0 : index
    %1700 = vector.load %arg10[%c15_627, %c0_628, %c0_629] : memref<16x1x16xf32, #tpu.memory_space<vmem>>, vector<1x1x16xf32>
    %1701 = vector.shape_cast %1700 : vector<1x1x16xf32> to vector<1x16xf32>
    %c15_630 = arith.constant 15 : index
    %c0_631 = arith.constant 0 : index
    %c0_632 = arith.constant 0 : index
    %1702 = vector.load %arg11[%c15_630, %c0_631, %c0_632] : memref<16x1x16xf32, #tpu.memory_space<vmem>>, vector<1x1x16xf32>
    %1703 = vector.shape_cast %1702 : vector<1x1x16xf32> to vector<1x16xf32>
    %1704 = vector.shape_cast %1669 : vector<16x16xf32> to vector<2x8x16xf32>
    %cst_633 = arith.constant dense<0.000000e+00> : vector<2x16xf32>
    %1705 = vector.multi_reduction <add>, %1704, %cst_633 [1] : vector<2x8x16xf32> to vector<2x16xf32>
    %1706 = vector.shape_cast %1705 : vector<2x16xf32> to vector<2x1x16xf32>
    %cst_634 = arith.constant 8.000000e+00 : f32
    %1707 = vector.broadcast %cst_634 : f32 to vector<2x1x16xf32>
    %1708 = arith.divf %1706, %1707 : vector<2x1x16xf32>
    %1709 = arith.mulf %1704, %1704 : vector<2x8x16xf32>
    %cst_635 = arith.constant dense<0.000000e+00> : vector<2x16xf32>
    %1710 = vector.multi_reduction <add>, %1709, %cst_635 [1] : vector<2x8x16xf32> to vector<2x16xf32>
    %1711 = vector.shape_cast %1710 : vector<2x16xf32> to vector<2x1x16xf32>
    %cst_636 = arith.constant 8.000000e+00 : f32
    %1712 = vector.broadcast %cst_636 : f32 to vector<2x1x16xf32>
    %1713 = arith.divf %1711, %1712 : vector<2x1x16xf32>
    %1714 = arith.mulf %1708, %1708 : vector<2x1x16xf32>
    %1715 = arith.subf %1713, %1714 : vector<2x1x16xf32>
    %cst_637 = arith.constant 0.000000e+00 : f32
    %1716 = vector.broadcast %cst_637 : f32 to vector<2x1x16xf32>
    %1717 = arith.maximumf %1715, %1716 : vector<2x1x16xf32>
    %1718 = vector.broadcast %1708 : vector<2x1x16xf32> to vector<2x8x16xf32>
    %1719 = arith.subf %1704, %1718 : vector<2x8x16xf32>
    %cst_638 = arith.constant 9.99999974E-6 : f32
    %1720 = vector.broadcast %cst_638 : f32 to vector<2x1x16xf32>
    %1721 = arith.addf %1717, %1720 : vector<2x1x16xf32>
    %1722 = math.rsqrt %1721 : vector<2x1x16xf32>
    %1723 = vector.broadcast %1722 : vector<2x1x16xf32> to vector<2x8x16xf32>
    %1724 = arith.mulf %1719, %1723 : vector<2x8x16xf32>
    %1725 = vector.shape_cast %1724 : vector<2x8x16xf32> to vector<16x16xf32>
    %1726 = vector.broadcast %1701 : vector<1x16xf32> to vector<16x16xf32>
    %1727 = arith.mulf %1725, %1726 : vector<16x16xf32>
    %1728 = vector.broadcast %1703 : vector<1x16xf32> to vector<16x16xf32>
    %1729 = arith.addf %1727, %1728 : vector<16x16xf32>
    %1730 = arith.negf %1729 : vector<16x16xf32>
    %1731 = math.exp %1730 : vector<16x16xf32>
    %cst_639 = arith.constant 1.000000e+00 : f32
    %1732 = vector.broadcast %cst_639 : f32 to vector<16x16xf32>
    %1733 = arith.addf %1732, %1731 : vector<16x16xf32>
    %1734 = arith.divf %1732, %1733 : vector<16x16xf32>
    %1735 = arith.mulf %1699, %1734 : vector<16x16xf32>
    %1736 = arith.addf %1662, %1735 : vector<16x16xf32>
    %cst_640 = arith.constant 0.707106769 : f32
    %1737 = vector.broadcast %cst_640 : f32 to vector<16x16xf32>
    %1738 = arith.mulf %1736, %1737 : vector<16x16xf32>
    %cst_641 = arith.constant 0.000000e+00 : f32
    %1739 = vector.broadcast %cst_641 : f32 to vector<16x16xf32>
    %1740 = arith.maximumf %1738, %1739 : vector<16x16xf32>
    %1741 = arith.addf %1266, %1740 : vector<16x16xf32>
    %1742 = arith.truncf %1741 : vector<16x16xf32> to vector<16x16xbf16>
    %c0_642 = arith.constant 0 : index
    %c0_643 = arith.constant 0 : index
    %1743 = vector.load %arg15[%c0_642, %c0_643] : memref<16x128xbf16, #tpu.memory_space<vmem>>, vector<16x128xbf16>
    %cst_644 = arith.constant dense<0.000000e+00> : vector<16x128xf32>
    %1744 = tpu.matmul %1742, %1743, %cst_644 {dimension_numbers = #tpu.dot_dimension_numbers<[1], [0], [0], [1], [0, 0, 1, 1], [], []>} : vector<16x16xbf16>, vector<16x128xbf16>, vector<16x128xf32> -> vector<16x128xf32>
    %1745 = tpu.iota {dimensions = array<i32: 1>} : vector<1x128xi32>
    %c4_i32_645 = arith.constant 4 : i32
    %1746 = vector.broadcast %c4_i32_645 : i32 to vector<1x128xi32>
    %1747 = arith.cmpi eq, %1745, %1746 : vector<1x128xi32>
    %1748 = arith.extui %1747 : vector<1x128xi1> to vector<1x128xi32>
    %1749 = arith.sitofp %1748 : vector<1x128xi32> to vector<1x128xf32>
    %1750 = vector.broadcast %1436 : vector<16x1xf32> to vector<16x128xf32>
    %1751 = vector.broadcast %1749 : vector<1x128xf32> to vector<16x128xf32>
    %1752 = arith.mulf %1750, %1751 : vector<16x128xf32>
    %1753 = arith.addf %1744, %1752 : vector<16x128xf32>
    %c0_646 = arith.constant 0 : index
    %c0_647 = arith.constant 0 : index
    %1754 = vector.load %arg16[%c0_646, %c0_647] : memref<16x128xf32, #tpu.memory_space<vmem>>, vector<16x128xf32>
    tpu.vector_store %arg16[%c0_646, %c0_647], %1753 {strides = array<i32>} : memref<16x128xf32, #tpu.memory_space<vmem>>, vector<16x128xf32>,
    return
  }
  func.func @transform_0(%arg0: i32) -> (i32, i32) {
    %c0_i32 = arith.constant 0 : i32
    %c0_i32_0 = arith.constant 0 : i32
    return %arg0, %c0_i32 : i32, i32
  }
  func.func @transform_1(%arg0: i32) -> (i32, i32) {
    %c0_i32 = arith.constant 0 : i32
    %c0_i32_0 = arith.constant 0 : i32
    %c0_i32_1 = arith.constant 0 : i32
    return %c0_i32, %c0_i32_0 : i32, i32
  }
  func.func @transform_2(%arg0: i32) -> (i32, i32) {
    %c0_i32 = arith.constant 0 : i32
    %c0_i32_0 = arith.constant 0 : i32
    %c0_i32_1 = arith.constant 0 : i32
    return %c0_i32, %c0_i32_0 : i32, i32
  }
  func.func @transform_3(%arg0: i32) -> (i32, i32, i32) {
    %c0_i32 = arith.constant 0 : i32
    %c0_i32_0 = arith.constant 0 : i32
    %c0_i32_1 = arith.constant 0 : i32
    %c0_i32_2 = arith.constant 0 : i32
    return %c0_i32, %c0_i32_0, %c0_i32_1 : i32, i32, i32
  }
  func.func @transform_4(%arg0: i32) -> (i32, i32, i32) {
    %c0_i32 = arith.constant 0 : i32
    %c0_i32_0 = arith.constant 0 : i32
    %c0_i32_1 = arith.constant 0 : i32
    %c0_i32_2 = arith.constant 0 : i32
    return %c0_i32, %c0_i32_0, %c0_i32_1 : i32, i32, i32
  }
  func.func @transform_5(%arg0: i32) -> (i32, i32, i32) {
    %c0_i32 = arith.constant 0 : i32
    %c0_i32_0 = arith.constant 0 : i32
    %c0_i32_1 = arith.constant 0 : i32
    %c0_i32_2 = arith.constant 0 : i32
    return %c0_i32, %c0_i32_0, %c0_i32_1 : i32, i32, i32
  }
  func.func @transform_6(%arg0: i32) -> (i32, i32, i32) {
    %c0_i32 = arith.constant 0 : i32
    %c0_i32_0 = arith.constant 0 : i32
    %c0_i32_1 = arith.constant 0 : i32
    %c0_i32_2 = arith.constant 0 : i32
    return %c0_i32, %c0_i32_0, %c0_i32_1 : i32, i32, i32
  }
  func.func @transform_7(%arg0: i32) -> (i32, i32, i32) {
    %c0_i32 = arith.constant 0 : i32
    %c0_i32_0 = arith.constant 0 : i32
    %c0_i32_1 = arith.constant 0 : i32
    %c0_i32_2 = arith.constant 0 : i32
    return %c0_i32, %c0_i32_0, %c0_i32_1 : i32, i32, i32
  }
  func.func @transform_8(%arg0: i32) -> (i32, i32, i32) {
    %c0_i32 = arith.constant 0 : i32
    %c0_i32_0 = arith.constant 0 : i32
    %c0_i32_1 = arith.constant 0 : i32
    %c0_i32_2 = arith.constant 0 : i32
    return %c0_i32, %c0_i32_0, %c0_i32_1 : i32, i32, i32
  }
  func.func @transform_9(%arg0: i32) -> (i32, i32, i32) {
    %c0_i32 = arith.constant 0 : i32
    %c0_i32_0 = arith.constant 0 : i32
    %c0_i32_1 = arith.constant 0 : i32
    %c0_i32_2 = arith.constant 0 : i32
    return %c0_i32, %c0_i32_0, %c0_i32_1 : i32, i32, i32
  }
  func.func @transform_10(%arg0: i32) -> (i32, i32, i32) {
    %c0_i32 = arith.constant 0 : i32
    %c0_i32_0 = arith.constant 0 : i32
    %c0_i32_1 = arith.constant 0 : i32
    %c0_i32_2 = arith.constant 0 : i32
    return %c0_i32, %c0_i32_0, %c0_i32_1 : i32, i32, i32
  }
  func.func @transform_11(%arg0: i32) -> (i32, i32, i32) {
    %c0_i32 = arith.constant 0 : i32
    %c0_i32_0 = arith.constant 0 : i32
    %c0_i32_1 = arith.constant 0 : i32
    %c0_i32_2 = arith.constant 0 : i32
    return %c0_i32, %c0_i32_0, %c0_i32_1 : i32, i32, i32
  }
  func.func @transform_12(%arg0: i32) -> (i32, i32, i32) {
    %c0_i32 = arith.constant 0 : i32
    %c0_i32_0 = arith.constant 0 : i32
    %c0_i32_1 = arith.constant 0 : i32
    %c0_i32_2 = arith.constant 0 : i32
    return %c0_i32, %c0_i32_0, %c0_i32_1 : i32, i32, i32
  }
  func.func @transform_13(%arg0: i32) -> (i32, i32, i32) {
    %c0_i32 = arith.constant 0 : i32
    %c0_i32_0 = arith.constant 0 : i32
    %c0_i32_1 = arith.constant 0 : i32
    %c0_i32_2 = arith.constant 0 : i32
    return %c0_i32, %c0_i32_0, %c0_i32_1 : i32, i32, i32
  }
  func.func @transform_14(%arg0: i32) -> (i32, i32) {
    %c0_i32 = arith.constant 0 : i32
    %c0_i32_0 = arith.constant 0 : i32
    %c0_i32_1 = arith.constant 0 : i32
    return %c0_i32, %c0_i32_0 : i32, i32
  }
  func.func @transform_15(%arg0: i32) -> (i32, i32) {
    %c0_i32 = arith.constant 0 : i32
    %c0_i32_0 = arith.constant 0 : i32
    return %arg0, %c0_i32 : i32, i32
  }
}

</mosaic_0001>

<llo_original>
// kernel: fwd.1
$region0: #{fwd.1}
  #allocation0 [shape = 'u32[]', space=smem, size = 0x4, offset = 0x4, fixed_abs, tag = 'smem constant byte address 0x4 - core index']
  #allocation1 [shape = 'u32[144,128]{1,0:T(1,128)}', space=vmem, size = 0x12000, scoped, tag = 'internal scratch']
  %s0 = inlined_call_operand.vmem [shape: f32[16,16], index: 0, kind: input, shape index: {}]
  %s1 = inlined_call_operand.vmem [shape: f32[1,16], index: 1, kind: input, shape index: {}]
  %s2 = inlined_call_operand.vmem [shape: f32[1,16], index: 2, kind: input, shape index: {}]
  %s3 = inlined_call_operand.hbm [shape: bf16[1,16,16], index: 3, kind: input, shape index: {}]
  %s4 = inlined_call_operand.hbm [shape: bf16[1,16,16], index: 4, kind: input, shape index: {}]
  %s5 = inlined_call_operand.vmem [shape: bf16[9,16,16], index: 5, kind: input, shape index: {}]
  %s6 = inlined_call_operand.hbm [shape: bf16[9,16,16], index: 6, kind: input, shape index: {}]
  %s7 = inlined_call_operand.hbm [shape: f32[16,1,16], index: 7, kind: input, shape index: {}]
  %s8 = inlined_call_operand.hbm [shape: f32[16,1,16], index: 8, kind: input, shape index: {}]
  %s9 = inlined_call_operand.hbm [shape: f32[16,1,16], index: 9, kind: input, shape index: {}]
  %s10 = inlined_call_operand.hbm [shape: f32[16,1,16], index: 10, kind: input, shape index: {}]
  %s11 = inlined_call_operand.hbm [shape: bf16[3,16,16], index: 11, kind: input, shape index: {}]
  %s12 = inlined_call_operand.vmem [shape: f32[3,1,16], index: 12, kind: input, shape index: {}]
  %s13 = inlined_call_operand.hbm [shape: f32[3,1,16], index: 13, kind: input, shape index: {}]
  %s14 = inlined_call_operand.hbm [shape: bf16[16,128], index: 14, kind: input, shape index: {}]
  %s15 = inlined_call_operand.vmem [shape: f32[16,128], index: 15, kind: output, shape index: {}]
  %s16 = sld [smem:[#allocation0]]
  $region110: #{fwd.1} parent=0
    _
  %s18 = ssub.s32 1, %s16
  %s19 = scalar_select 0, %s18, %s16
  $region1: #{fwd.1} parent=0
    #allocation2 [shape = 'u8[4096]{0}', space=vmem, size = 0x1000, scoped, tag = 'input window, operand 3, single buffered']
    #allocation3 [shape = 's32[1]{0}', space=sflag, size = 0x4, scoped, tag = 'scoped memory for fwd.1']
    #allocation4 [shape = 'u8[4096]{0}', space=vmem, size = 0x1000, scoped, tag = 'input window, operand 4, single buffered']
    #allocation5 [shape = 's32[1]{0}', space=sflag, size = 0x4, scoped, tag = 'scoped memory for fwd.1']
    #allocation6 [shape = 'u8[36864]{0}', space=vmem, size = 0x9000, scoped, tag = 'input window, operand 6, single buffered']
    #allocation7 [shape = 'u8[8192]{0}', space=vmem, size = 0x2000, scoped, tag = 'input window, operand 7, single buffered']
    #allocation8 [shape = 's32[1]{0}', space=sflag, size = 0x4, scoped, tag = 'scoped memory for fwd.1']
    #allocation9 [shape = 'u8[8192]{0}', space=vmem, size = 0x2000, scoped, tag = 'input window, operand 8, single buffered']
    #allocation10 [shape = 'u8[8192]{0}', space=vmem, size = 0x2000, scoped, tag = 'input window, operand 9, single buffered']
    #allocation11 [shape = 's32[1]{0}', space=sflag, size = 0x4, scoped, tag = 'scoped memory for fwd.1']
    #allocation12 [shape = 'u8[8192]{0}', space=vmem, size = 0x2000, scoped, tag = 'input window, operand 10, single buffered']
    #allocation13 [shape = 'u8[12288]{0}', space=vmem, size = 0x3000, scoped, tag = 'input window, operand 11, single buffered']
    #allocation14 [shape = 's32[1]{0}', space=sflag, size = 0x4, scoped, tag = 'scoped memory for fwd.1']
    #allocation15 [shape = 'u8[1536]{0}', space=vmem, size = 0x800, scoped, tag = 'input window, operand 13, single buffered']
    #allocation16 [shape = 'u8[4096]{0}', space=vmem, size = 0x1000, scoped, tag = 'input window, operand 14, single buffered']
    #allocation17 [shape = 's32[1]{0}', space=sflag, size = 0x4, scoped, tag = 'scoped memory for fwd.1']
    %20 = vsyncpa [#allocation3], 0
    %21 = vsyncpa [#allocation5], 0
    %22 = vsyncpa [#allocation8], 0
    %23 = vsyncpa [#allocation11], 0
    %24 = vsyncpa [#allocation14], 0
    %25 = vsyncpa [#allocation17], 0
    // Predicated region
    $region2: #{fwd.1} parent=1 // pred_check
      _
    $region3: #{fwd.1} parent=1 // pred_check_branch
      %27 = sbr.rel (0) target = $region5
    $region4: #{fwd.1} parent=1 // pred_region
      _
    $region5: #{fwd.1} parent=1 // pred_fallthru
      _
    // Predicated region
    $region6: #{fwd.1} parent=1 // pred_check
      _
    $region7: #{fwd.1} parent=1 // pred_check_branch
      %29 = sbr.rel (0) target = $region9
    $region8: #{fwd.1} parent=1 // pred_region
      _
    $region9: #{fwd.1} parent=1 // pred_fallthru
      _
    // Predicated region
    $region10: #{fwd.1} parent=1 // pred_check
      _
    $region11: #{fwd.1} parent=1 // pred_check_branch
      %31 = sbr.rel (0) target = $region13
    $region12: #{fwd.1} parent=1 // pred_region
      _
    $region13: #{fwd.1} parent=1 // pred_fallthru
      _
    // Predicated region
    $region14: #{fwd.1} parent=1 // pred_check
      _
    $region15: #{fwd.1} parent=1 // pred_check_branch
      %33 = sbr.rel (0) target = $region17
    $region16: #{fwd.1} parent=1 // pred_region
      %s35 = ssub.s32 128, 128
      %36 = vsyncadd [#allocation3], %s35
      %s37 = sshll.u32 [#allocation2], 4
      %s38 = int_to_ptr.vmem [resolvable:$true] %s37
      %43 = dma.hbm_to_vmem [thread:$0]  %s3, 128, %s38, [#allocation3], 64, 64, 4
    $region17: #{fwd.1} parent=1 // pred_fallthru
      _
    // Predicated region
    $region18: #{fwd.1} parent=1 // pred_check
      _
    $region19: #{fwd.1} parent=1 // pred_check_branch
      %45 = sbr.rel (0) target = $region21
    $region20: #{fwd.1} parent=1 // pred_region
      %s47 = ssub.s32 128, 128
      %48 = vsyncadd [#allocation5], %s47
      %s49 = sshll.u32 [#allocation4], 4
      %s50 = int_to_ptr.vmem [resolvable:$true] %s49
      %55 = dma.hbm_to_vmem [thread:$0]  %s4, 128, %s50, [#allocation5], 64, 64, 4
    $region21: #{fwd.1} parent=1 // pred_fallthru
      _
    // Predicated region
    $region22: #{fwd.1} parent=1 // pred_check
      _
    $region23: #{fwd.1} parent=1 // pred_check_branch
      %57 = sbr.rel (0) target = $region25
    $region24: #{fwd.1} parent=1 // pred_region
      _
    $region25: #{fwd.1} parent=1 // pred_fallthru
      _
    // Predicated region
    $region26: #{fwd.1} parent=1 // pred_check
      _
    $region27: #{fwd.1} parent=1 // pred_check_branch
      %59 = sbr.rel (0) target = $region29
    $region28: #{fwd.1} parent=1 // pred_region
      %s61 = ssub.s32 1152, 1152
      %62 = vsyncadd [#allocation5], %s61
      %s63 = sshll.u32 [#allocation6], 4
      %s64 = int_to_ptr.vmem [resolvable:$true] %s63
      %69 = dma.hbm_to_vmem [thread:$0]  %s6, 1152, %s64, [#allocation5], 64, 64, 4
    $region29: #{fwd.1} parent=1 // pred_fallthru
      _
    // Predicated region
    $region30: #{fwd.1} parent=1 // pred_check
      _
    $region31: #{fwd.1} parent=1 // pred_check_branch
      %71 = sbr.rel (0) target = $region33
    $region32: #{fwd.1} parent=1 // pred_region
      %s73 = ssub.s32 256, 256
      %74 = vsyncadd [#allocation8], %s73
      %s75 = sshll.u32 [#allocation7], 4
      %s76 = int_to_ptr.vmem [resolvable:$true] %s75
      %81 = dma.hbm_to_vmem [thread:$0]  %s7, 256, %s76, [#allocation8], 16, 16, 1
    $region33: #{fwd.1} parent=1 // pred_fallthru
      _
    // Predicated region
    $region34: #{fwd.1} parent=1 // pred_check
      _
    $region35: #{fwd.1} parent=1 // pred_check_branch
      %83 = sbr.rel (0) target = $region37
    $region36: #{fwd.1} parent=1 // pred_region
      %s85 = ssub.s32 256, 256
      %86 = vsyncadd [#allocation8], %s85
      %s87 = sshll.u32 [#allocation9], 4
      %s88 = int_to_ptr.vmem [resolvable:$true] %s87
      %93 = dma.hbm_to_vmem [thread:$0]  %s8, 256, %s88, [#allocation8], 16, 16, 1
    $region37: #{fwd.1} parent=1 // pred_fallthru
      _
    // Predicated region
    $region38: #{fwd.1} parent=1 // pred_check
      _
    $region39: #{fwd.1} parent=1 // pred_check_branch
      %95 = sbr.rel (0) target = $region41
    $region40: #{fwd.1} parent=1 // pred_region
      %s97 = ssub.s32 256, 256
      %98 = vsyncadd [#allocation11], %s97
      %s99 = sshll.u32 [#allocation10], 4
      %s100 = int_to_ptr.vmem [resolvable:$true] %s99
      %105 = dma.hbm_to_vmem [thread:$0]  %s9, 256, %s100, [#allocation11], 16, 16, 1
    $region41: #{fwd.1} parent=1 // pred_fallthru
      _
    // Predicated region
    $region42: #{fwd.1} parent=1 // pred_check
      _
    $region43: #{fwd.1} parent=1 // pred_check_branch
      %107 = sbr.rel (0) target = $region45
    $region44: #{fwd.1} parent=1 // pred_region
      %s109 = ssub.s32 256, 256
      %110 = vsyncadd [#allocation11], %s109
      %s111 = sshll.u32 [#allocation12], 4
      %s112 = int_to_ptr.vmem [resolvable:$true] %s111
      %117 = dma.hbm_to_vmem [thread:$0]  %s10, 256, %s112, [#allocation11], 16, 16, 1
    $region45: #{fwd.1} parent=1 // pred_fallthru
      _
    // Predicated region
    $region46: #{fwd.1} parent=1 // pred_check
      _
    $region47: #{fwd.1} parent=1 // pred_check_branch
      %119 = sbr.rel (0) target = $region49
    $region48: #{fwd.1} parent=1 // pred_region
      %s121 = ssub.s32 384, 384
      %122 = vsyncadd [#allocation14], %s121
      %s123 = sshll.u32 [#allocation13], 4
      %s124 = int_to_ptr.vmem [resolvable:$true] %s123
      %129 = dma.hbm_to_vmem [thread:$0]  %s11, 384, %s124, [#allocation14], 64, 64, 4
    $region49: #{fwd.1} parent=1 // pred_fallthru
      _
    // Predicated region
    $region50: #{fwd.1} parent=1 // pred_check
      _
    $region51: #{fwd.1} parent=1 // pred_check_branch
      %131 = sbr.rel (0) target = $region53
    $region52: #{fwd.1} parent=1 // pred_region
      _
    $region53: #{fwd.1} parent=1 // pred_fallthru
      _
    // Predicated region
    $region54: #{fwd.1} parent=1 // pred_check
      _
    $region55: #{fwd.1} parent=1 // pred_check_branch
      %133 = sbr.rel (0) target = $region57
    $region56: #{fwd.1} parent=1 // pred_region
      %s135 = ssub.s32 48, 48
      %136 = vsyncadd [#allocation14], %s135
      %s137 = sshll.u32 [#allocation15], 4
      %s138 = int_to_ptr.vmem [resolvable:$true] %s137
      %143 = dma.hbm_to_vmem [thread:$0]  %s13, 48, %s138, [#allocation14], 16, 16, 1
    $region57: #{fwd.1} parent=1 // pred_fallthru
      _
    // Predicated region
    $region58: #{fwd.1} parent=1 // pred_check
      _
    $region59: #{fwd.1} parent=1 // pred_check_branch
      %145 = sbr.rel (0) target = $region61
    $region60: #{fwd.1} parent=1 // pred_region
      %s147 = ssub.s32 128, 128
      %148 = vsyncadd [#allocation17], %s147
      %s149 = sshll.u32 [#allocation16], 4
      %s150 = int_to_ptr.vmem [resolvable:$true] %s149
      %155 = dma.hbm_to_vmem [thread:$0]  %s14, 128, %s150, [#allocation17], 64, 64, 4
    $region61: #{fwd.1} parent=1 // pred_fallthru
      _
    // Predicated region
    $region62: #{fwd.1} parent=1 // pred_check
      _
    $region63: #{fwd.1} parent=1 // pred_check_branch
      %157 = sbr.rel (0) target = $region65
    $region64: #{fwd.1} parent=1 // pred_region
      %158 = dma.done [#allocation3], 128
    $region65: #{fwd.1} parent=1 // pred_fallthru
      _
    // Predicated region
    $region66: #{fwd.1} parent=1 // pred_check
      _
    $region67: #{fwd.1} parent=1 // pred_check_branch
      %160 = sbr.rel (0) target = $region69
    $region68: #{fwd.1} parent=1 // pred_region
      %161 = dma.done [#allocation5], 128
    $region69: #{fwd.1} parent=1 // pred_fallthru
      _
    // Predicated region
    $region70: #{fwd.1} parent=1 // pred_check
      _
    $region71: #{fwd.1} parent=1 // pred_check_branch
      %163 = sbr.rel (0) target = $region73
    $region72: #{fwd.1} parent=1 // pred_region
      %164 = dma.done [#allocation5], 1152
    $region73: #{fwd.1} parent=1 // pred_fallthru
      _
    // Predicated region
    $region74: #{fwd.1} parent=1 // pred_check
      _
    $region75: #{fwd.1} parent=1 // pred_check_branch
      %166 = sbr.rel (0) target = $region77
    $region76: #{fwd.1} parent=1 // pred_region
      %167 = dma.done [#allocation8], 256
    $region77: #{fwd.1} parent=1 // pred_fallthru
      _
    // Predicated region
    $region78: #{fwd.1} parent=1 // pred_check
      _
    $region79: #{fwd.1} parent=1 // pred_check_branch
      %169 = sbr.rel (0) target = $region81
    $region80: #{fwd.1} parent=1 // pred_region
      %170 = dma.done [#allocation8], 256
    $region81: #{fwd.1} parent=1 // pred_fallthru
      _
    // Predicated region
    $region82: #{fwd.1} parent=1 // pred_check
      _
    $region83: #{fwd.1} parent=1 // pred_check_branch
      %172 = sbr.rel (0) target = $region85
    $region84: #{fwd.1} parent=1 // pred_region
      %173 = dma.done [#allocation11], 256
    $region85: #{fwd.1} parent=1 // pred_fallthru
      _
    // Predicated region
    $region86: #{fwd.1} parent=1 // pred_check
      _
    $region87: #{fwd.1} parent=1 // pred_check_branch
      %175 = sbr.rel (0) target = $region89
    $region88: #{fwd.1} parent=1 // pred_region
      %176 = dma.done [#allocation11], 256
    $region89: #{fwd.1} parent=1 // pred_fallthru
      _
    // Predicated region
    $region90: #{fwd.1} parent=1 // pred_check
      _
    $region91: #{fwd.1} parent=1 // pred_check_branch
      %178 = sbr.rel (0) target = $region93
    $region92: #{fwd.1} parent=1 // pred_region
      %179 = dma.done [#allocation14], 384
    $region93: #{fwd.1} parent=1 // pred_fallthru
      _
    // Predicated region
    $region94: #{fwd.1} parent=1 // pred_check
      _
    $region95: #{fwd.1} parent=1 // pred_check_branch
      %181 = sbr.rel (0) target = $region97
    $region96: #{fwd.1} parent=1 // pred_region
      %182 = dma.done [#allocation14], 48
    $region97: #{fwd.1} parent=1 // pred_fallthru
      _
    // Predicated region
    $region98: #{fwd.1} parent=1 // pred_check
      _
    $region99: #{fwd.1} parent=1 // pred_check_branch
      %184 = sbr.rel (0) target = $region101
    $region100: #{fwd.1} parent=1 // pred_region
      %185 = dma.done [#allocation17], 128
    $region101: #{fwd.1} parent=1 // pred_fallthru
      _
    %v187 = vld [vmem:[%s0] sm:$0xff]
    %v188 = vld [vmem:[%s0 + $0x8] sm:$0xff]
    %v189 = vld [vmem:[%s1] sm:$0x1]
    %v191 = vlaneseq
    %v192 = vshrl.u32 %v191, 7
    %v193 = vsub.s32 0, %v192
    %v194 = vrot.slane %v189, %v193
    %v196 = vmul.f32 %v187, %v194
    %v197 = vmul.f32 %v188, %v194
    %v198 = vld [vmem:[%s2] sm:$0x1]
    %v200 = vlaneseq
    %v201 = vshrl.u32 %v200, 7
    %v202 = vsub.s32 0, %v201
    %v203 = vrot.slane %v198, %v202
    %v205 = vadd.f32 %v196, %v203
    %v206 = vadd.f32 %v197, %v203
    %v207 = vpack.c.bf16 %v206, %v205
    %v208 = vld [vmem:[#allocation2] sm:$0xf]
    %v209 = vld [vmem:[#allocation2 + $0x4] sm:$0xf]
    %v210 = vld [vmem:[#allocation4] sm:$0xf]
    %v211 = vld [vmem:[#allocation4 + $0x4] sm:$0xf]
    %v214 = vunpack.c.l.b16 %v208
    %v215 = vunpack.c.l.b16 %v209
    %v216 = vpack.c.b16 %v215, %v214
    %vm218 = vcmask 130048
    %v220 = vsel %vm218, %v207, 0
    %222 = vmatprep.subr.bf16.mxu0 0
    %223 = vmatpush1.bf16.msra.mxu0 %v216
    %224 = vmatprep.subr.bf16.mxu0 0
    %225 = vmatpush1.bf16.msra.mxu0 0
    %226 = vmatprep.subr.bf16.mxu0 0
    %227 = vmatpush1.bf16.msra.mxu0 0
    %228 = vmatprep.subr.bf16.mxu0 0
    %229 = vmatpush1.bf16.msra.mxu0 0
    %230 = vmatprep.subr.bf16.mxu0 0
    %231 = vmatpush1.bf16.msra.mxu0 0
    %232 = vmatprep.subr.bf16.mxu0 0
    %233 = vmatpush1.bf16.msra.mxu0 0
    %234 = vmatprep.subr.bf16.mxu0 0
    %235 = vmatpush1.bf16.msra.mxu0 0
    %236 = vmatprep.subr.bf16.mxu0 0
    %237 = vmatpush1.bf16.msra.mxu0 0
    %238 = vmatprep.subr.bf16.mxu0 0
    %239 = vmatpush1.bf16.msra.mxu0 0
    %240 = vmatprep.subr.bf16.mxu0 0
    %241 = vmatpush1.bf16.msra.mxu0 0
    %242 = vmatprep.subr.bf16.mxu0 0
    %243 = vmatpush1.bf16.msra.mxu0 0
    %244 = vmatprep.subr.bf16.mxu0 0
    %245 = vmatpush1.bf16.msra.mxu0 0
    %246 = vmatprep.subr.bf16.mxu0 0
    %247 = vmatpush1.bf16.msra.mxu0 0
    %248 = vmatprep.subr.bf16.mxu0 0
    %249 = vmatpush1.bf16.msra.mxu0 0
    %250 = vmatprep.subr.bf16.mxu0 0
    %251 = vmatpush1.bf16.msra.mxu0 0
    %252 = vmatprep.subr.bf16.mxu0 0
    %253 = vmatpush1.bf16.msra.mxu0 0
    %254 = vmatprep.mubr.bf16.mxu0 0
    %255 = vmatmul.mubr.bf16.gmra.mrb[0].mxu0 %v220
    %v256 = vpop.f32.mrb[0].mxu0
    %v257 = vadd.f32 0.0, %v256
    %v258 = vpop.f32.mrb[0].mxu0
    %v259 = vpop.f32.mrb[0].mxu0
    %v260 = vadd.f32 0.0, %v259
    %v261 = vpop.f32.mrb[0].mxu0
    %262 = vdwg.mxu0
    %v265 = vunpack.c.l.b16 %v210
    %v266 = vunpack.c.l.b16 %v211
    %v267 = vpack.c.b16 %v266, %v265
    %269 = vmatprep.subr.bf16.mxu0 0
    %270 = vmatpush1.bf16.msra.mxu0 %v267
    %271 = vmatprep.subr.bf16.mxu0 0
    %272 = vmatpush1.bf16.msra.mxu0 0
    %273 = vmatprep.subr.bf16.mxu0 0
    %274 = vmatpush1.bf16.msra.mxu0 0
    %275 = vmatprep.subr.bf16.mxu0 0
    %276 = vmatpush1.bf16.msra.mxu0 0
    %277 = vmatprep.subr.bf16.mxu0 0
    %278 = vmatpush1.bf16.msra.mxu0 0
    %279 = vmatprep.subr.bf16.mxu0 0
    %280 = vmatpush1.bf16.msra.mxu0 0
    %281 = vmatprep.subr.bf16.mxu0 0
    %282 = vmatpush1.bf16.msra.mxu0 0
    %283 = vmatprep.subr.bf16.mxu0 0
    %284 = vmatpush1.bf16.msra.mxu0 0
    %285 = vmatprep.subr.bf16.mxu0 0
    %286 = vmatpush1.bf16.msra.mxu0 0
    %287 = vmatprep.subr.bf16.mxu0 0
    %288 = vmatpush1.bf16.msra.mxu0 0
    %289 = vmatprep.subr.bf16.mxu0 0
    %290 = vmatpush1.bf16.msra.mxu0 0
    %291 = vmatprep.subr.bf16.mxu0 0
    %292 = vmatpush1.bf16.msra.mxu0 0
    %293 = vmatprep.subr.bf16.mxu0 0
    %294 = vmatpush1.bf16.msra.mxu0 0
    %295 = vmatprep.subr.bf16.mxu0 0
    %296 = vmatpush1.bf16.msra.mxu0 0
    %297 = vmatprep.subr.bf16.mxu0 0
    %298 = vmatpush1.bf16.msra.mxu0 0
    %299 = vmatprep.subr.bf16.mxu0 0
    %300 = vmatpush1.bf16.msra.mxu0 0
    %301 = vmatprep.mubr.bf16.mxu0 0
    %302 = vmatmul.mubr.bf16.gmra.mrb[0].mxu0 %v220
    %v303 = vpop.f32.mrb[0].mxu0
    %v304 = vadd.f32 0.0, %v303
    %v305 = vpop.f32.mrb[0].mxu0
    %v306 = vpop.f32.mrb[0].mxu0
    %v307 = vadd.f32 0.0, %v306
    %v308 = vpop.f32.mrb[0].mxu0
    %309 = vdwg.mxu0
    %v310 = vld [vmem:[#allocation7] sm:$0x1]
    %v311 = vld [vmem:[#allocation9] sm:$0x1]
    %v312 = vsel %vm218, %v257, 0.0
    %v313 = vrot.slane %v312, 4
    %v314 = vadd.f32 %v312, %v313
    %v315 = vrot.slane %v314, 2
    %v316 = vadd.f32 %v314, %v315
    %v317 = vrot.slane %v316, 1
    %v318 = vadd.f32 %v316, %v317
    %v319 = vsel %vm218, %v260, 0.0
    %v320 = vrot.slane %v319, 4
    %v321 = vadd.f32 %v319, %v320
    %v322 = vrot.slane %v321, 2
    %v323 = vadd.f32 %v321, %v322
    %v324 = vrot.slane %v323, 1
    %v325 = vadd.f32 %v323, %v324
    %v326 = vrcp.pop 8.0
    %v327 = vmul.f32 %v318, %v326
    %v328 = vmul.f32 %v325, %v326
    %v329 = vmul.f32 %v257, %v257
    %v330 = vmul.f32 %v260, %v260
    %v331 = vsel %vm218, %v329, 0.0
    %v332 = vrot.slane %v331, 4
    %v333 = vadd.f32 %v331, %v332
    %v334 = vrot.slane %v333, 2
    %v335 = vadd.f32 %v333, %v334
    %v336 = vrot.slane %v335, 1
    %v337 = vadd.f32 %v335, %v336
    %v338 = vsel %vm218, %v330, 0.0
    %v339 = vrot.slane %v338, 4
    %v340 = vadd.f32 %v338, %v339
    %v341 = vrot.slane %v340, 2
    %v342 = vadd.f32 %v340, %v341
    %v343 = vrot.slane %v342, 1
    %v344 = vadd.f32 %v342, %v343
    %v345 = vmul.f32 %v337, %v326
    %v346 = vmul.f32 %v344, %v326
    %v347 = vmul.f32 %v327, %v327
    %v348 = vmul.f32 %v328, %v328
    %v349 = vsub.f32 %v345, %v347
    %v350 = vsub.f32 %v346, %v348
    %v351 = vmax.f32 %v349, 0.0
    %v352 = vmax.f32 %v350, 0.0
    %v353 = vsub.f32 %v257, %v327
    %v354 = vsub.f32 %v260, %v328
    %v355 = vadd.f32 %v351, 1e-05
    %v356 = vadd.f32 %v352, 1e-05
    %v357 = vrsqrt.pop %v355
    %v358 = vrsqrt.pop %v356
    %v359 = vmul.f32 %v353, %v357
    %v360 = vmul.f32 %v354, %v358
    %v362 = vlaneseq
    %v363 = vshrl.u32 %v362, 7
    %v364 = vsub.s32 0, %v363
    %v365 = vrot.slane %v310, %v364
    %v367 = vmul.f32 %v359, %v365
    %v368 = vmul.f32 %v360, %v365
    %v370 = vlaneseq
    %v371 = vshrl.u32 %v370, 7
    %v372 = vsub.s32 0, %v371
    %v373 = vrot.slane %v311, %v372
    %v375 = vadd.f32 %v367, %v373
    %v376 = vadd.f32 %v368, %v373
    %v377 = vld [vmem:[#allocation10] sm:$0x1]
    %v378 = vld [vmem:[#allocation12] sm:$0x1]
    %v379 = vsel %vm218, %v304, 0.0
    %v380 = vrot.slane %v379, 4
    %v381 = vadd.f32 %v379, %v380
    %v382 = vrot.slane %v381, 2
    %v383 = vadd.f32 %v381, %v382
    %v384 = vrot.slane %v383, 1
    %v385 = vadd.f32 %v383, %v384
    %v386 = vsel %vm218, %v307, 0.0
    %v387 = vrot.slane %v386, 4
    %v388 = vadd.f32 %v386, %v387
    %v389 = vrot.slane %v388, 2
    %v390 = vadd.f32 %v388, %v389
    %v391 = vrot.slane %v390, 1
    %v392 = vadd.f32 %v390, %v391
    %v393 = vmul.f32 %v385, %v326
    %v394 = vmul.f32 %v392, %v326
    %v395 = vmul.f32 %v304, %v304
    %v396 = vmul.f32 %v307, %v307
    %v397 = vsel %vm218, %v395, 0.0
    %v398 = vrot.slane %v397, 4
    %v399 = vadd.f32 %v397, %v398
    %v400 = vrot.slane %v399, 2
    %v401 = vadd.f32 %v399, %v400
    %v402 = vrot.slane %v401, 1
    %v403 = vadd.f32 %v401, %v402
    %v404 = vsel %vm218, %v396, 0.0
    %v405 = vrot.slane %v404, 4
    %v406 = vadd.f32 %v404, %v405
    %v407 = vrot.slane %v406, 2
    %v408 = vadd.f32 %v406, %v407
    %v409 = vrot.slane %v408, 1
    %v410 = vadd.f32 %v408, %v409
    %v411 = vmul.f32 %v403, %v326
    %v412 = vmul.f32 %v410, %v326
    %v413 = vmul.f32 %v393, %v393
    %v414 = vmul.f32 %v394, %v394
    %v415 = vsub.f32 %v411, %v413
    %v416 = vsub.f32 %v412, %v414
    %v417 = vmax.f32 %v415, 0.0
    %v418 = vmax.f32 %v416, 0.0
    %v419 = vsub.f32 %v304, %v393
    %v420 = vsub.f32 %v307, %v394
    %v421 = vadd.f32 %v417, 1e-05
    %v422 = vadd.f32 %v418, 1e-05
    %v423 = vrsqrt.pop %v421
    %v424 = vrsqrt.pop %v422
    %v425 = vmul.f32 %v419, %v423
    %v426 = vmul.f32 %v420, %v424
    %v428 = vlaneseq
    %v429 = vshrl.u32 %v428, 7
    %v430 = vsub.s32 0, %v429
    %v431 = vrot.slane %v377, %v430
    %v433 = vmul.f32 %v425, %v431
    %v434 = vmul.f32 %v426, %v431
    %v436 = vlaneseq
    %v437 = vshrl.u32 %v436, 7
    %v438 = vsub.s32 0, %v437
    %v439 = vrot.slane %v378, %v438
    %v441 = vadd.f32 %v433, %v439
    %v442 = vadd.f32 %v434, %v439
    %v443 = vxor.u32 %v441, 2147483648
    %v444 = vxor.u32 %v442, 2147483648
    %v445 = vmul.f32 %v443, 1.442695
    %v446 = vpow.pop %v445
    %v447 = vmul.f32 %v444, 1.442695
    %v448 = vpow.pop %v447
    %v449 = vadd.f32 %v446, 1.0
    %v450 = vadd.f32 %v448, 1.0
    %v451 = vrcp.pop %v449
    %v452 = vmul.f32 1.0, %v451
    %v453 = vrcp.pop %v450
    %v454 = vmul.f32 1.0, %v453
    %v455 = vmul.f32 %v375, %v452
    %v456 = vmul.f32 %v376, %v454
    %v457 = vpack.c.bf16 %v456, %v455
    %v458 = vld [vmem:[%s5] sm:$0xf]
    %v459 = vld [vmem:[%s5 + $0x4] sm:$0xf]
    %v460 = vld [vmem:[#allocation6] sm:$0xf]
    %v461 = vld [vmem:[#allocation6 + $0x4] sm:$0xf]
    %v464 = vunpack.c.l.b16 %v458
    %v465 = vunpack.c.l.b16 %v459
    %v466 = vpack.c.b16 %v465, %v464
    %v469 = vsel %vm218, %v457, 0
    %471 = vmatprep.subr.bf16.mxu0 0
    %472 = vmatpush1.bf16.msra.mxu0 %v466
    %473 = vmatprep.subr.bf16.mxu0 0
    %474 = vmatpush1.bf16.msra.mxu0 0
    %475 = vmatprep.subr.bf16.mxu0 0
    %476 = vmatpush1.bf16.msra.mxu0 0
    %477 = vmatprep.subr.bf16.mxu0 0
    %478 = vmatpush1.bf16.msra.mxu0 0
    %479 = vmatprep.subr.bf16.mxu0 0
    %480 = vmatpush1.bf16.msra.mxu0 0
    %481 = vmatprep.subr.bf16.mxu0 0
    %482 = vmatpush1.bf16.msra.mxu0 0
    %483 = vmatprep.subr.bf16.mxu0 0
    %484 = vmatpush1.bf16.msra.mxu0 0
    %485 = vmatprep.subr.bf16.mxu0 0
    %486 = vmatpush1.bf16.msra.mxu0 0
    %487 = vmatprep.subr.bf16.mxu0 0
    %488 = vmatpush1.bf16.msra.mxu0 0
    %489 = vmatprep.subr.bf16.mxu0 0
    %490 = vmatpush1.bf16.msra.mxu0 0
    %491 = vmatprep.subr.bf16.mxu0 0
    %492 = vmatpush1.bf16.msra.mxu0 0
    %493 = vmatprep.subr.bf16.mxu0 0
    %494 = vmatpush1.bf16.msra.mxu0 0
    %495 = vmatprep.subr.bf16.mxu0 0
    %496 = vmatpush1.bf16.msra.mxu0 0
    %497 = vmatprep.subr.bf16.mxu0 0
    %498 = vmatpush1.bf16.msra.mxu0 0
    %499 = vmatprep.subr.bf16.mxu0 0
    %500 = vmatpush1.bf16.msra.mxu0 0
    %501 = vmatprep.subr.bf16.mxu0 0
    %502 = vmatpush1.bf16.msra.mxu0 0
    %503 = vmatprep.mubr.bf16.mxu0 0
    %504 = vmatmul.mubr.bf16.gmra.mrb[0].mxu0 %v469
    %v505 = vpop.f32.mrb[0].mxu0
    %v506 = vadd.f32 0.0, %v505
    %v507 = vpop.f32.mrb[0].mxu0
    %v508 = vpop.f32.mrb[0].mxu0
    %v509 = vadd.f32 0.0, %v508
    %v510 = vpop.f32.mrb[0].mxu0
    %511 = vdwg.mxu0
    %v514 = vunpack.c.l.b16 %v460
    %v515 = vunpack.c.l.b16 %v461
    %v516 = vpack.c.b16 %v515, %v514
    %518 = vmatprep.subr.bf16.mxu0 0
    %519 = vmatpush1.bf16.msra.mxu0 %v516
    %520 = vmatprep.subr.bf16.mxu0 0
    %521 = vmatpush1.bf16.msra.mxu0 0
    %522 = vmatprep.subr.bf16.mxu0 0
    %523 = vmatpush1.bf16.msra.mxu0 0
    %524 = vmatprep.subr.bf16.mxu0 0
    %525 = vmatpush1.bf16.msra.mxu0 0
    %526 = vmatprep.subr.bf16.mxu0 0
    %527 = vmatpush1.bf16.msra.mxu0 0
    %528 = vmatprep.subr.bf16.mxu0 0
    %529 = vmatpush1.bf16.msra.mxu0 0
    %530 = vmatprep.subr.bf16.mxu0 0
    %531 = vmatpush1.bf16.msra.mxu0 0
    %532 = vmatprep.subr.bf16.mxu0 0
    %533 = vmatpush1.bf16.msra.mxu0 0
    %534 = vmatprep.subr.bf16.mxu0 0
    %535 = vmatpush1.bf16.msra.mxu0 0
    %536 = vmatprep.subr.bf16.mxu0 0
    %537 = vmatpush1.bf16.msra.mxu0 0
    %538 = vmatprep.subr.bf16.mxu0 0
    %539 = vmatpush1.bf16.msra.mxu0 0
    %540 = vmatprep.subr.bf16.mxu0 0
    %541 = vmatpush1.bf16.msra.mxu0 0
    %542 = vmatprep.subr.bf16.mxu0 0
    %543 = vmatpush1.bf16.msra.mxu0 0
    %544 = vmatprep.subr.bf16.mxu0 0
    %545 = vmatpush1.bf16.msra.mxu0 0
    %546 = vmatprep.subr.bf16.mxu0 0
    %547 = vmatpush1.bf16.msra.mxu0 0
    %548 = vmatprep.subr.bf16.mxu0 0
    %549 = vmatpush1.bf16.msra.mxu0 0
    %550 = vmatprep.mubr.bf16.mxu0 0
    %551 = vmatmul.mubr.bf16.gmra.mrb[0].mxu0 %v469
    %v552 = vpop.f32.mrb[0].mxu0
    %v553 = vadd.f32 0.0, %v552
    %v554 = vpop.f32.mrb[0].mxu0
    %v555 = vpop.f32.mrb[0].mxu0
    %v556 = vadd.f32 0.0, %v555
    %v557 = vpop.f32.mrb[0].mxu0
    %558 = vdwg.mxu0
    %s559 = scalar_lea.vmem [#allocation7], 1
    %v560 = vld [vmem:[%s559] sm:$0x1]
    %s561 = scalar_lea.vmem [#allocation9], 1
    %v562 = vld [vmem:[%s561] sm:$0x1]
    %v563 = vsel %vm218, %v506, 0.0
    %v564 = vrot.slane %v563, 4
    %v565 = vadd.f32 %v563, %v564
    %v566 = vrot.slane %v565, 2
    %v567 = vadd.f32 %v565, %v566
    %v568 = vrot.slane %v567, 1
    %v569 = vadd.f32 %v567, %v568
    %v570 = vsel %vm218, %v509, 0.0
    %v571 = vrot.slane %v570, 4
    %v572 = vadd.f32 %v570, %v571
    %v573 = vrot.slane %v572, 2
    %v574 = vadd.f32 %v572, %v573
    %v575 = vrot.slane %v574, 1
    %v576 = vadd.f32 %v574, %v575
    %v577 = vmul.f32 %v569, %v326
    %v578 = vmul.f32 %v576, %v326
    %v579 = vmul.f32 %v506, %v506
    %v580 = vmul.f32 %v509, %v509
    %v581 = vsel %vm218, %v579, 0.0
    %v582 = vrot.slane %v581, 4
    %v583 = vadd.f32 %v581, %v582
    %v584 = vrot.slane %v583, 2
    %v585 = vadd.f32 %v583, %v584
    %v586 = vrot.slane %v585, 1
    %v587 = vadd.f32 %v585, %v586
    %v588 = vsel %vm218, %v580, 0.0
    %v589 = vrot.slane %v588, 4
    %v590 = vadd.f32 %v588, %v589
    %v591 = vrot.slane %v590, 2
    %v592 = vadd.f32 %v590, %v591
    %v593 = vrot.slane %v592, 1
    %v594 = vadd.f32 %v592, %v593
    %v595 = vmul.f32 %v587, %v326
    %v596 = vmul.f32 %v594, %v326
    %v597 = vmul.f32 %v577, %v577
    %v598 = vmul.f32 %v578, %v578
    %v599 = vsub.f32 %v595, %v597
    %v600 = vsub.f32 %v596, %v598
    %v601 = vmax.f32 %v599, 0.0
    %v602 = vmax.f32 %v600, 0.0
    %v603 = vsub.f32 %v506, %v577
    %v604 = vsub.f32 %v509, %v578
    %v605 = vadd.f32 %v601, 1e-05
    %v606 = vadd.f32 %v602, 1e-05
    %v607 = vrsqrt.pop %v605
    %v608 = vrsqrt.pop %v606
    %v609 = vmul.f32 %v603, %v607
    %v610 = vmul.f32 %v604, %v608
    %v612 = vlaneseq
    %v613 = vshrl.u32 %v612, 7
    %v614 = vsub.s32 0, %v613
    %v615 = vrot.slane %v560, %v614
    %v617 = vmul.f32 %v609, %v615
    %v618 = vmul.f32 %v610, %v615
    %v620 = vlaneseq
    %v621 = vshrl.u32 %v620, 7
    %v622 = vsub.s32 0, %v621
    %v623 = vrot.slane %v562, %v622
    %v625 = vadd.f32 %v617, %v623
    %v626 = vadd.f32 %v618, %v623
    %s627 = scalar_lea.vmem [#allocation10], 1
    %v628 = vld [vmem:[%s627] sm:$0x1]
    %s629 = scalar_lea.vmem [#allocation12], 1
    %v630 = vld [vmem:[%s629] sm:$0x1]
    %v631 = vsel %vm218, %v553, 0.0
    %v632 = vrot.slane %v631, 4
    %v633 = vadd.f32 %v631, %v632
    %v634 = vrot.slane %v633, 2
    %v635 = vadd.f32 %v633, %v634
    %v636 = vrot.slane %v635, 1
    %v637 = vadd.f32 %v635, %v636
    %v638 = vsel %vm218, %v556, 0.0
    %v639 = vrot.slane %v638, 4
    %v640 = vadd.f32 %v638, %v639
    %v641 = vrot.slane %v640, 2
    %v642 = vadd.f32 %v640, %v641
    %v643 = vrot.slane %v642, 1
    %v644 = vadd.f32 %v642, %v643
    %v645 = vmul.f32 %v637, %v326
    %v646 = vmul.f32 %v644, %v326
    %v647 = vmul.f32 %v553, %v553
    %v648 = vmul.f32 %v556, %v556
    %v649 = vsel %vm218, %v647, 0.0
    %v650 = vrot.slane %v649, 4
    %v651 = vadd.f32 %v649, %v650
    %v652 = vrot.slane %v651, 2
    %v653 = vadd.f32 %v651, %v652
    %v654 = vrot.slane %v653, 1
    %v655 = vadd.f32 %v653, %v654
    %v656 = vsel %vm218, %v648, 0.0
    %v657 = vrot.slane %v656, 4
    %v658 = vadd.f32 %v656, %v657
    %v659 = vrot.slane %v658, 2
    %v660 = vadd.f32 %v658, %v659
    %v661 = vrot.slane %v660, 1
    %v662 = vadd.f32 %v660, %v661
    %v663 = vmul.f32 %v655, %v326
    %v664 = vmul.f32 %v662, %v326
    %v665 = vmul.f32 %v645, %v645
    %v666 = vmul.f32 %v646, %v646
    %v667 = vsub.f32 %v663, %v665
    %v668 = vsub.f32 %v664, %v666
    %v669 = vmax.f32 %v667, 0.0
    %v670 = vmax.f32 %v668, 0.0
    %v671 = vsub.f32 %v553, %v645
    %v672 = vsub.f32 %v556, %v646
    %v673 = vadd.f32 %v669, 1e-05
    %v674 = vadd.f32 %v670, 1e-05
    %v675 = vrsqrt.pop %v673
    %v676 = vrsqrt.pop %v674
    %v677 = vmul.f32 %v671, %v675
    %v678 = vmul.f32 %v672, %v676
    %v680 = vlaneseq
    %v681 = vshrl.u32 %v680, 7
    %v682 = vsub.s32 0, %v681
    %v683 = vrot.slane %v628, %v682
    %v685 = vmul.f32 %v677, %v683
    %v686 = vmul.f32 %v678, %v683
    %v688 = vlaneseq
    %v689 = vshrl.u32 %v688, 7
    %v690 = vsub.s32 0, %v689
    %v691 = vrot.slane %v630, %v690
    %v693 = vadd.f32 %v685, %v691
    %v694 = vadd.f32 %v686, %v691
    %v695 = vxor.u32 %v693, 2147483648
    %v696 = vxor.u32 %v694, 2147483648
    %v697 = vmul.f32 %v695, 1.442695
    %v698 = vpow.pop %v697
    %v699 = vmul.f32 %v696, 1.442695
    %v700 = vpow.pop %v699
    %v701 = vadd.f32 %v698, 1.0
    %v702 = vadd.f32 %v700, 1.0
    %v703 = vrcp.pop %v701
    %v704 = vmul.f32 1.0, %v703
    %v705 = vrcp.pop %v702
    %v706 = vmul.f32 1.0, %v705
    %v707 = vmul.f32 %v625, %v704
    %v708 = vmul.f32 %v626, %v706
    %v709 = vadd.f32 %v455, %v707
    %v710 = vadd.f32 %v456, %v708
    %v711 = vmul.f32 %v709, 0.70710677
    %v712 = vmul.f32 %v710, 0.70710677
    %v713 = vpack.c.bf16 %v712, %v711
    %s714 = scalar_lea.vmem %s5, 8
    %v715 = vld [vmem:[%s714] sm:$0xf]
    %v716 = vld [vmem:[%s714 + $0x4] sm:$0xf]
    %s717 = scalar_lea.vmem [#allocation6], 8
    %v718 = vld [vmem:[%s717] sm:$0xf]
    %v719 = vld [vmem:[%s717 + $0x4] sm:$0xf]
    %v722 = vunpack.c.l.b16 %v715
    %v723 = vunpack.c.l.b16 %v716
    %v724 = vpack.c.b16 %v723, %v722
    %v727 = vsel %vm218, %v713, 0
    %729 = vmatprep.subr.bf16.mxu0 0
    %730 = vmatpush1.bf16.msra.mxu0 %v724
    %731 = vmatprep.subr.bf16.mxu0 0
    %732 = vmatpush1.bf16.msra.mxu0 0
    %733 = vmatprep.subr.bf16.mxu0 0
    %734 = vmatpush1.bf16.msra.mxu0 0
    %735 = vmatprep.subr.bf16.mxu0 0
    %736 = vmatpush1.bf16.msra.mxu0 0
    %737 = vmatprep.subr.bf16.mxu0 0
    %738 = vmatpush1.bf16.msra.mxu0 0
    %739 = vmatprep.subr.bf16.mxu0 0
    %740 = vmatpush1.bf16.msra.mxu0 0
    %741 = vmatprep.subr.bf16.mxu0 0
    %742 = vmatpush1.bf16.msra.mxu0 0
    %743 = vmatprep.subr.bf16.mxu0 0
    %744 = vmatpush1.bf16.msra.mxu0 0
    %745 = vmatprep.subr.bf16.mxu0 0
    %746 = vmatpush1.bf16.msra.mxu0 0
    %747 = vmatprep.subr.bf16.mxu0 0
    %748 = vmatpush1.bf16.msra.mxu0 0
    %749 = vmatprep.subr.bf16.mxu0 0
    %750 = vmatpush1.bf16.msra.mxu0 0
    %751 = vmatprep.subr.bf16.mxu0 0
    %752 = vmatpush1.bf16.msra.mxu0 0
    %753 = vmatprep.subr.bf16.mxu0 0
    %754 = vmatpush1.bf16.msra.mxu0 0
    %755 = vmatprep.subr.bf16.mxu0 0
    %756 = vmatpush1.bf16.msra.mxu0 0
    %757 = vmatprep.subr.bf16.mxu0 0
    %758 = vmatpush1.bf16.msra.mxu0 0
    %759 = vmatprep.subr.bf16.mxu0 0
    %760 = vmatpush1.bf16.msra.mxu0 0
    %761 = vmatprep.mubr.bf16.mxu0 0
    %762 = vmatmul.mubr.bf16.gmra.mrb[0].mxu0 %v727
    %v763 = vpop.f32.mrb[0].mxu0
    %v764 = vadd.f32 0.0, %v763
    %v765 = vpop.f32.mrb[0].mxu0
    %v766 = vpop.f32.mrb[0].mxu0
    %v767 = vadd.f32 0.0, %v766
    %v768 = vpop.f32.mrb[0].mxu0
    %769 = vdwg.mxu0
    %v772 = vunpack.c.l.b16 %v718
    %v773 = vunpack.c.l.b16 %v719
    %v774 = vpack.c.b16 %v773, %v772
    %776 = vmatprep.subr.bf16.mxu0 0
    %777 = vmatpush1.bf16.msra.mxu0 %v774
    %778 = vmatprep.subr.bf16.mxu0 0
    %779 = vmatpush1.bf16.msra.mxu0 0
    %780 = vmatprep.subr.bf16.mxu0 0
    %781 = vmatpush1.bf16.msra.mxu0 0
    %782 = vmatprep.subr.bf16.mxu0 0
    %783 = vmatpush1.bf16.msra.mxu0 0
    %784 = vmatprep.subr.bf16.mxu0 0
    %785 = vmatpush1.bf16.msra.mxu0 0
    %786 = vmatprep.subr.bf16.mxu0 0
    %787 = vmatpush1.bf16.msra.mxu0 0
    %788 = vmatprep.subr.bf16.mxu0 0
    %789 = vmatpush1.bf16.msra.mxu0 0
    %790 = vmatprep.subr.bf16.mxu0 0
    %791 = vmatpush1.bf16.msra.mxu0 0
    %792 = vmatprep.subr.bf16.mxu0 0
    %793 = vmatpush1.bf16.msra.mxu0 0
    %794 = vmatprep.subr.bf16.mxu0 0
    %795 = vmatpush1.bf16.msra.mxu0 0
    %796 = vmatprep.subr.bf16.mxu0 0
    %797 = vmatpush1.bf16.msra.mxu0 0
    %798 = vmatprep.subr.bf16.mxu0 0
    %799 = vmatpush1.bf16.msra.mxu0 0
    %800 = vmatprep.subr.bf16.mxu0 0
    %801 = vmatpush1.bf16.msra.mxu0 0
    %802 = vmatprep.subr.bf16.mxu0 0
    %803 = vmatpush1.bf16.msra.mxu0 0
    %804 = vmatprep.subr.bf16.mxu0 0
    %805 = vmatpush1.bf16.msra.mxu0 0
    %806 = vmatprep.subr.bf16.mxu0 0
    %807 = vmatpush1.bf16.msra.mxu0 0
    %808 = vmatprep.mubr.bf16.mxu0 0
    %809 = vmatmul.mubr.bf16.gmra.mrb[0].mxu0 %v727
    %v810 = vpop.f32.mrb[0].mxu0
    %v811 = vadd.f32 0.0, %v810
    %v812 = vpop.f32.mrb[0].mxu0
    %v813 = vpop.f32.mrb[0].mxu0
    %v814 = vadd.f32 0.0, %v813
    %v815 = vpop.f32.mrb[0].mxu0
    %816 = vdwg.mxu0
    %s817 = scalar_lea.vmem [#allocation7], 2
    %v818 = vld [vmem:[%s817] sm:$0x1]
    %s819 = scalar_lea.vmem [#allocation9], 2
    %v820 = vld [vmem:[%s819] sm:$0x1]
    %v821 = vsel %vm218, %v764, 0.0
    %v822 = vrot.slane %v821, 4
    %v823 = vadd.f32 %v821, %v822
    %v824 = vrot.slane %v823, 2
    %v825 = vadd.f32 %v823, %v824
    %v826 = vrot.slane %v825, 1
    %v827 = vadd.f32 %v825, %v826
    %v828 = vsel %vm218, %v767, 0.0
    %v829 = vrot.slane %v828, 4
    %v830 = vadd.f32 %v828, %v829
    %v831 = vrot.slane %v830, 2
    %v832 = vadd.f32 %v830, %v831
    %v833 = vrot.slane %v832, 1
    %v834 = vadd.f32 %v832, %v833
    %v835 = vmul.f32 %v827, %v326
    %v836 = vmul.f32 %v834, %v326
    %v837 = vmul.f32 %v764, %v764
    %v838 = vmul.f32 %v767, %v767
    %v839 = vsel %vm218, %v837, 0.0
    %v840 = vrot.slane %v839, 4
    %v841 = vadd.f32 %v839, %v840
    %v842 = vrot.slane %v841, 2
    %v843 = vadd.f32 %v841, %v842
    %v844 = vrot.slane %v843, 1
    %v845 = vadd.f32 %v843, %v844
    %v846 = vsel %vm218, %v838, 0.0
    %v847 = vrot.slane %v846, 4
    %v848 = vadd.f32 %v846, %v847
    %v849 = vrot.slane %v848, 2
    %v850 = vadd.f32 %v848, %v849
    %v851 = vrot.slane %v850, 1
    %v852 = vadd.f32 %v850, %v851
    %v853 = vmul.f32 %v845, %v326
    %v854 = vmul.f32 %v852, %v326
    %v855 = vmul.f32 %v835, %v835
    %v856 = vmul.f32 %v836, %v836
    %v857 = vsub.f32 %v853, %v855
    %v858 = vsub.f32 %v854, %v856
    %v859 = vmax.f32 %v857, 0.0
    %v860 = vmax.f32 %v858, 0.0
    %v861 = vsub.f32 %v764, %v835
    %v862 = vsub.f32 %v767, %v836
    %v863 = vadd.f32 %v859, 1e-05
    %v864 = vadd.f32 %v860, 1e-05
    %v865 = vrsqrt.pop %v863
    %v866 = vrsqrt.pop %v864
    %v867 = vmul.f32 %v861, %v865
    %v868 = vmul.f32 %v862, %v866
    %v870 = vlaneseq
    %v871 = vshrl.u32 %v870, 7
    %v872 = vsub.s32 0, %v871
    %v873 = vrot.slane %v818, %v872
    %v875 = vmul.f32 %v867, %v873
    %v876 = vmul.f32 %v868, %v873
    %v878 = vlaneseq
    %v879 = vshrl.u32 %v878, 7
    %v880 = vsub.s32 0, %v879
    %v881 = vrot.slane %v820, %v880
    %v883 = vadd.f32 %v875, %v881
    %v884 = vadd.f32 %v876, %v881
    %s885 = scalar_lea.vmem [#allocation10], 2
    %v886 = vld [vmem:[%s885] sm:$0x1]
    %s887 = scalar_lea.vmem [#allocation12], 2
    %v888 = vld [vmem:[%s887] sm:$0x1]
    %v889 = vsel %vm218, %v811, 0.0
    %v890 = vrot.slane %v889, 4
    %v891 = vadd.f32 %v889, %v890
    %v892 = vrot.slane %v891, 2
    %v893 = vadd.f32 %v891, %v892
    %v894 = vrot.slane %v893, 1
    %v895 = vadd.f32 %v893, %v894
    %v896 = vsel %vm218, %v814, 0.0
    %v897 = vrot.slane %v896, 4
    %v898 = vadd.f32 %v896, %v897
    %v899 = vrot.slane %v898, 2
    %v900 = vadd.f32 %v898, %v899
    %v901 = vrot.slane %v900, 1
    %v902 = vadd.f32 %v900, %v901
    %v903 = vmul.f32 %v895, %v326
    %v904 = vmul.f32 %v902, %v326
    %v905 = vmul.f32 %v811, %v811
    %v906 = vmul.f32 %v814, %v814
    %v907 = vsel %vm218, %v905, 0.0
    %v908 = vrot.slane %v907, 4
    %v909 = vadd.f32 %v907, %v908
    %v910 = vrot.slane %v909, 2
    %v911 = vadd.f32 %v909, %v910
    %v912 = vrot.slane %v911, 1
    %v913 = vadd.f32 %v911, %v912
    %v914 = vsel %vm218, %v906, 0.0
    %v915 = vrot.slane %v914, 4
    %v916 = vadd.f32 %v914, %v915
    %v917 = vrot.slane %v916, 2
    %v918 = vadd.f32 %v916, %v917
    %v919 = vrot.slane %v918, 1
    %v920 = vadd.f32 %v918, %v919
    %v921 = vmul.f32 %v913, %v326
    %v922 = vmul.f32 %v920, %v326
    %v923 = vmul.f32 %v903, %v903
    %v924 = vmul.f32 %v904, %v904
    %v925 = vsub.f32 %v921, %v923
    %v926 = vsub.f32 %v922, %v924
    %v927 = vmax.f32 %v925, 0.0
    %v928 = vmax.f32 %v926, 0.0
    %v929 = vsub.f32 %v811, %v903
    %v930 = vsub.f32 %v814, %v904
    %v931 = vadd.f32 %v927, 1e-05
    %v932 = vadd.f32 %v928, 1e-05
    %v933 = vrsqrt.pop %v931
    %v934 = vrsqrt.pop %v932
    %v935 = vmul.f32 %v929, %v933
    %v936 = vmul.f32 %v930, %v934
    %v938 = vlaneseq
    %v939 = vshrl.u32 %v938, 7
    %v940 = vsub.s32 0, %v939
    %v941 = vrot.slane %v886, %v940
    %v943 = vmul.f32 %v935, %v941
    %v944 = vmul.f32 %v936, %v941
    %v946 = vlaneseq
    %v947 = vshrl.u32 %v946, 7
    %v948 = vsub.s32 0, %v947
    %v949 = vrot.slane %v888, %v948
    %v951 = vadd.f32 %v943, %v949
    %v952 = vadd.f32 %v944, %v949
    %v953 = vxor.u32 %v951, 2147483648
    %v954 = vxor.u32 %v952, 2147483648
    %v955 = vmul.f32 %v953, 1.442695
    %v956 = vpow.pop %v955
    %v957 = vmul.f32 %v954, 1.442695
    %v958 = vpow.pop %v957
    %v959 = vadd.f32 %v956, 1.0
    %v960 = vadd.f32 %v958, 1.0
    %v961 = vrcp.pop %v959
    %v962 = vmul.f32 1.0, %v961
    %v963 = vrcp.pop %v960
    %v964 = vmul.f32 1.0, %v963
    %v965 = vmul.f32 %v883, %v962
    %v966 = vmul.f32 %v884, %v964
    %v967 = vadd.f32 %v711, %v965
    %v968 = vadd.f32 %v712, %v966
    %v969 = vmul.f32 %v967, 0.70710677
    %v970 = vmul.f32 %v968, 0.70710677
    %v971 = vpack.c.bf16 %v970, %v969
    %s972 = scalar_lea.vmem %s5, 16
    %v973 = vld [vmem:[%s972] sm:$0xf]
    %v974 = vld [vmem:[%s972 + $0x4] sm:$0xf]
    %s975 = scalar_lea.vmem [#allocation6], 16
    %v976 = vld [vmem:[%s975] sm:$0xf]
    %v977 = vld [vmem:[%s975 + $0x4] sm:$0xf]
    %v980 = vunpack.c.l.b16 %v973
    %v981 = vunpack.c.l.b16 %v974
    %v982 = vpack.c.b16 %v981, %v980
    %v985 = vsel %vm218, %v971, 0
    %987 = vmatprep.subr.bf16.mxu0 0
    %988 = vmatpush1.bf16.msra.mxu0 %v982
    %989 = vmatprep.subr.bf16.mxu0 0
    %990 = vmatpush1.bf16.msra.mxu0 0
    %991 = vmatprep.subr.bf16.mxu0 0
    %992 = vmatpush1.bf16.msra.mxu0 0
    %993 = vmatprep.subr.bf16.mxu0 0
    %994 = vmatpush1.bf16.msra.mxu0 0
    %995 = vmatprep.subr.bf16.mxu0 0
    %996 = vmatpush1.bf16.msra.mxu0 0
    %997 = vmatprep.subr.bf16.mxu0 0
    %998 = vmatpush1.bf16.msra.mxu0 0
    %999 = vmatprep.subr.bf16.mxu0 0
    %1000 = vmatpush1.bf16.msra.mxu0 0
    %1001 = vmatprep.subr.bf16.mxu0 0
    %1002 = vmatpush1.bf16.msra.mxu0 0
    %1003 = vmatprep.subr.bf16.mxu0 0
    %1004 = vmatpush1.bf16.msra.mxu0 0
    %1005 = vmatprep.subr.bf16.mxu0 0
    %1006 = vmatpush1.bf16.msra.mxu0 0
    %1007 = vmatprep.subr.bf16.mxu0 0
    %1008 = vmatpush1.bf16.msra.mxu0 0
    %1009 = vmatprep.subr.bf16.mxu0 0
    %1010 = vmatpush1.bf16.msra.mxu0 0
    %1011 = vmatprep.subr.bf16.mxu0 0
    %1012 = vmatpush1.bf16.msra.mxu0 0
    %1013 = vmatprep.subr.bf16.mxu0 0
    %1014 = vmatpush1.bf16.msra.mxu0 0
    %1015 = vmatprep.subr.bf16.mxu0 0
    %1016 = vmatpush1.bf16.msra.mxu0 0
    %1017 = vmatprep.subr.bf16.mxu0 0
    %1018 = vmatpush1.bf16.msra.mxu0 0
    %1019 = vmatprep.mubr.bf16.mxu0 0
    %1020 = vmatmul.mubr.bf16.gmra.mrb[0].mxu0 %v985
    %v1021 = vpop.f32.mrb[0].mxu0
    %v1022 = vadd.f32 0.0, %v1021
    %v1023 = vpop.f32.mrb[0].mxu0
    %v1024 = vpop.f32.mrb[0].mxu0
    %v1025 = vadd.f32 0.0, %v1024
    %v1026 = vpop.f32.mrb[0].mxu0
    %1027 = vdwg.mxu0
    %v1030 = vunpack.c.l.b16 %v976
    %v1031 = vunpack.c.l.b16 %v977
    %v1032 = vpack.c.b16 %v1031, %v1030
    %1034 = vmatprep.subr.bf16.mxu0 0
    %1035 = vmatpush1.bf16.msra.mxu0 %v1032
    %1036 = vmatprep.subr.bf16.mxu0 0
    %1037 = vmatpush1.bf16.msra.mxu0 0
    %1038 = vmatprep.subr.bf16.mxu0 0
    %1039 = vmatpush1.bf16.msra.mxu0 0
    %1040 = vmatprep.subr.bf16.mxu0 0
    %1041 = vmatpush1.bf16.msra.mxu0 0
    %1042 = vmatprep.subr.bf16.mxu0 0
    %1043 = vmatpush1.bf16.msra.mxu0 0
    %1044 = vmatprep.subr.bf16.mxu0 0
    %1045 = vmatpush1.bf16.msra.mxu0 0
    %1046 = vmatprep.subr.bf16.mxu0 0
    %1047 = vmatpush1.bf16.msra.mxu0 0
    %1048 = vmatprep.subr.bf16.mxu0 0
    %1049 = vmatpush1.bf16.msra.mxu0 0
    %1050 = vmatprep.subr.bf16.mxu0 0
    %1051 = vmatpush1.bf16.msra.mxu0 0
    %1052 = vmatprep.subr.bf16.mxu0 0
    %1053 = vmatpush1.bf16.msra.mxu0 0
    %1054 = vmatprep.subr.bf16.mxu0 0
    %1055 = vmatpush1.bf16.msra.mxu0 0
    %1056 = vmatprep.subr.bf16.mxu0 0
    %1057 = vmatpush1.bf16.msra.mxu0 0
    %1058 = vmatprep.subr.bf16.mxu0 0
    %1059 = vmatpush1.bf16.msra.mxu0 0
    %1060 = vmatprep.subr.bf16.mxu0 0
    %1061 = vmatpush1.bf16.msra.mxu0 0
    %1062 = vmatprep.subr.bf16.mxu0 0
    %1063 = vmatpush1.bf16.msra.mxu0 0
    %1064 = vmatprep.subr.bf16.mxu0 0
    %1065 = vmatpush1.bf16.msra.mxu0 0
    %1066 = vmatprep.mubr.bf16.mxu0 0
    %1067 = vmatmul.mubr.bf16.gmra.mrb[0].mxu0 %v985
    %v1068 = vpop.f32.mrb[0].mxu0
    %v1069 = vadd.f32 0.0, %v1068
    %v1070 = vpop.f32.mrb[0].mxu0
    %v1071 = vpop.f32.mrb[0].mxu0
    %v1072 = vadd.f32 0.0, %v1071
    %v1073 = vpop.f32.mrb[0].mxu0
    %1074 = vdwg.mxu0
    %s1075 = scalar_lea.vmem [#allocation7], 3
    %v1076 = vld [vmem:[%s1075] sm:$0x1]
    %s1077 = scalar_lea.vmem [#allocation9], 3
    %v1078 = vld [vmem:[%s1077] sm:$0x1]
    %v1079 = vsel %vm218, %v1022, 0.0
    %v1080 = vrot.slane %v1079, 4
    %v1081 = vadd.f32 %v1079, %v1080
    %v1082 = vrot.slane %v1081, 2
    %v1083 = vadd.f32 %v1081, %v1082
    %v1084 = vrot.slane %v1083, 1
    %v1085 = vadd.f32 %v1083, %v1084
    %v1086 = vsel %vm218, %v1025, 0.0
    %v1087 = vrot.slane %v1086, 4
    %v1088 = vadd.f32 %v1086, %v1087
    %v1089 = vrot.slane %v1088, 2
    %v1090 = vadd.f32 %v1088, %v1089
    %v1091 = vrot.slane %v1090, 1
    %v1092 = vadd.f32 %v1090, %v1091
    %v1093 = vmul.f32 %v1085, %v326
    %v1094 = vmul.f32 %v1092, %v326
    %v1095 = vmul.f32 %v1022, %v1022
    %v1096 = vmul.f32 %v1025, %v1025
    %v1097 = vsel %vm218, %v1095, 0.0
    %v1098 = vrot.slane %v1097, 4
    %v1099 = vadd.f32 %v1097, %v1098
    %v1100 = vrot.slane %v1099, 2
    %v1101 = vadd.f32 %v1099, %v1100
    %v1102 = vrot.slane %v1101, 1
    %v1103 = vadd.f32 %v1101, %v1102
    %v1104 = vsel %vm218, %v1096, 0.0
    %v1105 = vrot.slane %v1104, 4
    %v1106 = vadd.f32 %v1104, %v1105
    %v1107 = vrot.slane %v1106, 2
    %v1108 = vadd.f32 %v1106, %v1107
    %v1109 = vrot.slane %v1108, 1
    %v1110 = vadd.f32 %v1108, %v1109
    %v1111 = vmul.f32 %v1103, %v326
    %v1112 = vmul.f32 %v1110, %v326
    %v1113 = vmul.f32 %v1093, %v1093
    %v1114 = vmul.f32 %v1094, %v1094
    %v1115 = vsub.f32 %v1111, %v1113
    %v1116 = vsub.f32 %v1112, %v1114
    %v1117 = vmax.f32 %v1115, 0.0
    %v1118 = vmax.f32 %v1116, 0.0
    %v1119 = vsub.f32 %v1022, %v1093
    %v1120 = vsub.f32 %v1025, %v1094
    %v1121 = vadd.f32 %v1117, 1e-05
    %v1122 = vadd.f32 %v1118, 1e-05
    %v1123 = vrsqrt.pop %v1121
    %v1124 = vrsqrt.pop %v1122
    %v1125 = vmul.f32 %v1119, %v1123
    %v1126 = vmul.f32 %v1120, %v1124
    %v1128 = vlaneseq
    %v1129 = vshrl.u32 %v1128, 7
    %v1130 = vsub.s32 0, %v1129
    %v1131 = vrot.slane %v1076, %v1130
    %v1133 = vmul.f32 %v1125, %v1131
    %v1134 = vmul.f32 %v1126, %v1131
    %v1136 = vlaneseq
    %v1137 = vshrl.u32 %v1136, 7
    %v1138 = vsub.s32 0, %v1137
    %v1139 = vrot.slane %v1078, %v1138
    %v1141 = vadd.f32 %v1133, %v1139
    %v1142 = vadd.f32 %v1134, %v1139
    %s1143 = scalar_lea.vmem [#allocation10], 3
    %v1144 = vld [vmem:[%s1143] sm:$0x1]
    %s1145 = scalar_lea.vmem [#allocation12], 3
    %v1146 = vld [vmem:[%s1145] sm:$0x1]
    %v1147 = vsel %vm218, %v1069, 0.0
    %v1148 = vrot.slane %v1147, 4
    %v1149 = vadd.f32 %v1147, %v1148
    %v1150 = vrot.slane %v1149, 2
    %v1151 = vadd.f32 %v1149, %v1150
    %v1152 = vrot.slane %v1151, 1
    %v1153 = vadd.f32 %v1151, %v1152
    %v1154 = vsel %vm218, %v1072, 0.0
    %v1155 = vrot.slane %v1154, 4
    %v1156 = vadd.f32 %v1154, %v1155
    %v1157 = vrot.slane %v1156, 2
    %v1158 = vadd.f32 %v1156, %v1157
    %v1159 = vrot.slane %v1158, 1
    %v1160 = vadd.f32 %v1158, %v1159
    %v1161 = vmul.f32 %v1153, %v326
    %v1162 = vmul.f32 %v1160, %v326
    %v1163 = vmul.f32 %v1069, %v1069
    %v1164 = vmul.f32 %v1072, %v1072
    %v1165 = vsel %vm218, %v1163, 0.0
    %v1166 = vrot.slane %v1165, 4
    %v1167 = vadd.f32 %v1165, %v1166
    %v1168 = vrot.slane %v1167, 2
    %v1169 = vadd.f32 %v1167, %v1168
    %v1170 = vrot.slane %v1169, 1
    %v1171 = vadd.f32 %v1169, %v1170
    %v1172 = vsel %vm218, %v1164, 0.0
    %v1173 = vrot.slane %v1172, 4
    %v1174 = vadd.f32 %v1172, %v1173
    %v1175 = vrot.slane %v1174, 2
    %v1176 = vadd.f32 %v1174, %v1175
    %v1177 = vrot.slane %v1176, 1
    %v1178 = vadd.f32 %v1176, %v1177
    %v1179 = vmul.f32 %v1171, %v326
    %v1180 = vmul.f32 %v1178, %v326
    %v1181 = vmul.f32 %v1161, %v1161
    %v1182 = vmul.f32 %v1162, %v1162
    %v1183 = vsub.f32 %v1179, %v1181
    %v1184 = vsub.f32 %v1180, %v1182
    %v1185 = vmax.f32 %v1183, 0.0
    %v1186 = vmax.f32 %v1184, 0.0
    %v1187 = vsub.f32 %v1069, %v1161
    %v1188 = vsub.f32 %v1072, %v1162
    %v1189 = vadd.f32 %v1185, 1e-05
    %v1190 = vadd.f32 %v1186, 1e-05
    %v1191 = vrsqrt.pop %v1189
    %v1192 = vrsqrt.pop %v1190
    %v1193 = vmul.f32 %v1187, %v1191
    %v1194 = vmul.f32 %v1188, %v1192
    %v1196 = vlaneseq
    %v1197 = vshrl.u32 %v1196, 7
    %v1198 = vsub.s32 0, %v1197
    %v1199 = vrot.slane %v1144, %v1198
    %v1201 = vmul.f32 %v1193, %v1199
    %v1202 = vmul.f32 %v1194, %v1199
    %v1204 = vlaneseq
    %v1205 = vshrl.u32 %v1204, 7
    %v1206 = vsub.s32 0, %v1205
    %v1207 = vrot.slane %v1146, %v1206
    %v1209 = vadd.f32 %v1201, %v1207
    %v1210 = vadd.f32 %v1202, %v1207
    %v1211 = vxor.u32 %v1209, 2147483648
    %v1212 = vxor.u32 %v1210, 2147483648
    %v1213 = vmul.f32 %v1211, 1.442695
    %v1214 = vpow.pop %v1213
    %v1215 = vmul.f32 %v1212, 1.442695
    %v1216 = vpow.pop %v1215
    %v1217 = vadd.f32 %v1214, 1.0
    %v1218 = vadd.f32 %v1216, 1.0
    %v1219 = vrcp.pop %v1217
    %v1220 = vmul.f32 1.0, %v1219
    %v1221 = vrcp.pop %v1218
    %v1222 = vmul.f32 1.0, %v1221
    %v1223 = vmul.f32 %v1141, %v1220
    %v1224 = vmul.f32 %v1142, %v1222
    %v1225 = vadd.f32 %v969, %v1223
    %v1226 = vadd.f32 %v970, %v1224
    %v1227 = vmul.f32 %v1225, 0.70710677
    %v1228 = vmul.f32 %v1226, 0.70710677
    %v1229 = vpack.c.bf16 %v1228, %v1227
    %v1230 = vld [vmem:[#allocation13] sm:$0xf]
    %v1231 = vld [vmem:[#allocation13 + $0x4] sm:$0xf]
    %v1234 = vunpack.c.l.b16 %v1230
    %v1235 = vunpack.c.l.b16 %v1231
    %v1236 = vpack.c.b16 %v1235, %v1234
    %v1239 = vsel %vm218, %v1229, 0
    %1241 = vmatprep.subr.bf16.mxu0 0
    %1242 = vmatpush1.bf16.msra.mxu0 %v1236
    %1243 = vmatprep.subr.bf16.mxu0 0
    %1244 = vmatpush1.bf16.msra.mxu0 0
    %1245 = vmatprep.subr.bf16.mxu0 0
    %1246 = vmatpush1.bf16.msra.mxu0 0
    %1247 = vmatprep.subr.bf16.mxu0 0
    %1248 = vmatpush1.bf16.msra.mxu0 0
    %1249 = vmatprep.subr.bf16.mxu0 0
    %1250 = vmatpush1.bf16.msra.mxu0 0
    %1251 = vmatprep.subr.bf16.mxu0 0
    %1252 = vmatpush1.bf16.msra.mxu0 0
    %1253 = vmatprep.subr.bf16.mxu0 0
    %1254 = vmatpush1.bf16.msra.mxu0 0
    %1255 = vmatprep.subr.bf16.mxu0 0
    %1256 = vmatpush1.bf16.msra.mxu0 0
    %1257 = vmatprep.subr.bf16.mxu0 0
    %1258 = vmatpush1.bf16.msra.mxu0 0
    %1259 = vmatprep.subr.bf16.mxu0 0
    %1260 = vmatpush1.bf16.msra.mxu0 0
    %1261 = vmatprep.subr.bf16.mxu0 0
    %1262 = vmatpush1.bf16.msra.mxu0 0
    %1263 = vmatprep.subr.bf16.mxu0 0
    %1264 = vmatpush1.bf16.msra.mxu0 0
    %1265 = vmatprep.subr.bf16.mxu0 0
    %1266 = vmatpush1.bf16.msra.mxu0 0
    %1267 = vmatprep.subr.bf16.mxu0 0
    %1268 = vmatpush1.bf16.msra.mxu0 0
    %1269 = vmatprep.subr.bf16.mxu0 0
    %1270 = vmatpush1.bf16.msra.mxu0 0
    %1271 = vmatprep.subr.bf16.mxu0 0
    %1272 = vmatpush1.bf16.msra.mxu0 0
    %1273 = vmatprep.mubr.bf16.mxu0 0
    %1274 = vmatmul.mubr.bf16.gmra.mrb[0].mxu0 %v1239
    %v1275 = vpop.f32.mrb[0].mxu0
    %v1276 = vadd.f32 0.0, %v1275
    %v1277 = vpop.f32.mrb[0].mxu0
    %v1278 = vpop.f32.mrb[0].mxu0
    %v1279 = vadd.f32 0.0, %v1278
    %v1280 = vpop.f32.mrb[0].mxu0
    %1281 = vdwg.mxu0
    %v1282 = vld [vmem:[%s12] sm:$0x1]
    %v1283 = vld [vmem:[#allocation15] sm:$0x1]
    %v1284 = vsel %vm218, %v1276, 0.0
    %v1285 = vrot.slane %v1284, 4
    %v1286 = vadd.f32 %v1284, %v1285
    %v1287 = vrot.slane %v1286, 2
    %v1288 = vadd.f32 %v1286, %v1287
    %v1289 = vrot.slane %v1288, 1
    %v1290 = vadd.f32 %v1288, %v1289
    %v1291 = vsel %vm218, %v1279, 0.0
    %v1292 = vrot.slane %v1291, 4
    %v1293 = vadd.f32 %v1291, %v1292
    %v1294 = vrot.slane %v1293, 2
    %v1295 = vadd.f32 %v1293, %v1294
    %v1296 = vrot.slane %v1295, 1
    %v1297 = vadd.f32 %v1295, %v1296
    %v1298 = vmul.f32 %v1290, %v326
    %v1299 = vmul.f32 %v1297, %v326
    %v1300 = vmul.f32 %v1276, %v1276
    %v1301 = vmul.f32 %v1279, %v1279
    %v1302 = vsel %vm218, %v1300, 0.0
    %v1303 = vrot.slane %v1302, 4
    %v1304 = vadd.f32 %v1302, %v1303
    %v1305 = vrot.slane %v1304, 2
    %v1306 = vadd.f32 %v1304, %v1305
    %v1307 = vrot.slane %v1306, 1
    %v1308 = vadd.f32 %v1306, %v1307
    %v1309 = vsel %vm218, %v1301, 0.0
    %v1310 = vrot.slane %v1309, 4
    %v1311 = vadd.f32 %v1309, %v1310
    %v1312 = vrot.slane %v1311, 2
    %v1313 = vadd.f32 %v1311, %v1312
    %v1314 = vrot.slane %v1313, 1
    %v1315 = vadd.f32 %v1313, %v1314
    %v1316 = vmul.f32 %v1308, %v326
    %v1317 = vmul.f32 %v1315, %v326
    %v1318 = vmul.f32 %v1298, %v1298
    %v1319 = vmul.f32 %v1299, %v1299
    %v1320 = vsub.f32 %v1316, %v1318
    %v1321 = vsub.f32 %v1317, %v1319
    %v1322 = vmax.f32 %v1320, 0.0
    %v1323 = vmax.f32 %v1321, 0.0
    %v1324 = vsub.f32 %v1276, %v1298
    %v1325 = vsub.f32 %v1279, %v1299
    %v1326 = vadd.f32 %v1322, 1e-05
    %v1327 = vadd.f32 %v1323, 1e-05
    %v1328 = vrsqrt.pop %v1326
    %v1329 = vrsqrt.pop %v1327
    %v1330 = vmul.f32 %v1324, %v1328
    %v1331 = vmul.f32 %v1325, %v1329
    %v1333 = vlaneseq
    %v1334 = vshrl.u32 %v1333, 7
    %v1335 = vsub.s32 0, %v1334
    %v1336 = vrot.slane %v1282, %v1335
    %v1338 = vmul.f32 %v1330, %v1336
    %v1339 = vmul.f32 %v1331, %v1336
    %v1341 = vlaneseq
    %v1342 = vshrl.u32 %v1341, 7
    %v1343 = vsub.s32 0, %v1342
    %v1344 = vrot.slane %v1283, %v1343
    %v1346 = vadd.f32 %v1338, %v1344
    %v1347 = vadd.f32 %v1339, %v1344
    %v1348 = vsel %vm218, %v1346, -inf
    %1349 = vmax.xlane.f32.xlu0 %v1348
    %v1350 = vpop.xlane.xlu0 %1349
    %v1351 = vsel %vm218, %v1347, -inf
    %1352 = vmax.xlane.f32.xlu0 %v1351
    %v1353 = vpop.xlane.xlu0 %1352
    %v1354 = vsub.f32 %v1346, %v1350
    %v1355 = vsub.f32 %v1347, %v1353
    %vm1356 = vcmask 1047680
    %1357 = vrot.lane.b32.xlu0 %v1354, 16
    %v1358 = vpop.permute.xlu0 %1357
    %v1359 = vsel %vm1356, %v1358, %v1354
    %1360 = vrot.lane.b32.xlu0 %v1355, 16
    %v1361 = vpop.permute.xlu0 %1360
    %v1362 = vsel %vm1356, %v1361, %v1355
    %1363 = vrot.lane.b32.xlu0 %v1359, 16
    %v1364 = vpop.permute.xlu0 %1363
    %1365 = vrot.lane.b32.xlu0 %v1362, 16
    %v1366 = vpop.permute.xlu0 %1365
    %v1367 = vsel %vm1356, %v1364, %v1354
    %v1368 = vsel %vm1356, %v1366, %v1355
    %1371 = vrot.lane.b32.xlu0 %v1354, 15
    %v1372 = vpop.permute.xlu0 %1371
    %1373 = vrot.lane.b32.xlu0 %v1355, 15
    %v1374 = vpop.permute.xlu0 %1373
    %vm1377 = vcmp.ge.f32.partialorder %v1367, %v1372
    %vm1378 = vcmp.ge.f32.partialorder %v1368, %v1374
    %v1379 = vsel %vm1377, 1, 0
    %v1380 = vsel %vm1378, 1, 0
    %v1381 = vcvt.s32.f32 %v1379
    %v1382 = vcvt.s32.f32 %v1380
    %v1383 = vadd.f32 %v1381, 1.0
    %v1384 = vadd.f32 %v1382, 1.0
    %v1385 = vmul.f32 %v1381, %v1367
    %v1386 = vmul.f32 %v1382, %v1368
    %1389 = vrot.lane.b32.xlu0 %v1385, 113
    %v1390 = vpop.permute.xlu0 %1389
    %1391 = vrot.lane.b32.xlu0 %v1386, 113
    %v1392 = vpop.permute.xlu0 %1391
    %v1395 = vadd.f32 %v1354, %v1390
    %v1396 = vadd.f32 %v1355, %v1392
    %1397 = vrot.lane.b32.xlu0 %v1354, 14
    %v1398 = vpop.permute.xlu0 %1397
    %1399 = vrot.lane.b32.xlu0 %v1355, 14
    %v1400 = vpop.permute.xlu0 %1399
    %vm1403 = vcmp.ge.f32.partialorder %v1367, %v1398
    %vm1404 = vcmp.ge.f32.partialorder %v1368, %v1400
    %v1405 = vsel %vm1403, 1, 0
    %v1406 = vsel %vm1404, 1, 0
    %v1407 = vcvt.s32.f32 %v1405
    %v1408 = vcvt.s32.f32 %v1406
    %1411 = vrot.lane.b32.xlu0 %v1407, 1
    %v1412 = vpop.permute.xlu0 %1411
    %1413 = vrot.lane.b32.xlu0 %v1408, 1
    %v1414 = vpop.permute.xlu0 %1413
    %v1417 = vadd.f32 %v1383, %v1412
    %v1418 = vadd.f32 %v1384, %v1414
    %v1419 = vmul.f32 %v1407, %v1367
    %v1420 = vmul.f32 %v1408, %v1368
    %1423 = vrot.lane.b32.xlu0 %v1419, 114
    %v1424 = vpop.permute.xlu0 %1423
    %1425 = vrot.lane.b32.xlu0 %v1420, 114
    %v1426 = vpop.permute.xlu0 %1425
    %v1429 = vadd.f32 %v1395, %v1424
    %v1430 = vadd.f32 %v1396, %v1426
    %1431 = vrot.lane.b32.xlu0 %v1354, 13
    %v1432 = vpop.permute.xlu0 %1431
    %1433 = vrot.lane.b32.xlu0 %v1355, 13
    %v1434 = vpop.permute.xlu0 %1433
    %vm1437 = vcmp.ge.f32.partialorder %v1367, %v1432
    %vm1438 = vcmp.ge.f32.partialorder %v1368, %v1434
    %v1439 = vsel %vm1437, 1, 0
    %v1440 = vsel %vm1438, 1, 0
    %v1441 = vcvt.s32.f32 %v1439
    %v1442 = vcvt.s32.f32 %v1440
    %1445 = vrot.lane.b32.xlu0 %v1441, 2
    %v1446 = vpop.permute.xlu0 %1445
    %1447 = vrot.lane.b32.xlu0 %v1442, 2
    %v1448 = vpop.permute.xlu0 %1447
    %v1451 = vadd.f32 %v1417, %v1446
    %v1452 = vadd.f32 %v1418, %v1448
    %v1453 = vmul.f32 %v1441, %v1367
    %v1454 = vmul.f32 %v1442, %v1368
    %1457 = vrot.lane.b32.xlu0 %v1453, 115
    %v1458 = vpop.permute.xlu0 %1457
    %1459 = vrot.lane.b32.xlu0 %v1454, 115
    %v1460 = vpop.permute.xlu0 %1459
    %v1463 = vadd.f32 %v1429, %v1458
    %v1464 = vadd.f32 %v1430, %v1460
    %1465 = vrot.lane.b32.xlu0 %v1354, 12
    %v1466 = vpop.permute.xlu0 %1465
    %1467 = vrot.lane.b32.xlu0 %v1355, 12
    %v1468 = vpop.permute.xlu0 %1467
    %vm1471 = vcmp.ge.f32.partialorder %v1367, %v1466
    %vm1472 = vcmp.ge.f32.partialorder %v1368, %v1468
    %v1473 = vsel %vm1471, 1, 0
    %v1474 = vsel %vm1472, 1, 0
    %v1475 = vcvt.s32.f32 %v1473
    %v1476 = vcvt.s32.f32 %v1474
    %1479 = vrot.lane.b32.xlu0 %v1475, 3
    %v1480 = vpop.permute.xlu0 %1479
    %1481 = vrot.lane.b32.xlu0 %v1476, 3
    %v1482 = vpop.permute.xlu0 %1481
    %v1485 = vadd.f32 %v1451, %v1480
    %v1486 = vadd.f32 %v1452, %v1482
    %v1487 = vmul.f32 %v1475, %v1367
    %v1488 = vmul.f32 %v1476, %v1368
    %1491 = vrot.lane.b32.xlu0 %v1487, 116
    %v1492 = vpop.permute.xlu0 %1491
    %1493 = vrot.lane.b32.xlu0 %v1488, 116
    %v1494 = vpop.permute.xlu0 %1493
    %v1497 = vadd.f32 %v1463, %v1492
    %v1498 = vadd.f32 %v1464, %v1494
    %1499 = vrot.lane.b32.xlu0 %v1354, 11
    %v1500 = vpop.permute.xlu0 %1499
    %1501 = vrot.lane.b32.xlu0 %v1355, 11
    %v1502 = vpop.permute.xlu0 %1501
    %vm1505 = vcmp.ge.f32.partialorder %v1367, %v1500
    %vm1506 = vcmp.ge.f32.partialorder %v1368, %v1502
    %v1507 = vsel %vm1505, 1, 0
    %v1508 = vsel %vm1506, 1, 0
    %v1509 = vcvt.s32.f32 %v1507
    %v1510 = vcvt.s32.f32 %v1508
    %1513 = vrot.lane.b32.xlu0 %v1509, 4
    %v1514 = vpop.permute.xlu0 %1513
    %1515 = vrot.lane.b32.xlu0 %v1510, 4
    %v1516 = vpop.permute.xlu0 %1515
    %v1519 = vadd.f32 %v1485, %v1514
    %v1520 = vadd.f32 %v1486, %v1516
    %v1521 = vmul.f32 %v1509, %v1367
    %v1522 = vmul.f32 %v1510, %v1368
    %1525 = vrot.lane.b32.xlu0 %v1521, 117
    %v1526 = vpop.permute.xlu0 %1525
    %1527 = vrot.lane.b32.xlu0 %v1522, 117
    %v1528 = vpop.permute.xlu0 %1527
    %v1531 = vadd.f32 %v1497, %v1526
    %v1532 = vadd.f32 %v1498, %v1528
    %1533 = vrot.lane.b32.xlu0 %v1354, 10
    %v1534 = vpop.permute.xlu0 %1533
    %1535 = vrot.lane.b32.xlu0 %v1355, 10
    %v1536 = vpop.permute.xlu0 %1535
    %vm1539 = vcmp.ge.f32.partialorder %v1367, %v1534
    %vm1540 = vcmp.ge.f32.partialorder %v1368, %v1536
    %v1541 = vsel %vm1539, 1, 0
    %v1542 = vsel %vm1540, 1, 0
    %v1543 = vcvt.s32.f32 %v1541
    %v1544 = vcvt.s32.f32 %v1542
    %1547 = vrot.lane.b32.xlu0 %v1543, 5
    %v1548 = vpop.permute.xlu0 %1547
    %1549 = vrot.lane.b32.xlu0 %v1544, 5
    %v1550 = vpop.permute.xlu0 %1549
    %v1553 = vadd.f32 %v1519, %v1548
    %v1554 = vadd.f32 %v1520, %v1550
    %v1555 = vmul.f32 %v1543, %v1367
    %v1556 = vmul.f32 %v1544, %v1368
    %1559 = vrot.lane.b32.xlu0 %v1555, 118
    %v1560 = vpop.permute.xlu0 %1559
    %1561 = vrot.lane.b32.xlu0 %v1556, 118
    %v1562 = vpop.permute.xlu0 %1561
    %v1565 = vadd.f32 %v1531, %v1560
    %v1566 = vadd.f32 %v1532, %v1562
    %1567 = vrot.lane.b32.xlu0 %v1354, 9
    %v1568 = vpop.permute.xlu0 %1567
    %1569 = vrot.lane.b32.xlu0 %v1355, 9
    %v1570 = vpop.permute.xlu0 %1569
    %vm1573 = vcmp.ge.f32.partialorder %v1367, %v1568
    %vm1574 = vcmp.ge.f32.partialorder %v1368, %v1570
    %v1575 = vsel %vm1573, 1, 0
    %v1576 = vsel %vm1574, 1, 0
    %v1577 = vcvt.s32.f32 %v1575
    %v1578 = vcvt.s32.f32 %v1576
    %1581 = vrot.lane.b32.xlu0 %v1577, 6
    %v1582 = vpop.permute.xlu0 %1581
    %1583 = vrot.lane.b32.xlu0 %v1578, 6
    %v1584 = vpop.permute.xlu0 %1583
    %v1587 = vadd.f32 %v1553, %v1582
    %v1588 = vadd.f32 %v1554, %v1584
    %v1589 = vmul.f32 %v1577, %v1367
    %v1590 = vmul.f32 %v1578, %v1368
    %1593 = vrot.lane.b32.xlu0 %v1589, 119
    %v1594 = vpop.permute.xlu0 %1593
    %1595 = vrot.lane.b32.xlu0 %v1590, 119
    %v1596 = vpop.permute.xlu0 %1595
    %v1599 = vadd.f32 %v1565, %v1594
    %v1600 = vadd.f32 %v1566, %v1596
    %1601 = vrot.lane.b32.xlu0 %v1354, 8
    %v1602 = vpop.permute.xlu0 %1601
    %1603 = vrot.lane.b32.xlu0 %v1355, 8
    %v1604 = vpop.permute.xlu0 %1603
    %vm1607 = vcmp.ge.f32.partialorder %v1367, %v1602
    %vm1608 = vcmp.ge.f32.partialorder %v1368, %v1604
    %v1609 = vsel %vm1607, 1, 0
    %v1610 = vsel %vm1608, 1, 0
    %v1611 = vcvt.s32.f32 %v1609
    %v1612 = vcvt.s32.f32 %v1610
    %1615 = vrot.lane.b32.xlu0 %v1611, 7
    %v1616 = vpop.permute.xlu0 %1615
    %1617 = vrot.lane.b32.xlu0 %v1612, 7
    %v1618 = vpop.permute.xlu0 %1617
    %v1621 = vadd.f32 %v1587, %v1616
    %v1622 = vadd.f32 %v1588, %v1618
    %v1623 = vmul.f32 %v1611, %v1367
    %v1624 = vmul.f32 %v1612, %v1368
    %1627 = vrot.lane.b32.xlu0 %v1623, 120
    %v1628 = vpop.permute.xlu0 %1627
    %1629 = vrot.lane.b32.xlu0 %v1624, 120
    %v1630 = vpop.permute.xlu0 %1629
    %v1633 = vadd.f32 %v1599, %v1628
    %v1634 = vadd.f32 %v1600, %v1630
    %1635 = vrot.lane.b32.xlu0 %v1354, 7
    %v1636 = vpop.permute.xlu0 %1635
    %1637 = vrot.lane.b32.xlu0 %v1355, 7
    %v1638 = vpop.permute.xlu0 %1637
    %vm1641 = vcmp.ge.f32.partialorder %v1367, %v1636
    %vm1642 = vcmp.ge.f32.partialorder %v1368, %v1638
    %v1643 = vsel %vm1641, 1, 0
    %v1644 = vsel %vm1642, 1, 0
    %v1645 = vcvt.s32.f32 %v1643
    %v1646 = vcvt.s32.f32 %v1644
    %1649 = vrot.lane.b32.xlu0 %v1645, 8
    %v1650 = vpop.permute.xlu0 %1649
    %1651 = vrot.lane.b32.xlu0 %v1646, 8
    %v1652 = vpop.permute.xlu0 %1651
    %v1655 = vadd.f32 %v1621, %v1650
    %v1656 = vadd.f32 %v1622, %v1652
    %v1657 = vmul.f32 %v1645, %v1367
    %v1658 = vmul.f32 %v1646, %v1368
    %1661 = vrot.lane.b32.xlu0 %v1657, 121
    %v1662 = vpop.permute.xlu0 %1661
    %1663 = vrot.lane.b32.xlu0 %v1658, 121
    %v1664 = vpop.permute.xlu0 %1663
    %v1667 = vadd.f32 %v1633, %v1662
    %v1668 = vadd.f32 %v1634, %v1664
    %1669 = vrot.lane.b32.xlu0 %v1354, 6
    %v1670 = vpop.permute.xlu0 %1669
    %1671 = vrot.lane.b32.xlu0 %v1355, 6
    %v1672 = vpop.permute.xlu0 %1671
    %vm1675 = vcmp.ge.f32.partialorder %v1367, %v1670
    %vm1676 = vcmp.ge.f32.partialorder %v1368, %v1672
    %v1677 = vsel %vm1675, 1, 0
    %v1678 = vsel %vm1676, 1, 0
    %v1679 = vcvt.s32.f32 %v1677
    %v1680 = vcvt.s32.f32 %v1678
    %1683 = vrot.lane.b32.xlu0 %v1679, 9
    %v1684 = vpop.permute.xlu0 %1683
    %1685 = vrot.lane.b32.xlu0 %v1680, 9
    %v1686 = vpop.permute.xlu0 %1685
    %v1689 = vadd.f32 %v1655, %v1684
    %v1690 = vadd.f32 %v1656, %v1686
    %v1691 = vmul.f32 %v1679, %v1367
    %v1692 = vmul.f32 %v1680, %v1368
    %1695 = vrot.lane.b32.xlu0 %v1691, 122
    %v1696 = vpop.permute.xlu0 %1695
    %1697 = vrot.lane.b32.xlu0 %v1692, 122
    %v1698 = vpop.permute.xlu0 %1697
    %v1701 = vadd.f32 %v1667, %v1696
    %v1702 = vadd.f32 %v1668, %v1698
    %1703 = vrot.lane.b32.xlu0 %v1354, 5
    %v1704 = vpop.permute.xlu0 %1703
    %1705 = vrot.lane.b32.xlu0 %v1355, 5
    %v1706 = vpop.permute.xlu0 %1705
    %vm1709 = vcmp.ge.f32.partialorder %v1367, %v1704
    %vm1710 = vcmp.ge.f32.partialorder %v1368, %v1706
    %v1711 = vsel %vm1709, 1, 0
    %v1712 = vsel %vm1710, 1, 0
    %v1713 = vcvt.s32.f32 %v1711
    %v1714 = vcvt.s32.f32 %v1712
    %1717 = vrot.lane.b32.xlu0 %v1713, 10
    %v1718 = vpop.permute.xlu0 %1717
    %1719 = vrot.lane.b32.xlu0 %v1714, 10
    %v1720 = vpop.permute.xlu0 %1719
    %v1723 = vadd.f32 %v1689, %v1718
    %v1724 = vadd.f32 %v1690, %v1720
    %v1725 = vmul.f32 %v1713, %v1367
    %v1726 = vmul.f32 %v1714, %v1368
    %1729 = vrot.lane.b32.xlu0 %v1725, 123
    %v1730 = vpop.permute.xlu0 %1729
    %1731 = vrot.lane.b32.xlu0 %v1726, 123
    %v1732 = vpop.permute.xlu0 %1731
    %v1735 = vadd.f32 %v1701, %v1730
    %v1736 = vadd.f32 %v1702, %v1732
    %1737 = vrot.lane.b32.xlu0 %v1354, 4
    %v1738 = vpop.permute.xlu0 %1737
    %1739 = vrot.lane.b32.xlu0 %v1355, 4
    %v1740 = vpop.permute.xlu0 %1739
    %vm1743 = vcmp.ge.f32.partialorder %v1367, %v1738
    %vm1744 = vcmp.ge.f32.partialorder %v1368, %v1740
    %v1745 = vsel %vm1743, 1, 0
    %v1746 = vsel %vm1744, 1, 0
    %v1747 = vcvt.s32.f32 %v1745
    %v1748 = vcvt.s32.f32 %v1746
    %1751 = vrot.lane.b32.xlu0 %v1747, 11
    %v1752 = vpop.permute.xlu0 %1751
    %1753 = vrot.lane.b32.xlu0 %v1748, 11
    %v1754 = vpop.permute.xlu0 %1753
    %v1757 = vadd.f32 %v1723, %v1752
    %v1758 = vadd.f32 %v1724, %v1754
    %v1759 = vmul.f32 %v1747, %v1367
    %v1760 = vmul.f32 %v1748, %v1368
    %1763 = vrot.lane.b32.xlu0 %v1759, 124
    %v1764 = vpop.permute.xlu0 %1763
    %1765 = vrot.lane.b32.xlu0 %v1760, 124
    %v1766 = vpop.permute.xlu0 %1765
    %v1769 = vadd.f32 %v1735, %v1764
    %v1770 = vadd.f32 %v1736, %v1766
    %1771 = vrot.lane.b32.xlu0 %v1354, 3
    %v1772 = vpop.permute.xlu0 %1771
    %1773 = vrot.lane.b32.xlu0 %v1355, 3
    %v1774 = vpop.permute.xlu0 %1773
    %vm1777 = vcmp.ge.f32.partialorder %v1367, %v1772
    %vm1778 = vcmp.ge.f32.partialorder %v1368, %v1774
    %v1779 = vsel %vm1777, 1, 0
    %v1780 = vsel %vm1778, 1, 0
    %v1781 = vcvt.s32.f32 %v1779
    %v1782 = vcvt.s32.f32 %v1780
    %1785 = vrot.lane.b32.xlu0 %v1781, 12
    %v1786 = vpop.permute.xlu0 %1785
    %1787 = vrot.lane.b32.xlu0 %v1782, 12
    %v1788 = vpop.permute.xlu0 %1787
    %v1791 = vadd.f32 %v1757, %v1786
    %v1792 = vadd.f32 %v1758, %v1788
    %v1793 = vmul.f32 %v1781, %v1367
    %v1794 = vmul.f32 %v1782, %v1368
    %1797 = vrot.lane.b32.xlu0 %v1793, 125
    %v1798 = vpop.permute.xlu0 %1797
    %1799 = vrot.lane.b32.xlu0 %v1794, 125
    %v1800 = vpop.permute.xlu0 %1799
    %v1803 = vadd.f32 %v1769, %v1798
    %v1804 = vadd.f32 %v1770, %v1800
    %1805 = vrot.lane.b32.xlu0 %v1354, 2
    %v1806 = vpop.permute.xlu0 %1805
    %1807 = vrot.lane.b32.xlu0 %v1355, 2
    %v1808 = vpop.permute.xlu0 %1807
    %vm1811 = vcmp.ge.f32.partialorder %v1367, %v1806
    %vm1812 = vcmp.ge.f32.partialorder %v1368, %v1808
    %v1813 = vsel %vm1811, 1, 0
    %v1814 = vsel %vm1812, 1, 0
    %v1815 = vcvt.s32.f32 %v1813
    %v1816 = vcvt.s32.f32 %v1814
    %1819 = vrot.lane.b32.xlu0 %v1815, 13
    %v1820 = vpop.permute.xlu0 %1819
    %1821 = vrot.lane.b32.xlu0 %v1816, 13
    %v1822 = vpop.permute.xlu0 %1821
    %v1825 = vadd.f32 %v1791, %v1820
    %v1826 = vadd.f32 %v1792, %v1822
    %v1827 = vmul.f32 %v1815, %v1367
    %v1828 = vmul.f32 %v1816, %v1368
    %1831 = vrot.lane.b32.xlu0 %v1827, 126
    %v1832 = vpop.permute.xlu0 %1831
    %1833 = vrot.lane.b32.xlu0 %v1828, 126
    %v1834 = vpop.permute.xlu0 %1833
    %v1837 = vadd.f32 %v1803, %v1832
    %v1838 = vadd.f32 %v1804, %v1834
    %1839 = vrot.lane.b32.xlu0 %v1354, 1
    %v1840 = vpop.permute.xlu0 %1839
    %1841 = vrot.lane.b32.xlu0 %v1355, 1
    %v1842 = vpop.permute.xlu0 %1841
    %vm1845 = vcmp.ge.f32.partialorder %v1367, %v1840
    %vm1846 = vcmp.ge.f32.partialorder %v1368, %v1842
    %v1847 = vsel %vm1845, 1, 0
    %v1848 = vsel %vm1846, 1, 0
    %v1849 = vcvt.s32.f32 %v1847
    %v1850 = vcvt.s32.f32 %v1848
    %1853 = vrot.lane.b32.xlu0 %v1849, 14
    %v1854 = vpop.permute.xlu0 %1853
    %1855 = vrot.lane.b32.xlu0 %v1850, 14
    %v1856 = vpop.permute.xlu0 %1855
    %v1859 = vadd.f32 %v1825, %v1854
    %v1860 = vadd.f32 %v1826, %v1856
    %v1861 = vmul.f32 %v1849, %v1367
    %v1862 = vmul.f32 %v1850, %v1368
    %1865 = vrot.lane.b32.xlu0 %v1861, 127
    %v1866 = vpop.permute.xlu0 %1865
    %1867 = vrot.lane.b32.xlu0 %v1862, 127
    %v1868 = vpop.permute.xlu0 %1867
    %v1871 = vadd.f32 %v1837, %v1866
    %v1872 = vadd.f32 %v1838, %v1868
    %v1873 = vmul.f32 %v1859, %v1372
    %v1874 = vmul.f32 %v1860, %v1374
    %v1875 = vadd.f32 %v1873, 1.0
    %v1876 = vadd.f32 %v1874, 1.0
    %1879 = vrot.lane.b32.xlu0 %v1871, 15
    %v1880 = vpop.permute.xlu0 %1879
    %1881 = vrot.lane.b32.xlu0 %v1872, 15
    %v1882 = vpop.permute.xlu0 %1881
    %vm1885 = vcmp.gt.f32.partialorder %v1875, %v1880
    %vm1886 = vcmp.gt.f32.partialorder %v1876, %v1882
    %v1887 = vsel %vm1885, 1, 0
    %v1888 = vsel %vm1886, 1, 0
    %v1889 = vcvt.s32.f32 %v1887
    %v1890 = vcvt.s32.f32 %v1888
    %1893 = vrot.lane.b32.xlu0 %v1889, 113
    %v1894 = vpop.permute.xlu0 %1893
    %1895 = vrot.lane.b32.xlu0 %v1890, 113
    %v1896 = vpop.permute.xlu0 %1895
    %v1899 = vsel %vm218, %v1894, 0.0
    %1900 = vadd.xlane.f32.xlu0 %v1899
    %v1901 = vpop.xlane.xlu0 %1900
    %v1902 = vsel %vm218, %v1896, 0.0
    %1903 = vadd.xlane.f32.xlu0 %v1902
    %v1904 = vpop.xlane.xlu0 %1903
    %v1905 = vmul.f32 %v1354, %v1894
    %v1906 = vmul.f32 %v1355, %v1896
    %v1907 = vsel %vm218, %v1905, 0.0
    %1908 = vadd.xlane.f32.xlu0 %v1907
    %v1909 = vpop.xlane.xlu0 %1908
    %v1910 = vsel %vm218, %v1906, 0.0
    %1911 = vadd.xlane.f32.xlu0 %v1910
    %v1912 = vpop.xlane.xlu0 %1911
    %v1913 = vsub.f32 %v1909, 1.0
    %v1914 = vsub.f32 %v1912, 1.0
    %v1915 = vrcp.pop %v1901
    %v1916 = vmul.f32 %v1913, %v1915
    %v1917 = vrcp.pop %v1904
    %v1918 = vmul.f32 %v1914, %v1917
    %v1919 = vsub.f32 %v1354, %v1916
    %v1920 = vsub.f32 %v1355, %v1918
    %v1921 = vmax.f32 %v1919, 0.0
    %v1922 = vmax.f32 %v1920, 0.0
    %v1923 = vadd.f32 %v1921, 1e-15
    %v1924 = vadd.f32 %v1922, 1e-15
    %v1925 = vlog2.pop %v1923
    %v1926 = vmul.f32 %v1925, 0.6931472
    %v1927 = vlog2.pop %v1924
    %v1928 = vmul.f32 %v1927, 0.6931472
    %v1929 = vmul.f32 %v1921, %v1926
    %v1930 = vmul.f32 %v1922, %v1928
    %v1931 = vsel %vm218, %v1929, 0.0
    %1932 = vadd.xlane.f32.xlu0 %v1931
    %v1933 = vpop.xlane.xlu0 %1932
    %v1934 = vsel %vm218, %v1930, 0.0
    %1935 = vadd.xlane.f32.xlu0 %v1934
    %v1936 = vpop.xlane.xlu0 %1935
    %v1937 = vadd.f32 %v1933, 0.0
    %v1938 = vadd.f32 %v1936, 0.0
    %v1939 = vsub.f32 1.3, %v1921
    %v1940 = vsub.f32 1.3, %v1922
    %v1941 = vmul.f32 %v1921, %v205
    %v1942 = vmul.f32 %v1922, %v206
    %v1943 = vpack.c.bf16 %v1942, %v1941
    %v1945 = vsel %vm218, %v1943, 0
    %1947 = vmatprep.subr.bf16.mxu0 0
    %1948 = vmatpush1.bf16.msra.mxu0 %v216
    %1949 = vmatprep.subr.bf16.mxu0 0
    %1950 = vmatpush1.bf16.msra.mxu0 0
    %1951 = vmatprep.subr.bf16.mxu0 0
    %1952 = vmatpush1.bf16.msra.mxu0 0
    %1953 = vmatprep.subr.bf16.mxu0 0
    %1954 = vmatpush1.bf16.msra.mxu0 0
    %1955 = vmatprep.subr.bf16.mxu0 0
    %1956 = vmatpush1.bf16.msra.mxu0 0
    %1957 = vmatprep.subr.bf16.mxu0 0
    %1958 = vmatpush1.bf16.msra.mxu0 0
    %1959 = vmatprep.subr.bf16.mxu0 0
    %1960 = vmatpush1.bf16.msra.mxu0 0
    %1961 = vmatprep.subr.bf16.mxu0 0
    %1962 = vmatpush1.bf16.msra.mxu0 0
    %1963 = vmatprep.subr.bf16.mxu0 0
    %1964 = vmatpush1.bf16.msra.mxu0 0
    %1965 = vmatprep.subr.bf16.mxu0 0
    %1966 = vmatpush1.bf16.msra.mxu0 0
    %1967 = vmatprep.subr.bf16.mxu0 0
    %1968 = vmatpush1.bf16.msra.mxu0 0
    %1969 = vmatprep.subr.bf16.mxu0 0
    %1970 = vmatpush1.bf16.msra.mxu0 0
    %1971 = vmatprep.subr.bf16.mxu0 0
    %1972 = vmatpush1.bf16.msra.mxu0 0
    %1973 = vmatprep.subr.bf16.mxu0 0
    %1974 = vmatpush1.bf16.msra.mxu0 0
    %1975 = vmatprep.subr.bf16.mxu0 0
    %1976 = vmatpush1.bf16.msra.mxu0 0
    %1977 = vmatprep.subr.bf16.mxu0 0
    %1978 = vmatpush1.bf16.msra.mxu0 0
    %1979 = vmatprep.mubr.bf16.mxu0 0
    %1980 = vmatmul.mubr.bf16.gmra.mrb[0].mxu0 %v1945
    %v1981 = vpop.f32.mrb[0].mxu0
    %v1982 = vadd.f32 0.0, %v1981
    %v1983 = vpop.f32.mrb[0].mxu0
    %v1984 = vpop.f32.mrb[0].mxu0
    %v1985 = vadd.f32 0.0, %v1984
    %v1986 = vpop.f32.mrb[0].mxu0
    %1987 = vdwg.mxu0
    %1988 = vmatprep.subr.bf16.mxu0 0
    %1989 = vmatpush1.bf16.msra.mxu0 %v267
    %1990 = vmatprep.subr.bf16.mxu0 0
    %1991 = vmatpush1.bf16.msra.mxu0 0
    %1992 = vmatprep.subr.bf16.mxu0 0
    %1993 = vmatpush1.bf16.msra.mxu0 0
    %1994 = vmatprep.subr.bf16.mxu0 0
    %1995 = vmatpush1.bf16.msra.mxu0 0
    %1996 = vmatprep.subr.bf16.mxu0 0
    %1997 = vmatpush1.bf16.msra.mxu0 0
    %1998 = vmatprep.subr.bf16.mxu0 0
    %1999 = vmatpush1.bf16.msra.mxu0 0
    %2000 = vmatprep.subr.bf16.mxu0 0
    %2001 = vmatpush1.bf16.msra.mxu0 0
    %2002 = vmatprep.subr.bf16.mxu0 0
    %2003 = vmatpush1.bf16.msra.mxu0 0
    %2004 = vmatprep.subr.bf16.mxu0 0
    %2005 = vmatpush1.bf16.msra.mxu0 0
    %2006 = vmatprep.subr.bf16.mxu0 0
    %2007 = vmatpush1.bf16.msra.mxu0 0
    %2008 = vmatprep.subr.bf16.mxu0 0
    %2009 = vmatpush1.bf16.msra.mxu0 0
    %2010 = vmatprep.subr.bf16.mxu0 0
    %2011 = vmatpush1.bf16.msra.mxu0 0
    %2012 = vmatprep.subr.bf16.mxu0 0
    %2013 = vmatpush1.bf16.msra.mxu0 0
    %2014 = vmatprep.subr.bf16.mxu0 0
    %2015 = vmatpush1.bf16.msra.mxu0 0
    %2016 = vmatprep.subr.bf16.mxu0 0
    %2017 = vmatpush1.bf16.msra.mxu0 0
    %2018 = vmatprep.subr.bf16.mxu0 0
    %2019 = vmatpush1.bf16.msra.mxu0 0
    %2020 = vmatprep.mubr.bf16.mxu0 0
    %2021 = vmatmul.mubr.bf16.gmra.mrb[0].mxu0 %v1945
    %v2022 = vpop.f32.mrb[0].mxu0
    %v2023 = vadd.f32 0.0, %v2022
    %v2024 = vpop.f32.mrb[0].mxu0
    %v2025 = vpop.f32.mrb[0].mxu0
    %v2026 = vadd.f32 0.0, %v2025
    %v2027 = vpop.f32.mrb[0].mxu0
    %2028 = vdwg.mxu0
    %s2029 = scalar_lea.vmem [#allocation7], 4
    %v2030 = vld [vmem:[%s2029] sm:$0x1]
    %s2031 = scalar_lea.vmem [#allocation9], 4
    %v2032 = vld [vmem:[%s2031] sm:$0x1]
    %v2033 = vsel %vm218, %v1982, 0.0
    %v2034 = vrot.slane %v2033, 4
    %v2035 = vadd.f32 %v2033, %v2034
    %v2036 = vrot.slane %v2035, 2
    %v2037 = vadd.f32 %v2035, %v2036
    %v2038 = vrot.slane %v2037, 1
    %v2039 = vadd.f32 %v2037, %v2038
    %v2040 = vsel %vm218, %v1985, 0.0
    %v2041 = vrot.slane %v2040, 4
    %v2042 = vadd.f32 %v2040, %v2041
    %v2043 = vrot.slane %v2042, 2
    %v2044 = vadd.f32 %v2042, %v2043
    %v2045 = vrot.slane %v2044, 1
    %v2046 = vadd.f32 %v2044, %v2045
    %v2047 = vmul.f32 %v2039, %v326
    %v2048 = vmul.f32 %v2046, %v326
    %v2049 = vmul.f32 %v1982, %v1982
    %v2050 = vmul.f32 %v1985, %v1985
    %v2051 = vsel %vm218, %v2049, 0.0
    %v2052 = vrot.slane %v2051, 4
    %v2053 = vadd.f32 %v2051, %v2052
    %v2054 = vrot.slane %v2053, 2
    %v2055 = vadd.f32 %v2053, %v2054
    %v2056 = vrot.slane %v2055, 1
    %v2057 = vadd.f32 %v2055, %v2056
    %v2058 = vsel %vm218, %v2050, 0.0
    %v2059 = vrot.slane %v2058, 4
    %v2060 = vadd.f32 %v2058, %v2059
    %v2061 = vrot.slane %v2060, 2
    %v2062 = vadd.f32 %v2060, %v2061
    %v2063 = vrot.slane %v2062, 1
    %v2064 = vadd.f32 %v2062, %v2063
    %v2065 = vmul.f32 %v2057, %v326
    %v2066 = vmul.f32 %v2064, %v326
    %v2067 = vmul.f32 %v2047, %v2047
    %v2068 = vmul.f32 %v2048, %v2048
    %v2069 = vsub.f32 %v2065, %v2067
    %v2070 = vsub.f32 %v2066, %v2068
    %v2071 = vmax.f32 %v2069, 0.0
    %v2072 = vmax.f32 %v2070, 0.0
    %v2073 = vsub.f32 %v1982, %v2047
    %v2074 = vsub.f32 %v1985, %v2048
    %v2075 = vadd.f32 %v2071, 1e-05
    %v2076 = vadd.f32 %v2072, 1e-05
    %v2077 = vrsqrt.pop %v2075
    %v2078 = vrsqrt.pop %v2076
    %v2079 = vmul.f32 %v2073, %v2077
    %v2080 = vmul.f32 %v2074, %v2078
    %v2082 = vlaneseq
    %v2083 = vshrl.u32 %v2082, 7
    %v2084 = vsub.s32 0, %v2083
    %v2085 = vrot.slane %v2030, %v2084
    %v2087 = vmul.f32 %v2079, %v2085
    %v2088 = vmul.f32 %v2080, %v2085
    %v2090 = vlaneseq
    %v2091 = vshrl.u32 %v2090, 7
    %v2092 = vsub.s32 0, %v2091
    %v2093 = vrot.slane %v2032, %v2092
    %v2095 = vadd.f32 %v2087, %v2093
    %v2096 = vadd.f32 %v2088, %v2093
    %s2097 = scalar_lea.vmem [#allocation10], 4
    %v2098 = vld [vmem:[%s2097] sm:$0x1]
    %s2099 = scalar_lea.vmem [#allocation12], 4
    %v2100 = vld [vmem:[%s2099] sm:$0x1]
    %v2101 = vsel %vm218, %v2023, 0.0
    %v2102 = vrot.slane %v2101, 4
    %v2103 = vadd.f32 %v2101, %v2102
    %v2104 = vrot.slane %v2103, 2
    %v2105 = vadd.f32 %v2103, %v2104
    %v2106 = vrot.slane %v2105, 1
    %v2107 = vadd.f32 %v2105, %v2106
    %v2108 = vsel %vm218, %v2026, 0.0
    %v2109 = vrot.slane %v2108, 4
    %v2110 = vadd.f32 %v2108, %v2109
    %v2111 = vrot.slane %v2110, 2
    %v2112 = vadd.f32 %v2110, %v2111
    %v2113 = vrot.slane %v2112, 1
    %v2114 = vadd.f32 %v2112, %v2113
    %v2115 = vmul.f32 %v2107, %v326
    %v2116 = vmul.f32 %v2114, %v326
    %v2117 = vmul.f32 %v2023, %v2023
    %v2118 = vmul.f32 %v2026, %v2026
    %v2119 = vsel %vm218, %v2117, 0.0
    %v2120 = vrot.slane %v2119, 4
    %v2121 = vadd.f32 %v2119, %v2120
    %v2122 = vrot.slane %v2121, 2
    %v2123 = vadd.f32 %v2121, %v2122
    %v2124 = vrot.slane %v2123, 1
    %v2125 = vadd.f32 %v2123, %v2124
    %v2126 = vsel %vm218, %v2118, 0.0
    %v2127 = vrot.slane %v2126, 4
    %v2128 = vadd.f32 %v2126, %v2127
    %v2129 = vrot.slane %v2128, 2
    %v2130 = vadd.f32 %v2128, %v2129
    %v2131 = vrot.slane %v2130, 1
    %v2132 = vadd.f32 %v2130, %v2131
    %v2133 = vmul.f32 %v2125, %v326
    %v2134 = vmul.f32 %v2132, %v326
    %v2135 = vmul.f32 %v2115, %v2115
    %v2136 = vmul.f32 %v2116, %v2116
    %v2137 = vsub.f32 %v2133, %v2135
    %v2138 = vsub.f32 %v2134, %v2136
    %v2139 = vmax.f32 %v2137, 0.0
    %v2140 = vmax.f32 %v2138, 0.0
    %v2141 = vsub.f32 %v2023, %v2115
    %v2142 = vsub.f32 %v2026, %v2116
    %v2143 = vadd.f32 %v2139, 1e-05
    %v2144 = vadd.f32 %v2140, 1e-05
    %v2145 = vrsqrt.pop %v2143
    %v2146 = vrsqrt.pop %v2144
    %v2147 = vmul.f32 %v2141, %v2145
    %v2148 = vmul.f32 %v2142, %v2146
    %v2150 = vlaneseq
    %v2151 = vshrl.u32 %v2150, 7
    %v2152 = vsub.s32 0, %v2151
    %v2153 = vrot.slane %v2098, %v2152
    %v2155 = vmul.f32 %v2147, %v2153
    %v2156 = vmul.f32 %v2148, %v2153
    %v2158 = vlaneseq
    %v2159 = vshrl.u32 %v2158, 7
    %v2160 = vsub.s32 0, %v2159
    %v2161 = vrot.slane %v2100, %v2160
    %v2163 = vadd.f32 %v2155, %v2161
    %v2164 = vadd.f32 %v2156, %v2161
    %v2165 = vxor.u32 %v2163, 2147483648
    %v2166 = vxor.u32 %v2164, 2147483648
    %v2167 = vmul.f32 %v2165, 1.442695
    %v2168 = vpow.pop %v2167
    %v2169 = vmul.f32 %v2166, 1.442695
    %v2170 = vpow.pop %v2169
    %v2171 = vadd.f32 %v2168, 1.0
    %v2172 = vadd.f32 %v2170, 1.0
    %v2173 = vrcp.pop %v2171
    %v2174 = vmul.f32 1.0, %v2173
    %v2175 = vrcp.pop %v2172
    %v2176 = vmul.f32 1.0, %v2175
    %v2177 = vmul.f32 %v2095, %v2174
    %v2178 = vmul.f32 %v2096, %v2176
    %v2179 = vpack.c.bf16 %v2178, %v2177
    %v2181 = vsel %vm218, %v2179, 0
    %2183 = vmatprep.subr.bf16.mxu0 0
    %2184 = vmatpush1.bf16.msra.mxu0 %v466
    %2185 = vmatprep.subr.bf16.mxu0 0
    %2186 = vmatpush1.bf16.msra.mxu0 0
    %2187 = vmatprep.subr.bf16.mxu0 0
    %2188 = vmatpush1.bf16.msra.mxu0 0
    %2189 = vmatprep.subr.bf16.mxu0 0
    %2190 = vmatpush1.bf16.msra.mxu0 0
    %2191 = vmatprep.subr.bf16.mxu0 0
    %2192 = vmatpush1.bf16.msra.mxu0 0
    %2193 = vmatprep.subr.bf16.mxu0 0
    %2194 = vmatpush1.bf16.msra.mxu0 0
    %2195 = vmatprep.subr.bf16.mxu0 0
    %2196 = vmatpush1.bf16.msra.mxu0 0
    %2197 = vmatprep.subr.bf16.mxu0 0
    %2198 = vmatpush1.bf16.msra.mxu0 0
    %2199 = vmatprep.subr.bf16.mxu0 0
    %2200 = vmatpush1.bf16.msra.mxu0 0
    %2201 = vmatprep.subr.bf16.mxu0 0
    %2202 = vmatpush1.bf16.msra.mxu0 0
    %2203 = vmatprep.subr.bf16.mxu0 0
    %2204 = vmatpush1.bf16.msra.mxu0 0
    %2205 = vmatprep.subr.bf16.mxu0 0
    %2206 = vmatpush1.bf16.msra.mxu0 0
    %2207 = vmatprep.subr.bf16.mxu0 0
    %2208 = vmatpush1.bf16.msra.mxu0 0
    %2209 = vmatprep.subr.bf16.mxu0 0
    %2210 = vmatpush1.bf16.msra.mxu0 0
    %2211 = vmatprep.subr.bf16.mxu0 0
    %2212 = vmatpush1.bf16.msra.mxu0 0
    %2213 = vmatprep.subr.bf16.mxu0 0
    %2214 = vmatpush1.bf16.msra.mxu0 0
    %2215 = vmatprep.mubr.bf16.mxu0 0
    %2216 = vmatmul.mubr.bf16.gmra.mrb[0].mxu0 %v2181
    %v2217 = vpop.f32.mrb[0].mxu0
    %v2218 = vadd.f32 0.0, %v2217
    %v2219 = vpop.f32.mrb[0].mxu0
    %v2220 = vpop.f32.mrb[0].mxu0
    %v2221 = vadd.f32 0.0, %v2220
    %v2222 = vpop.f32.mrb[0].mxu0
    %2223 = vdwg.mxu0
    %2224 = vmatprep.subr.bf16.mxu0 0
    %2225 = vmatpush1.bf16.msra.mxu0 %v516
    %2226 = vmatprep.subr.bf16.mxu0 0
    %2227 = vmatpush1.bf16.msra.mxu0 0
    %2228 = vmatprep.subr.bf16.mxu0 0
    %2229 = vmatpush1.bf16.msra.mxu0 0
    %2230 = vmatprep.subr.bf16.mxu0 0
    %2231 = vmatpush1.bf16.msra.mxu0 0
    %2232 = vmatprep.subr.bf16.mxu0 0
    %2233 = vmatpush1.bf16.msra.mxu0 0
    %2234 = vmatprep.subr.bf16.mxu0 0
    %2235 = vmatpush1.bf16.msra.mxu0 0
    %2236 = vmatprep.subr.bf16.mxu0 0
    %2237 = vmatpush1.bf16.msra.mxu0 0
    %2238 = vmatprep.subr.bf16.mxu0 0
    %2239 = vmatpush1.bf16.msra.mxu0 0
    %2240 = vmatprep.subr.bf16.mxu0 0
    %2241 = vmatpush1.bf16.msra.mxu0 0
    %2242 = vmatprep.subr.bf16.mxu0 0
    %2243 = vmatpush1.bf16.msra.mxu0 0
    %2244 = vmatprep.subr.bf16.mxu0 0
    %2245 = vmatpush1.bf16.msra.mxu0 0
    %2246 = vmatprep.subr.bf16.mxu0 0
    %2247 = vmatpush1.bf16.msra.mxu0 0
    %2248 = vmatprep.subr.bf16.mxu0 0
    %2249 = vmatpush1.bf16.msra.mxu0 0
    %2250 = vmatprep.subr.bf16.mxu0 0
    %2251 = vmatpush1.bf16.msra.mxu0 0
    %2252 = vmatprep.subr.bf16.mxu0 0
    %2253 = vmatpush1.bf16.msra.mxu0 0
    %2254 = vmatprep.subr.bf16.mxu0 0
    %2255 = vmatpush1.bf16.msra.mxu0 0
    %2256 = vmatprep.mubr.bf16.mxu0 0
    %2257 = vmatmul.mubr.bf16.gmra.mrb[0].mxu0 %v2181
    %v2258 = vpop.f32.mrb[0].mxu0
    %v2259 = vadd.f32 0.0, %v2258
    %v2260 = vpop.f32.mrb[0].mxu0
    %v2261 = vpop.f32.mrb[0].mxu0
    %v2262 = vadd.f32 0.0, %v2261
    %v2263 = vpop.f32.mrb[0].mxu0
    %2264 = vdwg.mxu0
    %s2265 = scalar_lea.vmem [#allocation7], 5
    %v2266 = vld [vmem:[%s2265] sm:$0x1]
    %s2267 = scalar_lea.vmem [#allocation9], 5
    %v2268 = vld [vmem:[%s2267] sm:$0x1]
    %v2269 = vsel %vm218, %v2218, 0.0
    %v2270 = vrot.slane %v2269, 4
    %v2271 = vadd.f32 %v2269, %v2270
    %v2272 = vrot.slane %v2271, 2
    %v2273 = vadd.f32 %v2271, %v2272
    %v2274 = vrot.slane %v2273, 1
    %v2275 = vadd.f32 %v2273, %v2274
    %v2276 = vsel %vm218, %v2221, 0.0
    %v2277 = vrot.slane %v2276, 4
    %v2278 = vadd.f32 %v2276, %v2277
    %v2279 = vrot.slane %v2278, 2
    %v2280 = vadd.f32 %v2278, %v2279
    %v2281 = vrot.slane %v2280, 1
    %v2282 = vadd.f32 %v2280, %v2281
    %v2283 = vmul.f32 %v2275, %v326
    %v2284 = vmul.f32 %v2282, %v326
    %v2285 = vmul.f32 %v2218, %v2218
    %v2286 = vmul.f32 %v2221, %v2221
    %v2287 = vsel %vm218, %v2285, 0.0
    %v2288 = vrot.slane %v2287, 4
    %v2289 = vadd.f32 %v2287, %v2288
    %v2290 = vrot.slane %v2289, 2
    %v2291 = vadd.f32 %v2289, %v2290
    %v2292 = vrot.slane %v2291, 1
    %v2293 = vadd.f32 %v2291, %v2292
    %v2294 = vsel %vm218, %v2286, 0.0
    %v2295 = vrot.slane %v2294, 4
    %v2296 = vadd.f32 %v2294, %v2295
    %v2297 = vrot.slane %v2296, 2
    %v2298 = vadd.f32 %v2296, %v2297
    %v2299 = vrot.slane %v2298, 1
    %v2300 = vadd.f32 %v2298, %v2299
    %v2301 = vmul.f32 %v2293, %v326
    %v2302 = vmul.f32 %v2300, %v326
    %v2303 = vmul.f32 %v2283, %v2283
    %v2304 = vmul.f32 %v2284, %v2284
    %v2305 = vsub.f32 %v2301, %v2303
    %v2306 = vsub.f32 %v2302, %v2304
    %v2307 = vmax.f32 %v2305, 0.0
    %v2308 = vmax.f32 %v2306, 0.0
    %v2309 = vsub.f32 %v2218, %v2283
    %v2310 = vsub.f32 %v2221, %v2284
    %v2311 = vadd.f32 %v2307, 1e-05
    %v2312 = vadd.f32 %v2308, 1e-05
    %v2313 = vrsqrt.pop %v2311
    %v2314 = vrsqrt.pop %v2312
    %v2315 = vmul.f32 %v2309, %v2313
    %v2316 = vmul.f32 %v2310, %v2314
    %v2318 = vlaneseq
    %v2319 = vshrl.u32 %v2318, 7
    %v2320 = vsub.s32 0, %v2319
    %v2321 = vrot.slane %v2266, %v2320
    %v2323 = vmul.f32 %v2315, %v2321
    %v2324 = vmul.f32 %v2316, %v2321
    %v2326 = vlaneseq
    %v2327 = vshrl.u32 %v2326, 7
    %v2328 = vsub.s32 0, %v2327
    %v2329 = vrot.slane %v2268, %v2328
    %v2331 = vadd.f32 %v2323, %v2329
    %v2332 = vadd.f32 %v2324, %v2329
    %s2333 = scalar_lea.vmem [#allocation10], 5
    %v2334 = vld [vmem:[%s2333] sm:$0x1]
    %s2335 = scalar_lea.vmem [#allocation12], 5
    %v2336 = vld [vmem:[%s2335] sm:$0x1]
    %v2337 = vsel %vm218, %v2259, 0.0
    %v2338 = vrot.slane %v2337, 4
    %v2339 = vadd.f32 %v2337, %v2338
    %v2340 = vrot.slane %v2339, 2
    %v2341 = vadd.f32 %v2339, %v2340
    %v2342 = vrot.slane %v2341, 1
    %v2343 = vadd.f32 %v2341, %v2342
    %v2344 = vsel %vm218, %v2262, 0.0
    %v2345 = vrot.slane %v2344, 4
    %v2346 = vadd.f32 %v2344, %v2345
    %v2347 = vrot.slane %v2346, 2
    %v2348 = vadd.f32 %v2346, %v2347
    %v2349 = vrot.slane %v2348, 1
    %v2350 = vadd.f32 %v2348, %v2349
    %v2351 = vmul.f32 %v2343, %v326
    %v2352 = vmul.f32 %v2350, %v326
    %v2353 = vmul.f32 %v2259, %v2259
    %v2354 = vmul.f32 %v2262, %v2262
    %v2355 = vsel %vm218, %v2353, 0.0
    %v2356 = vrot.slane %v2355, 4
    %v2357 = vadd.f32 %v2355, %v2356
    %v2358 = vrot.slane %v2357, 2
    %v2359 = vadd.f32 %v2357, %v2358
    %v2360 = vrot.slane %v2359, 1
    %v2361 = vadd.f32 %v2359, %v2360
    %v2362 = vsel %vm218, %v2354, 0.0
    %v2363 = vrot.slane %v2362, 4
    %v2364 = vadd.f32 %v2362, %v2363
    %v2365 = vrot.slane %v2364, 2
    %v2366 = vadd.f32 %v2364, %v2365
    %v2367 = vrot.slane %v2366, 1
    %v2368 = vadd.f32 %v2366, %v2367
    %v2369 = vmul.f32 %v2361, %v326
    %v2370 = vmul.f32 %v2368, %v326
    %v2371 = vmul.f32 %v2351, %v2351
    %v2372 = vmul.f32 %v2352, %v2352
    %v2373 = vsub.f32 %v2369, %v2371
    %v2374 = vsub.f32 %v2370, %v2372
    %v2375 = vmax.f32 %v2373, 0.0
    %v2376 = vmax.f32 %v2374, 0.0
    %v2377 = vsub.f32 %v2259, %v2351
    %v2378 = vsub.f32 %v2262, %v2352
    %v2379 = vadd.f32 %v2375, 1e-05
    %v2380 = vadd.f32 %v2376, 1e-05
    %v2381 = vrsqrt.pop %v2379
    %v2382 = vrsqrt.pop %v2380
    %v2383 = vmul.f32 %v2377, %v2381
    %v2384 = vmul.f32 %v2378, %v2382
    %v2386 = vlaneseq
    %v2387 = vshrl.u32 %v2386, 7
    %v2388 = vsub.s32 0, %v2387
    %v2389 = vrot.slane %v2334, %v2388
    %v2391 = vmul.f32 %v2383, %v2389
    %v2392 = vmul.f32 %v2384, %v2389
    %v2394 = vlaneseq
    %v2395 = vshrl.u32 %v2394, 7
    %v2396 = vsub.s32 0, %v2395
    %v2397 = vrot.slane %v2336, %v2396
    %v2399 = vadd.f32 %v2391, %v2397
    %v2400 = vadd.f32 %v2392, %v2397
    %v2401 = vxor.u32 %v2399, 2147483648
    %v2402 = vxor.u32 %v2400, 2147483648
    %v2403 = vmul.f32 %v2401, 1.442695
    %v2404 = vpow.pop %v2403
    %v2405 = vmul.f32 %v2402, 1.442695
    %v2406 = vpow.pop %v2405
    %v2407 = vadd.f32 %v2404, 1.0
    %v2408 = vadd.f32 %v2406, 1.0
    %v2409 = vrcp.pop %v2407
    %v2410 = vmul.f32 1.0, %v2409
    %v2411 = vrcp.pop %v2408
    %v2412 = vmul.f32 1.0, %v2411
    %v2413 = vmul.f32 %v2331, %v2410
    %v2414 = vmul.f32 %v2332, %v2412
    %v2415 = vadd.f32 %v2177, %v2413
    %v2416 = vadd.f32 %v2178, %v2414
    %v2417 = vmul.f32 %v2415, 0.70710677
    %v2418 = vmul.f32 %v2416, 0.70710677
    %v2419 = vpack.c.bf16 %v2418, %v2417
    %s2420 = scalar_lea.vmem %s5, 24
    %v2421 = vld [vmem:[%s2420] sm:$0xf]
    %v2422 = vld [vmem:[%s2420 + $0x4] sm:$0xf]
    %s2423 = scalar_lea.vmem [#allocation6], 24
    %v2424 = vld [vmem:[%s2423] sm:$0xf]
    %v2425 = vld [vmem:[%s2423 + $0x4] sm:$0xf]
    %v2428 = vunpack.c.l.b16 %v2421
    %v2429 = vunpack.c.l.b16 %v2422
    %v2430 = vpack.c.b16 %v2429, %v2428
    %v2433 = vsel %vm218, %v2419, 0
    %2435 = vmatprep.subr.bf16.mxu0 0
    %2436 = vmatpush1.bf16.msra.mxu0 %v2430
    %2437 = vmatprep.subr.bf16.mxu0 0
    %2438 = vmatpush1.bf16.msra.mxu0 0
    %2439 = vmatprep.subr.bf16.mxu0 0
    %2440 = vmatpush1.bf16.msra.mxu0 0
    %2441 = vmatprep.subr.bf16.mxu0 0
    %2442 = vmatpush1.bf16.msra.mxu0 0
    %2443 = vmatprep.subr.bf16.mxu0 0
    %2444 = vmatpush1.bf16.msra.mxu0 0
    %2445 = vmatprep.subr.bf16.mxu0 0
    %2446 = vmatpush1.bf16.msra.mxu0 0
    %2447 = vmatprep.subr.bf16.mxu0 0
    %2448 = vmatpush1.bf16.msra.mxu0 0
    %2449 = vmatprep.subr.bf16.mxu0 0
    %2450 = vmatpush1.bf16.msra.mxu0 0
    %2451 = vmatprep.subr.bf16.mxu0 0
    %2452 = vmatpush1.bf16.msra.mxu0 0
    %2453 = vmatprep.subr.bf16.mxu0 0
    %2454 = vmatpush1.bf16.msra.mxu0 0
    %2455 = vmatprep.subr.bf16.mxu0 0
    %2456 = vmatpush1.bf16.msra.mxu0 0
    %2457 = vmatprep.subr.bf16.mxu0 0
    %2458 = vmatpush1.bf16.msra.mxu0 0
    %2459 = vmatprep.subr.bf16.mxu0 0
    %2460 = vmatpush1.bf16.msra.mxu0 0
    %2461 = vmatprep.subr.bf16.mxu0 0
    %2462 = vmatpush1.bf16.msra.mxu0 0
    %2463 = vmatprep.subr.bf16.mxu0 0
    %2464 = vmatpush1.bf16.msra.mxu0 0
    %2465 = vmatprep.subr.bf16.mxu0 0
    %2466 = vmatpush1.bf16.msra.mxu0 0
    %2467 = vmatprep.mubr.bf16.mxu0 0
    %2468 = vmatmul.mubr.bf16.gmra.mrb[0].mxu0 %v2433
    %v2469 = vpop.f32.mrb[0].mxu0
    %v2470 = vadd.f32 0.0, %v2469
    %v2471 = vpop.f32.mrb[0].mxu0
    %v2472 = vpop.f32.mrb[0].mxu0
    %v2473 = vadd.f32 0.0, %v2472
    %v2474 = vpop.f32.mrb[0].mxu0
    %2475 = vdwg.mxu0
    %v2478 = vunpack.c.l.b16 %v2424
    %v2479 = vunpack.c.l.b16 %v2425
    %v2480 = vpack.c.b16 %v2479, %v2478
    %2482 = vmatprep.subr.bf16.mxu0 0
    %2483 = vmatpush1.bf16.msra.mxu0 %v2480
    %2484 = vmatprep.subr.bf16.mxu0 0
    %2485 = vmatpush1.bf16.msra.mxu0 0
    %2486 = vmatprep.subr.bf16.mxu0 0
    %2487 = vmatpush1.bf16.msra.mxu0 0
    %2488 = vmatprep.subr.bf16.mxu0 0
    %2489 = vmatpush1.bf16.msra.mxu0 0
    %2490 = vmatprep.subr.bf16.mxu0 0
    %2491 = vmatpush1.bf16.msra.mxu0 0
    %2492 = vmatprep.subr.bf16.mxu0 0
    %2493 = vmatpush1.bf16.msra.mxu0 0
    %2494 = vmatprep.subr.bf16.mxu0 0
    %2495 = vmatpush1.bf16.msra.mxu0 0
    %2496 = vmatprep.subr.bf16.mxu0 0
    %2497 = vmatpush1.bf16.msra.mxu0 0
    %2498 = vmatprep.subr.bf16.mxu0 0
    %2499 = vmatpush1.bf16.msra.mxu0 0
    %2500 = vmatprep.subr.bf16.mxu0 0
    %2501 = vmatpush1.bf16.msra.mxu0 0
    %2502 = vmatprep.subr.bf16.mxu0 0
    %2503 = vmatpush1.bf16.msra.mxu0 0
    %2504 = vmatprep.subr.bf16.mxu0 0
    %2505 = vmatpush1.bf16.msra.mxu0 0
    %2506 = vmatprep.subr.bf16.mxu0 0
    %2507 = vmatpush1.bf16.msra.mxu0 0
    %2508 = vmatprep.subr.bf16.mxu0 0
    %2509 = vmatpush1.bf16.msra.mxu0 0
    %2510 = vmatprep.subr.bf16.mxu0 0
    %2511 = vmatpush1.bf16.msra.mxu0 0
    %2512 = vmatprep.subr.bf16.mxu0 0
    %2513 = vmatpush1.bf16.msra.mxu0 0
    %2514 = vmatprep.mubr.bf16.mxu0 0
    %2515 = vmatmul.mubr.bf16.gmra.mrb[0].mxu0 %v2433
    %v2516 = vpop.f32.mrb[0].mxu0
    %v2517 = vadd.f32 0.0, %v2516
    %v2518 = vpop.f32.mrb[0].mxu0
    %v2519 = vpop.f32.mrb[0].mxu0
    %v2520 = vadd.f32 0.0, %v2519
    %v2521 = vpop.f32.mrb[0].mxu0
    %2522 = vdwg.mxu0
    %s2523 = scalar_lea.vmem [#allocation7], 6
    %v2524 = vld [vmem:[%s2523] sm:$0x1]
    %s2525 = scalar_lea.vmem [#allocation9], 6
    %v2526 = vld [vmem:[%s2525] sm:$0x1]
    %v2527 = vsel %vm218, %v2470, 0.0
    %v2528 = vrot.slane %v2527, 4
    %v2529 = vadd.f32 %v2527, %v2528
    %v2530 = vrot.slane %v2529, 2
    %v2531 = vadd.f32 %v2529, %v2530
    %v2532 = vrot.slane %v2531, 1
    %v2533 = vadd.f32 %v2531, %v2532
    %v2534 = vsel %vm218, %v2473, 0.0
    %v2535 = vrot.slane %v2534, 4
    %v2536 = vadd.f32 %v2534, %v2535
    %v2537 = vrot.slane %v2536, 2
    %v2538 = vadd.f32 %v2536, %v2537
    %v2539 = vrot.slane %v2538, 1
    %v2540 = vadd.f32 %v2538, %v2539
    %v2541 = vmul.f32 %v2533, %v326
    %v2542 = vmul.f32 %v2540, %v326
    %v2543 = vmul.f32 %v2470, %v2470
    %v2544 = vmul.f32 %v2473, %v2473
    %v2545 = vsel %vm218, %v2543, 0.0
    %v2546 = vrot.slane %v2545, 4
    %v2547 = vadd.f32 %v2545, %v2546
    %v2548 = vrot.slane %v2547, 2
    %v2549 = vadd.f32 %v2547, %v2548
    %v2550 = vrot.slane %v2549, 1
    %v2551 = vadd.f32 %v2549, %v2550
    %v2552 = vsel %vm218, %v2544, 0.0
    %v2553 = vrot.slane %v2552, 4
    %v2554 = vadd.f32 %v2552, %v2553
    %v2555 = vrot.slane %v2554, 2
    %v2556 = vadd.f32 %v2554, %v2555
    %v2557 = vrot.slane %v2556, 1
    %v2558 = vadd.f32 %v2556, %v2557
    %v2559 = vmul.f32 %v2551, %v326
    %v2560 = vmul.f32 %v2558, %v326
    %v2561 = vmul.f32 %v2541, %v2541
    %v2562 = vmul.f32 %v2542, %v2542
    %v2563 = vsub.f32 %v2559, %v2561
    %v2564 = vsub.f32 %v2560, %v2562
    %v2565 = vmax.f32 %v2563, 0.0
    %v2566 = vmax.f32 %v2564, 0.0
    %v2567 = vsub.f32 %v2470, %v2541
    %v2568 = vsub.f32 %v2473, %v2542
    %v2569 = vadd.f32 %v2565, 1e-05
    %v2570 = vadd.f32 %v2566, 1e-05
    %v2571 = vrsqrt.pop %v2569
    %v2572 = vrsqrt.pop %v2570
    %v2573 = vmul.f32 %v2567, %v2571
    %v2574 = vmul.f32 %v2568, %v2572
    %v2576 = vlaneseq
    %v2577 = vshrl.u32 %v2576, 7
    %v2578 = vsub.s32 0, %v2577
    %v2579 = vrot.slane %v2524, %v2578
    %v2581 = vmul.f32 %v2573, %v2579
    %v2582 = vmul.f32 %v2574, %v2579
    %v2584 = vlaneseq
    %v2585 = vshrl.u32 %v2584, 7
    %v2586 = vsub.s32 0, %v2585
    %v2587 = vrot.slane %v2526, %v2586
    %v2589 = vadd.f32 %v2581, %v2587
    %v2590 = vadd.f32 %v2582, %v2587
    %s2591 = scalar_lea.vmem [#allocation10], 6
    %v2592 = vld [vmem:[%s2591] sm:$0x1]
    %s2593 = scalar_lea.vmem [#allocation12], 6
    %v2594 = vld [vmem:[%s2593] sm:$0x1]
    %v2595 = vsel %vm218, %v2517, 0.0
    %v2596 = vrot.slane %v2595, 4
    %v2597 = vadd.f32 %v2595, %v2596
    %v2598 = vrot.slane %v2597, 2
    %v2599 = vadd.f32 %v2597, %v2598
    %v2600 = vrot.slane %v2599, 1
    %v2601 = vadd.f32 %v2599, %v2600
    %v2602 = vsel %vm218, %v2520, 0.0
    %v2603 = vrot.slane %v2602, 4
    %v2604 = vadd.f32 %v2602, %v2603
    %v2605 = vrot.slane %v2604, 2
    %v2606 = vadd.f32 %v2604, %v2605
    %v2607 = vrot.slane %v2606, 1
    %v2608 = vadd.f32 %v2606, %v2607
    %v2609 = vmul.f32 %v2601, %v326
    %v2610 = vmul.f32 %v2608, %v326
    %v2611 = vmul.f32 %v2517, %v2517
    %v2612 = vmul.f32 %v2520, %v2520
    %v2613 = vsel %vm218, %v2611, 0.0
    %v2614 = vrot.slane %v2613, 4
    %v2615 = vadd.f32 %v2613, %v2614
    %v2616 = vrot.slane %v2615, 2
    %v2617 = vadd.f32 %v2615, %v2616
    %v2618 = vrot.slane %v2617, 1
    %v2619 = vadd.f32 %v2617, %v2618
    %v2620 = vsel %vm218, %v2612, 0.0
    %v2621 = vrot.slane %v2620, 4
    %v2622 = vadd.f32 %v2620, %v2621
    %v2623 = vrot.slane %v2622, 2
    %v2624 = vadd.f32 %v2622, %v2623
    %v2625 = vrot.slane %v2624, 1
    %v2626 = vadd.f32 %v2624, %v2625
    %v2627 = vmul.f32 %v2619, %v326
    %v2628 = vmul.f32 %v2626, %v326
    %v2629 = vmul.f32 %v2609, %v2609
    %v2630 = vmul.f32 %v2610, %v2610
    %v2631 = vsub.f32 %v2627, %v2629
    %v2632 = vsub.f32 %v2628, %v2630
    %v2633 = vmax.f32 %v2631, 0.0
    %v2634 = vmax.f32 %v2632, 0.0
    %v2635 = vsub.f32 %v2517, %v2609
    %v2636 = vsub.f32 %v2520, %v2610
    %v2637 = vadd.f32 %v2633, 1e-05
    %v2638 = vadd.f32 %v2634, 1e-05
    %v2639 = vrsqrt.pop %v2637
    %v2640 = vrsqrt.pop %v2638
    %v2641 = vmul.f32 %v2635, %v2639
    %v2642 = vmul.f32 %v2636, %v2640
    %v2644 = vlaneseq
    %v2645 = vshrl.u32 %v2644, 7
    %v2646 = vsub.s32 0, %v2645
    %v2647 = vrot.slane %v2592, %v2646
    %v2649 = vmul.f32 %v2641, %v2647
    %v2650 = vmul.f32 %v2642, %v2647
    %v2652 = vlaneseq
    %v2653 = vshrl.u32 %v2652, 7
    %v2654 = vsub.s32 0, %v2653
    %v2655 = vrot.slane %v2594, %v2654
    %v2657 = vadd.f32 %v2649, %v2655
    %v2658 = vadd.f32 %v2650, %v2655
    %v2659 = vxor.u32 %v2657, 2147483648
    %v2660 = vxor.u32 %v2658, 2147483648
    %v2661 = vmul.f32 %v2659, 1.442695
    %v2662 = vpow.pop %v2661
    %v2663 = vmul.f32 %v2660, 1.442695
    %v2664 = vpow.pop %v2663
    %v2665 = vadd.f32 %v2662, 1.0
    %v2666 = vadd.f32 %v2664, 1.0
    %v2667 = vrcp.pop %v2665
    %v2668 = vmul.f32 1.0, %v2667
    %v2669 = vrcp.pop %v2666
    %v2670 = vmul.f32 1.0, %v2669
    %v2671 = vmul.f32 %v2589, %v2668
    %v2672 = vmul.f32 %v2590, %v2670
    %v2673 = vadd.f32 %v2417, %v2671
    %v2674 = vadd.f32 %v2418, %v2672
    %v2675 = vmul.f32 %v2673, 0.70710677
    %v2676 = vmul.f32 %v2674, 0.70710677
    %v2677 = vpack.c.bf16 %v2676, %v2675
    %s2678 = scalar_lea.vmem %s5, 32
    %v2679 = vld [vmem:[%s2678] sm:$0xf]
    %v2680 = vld [vmem:[%s2678 + $0x4] sm:$0xf]
    %s2681 = scalar_lea.vmem [#allocation6], 32
    %v2682 = vld [vmem:[%s2681] sm:$0xf]
    %v2683 = vld [vmem:[%s2681 + $0x4] sm:$0xf]
    %v2686 = vunpack.c.l.b16 %v2679
    %v2687 = vunpack.c.l.b16 %v2680
    %v2688 = vpack.c.b16 %v2687, %v2686
    %v2691 = vsel %vm218, %v2677, 0
    %2693 = vmatprep.subr.bf16.mxu0 0
    %2694 = vmatpush1.bf16.msra.mxu0 %v2688
    %2695 = vmatprep.subr.bf16.mxu0 0
    %2696 = vmatpush1.bf16.msra.mxu0 0
    %2697 = vmatprep.subr.bf16.mxu0 0
    %2698 = vmatpush1.bf16.msra.mxu0 0
    %2699 = vmatprep.subr.bf16.mxu0 0
    %2700 = vmatpush1.bf16.msra.mxu0 0
    %2701 = vmatprep.subr.bf16.mxu0 0
    %2702 = vmatpush1.bf16.msra.mxu0 0
    %2703 = vmatprep.subr.bf16.mxu0 0
    %2704 = vmatpush1.bf16.msra.mxu0 0
    %2705 = vmatprep.subr.bf16.mxu0 0
    %2706 = vmatpush1.bf16.msra.mxu0 0
    %2707 = vmatprep.subr.bf16.mxu0 0
    %2708 = vmatpush1.bf16.msra.mxu0 0
    %2709 = vmatprep.subr.bf16.mxu0 0
    %2710 = vmatpush1.bf16.msra.mxu0 0
    %2711 = vmatprep.subr.bf16.mxu0 0
    %2712 = vmatpush1.bf16.msra.mxu0 0
    %2713 = vmatprep.subr.bf16.mxu0 0
    %2714 = vmatpush1.bf16.msra.mxu0 0
    %2715 = vmatprep.subr.bf16.mxu0 0
    %2716 = vmatpush1.bf16.msra.mxu0 0
    %2717 = vmatprep.subr.bf16.mxu0 0
    %2718 = vmatpush1.bf16.msra.mxu0 0
    %2719 = vmatprep.subr.bf16.mxu0 0
    %2720 = vmatpush1.bf16.msra.mxu0 0
    %2721 = vmatprep.subr.bf16.mxu0 0
    %2722 = vmatpush1.bf16.msra.mxu0 0
    %2723 = vmatprep.subr.bf16.mxu0 0
    %2724 = vmatpush1.bf16.msra.mxu0 0
    %2725 = vmatprep.mubr.bf16.mxu0 0
    %2726 = vmatmul.mubr.bf16.gmra.mrb[0].mxu0 %v2691
    %v2727 = vpop.f32.mrb[0].mxu0
    %v2728 = vadd.f32 0.0, %v2727
    %v2729 = vpop.f32.mrb[0].mxu0
    %v2730 = vpop.f32.mrb[0].mxu0
    %v2731 = vadd.f32 0.0, %v2730
    %v2732 = vpop.f32.mrb[0].mxu0
    %2733 = vdwg.mxu0
    %v2736 = vunpack.c.l.b16 %v2682
    %v2737 = vunpack.c.l.b16 %v2683
    %v2738 = vpack.c.b16 %v2737, %v2736
    %2740 = vmatprep.subr.bf16.mxu0 0
    %2741 = vmatpush1.bf16.msra.mxu0 %v2738
    %2742 = vmatprep.subr.bf16.mxu0 0
    %2743 = vmatpush1.bf16.msra.mxu0 0
    %2744 = vmatprep.subr.bf16.mxu0 0
    %2745 = vmatpush1.bf16.msra.mxu0 0
    %2746 = vmatprep.subr.bf16.mxu0 0
    %2747 = vmatpush1.bf16.msra.mxu0 0
    %2748 = vmatprep.subr.bf16.mxu0 0
    %2749 = vmatpush1.bf16.msra.mxu0 0
    %2750 = vmatprep.subr.bf16.mxu0 0
    %2751 = vmatpush1.bf16.msra.mxu0 0
    %2752 = vmatprep.subr.bf16.mxu0 0
    %2753 = vmatpush1.bf16.msra.mxu0 0
    %2754 = vmatprep.subr.bf16.mxu0 0
    %2755 = vmatpush1.bf16.msra.mxu0 0
    %2756 = vmatprep.subr.bf16.mxu0 0
    %2757 = vmatpush1.bf16.msra.mxu0 0
    %2758 = vmatprep.subr.bf16.mxu0 0
    %2759 = vmatpush1.bf16.msra.mxu0 0
    %2760 = vmatprep.subr.bf16.mxu0 0
    %2761 = vmatpush1.bf16.msra.mxu0 0
    %2762 = vmatprep.subr.bf16.mxu0 0
    %2763 = vmatpush1.bf16.msra.mxu0 0
    %2764 = vmatprep.subr.bf16.mxu0 0
    %2765 = vmatpush1.bf16.msra.mxu0 0
    %2766 = vmatprep.subr.bf16.mxu0 0
    %2767 = vmatpush1.bf16.msra.mxu0 0
    %2768 = vmatprep.subr.bf16.mxu0 0
    %2769 = vmatpush1.bf16.msra.mxu0 0
    %2770 = vmatprep.subr.bf16.mxu0 0
    %2771 = vmatpush1.bf16.msra.mxu0 0
    %2772 = vmatprep.mubr.bf16.mxu0 0
    %2773 = vmatmul.mubr.bf16.gmra.mrb[0].mxu0 %v2691
    %v2774 = vpop.f32.mrb[0].mxu0
    %v2775 = vadd.f32 0.0, %v2774
    %v2776 = vpop.f32.mrb[0].mxu0
    %v2777 = vpop.f32.mrb[0].mxu0
    %v2778 = vadd.f32 0.0, %v2777
    %v2779 = vpop.f32.mrb[0].mxu0
    %2780 = vdwg.mxu0
    %s2781 = scalar_lea.vmem [#allocation7], 7
    %v2782 = vld [vmem:[%s2781] sm:$0x1]
    %s2783 = scalar_lea.vmem [#allocation9], 7
    %v2784 = vld [vmem:[%s2783] sm:$0x1]
    %v2785 = vsel %vm218, %v2728, 0.0
    %v2786 = vrot.slane %v2785, 4
    %v2787 = vadd.f32 %v2785, %v2786
    %v2788 = vrot.slane %v2787, 2
    %v2789 = vadd.f32 %v2787, %v2788
    %v2790 = vrot.slane %v2789, 1
    %v2791 = vadd.f32 %v2789, %v2790
    %v2792 = vsel %vm218, %v2731, 0.0
    %v2793 = vrot.slane %v2792, 4
    %v2794 = vadd.f32 %v2792, %v2793
    %v2795 = vrot.slane %v2794, 2
    %v2796 = vadd.f32 %v2794, %v2795
    %v2797 = vrot.slane %v2796, 1
    %v2798 = vadd.f32 %v2796, %v2797
    %v2799 = vmul.f32 %v2791, %v326
    %v2800 = vmul.f32 %v2798, %v326
    %v2801 = vmul.f32 %v2728, %v2728
    %v2802 = vmul.f32 %v2731, %v2731
    %v2803 = vsel %vm218, %v2801, 0.0
    %v2804 = vrot.slane %v2803, 4
    %v2805 = vadd.f32 %v2803, %v2804
    %v2806 = vrot.slane %v2805, 2
    %v2807 = vadd.f32 %v2805, %v2806
    %v2808 = vrot.slane %v2807, 1
    %v2809 = vadd.f32 %v2807, %v2808
    %v2810 = vsel %vm218, %v2802, 0.0
    %v2811 = vrot.slane %v2810, 4
    %v2812 = vadd.f32 %v2810, %v2811
    %v2813 = vrot.slane %v2812, 2
    %v2814 = vadd.f32 %v2812, %v2813
    %v2815 = vrot.slane %v2814, 1
    %v2816 = vadd.f32 %v2814, %v2815
    %v2817 = vmul.f32 %v2809, %v326
    %v2818 = vmul.f32 %v2816, %v326
    %v2819 = vmul.f32 %v2799, %v2799
    %v2820 = vmul.f32 %v2800, %v2800
    %v2821 = vsub.f32 %v2817, %v2819
    %v2822 = vsub.f32 %v2818, %v2820
    %v2823 = vmax.f32 %v2821, 0.0
    %v2824 = vmax.f32 %v2822, 0.0
    %v2825 = vsub.f32 %v2728, %v2799
    %v2826 = vsub.f32 %v2731, %v2800
    %v2827 = vadd.f32 %v2823, 1e-05
    %v2828 = vadd.f32 %v2824, 1e-05
    %v2829 = vrsqrt.pop %v2827
    %v2830 = vrsqrt.pop %v2828
    %v2831 = vmul.f32 %v2825, %v2829
    %v2832 = vmul.f32 %v2826, %v2830
    %v2834 = vlaneseq
    %v2835 = vshrl.u32 %v2834, 7
    %v2836 = vsub.s32 0, %v2835
    %v2837 = vrot.slane %v2782, %v2836
    %v2839 = vmul.f32 %v2831, %v2837
    %v2840 = vmul.f32 %v2832, %v2837
    %v2842 = vlaneseq
    %v2843 = vshrl.u32 %v2842, 7
    %v2844 = vsub.s32 0, %v2843
    %v2845 = vrot.slane %v2784, %v2844
    %v2847 = vadd.f32 %v2839, %v2845
    %v2848 = vadd.f32 %v2840, %v2845
    %s2849 = scalar_lea.vmem [#allocation10], 7
    %v2850 = vld [vmem:[%s2849] sm:$0x1]
    %s2851 = scalar_lea.vmem [#allocation12], 7
    %v2852 = vld [vmem:[%s2851] sm:$0x1]
    %v2853 = vsel %vm218, %v2775, 0.0
    %v2854 = vrot.slane %v2853, 4
    %v2855 = vadd.f32 %v2853, %v2854
    %v2856 = vrot.slane %v2855, 2
    %v2857 = vadd.f32 %v2855, %v2856
    %v2858 = vrot.slane %v2857, 1
    %v2859 = vadd.f32 %v2857, %v2858
    %v2860 = vsel %vm218, %v2778, 0.0
    %v2861 = vrot.slane %v2860, 4
    %v2862 = vadd.f32 %v2860, %v2861
    %v2863 = vrot.slane %v2862, 2
    %v2864 = vadd.f32 %v2862, %v2863
    %v2865 = vrot.slane %v2864, 1
    %v2866 = vadd.f32 %v2864, %v2865
    %v2867 = vmul.f32 %v2859, %v326
    %v2868 = vmul.f32 %v2866, %v326
    %v2869 = vmul.f32 %v2775, %v2775
    %v2870 = vmul.f32 %v2778, %v2778
    %v2871 = vsel %vm218, %v2869, 0.0
    %v2872 = vrot.slane %v2871, 4
    %v2873 = vadd.f32 %v2871, %v2872
    %v2874 = vrot.slane %v2873, 2
    %v2875 = vadd.f32 %v2873, %v2874
    %v2876 = vrot.slane %v2875, 1
    %v2877 = vadd.f32 %v2875, %v2876
    %v2878 = vsel %vm218, %v2870, 0.0
    %v2879 = vrot.slane %v2878, 4
    %v2880 = vadd.f32 %v2878, %v2879
    %v2881 = vrot.slane %v2880, 2
    %v2882 = vadd.f32 %v2880, %v2881
    %v2883 = vrot.slane %v2882, 1
    %v2884 = vadd.f32 %v2882, %v2883
    %v2885 = vmul.f32 %v2877, %v326
    %v2886 = vmul.f32 %v2884, %v326
    %v2887 = vmul.f32 %v2867, %v2867
    %v2888 = vmul.f32 %v2868, %v2868
    %v2889 = vsub.f32 %v2885, %v2887
    %v2890 = vsub.f32 %v2886, %v2888
    %v2891 = vmax.f32 %v2889, 0.0
    %v2892 = vmax.f32 %v2890, 0.0
    %v2893 = vsub.f32 %v2775, %v2867
    %v2894 = vsub.f32 %v2778, %v2868
    %v2895 = vadd.f32 %v2891, 1e-05
    %v2896 = vadd.f32 %v2892, 1e-05
    %v2897 = vrsqrt.pop %v2895
    %v2898 = vrsqrt.pop %v2896
    %v2899 = vmul.f32 %v2893, %v2897
    %v2900 = vmul.f32 %v2894, %v2898
    %v2902 = vlaneseq
    %v2903 = vshrl.u32 %v2902, 7
    %v2904 = vsub.s32 0, %v2903
    %v2905 = vrot.slane %v2850, %v2904
    %v2907 = vmul.f32 %v2899, %v2905
    %v2908 = vmul.f32 %v2900, %v2905
    %v2910 = vlaneseq
    %v2911 = vshrl.u32 %v2910, 7
    %v2912 = vsub.s32 0, %v2911
    %v2913 = vrot.slane %v2852, %v2912
    %v2915 = vadd.f32 %v2907, %v2913
    %v2916 = vadd.f32 %v2908, %v2913
    %v2917 = vxor.u32 %v2915, 2147483648
    %v2918 = vxor.u32 %v2916, 2147483648
    %v2919 = vmul.f32 %v2917, 1.442695
    %v2920 = vpow.pop %v2919
    %v2921 = vmul.f32 %v2918, 1.442695
    %v2922 = vpow.pop %v2921
    %v2923 = vadd.f32 %v2920, 1.0
    %v2924 = vadd.f32 %v2922, 1.0
    %v2925 = vrcp.pop %v2923
    %v2926 = vmul.f32 1.0, %v2925
    %v2927 = vrcp.pop %v2924
    %v2928 = vmul.f32 1.0, %v2927
    %v2929 = vmul.f32 %v2847, %v2926
    %v2930 = vmul.f32 %v2848, %v2928
    %v2931 = vadd.f32 %v2675, %v2929
    %v2932 = vadd.f32 %v2676, %v2930
    %v2933 = vmul.f32 %v2931, 0.70710677
    %v2934 = vmul.f32 %v2932, 0.70710677
    %v2935 = vmax.f32 %v2933, 0.0
    %v2936 = vmax.f32 %v2934, 0.0
    %v2937 = vadd.f32 %v2935, 0.0
    %v2938 = vadd.f32 %v2936, 0.0
    %v2939 = vpack.c.bf16 %v2934, %v2933
    %s2940 = scalar_lea.vmem [#allocation13], 8
    %v2941 = vld [vmem:[%s2940] sm:$0xf]
    %v2942 = vld [vmem:[%s2940 + $0x4] sm:$0xf]
    %v2945 = vunpack.c.l.b16 %v2941
    %v2946 = vunpack.c.l.b16 %v2942
    %v2947 = vpack.c.b16 %v2946, %v2945
    %v2950 = vsel %vm218, %v2939, 0
    %2952 = vmatprep.subr.bf16.mxu0 0
    %2953 = vmatpush1.bf16.msra.mxu0 %v2947
    %2954 = vmatprep.subr.bf16.mxu0 0
    %2955 = vmatpush1.bf16.msra.mxu0 0
    %2956 = vmatprep.subr.bf16.mxu0 0
    %2957 = vmatpush1.bf16.msra.mxu0 0
    %2958 = vmatprep.subr.bf16.mxu0 0
    %2959 = vmatpush1.bf16.msra.mxu0 0
    %2960 = vmatprep.subr.bf16.mxu0 0
    %2961 = vmatpush1.bf16.msra.mxu0 0
    %2962 = vmatprep.subr.bf16.mxu0 0
    %2963 = vmatpush1.bf16.msra.mxu0 0
    %2964 = vmatprep.subr.bf16.mxu0 0
    %2965 = vmatpush1.bf16.msra.mxu0 0
    %2966 = vmatprep.subr.bf16.mxu0 0
    %2967 = vmatpush1.bf16.msra.mxu0 0
    %2968 = vmatprep.subr.bf16.mxu0 0
    %2969 = vmatpush1.bf16.msra.mxu0 0
    %2970 = vmatprep.subr.bf16.mxu0 0
    %2971 = vmatpush1.bf16.msra.mxu0 0
    %2972 = vmatprep.subr.bf16.mxu0 0
    %2973 = vmatpush1.bf16.msra.mxu0 0
    %2974 = vmatprep.subr.bf16.mxu0 0
    %2975 = vmatpush1.bf16.msra.mxu0 0
    %2976 = vmatprep.subr.bf16.mxu0 0
    %2977 = vmatpush1.bf16.msra.mxu0 0
    %2978 = vmatprep.subr.bf16.mxu0 0
    %2979 = vmatpush1.bf16.msra.mxu0 0
    %2980 = vmatprep.subr.bf16.mxu0 0
    %2981 = vmatpush1.bf16.msra.mxu0 0
    %2982 = vmatprep.subr.bf16.mxu0 0
    %2983 = vmatpush1.bf16.msra.mxu0 0
    %2984 = vmatprep.mubr.bf16.mxu0 0
    %2985 = vmatmul.mubr.bf16.gmra.mrb[0].mxu0 %v2950
    %v2986 = vpop.f32.mrb[0].mxu0
    %v2987 = vadd.f32 0.0, %v2986
    %v2988 = vpop.f32.mrb[0].mxu0
    %v2989 = vpop.f32.mrb[0].mxu0
    %v2990 = vadd.f32 0.0, %v2989
    %v2991 = vpop.f32.mrb[0].mxu0
    %2992 = vdwg.mxu0
    %s2993 = scalar_lea.vmem %s12, 1
    %v2994 = vld [vmem:[%s2993] sm:$0x1]
    %s2995 = scalar_lea.vmem [#allocation15], 1
    %v2996 = vld [vmem:[%s2995] sm:$0x1]
    %v2997 = vsel %vm218, %v2987, 0.0
    %v2998 = vrot.slane %v2997, 4
    %v2999 = vadd.f32 %v2997, %v2998
    %v3000 = vrot.slane %v2999, 2
    %v3001 = vadd.f32 %v2999, %v3000
    %v3002 = vrot.slane %v3001, 1
    %v3003 = vadd.f32 %v3001, %v3002
    %v3004 = vsel %vm218, %v2990, 0.0
    %v3005 = vrot.slane %v3004, 4
    %v3006 = vadd.f32 %v3004, %v3005
    %v3007 = vrot.slane %v3006, 2
    %v3008 = vadd.f32 %v3006, %v3007
    %v3009 = vrot.slane %v3008, 1
    %v3010 = vadd.f32 %v3008, %v3009
    %v3011 = vmul.f32 %v3003, %v326
    %v3012 = vmul.f32 %v3010, %v326
    %v3013 = vmul.f32 %v2987, %v2987
    %v3014 = vmul.f32 %v2990, %v2990
    %v3015 = vsel %vm218, %v3013, 0.0
    %v3016 = vrot.slane %v3015, 4
    %v3017 = vadd.f32 %v3015, %v3016
    %v3018 = vrot.slane %v3017, 2
    %v3019 = vadd.f32 %v3017, %v3018
    %v3020 = vrot.slane %v3019, 1
    %v3021 = vadd.f32 %v3019, %v3020
    %v3022 = vsel %vm218, %v3014, 0.0
    %v3023 = vrot.slane %v3022, 4
    %v3024 = vadd.f32 %v3022, %v3023
    %v3025 = vrot.slane %v3024, 2
    %v3026 = vadd.f32 %v3024, %v3025
    %v3027 = vrot.slane %v3026, 1
    %v3028 = vadd.f32 %v3026, %v3027
    %v3029 = vmul.f32 %v3021, %v326
    %v3030 = vmul.f32 %v3028, %v326
    %v3031 = vmul.f32 %v3011, %v3011
    %v3032 = vmul.f32 %v3012, %v3012
    %v3033 = vsub.f32 %v3029, %v3031
    %v3034 = vsub.f32 %v3030, %v3032
    %v3035 = vmax.f32 %v3033, 0.0
    %v3036 = vmax.f32 %v3034, 0.0
    %v3037 = vsub.f32 %v2987, %v3011
    %v3038 = vsub.f32 %v2990, %v3012
    %v3039 = vadd.f32 %v3035, 1e-05
    %v3040 = vadd.f32 %v3036, 1e-05
    %v3041 = vrsqrt.pop %v3039
    %v3042 = vrsqrt.pop %v3040
    %v3043 = vmul.f32 %v3037, %v3041
    %v3044 = vmul.f32 %v3038, %v3042
    %v3046 = vlaneseq
    %v3047 = vshrl.u32 %v3046, 7
    %v3048 = vsub.s32 0, %v3047
    %v3049 = vrot.slane %v2994, %v3048
    %v3051 = vmul.f32 %v3043, %v3049
    %v3052 = vmul.f32 %v3044, %v3049
    %v3054 = vlaneseq
    %v3055 = vshrl.u32 %v3054, 7
    %v3056 = vsub.s32 0, %v3055
    %v3057 = vrot.slane %v2996, %v3056
    %v3059 = vadd.f32 %v3051, %v3057
    %v3060 = vadd.f32 %v3052, %v3057
    %v3061 = vmul.f32 %v3059, %v1939
    %v3062 = vmul.f32 %v3060, %v1940
    %v3063 = vsel %vm218, %v3061, -inf
    %3064 = vmax.xlane.f32.xlu0 %v3063
    %v3065 = vpop.xlane.xlu0 %3064
    %v3066 = vsel %vm218, %v3062, -inf
    %3067 = vmax.xlane.f32.xlu0 %v3066
    %v3068 = vpop.xlane.xlu0 %3067
    %v3069 = vsub.f32 %v3061, %v3065
    %v3070 = vsub.f32 %v3062, %v3068
    %3071 = vrot.lane.b32.xlu0 %v3069, 16
    %v3072 = vpop.permute.xlu0 %3071
    %v3073 = vsel %vm1356, %v3072, %v3069
    %3074 = vrot.lane.b32.xlu0 %v3070, 16
    %v3075 = vpop.permute.xlu0 %3074
    %v3076 = vsel %vm1356, %v3075, %v3070
    %3077 = vrot.lane.b32.xlu0 %v3073, 16
    %v3078 = vpop.permute.xlu0 %3077
    %3079 = vrot.lane.b32.xlu0 %v3076, 16
    %v3080 = vpop.permute.xlu0 %3079
    %v3081 = vsel %vm1356, %v3078, %v3069
    %v3082 = vsel %vm1356, %v3080, %v3070
    %3085 = vrot.lane.b32.xlu0 %v3069, 15
    %v3086 = vpop.permute.xlu0 %3085
    %3087 = vrot.lane.b32.xlu0 %v3070, 15
    %v3088 = vpop.permute.xlu0 %3087
    %vm3091 = vcmp.ge.f32.partialorder %v3081, %v3086
    %vm3092 = vcmp.ge.f32.partialorder %v3082, %v3088
    %v3093 = vsel %vm3091, 1, 0
    %v3094 = vsel %vm3092, 1, 0
    %v3095 = vcvt.s32.f32 %v3093
    %v3096 = vcvt.s32.f32 %v3094
    %v3097 = vadd.f32 %v3095, 1.0
    %v3098 = vadd.f32 %v3096, 1.0
    %v3099 = vmul.f32 %v3095, %v3081
    %v3100 = vmul.f32 %v3096, %v3082
    %3103 = vrot.lane.b32.xlu0 %v3099, 113
    %v3104 = vpop.permute.xlu0 %3103
    %3105 = vrot.lane.b32.xlu0 %v3100, 113
    %v3106 = vpop.permute.xlu0 %3105
    %v3109 = vadd.f32 %v3069, %v3104
    %v3110 = vadd.f32 %v3070, %v3106
    %3111 = vrot.lane.b32.xlu0 %v3069, 14
    %v3112 = vpop.permute.xlu0 %3111
    %3113 = vrot.lane.b32.xlu0 %v3070, 14
    %v3114 = vpop.permute.xlu0 %3113
    %vm3117 = vcmp.ge.f32.partialorder %v3081, %v3112
    %vm3118 = vcmp.ge.f32.partialorder %v3082, %v3114
    %v3119 = vsel %vm3117, 1, 0
    %v3120 = vsel %vm3118, 1, 0
    %v3121 = vcvt.s32.f32 %v3119
    %v3122 = vcvt.s32.f32 %v3120
    %3125 = vrot.lane.b32.xlu0 %v3121, 1
    %v3126 = vpop.permute.xlu0 %3125
    %3127 = vrot.lane.b32.xlu0 %v3122, 1
    %v3128 = vpop.permute.xlu0 %3127
    %v3131 = vadd.f32 %v3097, %v3126
    %v3132 = vadd.f32 %v3098, %v3128
    %v3133 = vmul.f32 %v3121, %v3081
    %v3134 = vmul.f32 %v3122, %v3082
    %3137 = vrot.lane.b32.xlu0 %v3133, 114
    %v3138 = vpop.permute.xlu0 %3137
    %3139 = vrot.lane.b32.xlu0 %v3134, 114
    %v3140 = vpop.permute.xlu0 %3139
    %v3143 = vadd.f32 %v3109, %v3138
    %v3144 = vadd.f32 %v3110, %v3140
    %3145 = vrot.lane.b32.xlu0 %v3069, 13
    %v3146 = vpop.permute.xlu0 %3145
    %3147 = vrot.lane.b32.xlu0 %v3070, 13
    %v3148 = vpop.permute.xlu0 %3147
    %vm3151 = vcmp.ge.f32.partialorder %v3081, %v3146
    %vm3152 = vcmp.ge.f32.partialorder %v3082, %v3148
    %v3153 = vsel %vm3151, 1, 0
    %v3154 = vsel %vm3152, 1, 0
    %v3155 = vcvt.s32.f32 %v3153
    %v3156 = vcvt.s32.f32 %v3154
    %3159 = vrot.lane.b32.xlu0 %v3155, 2
    %v3160 = vpop.permute.xlu0 %3159
    %3161 = vrot.lane.b32.xlu0 %v3156, 2
    %v3162 = vpop.permute.xlu0 %3161
    %v3165 = vadd.f32 %v3131, %v3160
    %v3166 = vadd.f32 %v3132, %v3162
    %v3167 = vmul.f32 %v3155, %v3081
    %v3168 = vmul.f32 %v3156, %v3082
    %3171 = vrot.lane.b32.xlu0 %v3167, 115
    %v3172 = vpop.permute.xlu0 %3171
    %3173 = vrot.lane.b32.xlu0 %v3168, 115
    %v3174 = vpop.permute.xlu0 %3173
    %v3177 = vadd.f32 %v3143, %v3172
    %v3178 = vadd.f32 %v3144, %v3174
    %3179 = vrot.lane.b32.xlu0 %v3069, 12
    %v3180 = vpop.permute.xlu0 %3179
    %3181 = vrot.lane.b32.xlu0 %v3070, 12
    %v3182 = vpop.permute.xlu0 %3181
    %vm3185 = vcmp.ge.f32.partialorder %v3081, %v3180
    %vm3186 = vcmp.ge.f32.partialorder %v3082, %v3182
    %v3187 = vsel %vm3185, 1, 0
    %v3188 = vsel %vm3186, 1, 0
    %v3189 = vcvt.s32.f32 %v3187
    %v3190 = vcvt.s32.f32 %v3188
    %3193 = vrot.lane.b32.xlu0 %v3189, 3
    %v3194 = vpop.permute.xlu0 %3193
    %3195 = vrot.lane.b32.xlu0 %v3190, 3
    %v3196 = vpop.permute.xlu0 %3195
    %v3199 = vadd.f32 %v3165, %v3194
    %v3200 = vadd.f32 %v3166, %v3196
    %v3201 = vmul.f32 %v3189, %v3081
    %v3202 = vmul.f32 %v3190, %v3082
    %3205 = vrot.lane.b32.xlu0 %v3201, 116
    %v3206 = vpop.permute.xlu0 %3205
    %3207 = vrot.lane.b32.xlu0 %v3202, 116
    %v3208 = vpop.permute.xlu0 %3207
    %v3211 = vadd.f32 %v3177, %v3206
    %v3212 = vadd.f32 %v3178, %v3208
    %3213 = vrot.lane.b32.xlu0 %v3069, 11
    %v3214 = vpop.permute.xlu0 %3213
    %3215 = vrot.lane.b32.xlu0 %v3070, 11
    %v3216 = vpop.permute.xlu0 %3215
    %vm3219 = vcmp.ge.f32.partialorder %v3081, %v3214
    %vm3220 = vcmp.ge.f32.partialorder %v3082, %v3216
    %v3221 = vsel %vm3219, 1, 0
    %v3222 = vsel %vm3220, 1, 0
    %v3223 = vcvt.s32.f32 %v3221
    %v3224 = vcvt.s32.f32 %v3222
    %3227 = vrot.lane.b32.xlu0 %v3223, 4
    %v3228 = vpop.permute.xlu0 %3227
    %3229 = vrot.lane.b32.xlu0 %v3224, 4
    %v3230 = vpop.permute.xlu0 %3229
    %v3233 = vadd.f32 %v3199, %v3228
    %v3234 = vadd.f32 %v3200, %v3230
    %v3235 = vmul.f32 %v3223, %v3081
    %v3236 = vmul.f32 %v3224, %v3082
    %3239 = vrot.lane.b32.xlu0 %v3235, 117
    %v3240 = vpop.permute.xlu0 %3239
    %3241 = vrot.lane.b32.xlu0 %v3236, 117
    %v3242 = vpop.permute.xlu0 %3241
    %v3245 = vadd.f32 %v3211, %v3240
    %v3246 = vadd.f32 %v3212, %v3242
    %3247 = vrot.lane.b32.xlu0 %v3069, 10
    %v3248 = vpop.permute.xlu0 %3247
    %3249 = vrot.lane.b32.xlu0 %v3070, 10
    %v3250 = vpop.permute.xlu0 %3249
    %vm3253 = vcmp.ge.f32.partialorder %v3081, %v3248
    %vm3254 = vcmp.ge.f32.partialorder %v3082, %v3250
    %v3255 = vsel %vm3253, 1, 0
    %v3256 = vsel %vm3254, 1, 0
    %v3257 = vcvt.s32.f32 %v3255
    %v3258 = vcvt.s32.f32 %v3256
    %3261 = vrot.lane.b32.xlu0 %v3257, 5
    %v3262 = vpop.permute.xlu0 %3261
    %3263 = vrot.lane.b32.xlu0 %v3258, 5
    %v3264 = vpop.permute.xlu0 %3263
    %v3267 = vadd.f32 %v3233, %v3262
    %v3268 = vadd.f32 %v3234, %v3264
    %v3269 = vmul.f32 %v3257, %v3081
    %v3270 = vmul.f32 %v3258, %v3082
    %3273 = vrot.lane.b32.xlu0 %v3269, 118
    %v3274 = vpop.permute.xlu0 %3273
    %3275 = vrot.lane.b32.xlu0 %v3270, 118
    %v3276 = vpop.permute.xlu0 %3275
    %v3279 = vadd.f32 %v3245, %v3274
    %v3280 = vadd.f32 %v3246, %v3276
    %3281 = vrot.lane.b32.xlu0 %v3069, 9
    %v3282 = vpop.permute.xlu0 %3281
    %3283 = vrot.lane.b32.xlu0 %v3070, 9
    %v3284 = vpop.permute.xlu0 %3283
    %vm3287 = vcmp.ge.f32.partialorder %v3081, %v3282
    %vm3288 = vcmp.ge.f32.partialorder %v3082, %v3284
    %v3289 = vsel %vm3287, 1, 0
    %v3290 = vsel %vm3288, 1, 0
    %v3291 = vcvt.s32.f32 %v3289
    %v3292 = vcvt.s32.f32 %v3290
    %3295 = vrot.lane.b32.xlu0 %v3291, 6
    %v3296 = vpop.permute.xlu0 %3295
    %3297 = vrot.lane.b32.xlu0 %v3292, 6
    %v3298 = vpop.permute.xlu0 %3297
    %v3301 = vadd.f32 %v3267, %v3296
    %v3302 = vadd.f32 %v3268, %v3298
    %v3303 = vmul.f32 %v3291, %v3081
    %v3304 = vmul.f32 %v3292, %v3082
    %3307 = vrot.lane.b32.xlu0 %v3303, 119
    %v3308 = vpop.permute.xlu0 %3307
    %3309 = vrot.lane.b32.xlu0 %v3304, 119
    %v3310 = vpop.permute.xlu0 %3309
    %v3313 = vadd.f32 %v3279, %v3308
    %v3314 = vadd.f32 %v3280, %v3310
    %3315 = vrot.lane.b32.xlu0 %v3069, 8
    %v3316 = vpop.permute.xlu0 %3315
    %3317 = vrot.lane.b32.xlu0 %v3070, 8
    %v3318 = vpop.permute.xlu0 %3317
    %vm3321 = vcmp.ge.f32.partialorder %v3081, %v3316
    %vm3322 = vcmp.ge.f32.partialorder %v3082, %v3318
    %v3323 = vsel %vm3321, 1, 0
    %v3324 = vsel %vm3322, 1, 0
    %v3325 = vcvt.s32.f32 %v3323
    %v3326 = vcvt.s32.f32 %v3324
    %3329 = vrot.lane.b32.xlu0 %v3325, 7
    %v3330 = vpop.permute.xlu0 %3329
    %3331 = vrot.lane.b32.xlu0 %v3326, 7
    %v3332 = vpop.permute.xlu0 %3331
    %v3335 = vadd.f32 %v3301, %v3330
    %v3336 = vadd.f32 %v3302, %v3332
    %v3337 = vmul.f32 %v3325, %v3081
    %v3338 = vmul.f32 %v3326, %v3082
    %3341 = vrot.lane.b32.xlu0 %v3337, 120
    %v3342 = vpop.permute.xlu0 %3341
    %3343 = vrot.lane.b32.xlu0 %v3338, 120
    %v3344 = vpop.permute.xlu0 %3343
    %v3347 = vadd.f32 %v3313, %v3342
    %v3348 = vadd.f32 %v3314, %v3344
    %3349 = vrot.lane.b32.xlu0 %v3069, 7
    %v3350 = vpop.permute.xlu0 %3349
    %3351 = vrot.lane.b32.xlu0 %v3070, 7
    %v3352 = vpop.permute.xlu0 %3351
    %vm3355 = vcmp.ge.f32.partialorder %v3081, %v3350
    %vm3356 = vcmp.ge.f32.partialorder %v3082, %v3352
    %v3357 = vsel %vm3355, 1, 0
    %v3358 = vsel %vm3356, 1, 0
    %v3359 = vcvt.s32.f32 %v3357
    %v3360 = vcvt.s32.f32 %v3358
    %3363 = vrot.lane.b32.xlu0 %v3359, 8
    %v3364 = vpop.permute.xlu0 %3363
    %3365 = vrot.lane.b32.xlu0 %v3360, 8
    %v3366 = vpop.permute.xlu0 %3365
    %v3369 = vadd.f32 %v3335, %v3364
    %v3370 = vadd.f32 %v3336, %v3366
    %v3371 = vmul.f32 %v3359, %v3081
    %v3372 = vmul.f32 %v3360, %v3082
    %3375 = vrot.lane.b32.xlu0 %v3371, 121
    %v3376 = vpop.permute.xlu0 %3375
    %3377 = vrot.lane.b32.xlu0 %v3372, 121
    %v3378 = vpop.permute.xlu0 %3377
    %v3381 = vadd.f32 %v3347, %v3376
    %v3382 = vadd.f32 %v3348, %v3378
    %3383 = vrot.lane.b32.xlu0 %v3069, 6
    %v3384 = vpop.permute.xlu0 %3383
    %3385 = vrot.lane.b32.xlu0 %v3070, 6
    %v3386 = vpop.permute.xlu0 %3385
    %vm3389 = vcmp.ge.f32.partialorder %v3081, %v3384
    %vm3390 = vcmp.ge.f32.partialorder %v3082, %v3386
    %v3391 = vsel %vm3389, 1, 0
    %v3392 = vsel %vm3390, 1, 0
    %v3393 = vcvt.s32.f32 %v3391
    %v3394 = vcvt.s32.f32 %v3392
    %3397 = vrot.lane.b32.xlu0 %v3393, 9
    %v3398 = vpop.permute.xlu0 %3397
    %3399 = vrot.lane.b32.xlu0 %v3394, 9
    %v3400 = vpop.permute.xlu0 %3399
    %v3403 = vadd.f32 %v3369, %v3398
    %v3404 = vadd.f32 %v3370, %v3400
    %v3405 = vmul.f32 %v3393, %v3081
    %v3406 = vmul.f32 %v3394, %v3082
    %3409 = vrot.lane.b32.xlu0 %v3405, 122
    %v3410 = vpop.permute.xlu0 %3409
    %3411 = vrot.lane.b32.xlu0 %v3406, 122
    %v3412 = vpop.permute.xlu0 %3411
    %v3415 = vadd.f32 %v3381, %v3410
    %v3416 = vadd.f32 %v3382, %v3412
    %3417 = vrot.lane.b32.xlu0 %v3069, 5
    %v3418 = vpop.permute.xlu0 %3417
    %3419 = vrot.lane.b32.xlu0 %v3070, 5
    %v3420 = vpop.permute.xlu0 %3419
    %vm3423 = vcmp.ge.f32.partialorder %v3081, %v3418
    %vm3424 = vcmp.ge.f32.partialorder %v3082, %v3420
    %v3425 = vsel %vm3423, 1, 0
    %v3426 = vsel %vm3424, 1, 0
    %v3427 = vcvt.s32.f32 %v3425
    %v3428 = vcvt.s32.f32 %v3426
    %3431 = vrot.lane.b32.xlu0 %v3427, 10
    %v3432 = vpop.permute.xlu0 %3431
    %3433 = vrot.lane.b32.xlu0 %v3428, 10
    %v3434 = vpop.permute.xlu0 %3433
    %v3437 = vadd.f32 %v3403, %v3432
    %v3438 = vadd.f32 %v3404, %v3434
    %v3439 = vmul.f32 %v3427, %v3081
    %v3440 = vmul.f32 %v3428, %v3082
    %3443 = vrot.lane.b32.xlu0 %v3439, 123
    %v3444 = vpop.permute.xlu0 %3443
    %3445 = vrot.lane.b32.xlu0 %v3440, 123
    %v3446 = vpop.permute.xlu0 %3445
    %v3449 = vadd.f32 %v3415, %v3444
    %v3450 = vadd.f32 %v3416, %v3446
    %3451 = vrot.lane.b32.xlu0 %v3069, 4
    %v3452 = vpop.permute.xlu0 %3451
    %3453 = vrot.lane.b32.xlu0 %v3070, 4
    %v3454 = vpop.permute.xlu0 %3453
    %vm3457 = vcmp.ge.f32.partialorder %v3081, %v3452
    %vm3458 = vcmp.ge.f32.partialorder %v3082, %v3454
    %v3459 = vsel %vm3457, 1, 0
    %v3460 = vsel %vm3458, 1, 0
    %v3461 = vcvt.s32.f32 %v3459
    %v3462 = vcvt.s32.f32 %v3460
    %3465 = vrot.lane.b32.xlu0 %v3461, 11
    %v3466 = vpop.permute.xlu0 %3465
    %3467 = vrot.lane.b32.xlu0 %v3462, 11
    %v3468 = vpop.permute.xlu0 %3467
    %v3471 = vadd.f32 %v3437, %v3466
    %v3472 = vadd.f32 %v3438, %v3468
    %v3473 = vmul.f32 %v3461, %v3081
    %v3474 = vmul.f32 %v3462, %v3082
    %3477 = vrot.lane.b32.xlu0 %v3473, 124
    %v3478 = vpop.permute.xlu0 %3477
    %3479 = vrot.lane.b32.xlu0 %v3474, 124
    %v3480 = vpop.permute.xlu0 %3479
    %v3483 = vadd.f32 %v3449, %v3478
    %v3484 = vadd.f32 %v3450, %v3480
    %3485 = vrot.lane.b32.xlu0 %v3069, 3
    %v3486 = vpop.permute.xlu0 %3485
    %3487 = vrot.lane.b32.xlu0 %v3070, 3
    %v3488 = vpop.permute.xlu0 %3487
    %vm3491 = vcmp.ge.f32.partialorder %v3081, %v3486
    %vm3492 = vcmp.ge.f32.partialorder %v3082, %v3488
    %v3493 = vsel %vm3491, 1, 0
    %v3494 = vsel %vm3492, 1, 0
    %v3495 = vcvt.s32.f32 %v3493
    %v3496 = vcvt.s32.f32 %v3494
    %3499 = vrot.lane.b32.xlu0 %v3495, 12
    %v3500 = vpop.permute.xlu0 %3499
    %3501 = vrot.lane.b32.xlu0 %v3496, 12
    %v3502 = vpop.permute.xlu0 %3501
    %v3505 = vadd.f32 %v3471, %v3500
    %v3506 = vadd.f32 %v3472, %v3502
    %v3507 = vmul.f32 %v3495, %v3081
    %v3508 = vmul.f32 %v3496, %v3082
    %3511 = vrot.lane.b32.xlu0 %v3507, 125
    %v3512 = vpop.permute.xlu0 %3511
    %3513 = vrot.lane.b32.xlu0 %v3508, 125
    %v3514 = vpop.permute.xlu0 %3513
    %v3517 = vadd.f32 %v3483, %v3512
    %v3518 = vadd.f32 %v3484, %v3514
    %3519 = vrot.lane.b32.xlu0 %v3069, 2
    %v3520 = vpop.permute.xlu0 %3519
    %3521 = vrot.lane.b32.xlu0 %v3070, 2
    %v3522 = vpop.permute.xlu0 %3521
    %vm3525 = vcmp.ge.f32.partialorder %v3081, %v3520
    %vm3526 = vcmp.ge.f32.partialorder %v3082, %v3522
    %v3527 = vsel %vm3525, 1, 0
    %v3528 = vsel %vm3526, 1, 0
    %v3529 = vcvt.s32.f32 %v3527
    %v3530 = vcvt.s32.f32 %v3528
    %3533 = vrot.lane.b32.xlu0 %v3529, 13
    %v3534 = vpop.permute.xlu0 %3533
    %3535 = vrot.lane.b32.xlu0 %v3530, 13
    %v3536 = vpop.permute.xlu0 %3535
    %v3539 = vadd.f32 %v3505, %v3534
    %v3540 = vadd.f32 %v3506, %v3536
    %v3541 = vmul.f32 %v3529, %v3081
    %v3542 = vmul.f32 %v3530, %v3082
    %3545 = vrot.lane.b32.xlu0 %v3541, 126
    %v3546 = vpop.permute.xlu0 %3545
    %3547 = vrot.lane.b32.xlu0 %v3542, 126
    %v3548 = vpop.permute.xlu0 %3547
    %v3551 = vadd.f32 %v3517, %v3546
    %v3552 = vadd.f32 %v3518, %v3548
    %3553 = vrot.lane.b32.xlu0 %v3069, 1
    %v3554 = vpop.permute.xlu0 %3553
    %3555 = vrot.lane.b32.xlu0 %v3070, 1
    %v3556 = vpop.permute.xlu0 %3555
    %vm3559 = vcmp.ge.f32.partialorder %v3081, %v3554
    %vm3560 = vcmp.ge.f32.partialorder %v3082, %v3556
    %v3561 = vsel %vm3559, 1, 0
    %v3562 = vsel %vm3560, 1, 0
    %v3563 = vcvt.s32.f32 %v3561
    %v3564 = vcvt.s32.f32 %v3562
    %3567 = vrot.lane.b32.xlu0 %v3563, 14
    %v3568 = vpop.permute.xlu0 %3567
    %3569 = vrot.lane.b32.xlu0 %v3564, 14
    %v3570 = vpop.permute.xlu0 %3569
    %v3573 = vadd.f32 %v3539, %v3568
    %v3574 = vadd.f32 %v3540, %v3570
    %v3575 = vmul.f32 %v3563, %v3081
    %v3576 = vmul.f32 %v3564, %v3082
    %3579 = vrot.lane.b32.xlu0 %v3575, 127
    %v3580 = vpop.permute.xlu0 %3579
    %3581 = vrot.lane.b32.xlu0 %v3576, 127
    %v3582 = vpop.permute.xlu0 %3581
    %v3585 = vadd.f32 %v3551, %v3580
    %v3586 = vadd.f32 %v3552, %v3582
    %v3587 = vmul.f32 %v3573, %v3086
    %v3588 = vmul.f32 %v3574, %v3088
    %v3589 = vadd.f32 %v3587, 1.0
    %v3590 = vadd.f32 %v3588, 1.0
    %3593 = vrot.lane.b32.xlu0 %v3585, 15
    %v3594 = vpop.permute.xlu0 %3593
    %3595 = vrot.lane.b32.xlu0 %v3586, 15
    %v3596 = vpop.permute.xlu0 %3595
    %vm3599 = vcmp.gt.f32.partialorder %v3589, %v3594
    %vm3600 = vcmp.gt.f32.partialorder %v3590, %v3596
    %v3601 = vsel %vm3599, 1, 0
    %v3602 = vsel %vm3600, 1, 0
    %v3603 = vcvt.s32.f32 %v3601
    %v3604 = vcvt.s32.f32 %v3602
    %3607 = vrot.lane.b32.xlu0 %v3603, 113
    %v3608 = vpop.permute.xlu0 %3607
    %3609 = vrot.lane.b32.xlu0 %v3604, 113
    %v3610 = vpop.permute.xlu0 %3609
    %v3613 = vsel %vm218, %v3608, 0.0
    %3614 = vadd.xlane.f32.xlu0 %v3613
    %v3615 = vpop.xlane.xlu0 %3614
    %v3616 = vsel %vm218, %v3610, 0.0
    %3617 = vadd.xlane.f32.xlu0 %v3616
    %v3618 = vpop.xlane.xlu0 %3617
    %v3619 = vmul.f32 %v3069, %v3608
    %v3620 = vmul.f32 %v3070, %v3610
    %v3621 = vsel %vm218, %v3619, 0.0
    %3622 = vadd.xlane.f32.xlu0 %v3621
    %v3623 = vpop.xlane.xlu0 %3622
    %v3624 = vsel %vm218, %v3620, 0.0
    %3625 = vadd.xlane.f32.xlu0 %v3624
    %v3626 = vpop.xlane.xlu0 %3625
    %v3627 = vsub.f32 %v3623, 1.0
    %v3628 = vsub.f32 %v3626, 1.0
    %v3629 = vrcp.pop %v3615
    %v3630 = vmul.f32 %v3627, %v3629
    %v3631 = vrcp.pop %v3618
    %v3632 = vmul.f32 %v3628, %v3631
    %v3633 = vsub.f32 %v3069, %v3630
    %v3634 = vsub.f32 %v3070, %v3632
    %v3635 = vmax.f32 %v3633, 0.0
    %v3636 = vmax.f32 %v3634, 0.0
    %v3637 = vadd.f32 %v3635, 1e-15
    %v3638 = vadd.f32 %v3636, 1e-15
    %v3639 = vlog2.pop %v3637
    %v3640 = vmul.f32 %v3639, 0.6931472
    %v3641 = vlog2.pop %v3638
    %v3642 = vmul.f32 %v3641, 0.6931472
    %v3643 = vmul.f32 %v3635, %v3640
    %v3644 = vmul.f32 %v3636, %v3642
    %v3645 = vsel %vm218, %v3643, 0.0
    %3646 = vadd.xlane.f32.xlu0 %v3645
    %v3647 = vpop.xlane.xlu0 %3646
    %v3648 = vsel %vm218, %v3644, 0.0
    %3649 = vadd.xlane.f32.xlu0 %v3648
    %v3650 = vpop.xlane.xlu0 %3649
    %v3651 = vadd.f32 %v1937, %v3647
    %v3652 = vadd.f32 %v1938, %v3650
    %v3653 = vsub.f32 1.3, %v3635
    %v3654 = vsub.f32 1.3, %v3636
    %v3655 = vmul.f32 %v3653, %v1939
    %v3656 = vmul.f32 %v3654, %v1940
    %v3657 = vmul.f32 %v3635, %v205
    %v3658 = vmul.f32 %v3636, %v206
    %v3659 = vpack.c.bf16 %v3658, %v3657
    %v3661 = vsel %vm218, %v3659, 0
    %3663 = vmatprep.subr.bf16.mxu0 0
    %3664 = vmatpush1.bf16.msra.mxu0 %v216
    %3665 = vmatprep.subr.bf16.mxu0 0
    %3666 = vmatpush1.bf16.msra.mxu0 0
    %3667 = vmatprep.subr.bf16.mxu0 0
    %3668 = vmatpush1.bf16.msra.mxu0 0
    %3669 = vmatprep.subr.bf16.mxu0 0
    %3670 = vmatpush1.bf16.msra.mxu0 0
    %3671 = vmatprep.subr.bf16.mxu0 0
    %3672 = vmatpush1.bf16.msra.mxu0 0
    %3673 = vmatprep.subr.bf16.mxu0 0
    %3674 = vmatpush1.bf16.msra.mxu0 0
    %3675 = vmatprep.subr.bf16.mxu0 0
    %3676 = vmatpush1.bf16.msra.mxu0 0
    %3677 = vmatprep.subr.bf16.mxu0 0
    %3678 = vmatpush1.bf16.msra.mxu0 0
    %3679 = vmatprep.subr.bf16.mxu0 0
    %3680 = vmatpush1.bf16.msra.mxu0 0
    %3681 = vmatprep.subr.bf16.mxu0 0
    %3682 = vmatpush1.bf16.msra.mxu0 0
    %3683 = vmatprep.subr.bf16.mxu0 0
    %3684 = vmatpush1.bf16.msra.mxu0 0
    %3685 = vmatprep.subr.bf16.mxu0 0
    %3686 = vmatpush1.bf16.msra.mxu0 0
    %3687 = vmatprep.subr.bf16.mxu0 0
    %3688 = vmatpush1.bf16.msra.mxu0 0
    %3689 = vmatprep.subr.bf16.mxu0 0
    %3690 = vmatpush1.bf16.msra.mxu0 0
    %3691 = vmatprep.subr.bf16.mxu0 0
    %3692 = vmatpush1.bf16.msra.mxu0 0
    %3693 = vmatprep.subr.bf16.mxu0 0
    %3694 = vmatpush1.bf16.msra.mxu0 0
    %3695 = vmatprep.mubr.bf16.mxu0 0
    %3696 = vmatmul.mubr.bf16.gmra.mrb[0].mxu0 %v3661
    %v3697 = vpop.f32.mrb[0].mxu0
    %v3698 = vadd.f32 0.0, %v3697
    %v3699 = vpop.f32.mrb[0].mxu0
    %v3700 = vpop.f32.mrb[0].mxu0
    %v3701 = vadd.f32 0.0, %v3700
    %v3702 = vpop.f32.mrb[0].mxu0
    %3703 = vdwg.mxu0
    %3704 = vmatprep.subr.bf16.mxu0 0
    %3705 = vmatpush1.bf16.msra.mxu0 %v267
    %3706 = vmatprep.subr.bf16.mxu0 0
    %3707 = vmatpush1.bf16.msra.mxu0 0
    %3708 = vmatprep.subr.bf16.mxu0 0
    %3709 = vmatpush1.bf16.msra.mxu0 0
    %3710 = vmatprep.subr.bf16.mxu0 0
    %3711 = vmatpush1.bf16.msra.mxu0 0
    %3712 = vmatprep.subr.bf16.mxu0 0
    %3713 = vmatpush1.bf16.msra.mxu0 0
    %3714 = vmatprep.subr.bf16.mxu0 0
    %3715 = vmatpush1.bf16.msra.mxu0 0
    %3716 = vmatprep.subr.bf16.mxu0 0
    %3717 = vmatpush1.bf16.msra.mxu0 0
    %3718 = vmatprep.subr.bf16.mxu0 0
    %3719 = vmatpush1.bf16.msra.mxu0 0
    %3720 = vmatprep.subr.bf16.mxu0 0
    %3721 = vmatpush1.bf16.msra.mxu0 0
    %3722 = vmatprep.subr.bf16.mxu0 0
    %3723 = vmatpush1.bf16.msra.mxu0 0
    %3724 = vmatprep.subr.bf16.mxu0 0
    %3725 = vmatpush1.bf16.msra.mxu0 0
    %3726 = vmatprep.subr.bf16.mxu0 0
    %3727 = vmatpush1.bf16.msra.mxu0 0
    %3728 = vmatprep.subr.bf16.mxu0 0
    %3729 = vmatpush1.bf16.msra.mxu0 0
    %3730 = vmatprep.subr.bf16.mxu0 0
    %3731 = vmatpush1.bf16.msra.mxu0 0
    %3732 = vmatprep.subr.bf16.mxu0 0
    %3733 = vmatpush1.bf16.msra.mxu0 0
    %3734 = vmatprep.subr.bf16.mxu0 0
    %3735 = vmatpush1.bf16.msra.mxu0 0
    %3736 = vmatprep.mubr.bf16.mxu0 0
    %3737 = vmatmul.mubr.bf16.gmra.mrb[0].mxu0 %v3661
    %v3738 = vpop.f32.mrb[0].mxu0
    %v3739 = vadd.f32 0.0, %v3738
    %v3740 = vpop.f32.mrb[0].mxu0
    %v3741 = vpop.f32.mrb[0].mxu0
    %v3742 = vadd.f32 0.0, %v3741
    %v3743 = vpop.f32.mrb[0].mxu0
    %3744 = vdwg.mxu0
    %s3745 = scalar_lea.vmem [#allocation7], 8
    %v3746 = vld [vmem:[%s3745] sm:$0x1]
    %s3747 = scalar_lea.vmem [#allocation9], 8
    %v3748 = vld [vmem:[%s3747] sm:$0x1]
    %v3749 = vsel %vm218, %v3698, 0.0
    %v3750 = vrot.slane %v3749, 4
    %v3751 = vadd.f32 %v3749, %v3750
    %v3752 = vrot.slane %v3751, 2
    %v3753 = vadd.f32 %v3751, %v3752
    %v3754 = vrot.slane %v3753, 1
    %v3755 = vadd.f32 %v3753, %v3754
    %v3756 = vsel %vm218, %v3701, 0.0
    %v3757 = vrot.slane %v3756, 4
    %v3758 = vadd.f32 %v3756, %v3757
    %v3759 = vrot.slane %v3758, 2
    %v3760 = vadd.f32 %v3758, %v3759
    %v3761 = vrot.slane %v3760, 1
    %v3762 = vadd.f32 %v3760, %v3761
    %v3763 = vmul.f32 %v3755, %v326
    %v3764 = vmul.f32 %v3762, %v326
    %v3765 = vmul.f32 %v3698, %v3698
    %v3766 = vmul.f32 %v3701, %v3701
    %v3767 = vsel %vm218, %v3765, 0.0
    %v3768 = vrot.slane %v3767, 4
    %v3769 = vadd.f32 %v3767, %v3768
    %v3770 = vrot.slane %v3769, 2
    %v3771 = vadd.f32 %v3769, %v3770
    %v3772 = vrot.slane %v3771, 1
    %v3773 = vadd.f32 %v3771, %v3772
    %v3774 = vsel %vm218, %v3766, 0.0
    %v3775 = vrot.slane %v3774, 4
    %v3776 = vadd.f32 %v3774, %v3775
    %v3777 = vrot.slane %v3776, 2
    %v3778 = vadd.f32 %v3776, %v3777
    %v3779 = vrot.slane %v3778, 1
    %v3780 = vadd.f32 %v3778, %v3779
    %v3781 = vmul.f32 %v3773, %v326
    %v3782 = vmul.f32 %v3780, %v326
    %v3783 = vmul.f32 %v3763, %v3763
    %v3784 = vmul.f32 %v3764, %v3764
    %v3785 = vsub.f32 %v3781, %v3783
    %v3786 = vsub.f32 %v3782, %v3784
    %v3787 = vmax.f32 %v3785, 0.0
    %v3788 = vmax.f32 %v3786, 0.0
    %v3789 = vsub.f32 %v3698, %v3763
    %v3790 = vsub.f32 %v3701, %v3764
    %v3791 = vadd.f32 %v3787, 1e-05
    %v3792 = vadd.f32 %v3788, 1e-05
    %v3793 = vrsqrt.pop %v3791
    %v3794 = vrsqrt.pop %v3792
    %v3795 = vmul.f32 %v3789, %v3793
    %v3796 = vmul.f32 %v3790, %v3794
    %v3798 = vlaneseq
    %v3799 = vshrl.u32 %v3798, 7
    %v3800 = vsub.s32 0, %v3799
    %v3801 = vrot.slane %v3746, %v3800
    %v3803 = vmul.f32 %v3795, %v3801
    %v3804 = vmul.f32 %v3796, %v3801
    %v3806 = vlaneseq
    %v3807 = vshrl.u32 %v3806, 7
    %v3808 = vsub.s32 0, %v3807
    %v3809 = vrot.slane %v3748, %v3808
    %v3811 = vadd.f32 %v3803, %v3809
    %v3812 = vadd.f32 %v3804, %v3809
    %s3813 = scalar_lea.vmem [#allocation10], 8
    %v3814 = vld [vmem:[%s3813] sm:$0x1]
    %s3815 = scalar_lea.vmem [#allocation12], 8
    %v3816 = vld [vmem:[%s3815] sm:$0x1]
    %v3817 = vsel %vm218, %v3739, 0.0
    %v3818 = vrot.slane %v3817, 4
    %v3819 = vadd.f32 %v3817, %v3818
    %v3820 = vrot.slane %v3819, 2
    %v3821 = vadd.f32 %v3819, %v3820
    %v3822 = vrot.slane %v3821, 1
    %v3823 = vadd.f32 %v3821, %v3822
    %v3824 = vsel %vm218, %v3742, 0.0
    %v3825 = vrot.slane %v3824, 4
    %v3826 = vadd.f32 %v3824, %v3825
    %v3827 = vrot.slane %v3826, 2
    %v3828 = vadd.f32 %v3826, %v3827
    %v3829 = vrot.slane %v3828, 1
    %v3830 = vadd.f32 %v3828, %v3829
    %v3831 = vmul.f32 %v3823, %v326
    %v3832 = vmul.f32 %v3830, %v326
    %v3833 = vmul.f32 %v3739, %v3739
    %v3834 = vmul.f32 %v3742, %v3742
    %v3835 = vsel %vm218, %v3833, 0.0
    %v3836 = vrot.slane %v3835, 4
    %v3837 = vadd.f32 %v3835, %v3836
    %v3838 = vrot.slane %v3837, 2
    %v3839 = vadd.f32 %v3837, %v3838
    %v3840 = vrot.slane %v3839, 1
    %v3841 = vadd.f32 %v3839, %v3840
    %v3842 = vsel %vm218, %v3834, 0.0
    %v3843 = vrot.slane %v3842, 4
    %v3844 = vadd.f32 %v3842, %v3843
    %v3845 = vrot.slane %v3844, 2
    %v3846 = vadd.f32 %v3844, %v3845
    %v3847 = vrot.slane %v3846, 1
    %v3848 = vadd.f32 %v3846, %v3847
    %v3849 = vmul.f32 %v3841, %v326
    %v3850 = vmul.f32 %v3848, %v326
    %v3851 = vmul.f32 %v3831, %v3831
    %v3852 = vmul.f32 %v3832, %v3832
    %v3853 = vsub.f32 %v3849, %v3851
    %v3854 = vsub.f32 %v3850, %v3852
    %v3855 = vmax.f32 %v3853, 0.0
    %v3856 = vmax.f32 %v3854, 0.0
    %v3857 = vsub.f32 %v3739, %v3831
    %v3858 = vsub.f32 %v3742, %v3832
    %v3859 = vadd.f32 %v3855, 1e-05
    %v3860 = vadd.f32 %v3856, 1e-05
    %v3861 = vrsqrt.pop %v3859
    %v3862 = vrsqrt.pop %v3860
    %v3863 = vmul.f32 %v3857, %v3861
    %v3864 = vmul.f32 %v3858, %v3862
    %v3866 = vlaneseq
    %v3867 = vshrl.u32 %v3866, 7
    %v3868 = vsub.s32 0, %v3867
    %v3869 = vrot.slane %v3814, %v3868
    %v3871 = vmul.f32 %v3863, %v3869
    %v3872 = vmul.f32 %v3864, %v3869
    %v3874 = vlaneseq
    %v3875 = vshrl.u32 %v3874, 7
    %v3876 = vsub.s32 0, %v3875
    %v3877 = vrot.slane %v3816, %v3876
    %v3879 = vadd.f32 %v3871, %v3877
    %v3880 = vadd.f32 %v3872, %v3877
    %v3881 = vxor.u32 %v3879, 2147483648
    %v3882 = vxor.u32 %v3880, 2147483648
    %v3883 = vmul.f32 %v3881, 1.442695
    %v3884 = vpow.pop %v3883
    %v3885 = vmul.f32 %v3882, 1.442695
    %v3886 = vpow.pop %v3885
    %v3887 = vadd.f32 %v3884, 1.0
    %v3888 = vadd.f32 %v3886, 1.0
    %v3889 = vrcp.pop %v3887
    %v3890 = vmul.f32 1.0, %v3889
    %v3891 = vrcp.pop %v3888
    %v3892 = vmul.f32 1.0, %v3891
    %v3893 = vmul.f32 %v3811, %v3890
    %v3894 = vmul.f32 %v3812, %v3892
    %v3895 = vpack.c.bf16 %v3894, %v3893
    %v3897 = vsel %vm218, %v3895, 0
    %3899 = vmatprep.subr.bf16.mxu0 0
    %3900 = vmatpush1.bf16.msra.mxu0 %v466
    %3901 = vmatprep.subr.bf16.mxu0 0
    %3902 = vmatpush1.bf16.msra.mxu0 0
    %3903 = vmatprep.subr.bf16.mxu0 0
    %3904 = vmatpush1.bf16.msra.mxu0 0
    %3905 = vmatprep.subr.bf16.mxu0 0
    %3906 = vmatpush1.bf16.msra.mxu0 0
    %3907 = vmatprep.subr.bf16.mxu0 0
    %3908 = vmatpush1.bf16.msra.mxu0 0
    %3909 = vmatprep.subr.bf16.mxu0 0
    %3910 = vmatpush1.bf16.msra.mxu0 0
    %3911 = vmatprep.subr.bf16.mxu0 0
    %3912 = vmatpush1.bf16.msra.mxu0 0
    %3913 = vmatprep.subr.bf16.mxu0 0
    %3914 = vmatpush1.bf16.msra.mxu0 0
    %3915 = vmatprep.subr.bf16.mxu0 0
    %3916 = vmatpush1.bf16.msra.mxu0 0
    %3917 = vmatprep.subr.bf16.mxu0 0
    %3918 = vmatpush1.bf16.msra.mxu0 0
    %3919 = vmatprep.subr.bf16.mxu0 0
    %3920 = vmatpush1.bf16.msra.mxu0 0
    %3921 = vmatprep.subr.bf16.mxu0 0
    %3922 = vmatpush1.bf16.msra.mxu0 0
    %3923 = vmatprep.subr.bf16.mxu0 0
    %3924 = vmatpush1.bf16.msra.mxu0 0
    %3925 = vmatprep.subr.bf16.mxu0 0
    %3926 = vmatpush1.bf16.msra.mxu0 0
    %3927 = vmatprep.subr.bf16.mxu0 0
    %3928 = vmatpush1.bf16.msra.mxu0 0
    %3929 = vmatprep.subr.bf16.mxu0 0
    %3930 = vmatpush1.bf16.msra.mxu0 0
    %3931 = vmatprep.mubr.bf16.mxu0 0
    %3932 = vmatmul.mubr.bf16.gmra.mrb[0].mxu0 %v3897
    %v3933 = vpop.f32.mrb[0].mxu0
    %v3934 = vadd.f32 0.0, %v3933
    %v3935 = vpop.f32.mrb[0].mxu0
    %v3936 = vpop.f32.mrb[0].mxu0
    %v3937 = vadd.f32 0.0, %v3936
    %v3938 = vpop.f32.mrb[0].mxu0
    %3939 = vdwg.mxu0
    %3940 = vmatprep.subr.bf16.mxu0 0
    %3941 = vmatpush1.bf16.msra.mxu0 %v516
    %3942 = vmatprep.subr.bf16.mxu0 0
    %3943 = vmatpush1.bf16.msra.mxu0 0
    %3944 = vmatprep.subr.bf16.mxu0 0
    %3945 = vmatpush1.bf16.msra.mxu0 0
    %3946 = vmatprep.subr.bf16.mxu0 0
    %3947 = vmatpush1.bf16.msra.mxu0 0
    %3948 = vmatprep.subr.bf16.mxu0 0
    %3949 = vmatpush1.bf16.msra.mxu0 0
    %3950 = vmatprep.subr.bf16.mxu0 0
    %3951 = vmatpush1.bf16.msra.mxu0 0
    %3952 = vmatprep.subr.bf16.mxu0 0
    %3953 = vmatpush1.bf16.msra.mxu0 0
    %3954 = vmatprep.subr.bf16.mxu0 0
    %3955 = vmatpush1.bf16.msra.mxu0 0
    %3956 = vmatprep.subr.bf16.mxu0 0
    %3957 = vmatpush1.bf16.msra.mxu0 0
    %3958 = vmatprep.subr.bf16.mxu0 0
    %3959 = vmatpush1.bf16.msra.mxu0 0
    %3960 = vmatprep.subr.bf16.mxu0 0
    %3961 = vmatpush1.bf16.msra.mxu0 0
    %3962 = vmatprep.subr.bf16.mxu0 0
    %3963 = vmatpush1.bf16.msra.mxu0 0
    %3964 = vmatprep.subr.bf16.mxu0 0
    %3965 = vmatpush1.bf16.msra.mxu0 0
    %3966 = vmatprep.subr.bf16.mxu0 0
    %3967 = vmatpush1.bf16.msra.mxu0 0
    %3968 = vmatprep.subr.bf16.mxu0 0
    %3969 = vmatpush1.bf16.msra.mxu0 0
    %3970 = vmatprep.subr.bf16.mxu0 0
    %3971 = vmatpush1.bf16.msra.mxu0 0
    %3972 = vmatprep.mubr.bf16.mxu0 0
    %3973 = vmatmul.mubr.bf16.gmra.mrb[0].mxu0 %v3897
    %v3974 = vpop.f32.mrb[0].mxu0
    %v3975 = vadd.f32 0.0, %v3974
    %v3976 = vpop.f32.mrb[0].mxu0
    %v3977 = vpop.f32.mrb[0].mxu0
    %v3978 = vadd.f32 0.0, %v3977
    %v3979 = vpop.f32.mrb[0].mxu0
    %3980 = vdwg.mxu0
    %s3981 = scalar_lea.vmem [#allocation7], 9
    %v3982 = vld [vmem:[%s3981] sm:$0x1]
    %s3983 = scalar_lea.vmem [#allocation9], 9
    %v3984 = vld [vmem:[%s3983] sm:$0x1]
    %v3985 = vsel %vm218, %v3934, 0.0
    %v3986 = vrot.slane %v3985, 4
    %v3987 = vadd.f32 %v3985, %v3986
    %v3988 = vrot.slane %v3987, 2
    %v3989 = vadd.f32 %v3987, %v3988
    %v3990 = vrot.slane %v3989, 1
    %v3991 = vadd.f32 %v3989, %v3990
    %v3992 = vsel %vm218, %v3937, 0.0
    %v3993 = vrot.slane %v3992, 4
    %v3994 = vadd.f32 %v3992, %v3993
    %v3995 = vrot.slane %v3994, 2
    %v3996 = vadd.f32 %v3994, %v3995
    %v3997 = vrot.slane %v3996, 1
    %v3998 = vadd.f32 %v3996, %v3997
    %v3999 = vmul.f32 %v3991, %v326
    %v4000 = vmul.f32 %v3998, %v326
    %v4001 = vmul.f32 %v3934, %v3934
    %v4002 = vmul.f32 %v3937, %v3937
    %v4003 = vsel %vm218, %v4001, 0.0
    %v4004 = vrot.slane %v4003, 4
    %v4005 = vadd.f32 %v4003, %v4004
    %v4006 = vrot.slane %v4005, 2
    %v4007 = vadd.f32 %v4005, %v4006
    %v4008 = vrot.slane %v4007, 1
    %v4009 = vadd.f32 %v4007, %v4008
    %v4010 = vsel %vm218, %v4002, 0.0
    %v4011 = vrot.slane %v4010, 4
    %v4012 = vadd.f32 %v4010, %v4011
    %v4013 = vrot.slane %v4012, 2
    %v4014 = vadd.f32 %v4012, %v4013
    %v4015 = vrot.slane %v4014, 1
    %v4016 = vadd.f32 %v4014, %v4015
    %v4017 = vmul.f32 %v4009, %v326
    %v4018 = vmul.f32 %v4016, %v326
    %v4019 = vmul.f32 %v3999, %v3999
    %v4020 = vmul.f32 %v4000, %v4000
    %v4021 = vsub.f32 %v4017, %v4019
    %v4022 = vsub.f32 %v4018, %v4020
    %v4023 = vmax.f32 %v4021, 0.0
    %v4024 = vmax.f32 %v4022, 0.0
    %v4025 = vsub.f32 %v3934, %v3999
    %v4026 = vsub.f32 %v3937, %v4000
    %v4027 = vadd.f32 %v4023, 1e-05
    %v4028 = vadd.f32 %v4024, 1e-05
    %v4029 = vrsqrt.pop %v4027
    %v4030 = vrsqrt.pop %v4028
    %v4031 = vmul.f32 %v4025, %v4029
    %v4032 = vmul.f32 %v4026, %v4030
    %v4034 = vlaneseq
    %v4035 = vshrl.u32 %v4034, 7
    %v4036 = vsub.s32 0, %v4035
    %v4037 = vrot.slane %v3982, %v4036
    %v4039 = vmul.f32 %v4031, %v4037
    %v4040 = vmul.f32 %v4032, %v4037
    %v4042 = vlaneseq
    %v4043 = vshrl.u32 %v4042, 7
    %v4044 = vsub.s32 0, %v4043
    %v4045 = vrot.slane %v3984, %v4044
    %v4047 = vadd.f32 %v4039, %v4045
    %v4048 = vadd.f32 %v4040, %v4045
    %s4049 = scalar_lea.vmem [#allocation10], 9
    %v4050 = vld [vmem:[%s4049] sm:$0x1]
    %s4051 = scalar_lea.vmem [#allocation12], 9
    %v4052 = vld [vmem:[%s4051] sm:$0x1]
    %v4053 = vsel %vm218, %v3975, 0.0
    %v4054 = vrot.slane %v4053, 4
    %v4055 = vadd.f32 %v4053, %v4054
    %v4056 = vrot.slane %v4055, 2
    %v4057 = vadd.f32 %v4055, %v4056
    %v4058 = vrot.slane %v4057, 1
    %v4059 = vadd.f32 %v4057, %v4058
    %v4060 = vsel %vm218, %v3978, 0.0
    %v4061 = vrot.slane %v4060, 4
    %v4062 = vadd.f32 %v4060, %v4061
    %v4063 = vrot.slane %v4062, 2
    %v4064 = vadd.f32 %v4062, %v4063
    %v4065 = vrot.slane %v4064, 1
    %v4066 = vadd.f32 %v4064, %v4065
    %v4067 = vmul.f32 %v4059, %v326
    %v4068 = vmul.f32 %v4066, %v326
    %v4069 = vmul.f32 %v3975, %v3975
    %v4070 = vmul.f32 %v3978, %v3978
    %v4071 = vsel %vm218, %v4069, 0.0
    %v4072 = vrot.slane %v4071, 4
    %v4073 = vadd.f32 %v4071, %v4072
    %v4074 = vrot.slane %v4073, 2
    %v4075 = vadd.f32 %v4073, %v4074
    %v4076 = vrot.slane %v4075, 1
    %v4077 = vadd.f32 %v4075, %v4076
    %v4078 = vsel %vm218, %v4070, 0.0
    %v4079 = vrot.slane %v4078, 4
    %v4080 = vadd.f32 %v4078, %v4079
    %v4081 = vrot.slane %v4080, 2
    %v4082 = vadd.f32 %v4080, %v4081
    %v4083 = vrot.slane %v4082, 1
    %v4084 = vadd.f32 %v4082, %v4083
    %v4085 = vmul.f32 %v4077, %v326
    %v4086 = vmul.f32 %v4084, %v326
    %v4087 = vmul.f32 %v4067, %v4067
    %v4088 = vmul.f32 %v4068, %v4068
    %v4089 = vsub.f32 %v4085, %v4087
    %v4090 = vsub.f32 %v4086, %v4088
    %v4091 = vmax.f32 %v4089, 0.0
    %v4092 = vmax.f32 %v4090, 0.0
    %v4093 = vsub.f32 %v3975, %v4067
    %v4094 = vsub.f32 %v3978, %v4068
    %v4095 = vadd.f32 %v4091, 1e-05
    %v4096 = vadd.f32 %v4092, 1e-05
    %v4097 = vrsqrt.pop %v4095
    %v4098 = vrsqrt.pop %v4096
    %v4099 = vmul.f32 %v4093, %v4097
    %v4100 = vmul.f32 %v4094, %v4098
    %v4102 = vlaneseq
    %v4103 = vshrl.u32 %v4102, 7
    %v4104 = vsub.s32 0, %v4103
    %v4105 = vrot.slane %v4050, %v4104
    %v4107 = vmul.f32 %v4099, %v4105
    %v4108 = vmul.f32 %v4100, %v4105
    %v4110 = vlaneseq
    %v4111 = vshrl.u32 %v4110, 7
    %v4112 = vsub.s32 0, %v4111
    %v4113 = vrot.slane %v4052, %v4112
    %v4115 = vadd.f32 %v4107, %v4113
    %v4116 = vadd.f32 %v4108, %v4113
    %v4117 = vxor.u32 %v4115, 2147483648
    %v4118 = vxor.u32 %v4116, 2147483648
    %v4119 = vmul.f32 %v4117, 1.442695
    %v4120 = vpow.pop %v4119
    %v4121 = vmul.f32 %v4118, 1.442695
    %v4122 = vpow.pop %v4121
    %v4123 = vadd.f32 %v4120, 1.0
    %v4124 = vadd.f32 %v4122, 1.0
    %v4125 = vrcp.pop %v4123
    %v4126 = vmul.f32 1.0, %v4125
    %v4127 = vrcp.pop %v4124
    %v4128 = vmul.f32 1.0, %v4127
    %v4129 = vmul.f32 %v4047, %v4126
    %v4130 = vmul.f32 %v4048, %v4128
    %v4131 = vadd.f32 %v3893, %v4129
    %v4132 = vadd.f32 %v3894, %v4130
    %v4133 = vmul.f32 %v4131, 0.70710677
    %v4134 = vmul.f32 %v4132, 0.70710677
    %v4135 = vpack.c.bf16 %v4134, %v4133
    %s4136 = scalar_lea.vmem %s5, 40
    %v4137 = vld [vmem:[%s4136] sm:$0xf]
    %v4138 = vld [vmem:[%s4136 + $0x4] sm:$0xf]
    %s4139 = scalar_lea.vmem [#allocation6], 40
    %v4140 = vld [vmem:[%s4139] sm:$0xf]
    %v4141 = vld [vmem:[%s4139 + $0x4] sm:$0xf]
    %v4144 = vunpack.c.l.b16 %v4137
    %v4145 = vunpack.c.l.b16 %v4138
    %v4146 = vpack.c.b16 %v4145, %v4144
    %v4149 = vsel %vm218, %v4135, 0
    %4151 = vmatprep.subr.bf16.mxu0 0
    %4152 = vmatpush1.bf16.msra.mxu0 %v4146
    %4153 = vmatprep.subr.bf16.mxu0 0
    %4154 = vmatpush1.bf16.msra.mxu0 0
    %4155 = vmatprep.subr.bf16.mxu0 0
    %4156 = vmatpush1.bf16.msra.mxu0 0
    %4157 = vmatprep.subr.bf16.mxu0 0
    %4158 = vmatpush1.bf16.msra.mxu0 0
    %4159 = vmatprep.subr.bf16.mxu0 0
    %4160 = vmatpush1.bf16.msra.mxu0 0
    %4161 = vmatprep.subr.bf16.mxu0 0
    %4162 = vmatpush1.bf16.msra.mxu0 0
    %4163 = vmatprep.subr.bf16.mxu0 0
    %4164 = vmatpush1.bf16.msra.mxu0 0
    %4165 = vmatprep.subr.bf16.mxu0 0
    %4166 = vmatpush1.bf16.msra.mxu0 0
    %4167 = vmatprep.subr.bf16.mxu0 0
    %4168 = vmatpush1.bf16.msra.mxu0 0
    %4169 = vmatprep.subr.bf16.mxu0 0
    %4170 = vmatpush1.bf16.msra.mxu0 0
    %4171 = vmatprep.subr.bf16.mxu0 0
    %4172 = vmatpush1.bf16.msra.mxu0 0
    %4173 = vmatprep.subr.bf16.mxu0 0
    %4174 = vmatpush1.bf16.msra.mxu0 0
    %4175 = vmatprep.subr.bf16.mxu0 0
    %4176 = vmatpush1.bf16.msra.mxu0 0
    %4177 = vmatprep.subr.bf16.mxu0 0
    %4178 = vmatpush1.bf16.msra.mxu0 0
    %4179 = vmatprep.subr.bf16.mxu0 0
    %4180 = vmatpush1.bf16.msra.mxu0 0
    %4181 = vmatprep.subr.bf16.mxu0 0
    %4182 = vmatpush1.bf16.msra.mxu0 0
    %4183 = vmatprep.mubr.bf16.mxu0 0
    %4184 = vmatmul.mubr.bf16.gmra.mrb[0].mxu0 %v4149
    %v4185 = vpop.f32.mrb[0].mxu0
    %v4186 = vadd.f32 0.0, %v4185
    %v4187 = vpop.f32.mrb[0].mxu0
    %v4188 = vpop.f32.mrb[0].mxu0
    %v4189 = vadd.f32 0.0, %v4188
    %v4190 = vpop.f32.mrb[0].mxu0
    %4191 = vdwg.mxu0
    %v4194 = vunpack.c.l.b16 %v4140
    %v4195 = vunpack.c.l.b16 %v4141
    %v4196 = vpack.c.b16 %v4195, %v4194
    %4198 = vmatprep.subr.bf16.mxu0 0
    %4199 = vmatpush1.bf16.msra.mxu0 %v4196
    %4200 = vmatprep.subr.bf16.mxu0 0
    %4201 = vmatpush1.bf16.msra.mxu0 0
    %4202 = vmatprep.subr.bf16.mxu0 0
    %4203 = vmatpush1.bf16.msra.mxu0 0
    %4204 = vmatprep.subr.bf16.mxu0 0
    %4205 = vmatpush1.bf16.msra.mxu0 0
    %4206 = vmatprep.subr.bf16.mxu0 0
    %4207 = vmatpush1.bf16.msra.mxu0 0
    %4208 = vmatprep.subr.bf16.mxu0 0
    %4209 = vmatpush1.bf16.msra.mxu0 0
    %4210 = vmatprep.subr.bf16.mxu0 0
    %4211 = vmatpush1.bf16.msra.mxu0 0
    %4212 = vmatprep.subr.bf16.mxu0 0
    %4213 = vmatpush1.bf16.msra.mxu0 0
    %4214 = vmatprep.subr.bf16.mxu0 0
    %4215 = vmatpush1.bf16.msra.mxu0 0
    %4216 = vmatprep.subr.bf16.mxu0 0
    %4217 = vmatpush1.bf16.msra.mxu0 0
    %4218 = vmatprep.subr.bf16.mxu0 0
    %4219 = vmatpush1.bf16.msra.mxu0 0
    %4220 = vmatprep.subr.bf16.mxu0 0
    %4221 = vmatpush1.bf16.msra.mxu0 0
    %4222 = vmatprep.subr.bf16.mxu0 0
    %4223 = vmatpush1.bf16.msra.mxu0 0
    %4224 = vmatprep.subr.bf16.mxu0 0
    %4225 = vmatpush1.bf16.msra.mxu0 0
    %4226 = vmatprep.subr.bf16.mxu0 0
    %4227 = vmatpush1.bf16.msra.mxu0 0
    %4228 = vmatprep.subr.bf16.mxu0 0
    %4229 = vmatpush1.bf16.msra.mxu0 0
    %4230 = vmatprep.mubr.bf16.mxu0 0
    %4231 = vmatmul.mubr.bf16.gmra.mrb[0].mxu0 %v4149
    %v4232 = vpop.f32.mrb[0].mxu0
    %v4233 = vadd.f32 0.0, %v4232
    %v4234 = vpop.f32.mrb[0].mxu0
    %v4235 = vpop.f32.mrb[0].mxu0
    %v4236 = vadd.f32 0.0, %v4235
    %v4237 = vpop.f32.mrb[0].mxu0
    %4238 = vdwg.mxu0
    %s4239 = scalar_lea.vmem [#allocation7], 10
    %v4240 = vld [vmem:[%s4239] sm:$0x1]
    %s4241 = scalar_lea.vmem [#allocation9], 10
    %v4242 = vld [vmem:[%s4241] sm:$0x1]
    %v4243 = vsel %vm218, %v4186, 0.0
    %v4244 = vrot.slane %v4243, 4
    %v4245 = vadd.f32 %v4243, %v4244
    %v4246 = vrot.slane %v4245, 2
    %v4247 = vadd.f32 %v4245, %v4246
    %v4248 = vrot.slane %v4247, 1
    %v4249 = vadd.f32 %v4247, %v4248
    %v4250 = vsel %vm218, %v4189, 0.0
    %v4251 = vrot.slane %v4250, 4
    %v4252 = vadd.f32 %v4250, %v4251
    %v4253 = vrot.slane %v4252, 2
    %v4254 = vadd.f32 %v4252, %v4253
    %v4255 = vrot.slane %v4254, 1
    %v4256 = vadd.f32 %v4254, %v4255
    %v4257 = vmul.f32 %v4249, %v326
    %v4258 = vmul.f32 %v4256, %v326
    %v4259 = vmul.f32 %v4186, %v4186
    %v4260 = vmul.f32 %v4189, %v4189
    %v4261 = vsel %vm218, %v4259, 0.0
    %v4262 = vrot.slane %v4261, 4
    %v4263 = vadd.f32 %v4261, %v4262
    %v4264 = vrot.slane %v4263, 2
    %v4265 = vadd.f32 %v4263, %v4264
    %v4266 = vrot.slane %v4265, 1
    %v4267 = vadd.f32 %v4265, %v4266
    %v4268 = vsel %vm218, %v4260, 0.0
    %v4269 = vrot.slane %v4268, 4
    %v4270 = vadd.f32 %v4268, %v4269
    %v4271 = vrot.slane %v4270, 2
    %v4272 = vadd.f32 %v4270, %v4271
    %v4273 = vrot.slane %v4272, 1
    %v4274 = vadd.f32 %v4272, %v4273
    %v4275 = vmul.f32 %v4267, %v326
    %v4276 = vmul.f32 %v4274, %v326
    %v4277 = vmul.f32 %v4257, %v4257
    %v4278 = vmul.f32 %v4258, %v4258
    %v4279 = vsub.f32 %v4275, %v4277
    %v4280 = vsub.f32 %v4276, %v4278
    %v4281 = vmax.f32 %v4279, 0.0
    %v4282 = vmax.f32 %v4280, 0.0
    %v4283 = vsub.f32 %v4186, %v4257
    %v4284 = vsub.f32 %v4189, %v4258
    %v4285 = vadd.f32 %v4281, 1e-05
    %v4286 = vadd.f32 %v4282, 1e-05
    %v4287 = vrsqrt.pop %v4285
    %v4288 = vrsqrt.pop %v4286
    %v4289 = vmul.f32 %v4283, %v4287
    %v4290 = vmul.f32 %v4284, %v4288
    %v4292 = vlaneseq
    %v4293 = vshrl.u32 %v4292, 7
    %v4294 = vsub.s32 0, %v4293
    %v4295 = vrot.slane %v4240, %v4294
    %v4297 = vmul.f32 %v4289, %v4295
    %v4298 = vmul.f32 %v4290, %v4295
    %v4300 = vlaneseq
    %v4301 = vshrl.u32 %v4300, 7
    %v4302 = vsub.s32 0, %v4301
    %v4303 = vrot.slane %v4242, %v4302
    %v4305 = vadd.f32 %v4297, %v4303
    %v4306 = vadd.f32 %v4298, %v4303
    %s4307 = scalar_lea.vmem [#allocation10], 10
    %v4308 = vld [vmem:[%s4307] sm:$0x1]
    %s4309 = scalar_lea.vmem [#allocation12], 10
    %v4310 = vld [vmem:[%s4309] sm:$0x1]
    %v4311 = vsel %vm218, %v4233, 0.0
    %v4312 = vrot.slane %v4311, 4
    %v4313 = vadd.f32 %v4311, %v4312
    %v4314 = vrot.slane %v4313, 2
    %v4315 = vadd.f32 %v4313, %v4314
    %v4316 = vrot.slane %v4315, 1
    %v4317 = vadd.f32 %v4315, %v4316
    %v4318 = vsel %vm218, %v4236, 0.0
    %v4319 = vrot.slane %v4318, 4
    %v4320 = vadd.f32 %v4318, %v4319
    %v4321 = vrot.slane %v4320, 2
    %v4322 = vadd.f32 %v4320, %v4321
    %v4323 = vrot.slane %v4322, 1
    %v4324 = vadd.f32 %v4322, %v4323
    %v4325 = vmul.f32 %v4317, %v326
    %v4326 = vmul.f32 %v4324, %v326
    %v4327 = vmul.f32 %v4233, %v4233
    %v4328 = vmul.f32 %v4236, %v4236
    %v4329 = vsel %vm218, %v4327, 0.0
    %v4330 = vrot.slane %v4329, 4
    %v4331 = vadd.f32 %v4329, %v4330
    %v4332 = vrot.slane %v4331, 2
    %v4333 = vadd.f32 %v4331, %v4332
    %v4334 = vrot.slane %v4333, 1
    %v4335 = vadd.f32 %v4333, %v4334
    %v4336 = vsel %vm218, %v4328, 0.0
    %v4337 = vrot.slane %v4336, 4
    %v4338 = vadd.f32 %v4336, %v4337
    %v4339 = vrot.slane %v4338, 2
    %v4340 = vadd.f32 %v4338, %v4339
    %v4341 = vrot.slane %v4340, 1
    %v4342 = vadd.f32 %v4340, %v4341
    %v4343 = vmul.f32 %v4335, %v326
    %v4344 = vmul.f32 %v4342, %v326
    %v4345 = vmul.f32 %v4325, %v4325
    %v4346 = vmul.f32 %v4326, %v4326
    %v4347 = vsub.f32 %v4343, %v4345
    %v4348 = vsub.f32 %v4344, %v4346
    %v4349 = vmax.f32 %v4347, 0.0
    %v4350 = vmax.f32 %v4348, 0.0
    %v4351 = vsub.f32 %v4233, %v4325
    %v4352 = vsub.f32 %v4236, %v4326
    %v4353 = vadd.f32 %v4349, 1e-05
    %v4354 = vadd.f32 %v4350, 1e-05
    %v4355 = vrsqrt.pop %v4353
    %v4356 = vrsqrt.pop %v4354
    %v4357 = vmul.f32 %v4351, %v4355
    %v4358 = vmul.f32 %v4352, %v4356
    %v4360 = vlaneseq
    %v4361 = vshrl.u32 %v4360, 7
    %v4362 = vsub.s32 0, %v4361
    %v4363 = vrot.slane %v4308, %v4362
    %v4365 = vmul.f32 %v4357, %v4363
    %v4366 = vmul.f32 %v4358, %v4363
    %v4368 = vlaneseq
    %v4369 = vshrl.u32 %v4368, 7
    %v4370 = vsub.s32 0, %v4369
    %v4371 = vrot.slane %v4310, %v4370
    %v4373 = vadd.f32 %v4365, %v4371
    %v4374 = vadd.f32 %v4366, %v4371
    %v4375 = vxor.u32 %v4373, 2147483648
    %v4376 = vxor.u32 %v4374, 2147483648
    %v4377 = vmul.f32 %v4375, 1.442695
    %v4378 = vpow.pop %v4377
    %v4379 = vmul.f32 %v4376, 1.442695
    %v4380 = vpow.pop %v4379
    %v4381 = vadd.f32 %v4378, 1.0
    %v4382 = vadd.f32 %v4380, 1.0
    %v4383 = vrcp.pop %v4381
    %v4384 = vmul.f32 1.0, %v4383
    %v4385 = vrcp.pop %v4382
    %v4386 = vmul.f32 1.0, %v4385
    %v4387 = vmul.f32 %v4305, %v4384
    %v4388 = vmul.f32 %v4306, %v4386
    %v4389 = vadd.f32 %v4133, %v4387
    %v4390 = vadd.f32 %v4134, %v4388
    %v4391 = vmul.f32 %v4389, 0.70710677
    %v4392 = vmul.f32 %v4390, 0.70710677
    %v4393 = vpack.c.bf16 %v4392, %v4391
    %s4394 = scalar_lea.vmem %s5, 48
    %v4395 = vld [vmem:[%s4394] sm:$0xf]
    %v4396 = vld [vmem:[%s4394 + $0x4] sm:$0xf]
    %s4397 = scalar_lea.vmem [#allocation6], 48
    %v4398 = vld [vmem:[%s4397] sm:$0xf]
    %v4399 = vld [vmem:[%s4397 + $0x4] sm:$0xf]
    %v4402 = vunpack.c.l.b16 %v4395
    %v4403 = vunpack.c.l.b16 %v4396
    %v4404 = vpack.c.b16 %v4403, %v4402
    %v4407 = vsel %vm218, %v4393, 0
    %4409 = vmatprep.subr.bf16.mxu0 0
    %4410 = vmatpush1.bf16.msra.mxu0 %v4404
    %4411 = vmatprep.subr.bf16.mxu0 0
    %4412 = vmatpush1.bf16.msra.mxu0 0
    %4413 = vmatprep.subr.bf16.mxu0 0
    %4414 = vmatpush1.bf16.msra.mxu0 0
    %4415 = vmatprep.subr.bf16.mxu0 0
    %4416 = vmatpush1.bf16.msra.mxu0 0
    %4417 = vmatprep.subr.bf16.mxu0 0
    %4418 = vmatpush1.bf16.msra.mxu0 0
    %4419 = vmatprep.subr.bf16.mxu0 0
    %4420 = vmatpush1.bf16.msra.mxu0 0
    %4421 = vmatprep.subr.bf16.mxu0 0
    %4422 = vmatpush1.bf16.msra.mxu0 0
    %4423 = vmatprep.subr.bf16.mxu0 0
    %4424 = vmatpush1.bf16.msra.mxu0 0
    %4425 = vmatprep.subr.bf16.mxu0 0
    %4426 = vmatpush1.bf16.msra.mxu0 0
    %4427 = vmatprep.subr.bf16.mxu0 0
    %4428 = vmatpush1.bf16.msra.mxu0 0
    %4429 = vmatprep.subr.bf16.mxu0 0
    %4430 = vmatpush1.bf16.msra.mxu0 0
    %4431 = vmatprep.subr.bf16.mxu0 0
    %4432 = vmatpush1.bf16.msra.mxu0 0
    %4433 = vmatprep.subr.bf16.mxu0 0
    %4434 = vmatpush1.bf16.msra.mxu0 0
    %4435 = vmatprep.subr.bf16.mxu0 0
    %4436 = vmatpush1.bf16.msra.mxu0 0
    %4437 = vmatprep.subr.bf16.mxu0 0
    %4438 = vmatpush1.bf16.msra.mxu0 0
    %4439 = vmatprep.subr.bf16.mxu0 0
    %4440 = vmatpush1.bf16.msra.mxu0 0
    %4441 = vmatprep.mubr.bf16.mxu0 0
    %4442 = vmatmul.mubr.bf16.gmra.mrb[0].mxu0 %v4407
    %v4443 = vpop.f32.mrb[0].mxu0
    %v4444 = vadd.f32 0.0, %v4443
    %v4445 = vpop.f32.mrb[0].mxu0
    %v4446 = vpop.f32.mrb[0].mxu0
    %v4447 = vadd.f32 0.0, %v4446
    %v4448 = vpop.f32.mrb[0].mxu0
    %4449 = vdwg.mxu0
    %v4452 = vunpack.c.l.b16 %v4398
    %v4453 = vunpack.c.l.b16 %v4399
    %v4454 = vpack.c.b16 %v4453, %v4452
    %4456 = vmatprep.subr.bf16.mxu0 0
    %4457 = vmatpush1.bf16.msra.mxu0 %v4454
    %4458 = vmatprep.subr.bf16.mxu0 0
    %4459 = vmatpush1.bf16.msra.mxu0 0
    %4460 = vmatprep.subr.bf16.mxu0 0
    %4461 = vmatpush1.bf16.msra.mxu0 0
    %4462 = vmatprep.subr.bf16.mxu0 0
    %4463 = vmatpush1.bf16.msra.mxu0 0
    %4464 = vmatprep.subr.bf16.mxu0 0
    %4465 = vmatpush1.bf16.msra.mxu0 0
    %4466 = vmatprep.subr.bf16.mxu0 0
    %4467 = vmatpush1.bf16.msra.mxu0 0
    %4468 = vmatprep.subr.bf16.mxu0 0
    %4469 = vmatpush1.bf16.msra.mxu0 0
    %4470 = vmatprep.subr.bf16.mxu0 0
    %4471 = vmatpush1.bf16.msra.mxu0 0
    %4472 = vmatprep.subr.bf16.mxu0 0
    %4473 = vmatpush1.bf16.msra.mxu0 0
    %4474 = vmatprep.subr.bf16.mxu0 0
    %4475 = vmatpush1.bf16.msra.mxu0 0
    %4476 = vmatprep.subr.bf16.mxu0 0
    %4477 = vmatpush1.bf16.msra.mxu0 0
    %4478 = vmatprep.subr.bf16.mxu0 0
    %4479 = vmatpush1.bf16.msra.mxu0 0
    %4480 = vmatprep.subr.bf16.mxu0 0
    %4481 = vmatpush1.bf16.msra.mxu0 0
    %4482 = vmatprep.subr.bf16.mxu0 0
    %4483 = vmatpush1.bf16.msra.mxu0 0
    %4484 = vmatprep.subr.bf16.mxu0 0
    %4485 = vmatpush1.bf16.msra.mxu0 0
    %4486 = vmatprep.subr.bf16.mxu0 0
    %4487 = vmatpush1.bf16.msra.mxu0 0
    %4488 = vmatprep.mubr.bf16.mxu0 0
    %4489 = vmatmul.mubr.bf16.gmra.mrb[0].mxu0 %v4407
    %v4490 = vpop.f32.mrb[0].mxu0
    %v4491 = vadd.f32 0.0, %v4490
    %v4492 = vpop.f32.mrb[0].mxu0
    %v4493 = vpop.f32.mrb[0].mxu0
    %v4494 = vadd.f32 0.0, %v4493
    %v4495 = vpop.f32.mrb[0].mxu0
    %4496 = vdwg.mxu0
    %s4497 = scalar_lea.vmem [#allocation7], 11
    %v4498 = vld [vmem:[%s4497] sm:$0x1]
    %s4499 = scalar_lea.vmem [#allocation9], 11
    %v4500 = vld [vmem:[%s4499] sm:$0x1]
    %v4501 = vsel %vm218, %v4444, 0.0
    %v4502 = vrot.slane %v4501, 4
    %v4503 = vadd.f32 %v4501, %v4502
    %v4504 = vrot.slane %v4503, 2
    %v4505 = vadd.f32 %v4503, %v4504
    %v4506 = vrot.slane %v4505, 1
    %v4507 = vadd.f32 %v4505, %v4506
    %v4508 = vsel %vm218, %v4447, 0.0
    %v4509 = vrot.slane %v4508, 4
    %v4510 = vadd.f32 %v4508, %v4509
    %v4511 = vrot.slane %v4510, 2
    %v4512 = vadd.f32 %v4510, %v4511
    %v4513 = vrot.slane %v4512, 1
    %v4514 = vadd.f32 %v4512, %v4513
    %v4515 = vmul.f32 %v4507, %v326
    %v4516 = vmul.f32 %v4514, %v326
    %v4517 = vmul.f32 %v4444, %v4444
    %v4518 = vmul.f32 %v4447, %v4447
    %v4519 = vsel %vm218, %v4517, 0.0
    %v4520 = vrot.slane %v4519, 4
    %v4521 = vadd.f32 %v4519, %v4520
    %v4522 = vrot.slane %v4521, 2
    %v4523 = vadd.f32 %v4521, %v4522
    %v4524 = vrot.slane %v4523, 1
    %v4525 = vadd.f32 %v4523, %v4524
    %v4526 = vsel %vm218, %v4518, 0.0
    %v4527 = vrot.slane %v4526, 4
    %v4528 = vadd.f32 %v4526, %v4527
    %v4529 = vrot.slane %v4528, 2
    %v4530 = vadd.f32 %v4528, %v4529
    %v4531 = vrot.slane %v4530, 1
    %v4532 = vadd.f32 %v4530, %v4531
    %v4533 = vmul.f32 %v4525, %v326
    %v4534 = vmul.f32 %v4532, %v326
    %v4535 = vmul.f32 %v4515, %v4515
    %v4536 = vmul.f32 %v4516, %v4516
    %v4537 = vsub.f32 %v4533, %v4535
    %v4538 = vsub.f32 %v4534, %v4536
    %v4539 = vmax.f32 %v4537, 0.0
    %v4540 = vmax.f32 %v4538, 0.0
    %v4541 = vsub.f32 %v4444, %v4515
    %v4542 = vsub.f32 %v4447, %v4516
    %v4543 = vadd.f32 %v4539, 1e-05
    %v4544 = vadd.f32 %v4540, 1e-05
    %v4545 = vrsqrt.pop %v4543
    %v4546 = vrsqrt.pop %v4544
    %v4547 = vmul.f32 %v4541, %v4545
    %v4548 = vmul.f32 %v4542, %v4546
    %v4550 = vlaneseq
    %v4551 = vshrl.u32 %v4550, 7
    %v4552 = vsub.s32 0, %v4551
    %v4553 = vrot.slane %v4498, %v4552
    %v4555 = vmul.f32 %v4547, %v4553
    %v4556 = vmul.f32 %v4548, %v4553
    %v4558 = vlaneseq
    %v4559 = vshrl.u32 %v4558, 7
    %v4560 = vsub.s32 0, %v4559
    %v4561 = vrot.slane %v4500, %v4560
    %v4563 = vadd.f32 %v4555, %v4561
    %v4564 = vadd.f32 %v4556, %v4561
    %s4565 = scalar_lea.vmem [#allocation10], 11
    %v4566 = vld [vmem:[%s4565] sm:$0x1]
    %s4567 = scalar_lea.vmem [#allocation12], 11
    %v4568 = vld [vmem:[%s4567] sm:$0x1]
    %v4569 = vsel %vm218, %v4491, 0.0
    %v4570 = vrot.slane %v4569, 4
    %v4571 = vadd.f32 %v4569, %v4570
    %v4572 = vrot.slane %v4571, 2
    %v4573 = vadd.f32 %v4571, %v4572
    %v4574 = vrot.slane %v4573, 1
    %v4575 = vadd.f32 %v4573, %v4574
    %v4576 = vsel %vm218, %v4494, 0.0
    %v4577 = vrot.slane %v4576, 4
    %v4578 = vadd.f32 %v4576, %v4577
    %v4579 = vrot.slane %v4578, 2
    %v4580 = vadd.f32 %v4578, %v4579
    %v4581 = vrot.slane %v4580, 1
    %v4582 = vadd.f32 %v4580, %v4581
    %v4583 = vmul.f32 %v4575, %v326
    %v4584 = vmul.f32 %v4582, %v326
    %v4585 = vmul.f32 %v4491, %v4491
    %v4586 = vmul.f32 %v4494, %v4494
    %v4587 = vsel %vm218, %v4585, 0.0
    %v4588 = vrot.slane %v4587, 4
    %v4589 = vadd.f32 %v4587, %v4588
    %v4590 = vrot.slane %v4589, 2
    %v4591 = vadd.f32 %v4589, %v4590
    %v4592 = vrot.slane %v4591, 1
    %v4593 = vadd.f32 %v4591, %v4592
    %v4594 = vsel %vm218, %v4586, 0.0
    %v4595 = vrot.slane %v4594, 4
    %v4596 = vadd.f32 %v4594, %v4595
    %v4597 = vrot.slane %v4596, 2
    %v4598 = vadd.f32 %v4596, %v4597
    %v4599 = vrot.slane %v4598, 1
    %v4600 = vadd.f32 %v4598, %v4599
    %v4601 = vmul.f32 %v4593, %v326
    %v4602 = vmul.f32 %v4600, %v326
    %v4603 = vmul.f32 %v4583, %v4583
    %v4604 = vmul.f32 %v4584, %v4584
    %v4605 = vsub.f32 %v4601, %v4603
    %v4606 = vsub.f32 %v4602, %v4604
    %v4607 = vmax.f32 %v4605, 0.0
    %v4608 = vmax.f32 %v4606, 0.0
    %v4609 = vsub.f32 %v4491, %v4583
    %v4610 = vsub.f32 %v4494, %v4584
    %v4611 = vadd.f32 %v4607, 1e-05
    %v4612 = vadd.f32 %v4608, 1e-05
    %v4613 = vrsqrt.pop %v4611
    %v4614 = vrsqrt.pop %v4612
    %v4615 = vmul.f32 %v4609, %v4613
    %v4616 = vmul.f32 %v4610, %v4614
    %v4618 = vlaneseq
    %v4619 = vshrl.u32 %v4618, 7
    %v4620 = vsub.s32 0, %v4619
    %v4621 = vrot.slane %v4566, %v4620
    %v4623 = vmul.f32 %v4615, %v4621
    %v4624 = vmul.f32 %v4616, %v4621
    %v4626 = vlaneseq
    %v4627 = vshrl.u32 %v4626, 7
    %v4628 = vsub.s32 0, %v4627
    %v4629 = vrot.slane %v4568, %v4628
    %v4631 = vadd.f32 %v4623, %v4629
    %v4632 = vadd.f32 %v4624, %v4629
    %v4633 = vxor.u32 %v4631, 2147483648
    %v4634 = vxor.u32 %v4632, 2147483648
    %v4635 = vmul.f32 %v4633, 1.442695
    %v4636 = vpow.pop %v4635
    %v4637 = vmul.f32 %v4634, 1.442695
    %v4638 = vpow.pop %v4637
    %v4639 = vadd.f32 %v4636, 1.0
    %v4640 = vadd.f32 %v4638, 1.0
    %v4641 = vrcp.pop %v4639
    %v4642 = vmul.f32 1.0, %v4641
    %v4643 = vrcp.pop %v4640
    %v4644 = vmul.f32 1.0, %v4643
    %v4645 = vmul.f32 %v4563, %v4642
    %v4646 = vmul.f32 %v4564, %v4644
    %v4647 = vadd.f32 %v4391, %v4645
    %v4648 = vadd.f32 %v4392, %v4646
    %v4649 = vmul.f32 %v4647, 0.70710677
    %v4650 = vmul.f32 %v4648, 0.70710677
    %v4651 = vmax.f32 %v4649, 0.0
    %v4652 = vmax.f32 %v4650, 0.0
    %v4653 = vadd.f32 %v2937, %v4651
    %v4654 = vadd.f32 %v2938, %v4652
    %v4655 = vpack.c.bf16 %v4650, %v4649
    %s4656 = scalar_lea.vmem [#allocation13], 16
    %v4657 = vld [vmem:[%s4656] sm:$0xf]
    %v4658 = vld [vmem:[%s4656 + $0x4] sm:$0xf]
    %v4661 = vunpack.c.l.b16 %v4657
    %v4662 = vunpack.c.l.b16 %v4658
    %v4663 = vpack.c.b16 %v4662, %v4661
    %v4666 = vsel %vm218, %v4655, 0
    %4668 = vmatprep.subr.bf16.mxu0 0
    %4669 = vmatpush1.bf16.msra.mxu0 %v4663
    %4670 = vmatprep.subr.bf16.mxu0 0
    %4671 = vmatpush1.bf16.msra.mxu0 0
    %4672 = vmatprep.subr.bf16.mxu0 0
    %4673 = vmatpush1.bf16.msra.mxu0 0
    %4674 = vmatprep.subr.bf16.mxu0 0
    %4675 = vmatpush1.bf16.msra.mxu0 0
    %4676 = vmatprep.subr.bf16.mxu0 0
    %4677 = vmatpush1.bf16.msra.mxu0 0
    %4678 = vmatprep.subr.bf16.mxu0 0
    %4679 = vmatpush1.bf16.msra.mxu0 0
    %4680 = vmatprep.subr.bf16.mxu0 0
    %4681 = vmatpush1.bf16.msra.mxu0 0
    %4682 = vmatprep.subr.bf16.mxu0 0
    %4683 = vmatpush1.bf16.msra.mxu0 0
    %4684 = vmatprep.subr.bf16.mxu0 0
    %4685 = vmatpush1.bf16.msra.mxu0 0
    %4686 = vmatprep.subr.bf16.mxu0 0
    %4687 = vmatpush1.bf16.msra.mxu0 0
    %4688 = vmatprep.subr.bf16.mxu0 0
    %4689 = vmatpush1.bf16.msra.mxu0 0
    %4690 = vmatprep.subr.bf16.mxu0 0
    %4691 = vmatpush1.bf16.msra.mxu0 0
    %4692 = vmatprep.subr.bf16.mxu0 0
    %4693 = vmatpush1.bf16.msra.mxu0 0
    %4694 = vmatprep.subr.bf16.mxu0 0
    %4695 = vmatpush1.bf16.msra.mxu0 0
    %4696 = vmatprep.subr.bf16.mxu0 0
    %4697 = vmatpush1.bf16.msra.mxu0 0
    %4698 = vmatprep.subr.bf16.mxu0 0
    %4699 = vmatpush1.bf16.msra.mxu0 0
    %4700 = vmatprep.mubr.bf16.mxu0 0
    %4701 = vmatmul.mubr.bf16.gmra.mrb[0].mxu0 %v4666
    %v4702 = vpop.f32.mrb[0].mxu0
    %v4703 = vadd.f32 0.0, %v4702
    %v4704 = vpop.f32.mrb[0].mxu0
    %v4705 = vpop.f32.mrb[0].mxu0
    %v4706 = vadd.f32 0.0, %v4705
    %v4707 = vpop.f32.mrb[0].mxu0
    %4708 = vdwg.mxu0
    %s4709 = scalar_lea.vmem %s12, 2
    %v4710 = vld [vmem:[%s4709] sm:$0x1]
    %s4711 = scalar_lea.vmem [#allocation15], 2
    %v4712 = vld [vmem:[%s4711] sm:$0x1]
    %v4713 = vsel %vm218, %v4703, 0.0
    %v4714 = vrot.slane %v4713, 4
    %v4715 = vadd.f32 %v4713, %v4714
    %v4716 = vrot.slane %v4715, 2
    %v4717 = vadd.f32 %v4715, %v4716
    %v4718 = vrot.slane %v4717, 1
    %v4719 = vadd.f32 %v4717, %v4718
    %v4720 = vsel %vm218, %v4706, 0.0
    %v4721 = vrot.slane %v4720, 4
    %v4722 = vadd.f32 %v4720, %v4721
    %v4723 = vrot.slane %v4722, 2
    %v4724 = vadd.f32 %v4722, %v4723
    %v4725 = vrot.slane %v4724, 1
    %v4726 = vadd.f32 %v4724, %v4725
    %v4727 = vmul.f32 %v4719, %v326
    %v4728 = vmul.f32 %v4726, %v326
    %v4729 = vmul.f32 %v4703, %v4703
    %v4730 = vmul.f32 %v4706, %v4706
    %v4731 = vsel %vm218, %v4729, 0.0
    %v4732 = vrot.slane %v4731, 4
    %v4733 = vadd.f32 %v4731, %v4732
    %v4734 = vrot.slane %v4733, 2
    %v4735 = vadd.f32 %v4733, %v4734
    %v4736 = vrot.slane %v4735, 1
    %v4737 = vadd.f32 %v4735, %v4736
    %v4738 = vsel %vm218, %v4730, 0.0
    %v4739 = vrot.slane %v4738, 4
    %v4740 = vadd.f32 %v4738, %v4739
    %v4741 = vrot.slane %v4740, 2
    %v4742 = vadd.f32 %v4740, %v4741
    %v4743 = vrot.slane %v4742, 1
    %v4744 = vadd.f32 %v4742, %v4743
    %v4745 = vmul.f32 %v4737, %v326
    %v4746 = vmul.f32 %v4744, %v326
    %v4747 = vmul.f32 %v4727, %v4727
    %v4748 = vmul.f32 %v4728, %v4728
    %v4749 = vsub.f32 %v4745, %v4747
    %v4750 = vsub.f32 %v4746, %v4748
    %v4751 = vmax.f32 %v4749, 0.0
    %v4752 = vmax.f32 %v4750, 0.0
    %v4753 = vsub.f32 %v4703, %v4727
    %v4754 = vsub.f32 %v4706, %v4728
    %v4755 = vadd.f32 %v4751, 1e-05
    %v4756 = vadd.f32 %v4752, 1e-05
    %v4757 = vrsqrt.pop %v4755
    %v4758 = vrsqrt.pop %v4756
    %v4759 = vmul.f32 %v4753, %v4757
    %v4760 = vmul.f32 %v4754, %v4758
    %v4762 = vlaneseq
    %v4763 = vshrl.u32 %v4762, 7
    %v4764 = vsub.s32 0, %v4763
    %v4765 = vrot.slane %v4710, %v4764
    %v4767 = vmul.f32 %v4759, %v4765
    %v4768 = vmul.f32 %v4760, %v4765
    %v4770 = vlaneseq
    %v4771 = vshrl.u32 %v4770, 7
    %v4772 = vsub.s32 0, %v4771
    %v4773 = vrot.slane %v4712, %v4772
    %v4775 = vadd.f32 %v4767, %v4773
    %v4776 = vadd.f32 %v4768, %v4773
    %v4777 = vmul.f32 %v4775, %v3655
    %v4778 = vmul.f32 %v4776, %v3656
    %v4779 = vsel %vm218, %v4777, -inf
    %4780 = vmax.xlane.f32.xlu0 %v4779
    %v4781 = vpop.xlane.xlu0 %4780
    %v4782 = vsel %vm218, %v4778, -inf
    %4783 = vmax.xlane.f32.xlu0 %v4782
    %v4784 = vpop.xlane.xlu0 %4783
    %v4785 = vsub.f32 %v4777, %v4781
    %v4786 = vsub.f32 %v4778, %v4784
    %4787 = vrot.lane.b32.xlu0 %v4785, 16
    %v4788 = vpop.permute.xlu0 %4787
    %v4789 = vsel %vm1356, %v4788, %v4785
    %4790 = vrot.lane.b32.xlu0 %v4786, 16
    %v4791 = vpop.permute.xlu0 %4790
    %v4792 = vsel %vm1356, %v4791, %v4786
    %4793 = vrot.lane.b32.xlu0 %v4789, 16
    %v4794 = vpop.permute.xlu0 %4793
    %4795 = vrot.lane.b32.xlu0 %v4792, 16
    %v4796 = vpop.permute.xlu0 %4795
    %v4797 = vsel %vm1356, %v4794, %v4785
    %v4798 = vsel %vm1356, %v4796, %v4786
    %4801 = vrot.lane.b32.xlu0 %v4785, 15
    %v4802 = vpop.permute.xlu0 %4801
    %4803 = vrot.lane.b32.xlu0 %v4786, 15
    %v4804 = vpop.permute.xlu0 %4803
    %vm4807 = vcmp.ge.f32.partialorder %v4797, %v4802
    %vm4808 = vcmp.ge.f32.partialorder %v4798, %v4804
    %v4809 = vsel %vm4807, 1, 0
    %v4810 = vsel %vm4808, 1, 0
    %v4811 = vcvt.s32.f32 %v4809
    %v4812 = vcvt.s32.f32 %v4810
    %v4813 = vadd.f32 %v4811, 1.0
    %v4814 = vadd.f32 %v4812, 1.0
    %v4815 = vmul.f32 %v4811, %v4797
    %v4816 = vmul.f32 %v4812, %v4798
    %4819 = vrot.lane.b32.xlu0 %v4815, 113
    %v4820 = vpop.permute.xlu0 %4819
    %4821 = vrot.lane.b32.xlu0 %v4816, 113
    %v4822 = vpop.permute.xlu0 %4821
    %v4825 = vadd.f32 %v4785, %v4820
    %v4826 = vadd.f32 %v4786, %v4822
    %4827 = vrot.lane.b32.xlu0 %v4785, 14
    %v4828 = vpop.permute.xlu0 %4827
    %4829 = vrot.lane.b32.xlu0 %v4786, 14
    %v4830 = vpop.permute.xlu0 %4829
    %vm4833 = vcmp.ge.f32.partialorder %v4797, %v4828
    %vm4834 = vcmp.ge.f32.partialorder %v4798, %v4830
    %v4835 = vsel %vm4833, 1, 0
    %v4836 = vsel %vm4834, 1, 0
    %v4837 = vcvt.s32.f32 %v4835
    %v4838 = vcvt.s32.f32 %v4836
    %4841 = vrot.lane.b32.xlu0 %v4837, 1
    %v4842 = vpop.permute.xlu0 %4841
    %4843 = vrot.lane.b32.xlu0 %v4838, 1
    %v4844 = vpop.permute.xlu0 %4843
    %v4847 = vadd.f32 %v4813, %v4842
    %v4848 = vadd.f32 %v4814, %v4844
    %v4849 = vmul.f32 %v4837, %v4797
    %v4850 = vmul.f32 %v4838, %v4798
    %4853 = vrot.lane.b32.xlu0 %v4849, 114
    %v4854 = vpop.permute.xlu0 %4853
    %4855 = vrot.lane.b32.xlu0 %v4850, 114
    %v4856 = vpop.permute.xlu0 %4855
    %v4859 = vadd.f32 %v4825, %v4854
    %v4860 = vadd.f32 %v4826, %v4856
    %4861 = vrot.lane.b32.xlu0 %v4785, 13
    %v4862 = vpop.permute.xlu0 %4861
    %4863 = vrot.lane.b32.xlu0 %v4786, 13
    %v4864 = vpop.permute.xlu0 %4863
    %vm4867 = vcmp.ge.f32.partialorder %v4797, %v4862
    %vm4868 = vcmp.ge.f32.partialorder %v4798, %v4864
    %v4869 = vsel %vm4867, 1, 0
    %v4870 = vsel %vm4868, 1, 0
    %v4871 = vcvt.s32.f32 %v4869
    %v4872 = vcvt.s32.f32 %v4870
    %4875 = vrot.lane.b32.xlu0 %v4871, 2
    %v4876 = vpop.permute.xlu0 %4875
    %4877 = vrot.lane.b32.xlu0 %v4872, 2
    %v4878 = vpop.permute.xlu0 %4877
    %v4881 = vadd.f32 %v4847, %v4876
    %v4882 = vadd.f32 %v4848, %v4878
    %v4883 = vmul.f32 %v4871, %v4797
    %v4884 = vmul.f32 %v4872, %v4798
    %4887 = vrot.lane.b32.xlu0 %v4883, 115
    %v4888 = vpop.permute.xlu0 %4887
    %4889 = vrot.lane.b32.xlu0 %v4884, 115
    %v4890 = vpop.permute.xlu0 %4889
    %v4893 = vadd.f32 %v4859, %v4888
    %v4894 = vadd.f32 %v4860, %v4890
    %4895 = vrot.lane.b32.xlu0 %v4785, 12
    %v4896 = vpop.permute.xlu0 %4895
    %4897 = vrot.lane.b32.xlu0 %v4786, 12
    %v4898 = vpop.permute.xlu0 %4897
    %vm4901 = vcmp.ge.f32.partialorder %v4797, %v4896
    %vm4902 = vcmp.ge.f32.partialorder %v4798, %v4898
    %v4903 = vsel %vm4901, 1, 0
    %v4904 = vsel %vm4902, 1, 0
    %v4905 = vcvt.s32.f32 %v4903
    %v4906 = vcvt.s32.f32 %v4904
    %4909 = vrot.lane.b32.xlu0 %v4905, 3
    %v4910 = vpop.permute.xlu0 %4909
    %4911 = vrot.lane.b32.xlu0 %v4906, 3
    %v4912 = vpop.permute.xlu0 %4911
    %v4915 = vadd.f32 %v4881, %v4910
    %v4916 = vadd.f32 %v4882, %v4912
    %v4917 = vmul.f32 %v4905, %v4797
    %v4918 = vmul.f32 %v4906, %v4798
    %4921 = vrot.lane.b32.xlu0 %v4917, 116
    %v4922 = vpop.permute.xlu0 %4921
    %4923 = vrot.lane.b32.xlu0 %v4918, 116
    %v4924 = vpop.permute.xlu0 %4923
    %v4927 = vadd.f32 %v4893, %v4922
    %v4928 = vadd.f32 %v4894, %v4924
    %4929 = vrot.lane.b32.xlu0 %v4785, 11
    %v4930 = vpop.permute.xlu0 %4929
    %4931 = vrot.lane.b32.xlu0 %v4786, 11
    %v4932 = vpop.permute.xlu0 %4931
    %vm4935 = vcmp.ge.f32.partialorder %v4797, %v4930
    %vm4936 = vcmp.ge.f32.partialorder %v4798, %v4932
    %v4937 = vsel %vm4935, 1, 0
    %v4938 = vsel %vm4936, 1, 0
    %v4939 = vcvt.s32.f32 %v4937
    %v4940 = vcvt.s32.f32 %v4938
    %4943 = vrot.lane.b32.xlu0 %v4939, 4
    %v4944 = vpop.permute.xlu0 %4943
    %4945 = vrot.lane.b32.xlu0 %v4940, 4
    %v4946 = vpop.permute.xlu0 %4945
    %v4949 = vadd.f32 %v4915, %v4944
    %v4950 = vadd.f32 %v4916, %v4946
    %v4951 = vmul.f32 %v4939, %v4797
    %v4952 = vmul.f32 %v4940, %v4798
    %4955 = vrot.lane.b32.xlu0 %v4951, 117
    %v4956 = vpop.permute.xlu0 %4955
    %4957 = vrot.lane.b32.xlu0 %v4952, 117
    %v4958 = vpop.permute.xlu0 %4957
    %v4961 = vadd.f32 %v4927, %v4956
    %v4962 = vadd.f32 %v4928, %v4958
    %4963 = vrot.lane.b32.xlu0 %v4785, 10
    %v4964 = vpop.permute.xlu0 %4963
    %4965 = vrot.lane.b32.xlu0 %v4786, 10
    %v4966 = vpop.permute.xlu0 %4965
    %vm4969 = vcmp.ge.f32.partialorder %v4797, %v4964
    %vm4970 = vcmp.ge.f32.partialorder %v4798, %v4966
    %v4971 = vsel %vm4969, 1, 0
    %v4972 = vsel %vm4970, 1, 0
    %v4973 = vcvt.s32.f32 %v4971
    %v4974 = vcvt.s32.f32 %v4972
    %4977 = vrot.lane.b32.xlu0 %v4973, 5
    %v4978 = vpop.permute.xlu0 %4977
    %4979 = vrot.lane.b32.xlu0 %v4974, 5
    %v4980 = vpop.permute.xlu0 %4979
    %v4983 = vadd.f32 %v4949, %v4978
    %v4984 = vadd.f32 %v4950, %v4980
    %v4985 = vmul.f32 %v4973, %v4797
    %v4986 = vmul.f32 %v4974, %v4798
    %4989 = vrot.lane.b32.xlu0 %v4985, 118
    %v4990 = vpop.permute.xlu0 %4989
    %4991 = vrot.lane.b32.xlu0 %v4986, 118
    %v4992 = vpop.permute.xlu0 %4991
    %v4995 = vadd.f32 %v4961, %v4990
    %v4996 = vadd.f32 %v4962, %v4992
    %4997 = vrot.lane.b32.xlu0 %v4785, 9
    %v4998 = vpop.permute.xlu0 %4997
    %4999 = vrot.lane.b32.xlu0 %v4786, 9
    %v5000 = vpop.permute.xlu0 %4999
    %vm5003 = vcmp.ge.f32.partialorder %v4797, %v4998
    %vm5004 = vcmp.ge.f32.partialorder %v4798, %v5000
    %v5005 = vsel %vm5003, 1, 0
    %v5006 = vsel %vm5004, 1, 0
    %v5007 = vcvt.s32.f32 %v5005
    %v5008 = vcvt.s32.f32 %v5006
    %5011 = vrot.lane.b32.xlu0 %v5007, 6
    %v5012 = vpop.permute.xlu0 %5011
    %5013 = vrot.lane.b32.xlu0 %v5008, 6
    %v5014 = vpop.permute.xlu0 %5013
    %v5017 = vadd.f32 %v4983, %v5012
    %v5018 = vadd.f32 %v4984, %v5014
    %v5019 = vmul.f32 %v5007, %v4797
    %v5020 = vmul.f32 %v5008, %v4798
    %5023 = vrot.lane.b32.xlu0 %v5019, 119
    %v5024 = vpop.permute.xlu0 %5023
    %5025 = vrot.lane.b32.xlu0 %v5020, 119
    %v5026 = vpop.permute.xlu0 %5025
    %v5029 = vadd.f32 %v4995, %v5024
    %v5030 = vadd.f32 %v4996, %v5026
    %5031 = vrot.lane.b32.xlu0 %v4785, 8
    %v5032 = vpop.permute.xlu0 %5031
    %5033 = vrot.lane.b32.xlu0 %v4786, 8
    %v5034 = vpop.permute.xlu0 %5033
    %vm5037 = vcmp.ge.f32.partialorder %v4797, %v5032
    %vm5038 = vcmp.ge.f32.partialorder %v4798, %v5034
    %v5039 = vsel %vm5037, 1, 0
    %v5040 = vsel %vm5038, 1, 0
    %v5041 = vcvt.s32.f32 %v5039
    %v5042 = vcvt.s32.f32 %v5040
    %5045 = vrot.lane.b32.xlu0 %v5041, 7
    %v5046 = vpop.permute.xlu0 %5045
    %5047 = vrot.lane.b32.xlu0 %v5042, 7
    %v5048 = vpop.permute.xlu0 %5047
    %v5051 = vadd.f32 %v5017, %v5046
    %v5052 = vadd.f32 %v5018, %v5048
    %v5053 = vmul.f32 %v5041, %v4797
    %v5054 = vmul.f32 %v5042, %v4798
    %5057 = vrot.lane.b32.xlu0 %v5053, 120
    %v5058 = vpop.permute.xlu0 %5057
    %5059 = vrot.lane.b32.xlu0 %v5054, 120
    %v5060 = vpop.permute.xlu0 %5059
    %v5063 = vadd.f32 %v5029, %v5058
    %v5064 = vadd.f32 %v5030, %v5060
    %5065 = vrot.lane.b32.xlu0 %v4785, 7
    %v5066 = vpop.permute.xlu0 %5065
    %5067 = vrot.lane.b32.xlu0 %v4786, 7
    %v5068 = vpop.permute.xlu0 %5067
    %vm5071 = vcmp.ge.f32.partialorder %v4797, %v5066
    %vm5072 = vcmp.ge.f32.partialorder %v4798, %v5068
    %v5073 = vsel %vm5071, 1, 0
    %v5074 = vsel %vm5072, 1, 0
    %v5075 = vcvt.s32.f32 %v5073
    %v5076 = vcvt.s32.f32 %v5074
    %5079 = vrot.lane.b32.xlu0 %v5075, 8
    %v5080 = vpop.permute.xlu0 %5079
    %5081 = vrot.lane.b32.xlu0 %v5076, 8
    %v5082 = vpop.permute.xlu0 %5081
    %v5085 = vadd.f32 %v5051, %v5080
    %v5086 = vadd.f32 %v5052, %v5082
    %v5087 = vmul.f32 %v5075, %v4797
    %v5088 = vmul.f32 %v5076, %v4798
    %5091 = vrot.lane.b32.xlu0 %v5087, 121
    %v5092 = vpop.permute.xlu0 %5091
    %5093 = vrot.lane.b32.xlu0 %v5088, 121
    %v5094 = vpop.permute.xlu0 %5093
    %v5097 = vadd.f32 %v5063, %v5092
    %v5098 = vadd.f32 %v5064, %v5094
    %5099 = vrot.lane.b32.xlu0 %v4785, 6
    %v5100 = vpop.permute.xlu0 %5099
    %5101 = vrot.lane.b32.xlu0 %v4786, 6
    %v5102 = vpop.permute.xlu0 %5101
    %vm5105 = vcmp.ge.f32.partialorder %v4797, %v5100
    %vm5106 = vcmp.ge.f32.partialorder %v4798, %v5102
    %v5107 = vsel %vm5105, 1, 0
    %v5108 = vsel %vm5106, 1, 0
    %v5109 = vcvt.s32.f32 %v5107
    %v5110 = vcvt.s32.f32 %v5108
    %5113 = vrot.lane.b32.xlu0 %v5109, 9
    %v5114 = vpop.permute.xlu0 %5113
    %5115 = vrot.lane.b32.xlu0 %v5110, 9
    %v5116 = vpop.permute.xlu0 %5115
    %v5119 = vadd.f32 %v5085, %v5114
    %v5120 = vadd.f32 %v5086, %v5116
    %v5121 = vmul.f32 %v5109, %v4797
    %v5122 = vmul.f32 %v5110, %v4798
    %5125 = vrot.lane.b32.xlu0 %v5121, 122
    %v5126 = vpop.permute.xlu0 %5125
    %5127 = vrot.lane.b32.xlu0 %v5122, 122
    %v5128 = vpop.permute.xlu0 %5127
    %v5131 = vadd.f32 %v5097, %v5126
    %v5132 = vadd.f32 %v5098, %v5128
    %5133 = vrot.lane.b32.xlu0 %v4785, 5
    %v5134 = vpop.permute.xlu0 %5133
    %5135 = vrot.lane.b32.xlu0 %v4786, 5
    %v5136 = vpop.permute.xlu0 %5135
    %vm5139 = vcmp.ge.f32.partialorder %v4797, %v5134
    %vm5140 = vcmp.ge.f32.partialorder %v4798, %v5136
    %v5141 = vsel %vm5139, 1, 0
    %v5142 = vsel %vm5140, 1, 0
    %v5143 = vcvt.s32.f32 %v5141
    %v5144 = vcvt.s32.f32 %v5142
    %5147 = vrot.lane.b32.xlu0 %v5143, 10
    %v5148 = vpop.permute.xlu0 %5147
    %5149 = vrot.lane.b32.xlu0 %v5144, 10
    %v5150 = vpop.permute.xlu0 %5149
    %v5153 = vadd.f32 %v5119, %v5148
    %v5154 = vadd.f32 %v5120, %v5150
    %v5155 = vmul.f32 %v5143, %v4797
    %v5156 = vmul.f32 %v5144, %v4798
    %5159 = vrot.lane.b32.xlu0 %v5155, 123
    %v5160 = vpop.permute.xlu0 %5159
    %5161 = vrot.lane.b32.xlu0 %v5156, 123
    %v5162 = vpop.permute.xlu0 %5161
    %v5165 = vadd.f32 %v5131, %v5160
    %v5166 = vadd.f32 %v5132, %v5162
    %5167 = vrot.lane.b32.xlu0 %v4785, 4
    %v5168 = vpop.permute.xlu0 %5167
    %5169 = vrot.lane.b32.xlu0 %v4786, 4
    %v5170 = vpop.permute.xlu0 %5169
    %vm5173 = vcmp.ge.f32.partialorder %v4797, %v5168
    %vm5174 = vcmp.ge.f32.partialorder %v4798, %v5170
    %v5175 = vsel %vm5173, 1, 0
    %v5176 = vsel %vm5174, 1, 0
    %v5177 = vcvt.s32.f32 %v5175
    %v5178 = vcvt.s32.f32 %v5176
    %5181 = vrot.lane.b32.xlu0 %v5177, 11
    %v5182 = vpop.permute.xlu0 %5181
    %5183 = vrot.lane.b32.xlu0 %v5178, 11
    %v5184 = vpop.permute.xlu0 %5183
    %v5187 = vadd.f32 %v5153, %v5182
    %v5188 = vadd.f32 %v5154, %v5184
    %v5189 = vmul.f32 %v5177, %v4797
    %v5190 = vmul.f32 %v5178, %v4798
    %5193 = vrot.lane.b32.xlu0 %v5189, 124
    %v5194 = vpop.permute.xlu0 %5193
    %5195 = vrot.lane.b32.xlu0 %v5190, 124
    %v5196 = vpop.permute.xlu0 %5195
    %v5199 = vadd.f32 %v5165, %v5194
    %v5200 = vadd.f32 %v5166, %v5196
    %5201 = vrot.lane.b32.xlu0 %v4785, 3
    %v5202 = vpop.permute.xlu0 %5201
    %5203 = vrot.lane.b32.xlu0 %v4786, 3
    %v5204 = vpop.permute.xlu0 %5203
    %vm5207 = vcmp.ge.f32.partialorder %v4797, %v5202
    %vm5208 = vcmp.ge.f32.partialorder %v4798, %v5204
    %v5209 = vsel %vm5207, 1, 0
    %v5210 = vsel %vm5208, 1, 0
    %v5211 = vcvt.s32.f32 %v5209
    %v5212 = vcvt.s32.f32 %v5210
    %5215 = vrot.lane.b32.xlu0 %v5211, 12
    %v5216 = vpop.permute.xlu0 %5215
    %5217 = vrot.lane.b32.xlu0 %v5212, 12
    %v5218 = vpop.permute.xlu0 %5217
    %v5221 = vadd.f32 %v5187, %v5216
    %v5222 = vadd.f32 %v5188, %v5218
    %v5223 = vmul.f32 %v5211, %v4797
    %v5224 = vmul.f32 %v5212, %v4798
    %5227 = vrot.lane.b32.xlu0 %v5223, 125
    %v5228 = vpop.permute.xlu0 %5227
    %5229 = vrot.lane.b32.xlu0 %v5224, 125
    %v5230 = vpop.permute.xlu0 %5229
    %v5233 = vadd.f32 %v5199, %v5228
    %v5234 = vadd.f32 %v5200, %v5230
    %5235 = vrot.lane.b32.xlu0 %v4785, 2
    %v5236 = vpop.permute.xlu0 %5235
    %5237 = vrot.lane.b32.xlu0 %v4786, 2
    %v5238 = vpop.permute.xlu0 %5237
    %vm5241 = vcmp.ge.f32.partialorder %v4797, %v5236
    %vm5242 = vcmp.ge.f32.partialorder %v4798, %v5238
    %v5243 = vsel %vm5241, 1, 0
    %v5244 = vsel %vm5242, 1, 0
    %v5245 = vcvt.s32.f32 %v5243
    %v5246 = vcvt.s32.f32 %v5244
    %5249 = vrot.lane.b32.xlu0 %v5245, 13
    %v5250 = vpop.permute.xlu0 %5249
    %5251 = vrot.lane.b32.xlu0 %v5246, 13
    %v5252 = vpop.permute.xlu0 %5251
    %v5255 = vadd.f32 %v5221, %v5250
    %v5256 = vadd.f32 %v5222, %v5252
    %v5257 = vmul.f32 %v5245, %v4797
    %v5258 = vmul.f32 %v5246, %v4798
    %5261 = vrot.lane.b32.xlu0 %v5257, 126
    %v5262 = vpop.permute.xlu0 %5261
    %5263 = vrot.lane.b32.xlu0 %v5258, 126
    %v5264 = vpop.permute.xlu0 %5263
    %v5267 = vadd.f32 %v5233, %v5262
    %v5268 = vadd.f32 %v5234, %v5264
    %5269 = vrot.lane.b32.xlu0 %v4785, 1
    %v5270 = vpop.permute.xlu0 %5269
    %5271 = vrot.lane.b32.xlu0 %v4786, 1
    %v5272 = vpop.permute.xlu0 %5271
    %vm5275 = vcmp.ge.f32.partialorder %v4797, %v5270
    %vm5276 = vcmp.ge.f32.partialorder %v4798, %v5272
    %v5277 = vsel %vm5275, 1, 0
    %v5278 = vsel %vm5276, 1, 0
    %v5279 = vcvt.s32.f32 %v5277
    %v5280 = vcvt.s32.f32 %v5278
    %5283 = vrot.lane.b32.xlu0 %v5279, 14
    %v5284 = vpop.permute.xlu0 %5283
    %5285 = vrot.lane.b32.xlu0 %v5280, 14
    %v5286 = vpop.permute.xlu0 %5285
    %v5289 = vadd.f32 %v5255, %v5284
    %v5290 = vadd.f32 %v5256, %v5286
    %v5291 = vmul.f32 %v5279, %v4797
    %v5292 = vmul.f32 %v5280, %v4798
    %5295 = vrot.lane.b32.xlu0 %v5291, 127
    %v5296 = vpop.permute.xlu0 %5295
    %5297 = vrot.lane.b32.xlu0 %v5292, 127
    %v5298 = vpop.permute.xlu0 %5297
    %v5301 = vadd.f32 %v5267, %v5296
    %v5302 = vadd.f32 %v5268, %v5298
    %v5303 = vmul.f32 %v5289, %v4802
    %v5304 = vmul.f32 %v5290, %v4804
    %v5305 = vadd.f32 %v5303, 1.0
    %v5306 = vadd.f32 %v5304, 1.0
    %5309 = vrot.lane.b32.xlu0 %v5301, 15
    %v5310 = vpop.permute.xlu0 %5309
    %5311 = vrot.lane.b32.xlu0 %v5302, 15
    %v5312 = vpop.permute.xlu0 %5311
    %vm5315 = vcmp.gt.f32.partialorder %v5305, %v5310
    %vm5316 = vcmp.gt.f32.partialorder %v5306, %v5312
    %v5317 = vsel %vm5315, 1, 0
    %v5318 = vsel %vm5316, 1, 0
    %v5319 = vcvt.s32.f32 %v5317
    %v5320 = vcvt.s32.f32 %v5318
    %5323 = vrot.lane.b32.xlu0 %v5319, 113
    %v5324 = vpop.permute.xlu0 %5323
    %5325 = vrot.lane.b32.xlu0 %v5320, 113
    %v5326 = vpop.permute.xlu0 %5325
    %v5329 = vsel %vm218, %v5324, 0.0
    %5330 = vadd.xlane.f32.xlu0 %v5329
    %v5331 = vpop.xlane.xlu0 %5330
    %v5332 = vsel %vm218, %v5326, 0.0
    %5333 = vadd.xlane.f32.xlu0 %v5332
    %v5334 = vpop.xlane.xlu0 %5333
    %v5335 = vmul.f32 %v4785, %v5324
    %v5336 = vmul.f32 %v4786, %v5326
    %v5337 = vsel %vm218, %v5335, 0.0
    %5338 = vadd.xlane.f32.xlu0 %v5337
    %v5339 = vpop.xlane.xlu0 %5338
    %v5340 = vsel %vm218, %v5336, 0.0
    %5341 = vadd.xlane.f32.xlu0 %v5340
    %v5342 = vpop.xlane.xlu0 %5341
    %v5343 = vsub.f32 %v5339, 1.0
    %v5344 = vsub.f32 %v5342, 1.0
    %v5345 = vrcp.pop %v5331
    %v5346 = vmul.f32 %v5343, %v5345
    %v5347 = vrcp.pop %v5334
    %v5348 = vmul.f32 %v5344, %v5347
    %v5349 = vsub.f32 %v4785, %v5346
    %v5350 = vsub.f32 %v4786, %v5348
    %v5351 = vmax.f32 %v5349, 0.0
    %v5352 = vmax.f32 %v5350, 0.0
    %v5353 = vadd.f32 %v5351, 1e-15
    %v5354 = vadd.f32 %v5352, 1e-15
    %v5355 = vlog2.pop %v5353
    %v5356 = vmul.f32 %v5355, 0.6931472
    %v5357 = vlog2.pop %v5354
    %v5358 = vmul.f32 %v5357, 0.6931472
    %v5359 = vmul.f32 %v5351, %v5356
    %v5360 = vmul.f32 %v5352, %v5358
    %v5361 = vsel %vm218, %v5359, 0.0
    %5362 = vadd.xlane.f32.xlu0 %v5361
    %v5363 = vpop.xlane.xlu0 %5362
    %v5364 = vsel %vm218, %v5360, 0.0
    %5365 = vadd.xlane.f32.xlu0 %v5364
    %v5366 = vpop.xlane.xlu0 %5365
    %v5367 = vadd.f32 %v3651, %v5363
    %v5368 = vadd.f32 %v3652, %v5366
    %v5369 = vmul.f32 %v5351, %v205
    %v5370 = vmul.f32 %v5352, %v206
    %v5371 = vpack.c.bf16 %v5370, %v5369
    %v5373 = vsel %vm218, %v5371, 0
    %5375 = vmatprep.subr.bf16.mxu0 0
    %5376 = vmatpush1.bf16.msra.mxu0 %v216
    %5377 = vmatprep.subr.bf16.mxu0 0
    %5378 = vmatpush1.bf16.msra.mxu0 0
    %5379 = vmatprep.subr.bf16.mxu0 0
    %5380 = vmatpush1.bf16.msra.mxu0 0
    %5381 = vmatprep.subr.bf16.mxu0 0
    %5382 = vmatpush1.bf16.msra.mxu0 0
    %5383 = vmatprep.subr.bf16.mxu0 0
    %5384 = vmatpush1.bf16.msra.mxu0 0
    %5385 = vmatprep.subr.bf16.mxu0 0
    %5386 = vmatpush1.bf16.msra.mxu0 0
    %5387 = vmatprep.subr.bf16.mxu0 0
    %5388 = vmatpush1.bf16.msra.mxu0 0
    %5389 = vmatprep.subr.bf16.mxu0 0
    %5390 = vmatpush1.bf16.msra.mxu0 0
    %5391 = vmatprep.subr.bf16.mxu0 0
    %5392 = vmatpush1.bf16.msra.mxu0 0
    %5393 = vmatprep.subr.bf16.mxu0 0
    %5394 = vmatpush1.bf16.msra.mxu0 0
    %5395 = vmatprep.subr.bf16.mxu0 0
    %5396 = vmatpush1.bf16.msra.mxu0 0
    %5397 = vmatprep.subr.bf16.mxu0 0
    %5398 = vmatpush1.bf16.msra.mxu0 0
    %5399 = vmatprep.subr.bf16.mxu0 0
    %5400 = vmatpush1.bf16.msra.mxu0 0
    %5401 = vmatprep.subr.bf16.mxu0 0
    %5402 = vmatpush1.bf16.msra.mxu0 0
    %5403 = vmatprep.subr.bf16.mxu0 0
    %5404 = vmatpush1.bf16.msra.mxu0 0
    %5405 = vmatprep.subr.bf16.mxu0 0
    %5406 = vmatpush1.bf16.msra.mxu0 0
    %5407 = vmatprep.mubr.bf16.mxu0 0
    %5408 = vmatmul.mubr.bf16.gmra.mrb[0].mxu0 %v5373
    %v5409 = vpop.f32.mrb[0].mxu0
    %v5410 = vadd.f32 0.0, %v5409
    %v5411 = vpop.f32.mrb[0].mxu0
    %v5412 = vpop.f32.mrb[0].mxu0
    %v5413 = vadd.f32 0.0, %v5412
    %v5414 = vpop.f32.mrb[0].mxu0
    %5415 = vdwg.mxu0
    %5416 = vmatprep.subr.bf16.mxu0 0
    %5417 = vmatpush1.bf16.msra.mxu0 %v267
    %5418 = vmatprep.subr.bf16.mxu0 0
    %5419 = vmatpush1.bf16.msra.mxu0 0
    %5420 = vmatprep.subr.bf16.mxu0 0
    %5421 = vmatpush1.bf16.msra.mxu0 0
    %5422 = vmatprep.subr.bf16.mxu0 0
    %5423 = vmatpush1.bf16.msra.mxu0 0
    %5424 = vmatprep.subr.bf16.mxu0 0
    %5425 = vmatpush1.bf16.msra.mxu0 0
    %5426 = vmatprep.subr.bf16.mxu0 0
    %5427 = vmatpush1.bf16.msra.mxu0 0
    %5428 = vmatprep.subr.bf16.mxu0 0
    %5429 = vmatpush1.bf16.msra.mxu0 0
    %5430 = vmatprep.subr.bf16.mxu0 0
    %5431 = vmatpush1.bf16.msra.mxu0 0
    %5432 = vmatprep.subr.bf16.mxu0 0
    %5433 = vmatpush1.bf16.msra.mxu0 0
    %5434 = vmatprep.subr.bf16.mxu0 0
    %5435 = vmatpush1.bf16.msra.mxu0 0
    %5436 = vmatprep.subr.bf16.mxu0 0
    %5437 = vmatpush1.bf16.msra.mxu0 0
    %5438 = vmatprep.subr.bf16.mxu0 0
    %5439 = vmatpush1.bf16.msra.mxu0 0
    %5440 = vmatprep.subr.bf16.mxu0 0
    %5441 = vmatpush1.bf16.msra.mxu0 0
    %5442 = vmatprep.subr.bf16.mxu0 0
    %5443 = vmatpush1.bf16.msra.mxu0 0
    %5444 = vmatprep.subr.bf16.mxu0 0
    %5445 = vmatpush1.bf16.msra.mxu0 0
    %5446 = vmatprep.subr.bf16.mxu0 0
    %5447 = vmatpush1.bf16.msra.mxu0 0
    %5448 = vmatprep.mubr.bf16.mxu0 0
    %5449 = vmatmul.mubr.bf16.gmra.mrb[0].mxu0 %v5373
    %v5450 = vpop.f32.mrb[0].mxu0
    %v5451 = vadd.f32 0.0, %v5450
    %v5452 = vpop.f32.mrb[0].mxu0
    %v5453 = vpop.f32.mrb[0].mxu0
    %v5454 = vadd.f32 0.0, %v5453
    %v5455 = vpop.f32.mrb[0].mxu0
    %5456 = vdwg.mxu0
    %s5457 = scalar_lea.vmem [#allocation7], 12
    %v5458 = vld [vmem:[%s5457] sm:$0x1]
    %s5459 = scalar_lea.vmem [#allocation9], 12
    %v5460 = vld [vmem:[%s5459] sm:$0x1]
    %v5461 = vsel %vm218, %v5410, 0.0
    %v5462 = vrot.slane %v5461, 4
    %v5463 = vadd.f32 %v5461, %v5462
    %v5464 = vrot.slane %v5463, 2
    %v5465 = vadd.f32 %v5463, %v5464
    %v5466 = vrot.slane %v5465, 1
    %v5467 = vadd.f32 %v5465, %v5466
    %v5468 = vsel %vm218, %v5413, 0.0
    %v5469 = vrot.slane %v5468, 4
    %v5470 = vadd.f32 %v5468, %v5469
    %v5471 = vrot.slane %v5470, 2
    %v5472 = vadd.f32 %v5470, %v5471
    %v5473 = vrot.slane %v5472, 1
    %v5474 = vadd.f32 %v5472, %v5473
    %v5475 = vmul.f32 %v5467, %v326
    %v5476 = vmul.f32 %v5474, %v326
    %v5477 = vmul.f32 %v5410, %v5410
    %v5478 = vmul.f32 %v5413, %v5413
    %v5479 = vsel %vm218, %v5477, 0.0
    %v5480 = vrot.slane %v5479, 4
    %v5481 = vadd.f32 %v5479, %v5480
    %v5482 = vrot.slane %v5481, 2
    %v5483 = vadd.f32 %v5481, %v5482
    %v5484 = vrot.slane %v5483, 1
    %v5485 = vadd.f32 %v5483, %v5484
    %v5486 = vsel %vm218, %v5478, 0.0
    %v5487 = vrot.slane %v5486, 4
    %v5488 = vadd.f32 %v5486, %v5487
    %v5489 = vrot.slane %v5488, 2
    %v5490 = vadd.f32 %v5488, %v5489
    %v5491 = vrot.slane %v5490, 1
    %v5492 = vadd.f32 %v5490, %v5491
    %v5493 = vmul.f32 %v5485, %v326
    %v5494 = vmul.f32 %v5492, %v326
    %v5495 = vmul.f32 %v5475, %v5475
    %v5496 = vmul.f32 %v5476, %v5476
    %v5497 = vsub.f32 %v5493, %v5495
    %v5498 = vsub.f32 %v5494, %v5496
    %v5499 = vmax.f32 %v5497, 0.0
    %v5500 = vmax.f32 %v5498, 0.0
    %v5501 = vsub.f32 %v5410, %v5475
    %v5502 = vsub.f32 %v5413, %v5476
    %v5503 = vadd.f32 %v5499, 1e-05
    %v5504 = vadd.f32 %v5500, 1e-05
    %v5505 = vrsqrt.pop %v5503
    %v5506 = vrsqrt.pop %v5504
    %v5507 = vmul.f32 %v5501, %v5505
    %v5508 = vmul.f32 %v5502, %v5506
    %v5510 = vlaneseq
    %v5511 = vshrl.u32 %v5510, 7
    %v5512 = vsub.s32 0, %v5511
    %v5513 = vrot.slane %v5458, %v5512
    %v5515 = vmul.f32 %v5507, %v5513
    %v5516 = vmul.f32 %v5508, %v5513
    %v5518 = vlaneseq
    %v5519 = vshrl.u32 %v5518, 7
    %v5520 = vsub.s32 0, %v5519
    %v5521 = vrot.slane %v5460, %v5520
    %v5523 = vadd.f32 %v5515, %v5521
    %v5524 = vadd.f32 %v5516, %v5521
    %s5525 = scalar_lea.vmem [#allocation10], 12
    %v5526 = vld [vmem:[%s5525] sm:$0x1]
    %s5527 = scalar_lea.vmem [#allocation12], 12
    %v5528 = vld [vmem:[%s5527] sm:$0x1]
    %v5529 = vsel %vm218, %v5451, 0.0
    %v5530 = vrot.slane %v5529, 4
    %v5531 = vadd.f32 %v5529, %v5530
    %v5532 = vrot.slane %v5531, 2
    %v5533 = vadd.f32 %v5531, %v5532
    %v5534 = vrot.slane %v5533, 1
    %v5535 = vadd.f32 %v5533, %v5534
    %v5536 = vsel %vm218, %v5454, 0.0
    %v5537 = vrot.slane %v5536, 4
    %v5538 = vadd.f32 %v5536, %v5537
    %v5539 = vrot.slane %v5538, 2
    %v5540 = vadd.f32 %v5538, %v5539
    %v5541 = vrot.slane %v5540, 1
    %v5542 = vadd.f32 %v5540, %v5541
    %v5543 = vmul.f32 %v5535, %v326
    %v5544 = vmul.f32 %v5542, %v326
    %v5545 = vmul.f32 %v5451, %v5451
    %v5546 = vmul.f32 %v5454, %v5454
    %v5547 = vsel %vm218, %v5545, 0.0
    %v5548 = vrot.slane %v5547, 4
    %v5549 = vadd.f32 %v5547, %v5548
    %v5550 = vrot.slane %v5549, 2
    %v5551 = vadd.f32 %v5549, %v5550
    %v5552 = vrot.slane %v5551, 1
    %v5553 = vadd.f32 %v5551, %v5552
    %v5554 = vsel %vm218, %v5546, 0.0
    %v5555 = vrot.slane %v5554, 4
    %v5556 = vadd.f32 %v5554, %v5555
    %v5557 = vrot.slane %v5556, 2
    %v5558 = vadd.f32 %v5556, %v5557
    %v5559 = vrot.slane %v5558, 1
    %v5560 = vadd.f32 %v5558, %v5559
    %v5561 = vmul.f32 %v5553, %v326
    %v5562 = vmul.f32 %v5560, %v326
    %v5563 = vmul.f32 %v5543, %v5543
    %v5564 = vmul.f32 %v5544, %v5544
    %v5565 = vsub.f32 %v5561, %v5563
    %v5566 = vsub.f32 %v5562, %v5564
    %v5567 = vmax.f32 %v5565, 0.0
    %v5568 = vmax.f32 %v5566, 0.0
    %v5569 = vsub.f32 %v5451, %v5543
    %v5570 = vsub.f32 %v5454, %v5544
    %v5571 = vadd.f32 %v5567, 1e-05
    %v5572 = vadd.f32 %v5568, 1e-05
    %v5573 = vrsqrt.pop %v5571
    %v5574 = vrsqrt.pop %v5572
    %v5575 = vmul.f32 %v5569, %v5573
    %v5576 = vmul.f32 %v5570, %v5574
    %v5578 = vlaneseq
    %v5579 = vshrl.u32 %v5578, 7
    %v5580 = vsub.s32 0, %v5579
    %v5581 = vrot.slane %v5526, %v5580
    %v5583 = vmul.f32 %v5575, %v5581
    %v5584 = vmul.f32 %v5576, %v5581
    %v5586 = vlaneseq
    %v5587 = vshrl.u32 %v5586, 7
    %v5588 = vsub.s32 0, %v5587
    %v5589 = vrot.slane %v5528, %v5588
    %v5591 = vadd.f32 %v5583, %v5589
    %v5592 = vadd.f32 %v5584, %v5589
    %v5593 = vxor.u32 %v5591, 2147483648
    %v5594 = vxor.u32 %v5592, 2147483648
    %v5595 = vmul.f32 %v5593, 1.442695
    %v5596 = vpow.pop %v5595
    %v5597 = vmul.f32 %v5594, 1.442695
    %v5598 = vpow.pop %v5597
    %v5599 = vadd.f32 %v5596, 1.0
    %v5600 = vadd.f32 %v5598, 1.0
    %v5601 = vrcp.pop %v5599
    %v5602 = vmul.f32 1.0, %v5601
    %v5603 = vrcp.pop %v5600
    %v5604 = vmul.f32 1.0, %v5603
    %v5605 = vmul.f32 %v5523, %v5602
    %v5606 = vmul.f32 %v5524, %v5604
    %v5607 = vpack.c.bf16 %v5606, %v5605
    %v5609 = vsel %vm218, %v5607, 0
    %5611 = vmatprep.subr.bf16.mxu0 0
    %5612 = vmatpush1.bf16.msra.mxu0 %v466
    %5613 = vmatprep.subr.bf16.mxu0 0
    %5614 = vmatpush1.bf16.msra.mxu0 0
    %5615 = vmatprep.subr.bf16.mxu0 0
    %5616 = vmatpush1.bf16.msra.mxu0 0
    %5617 = vmatprep.subr.bf16.mxu0 0
    %5618 = vmatpush1.bf16.msra.mxu0 0
    %5619 = vmatprep.subr.bf16.mxu0 0
    %5620 = vmatpush1.bf16.msra.mxu0 0
    %5621 = vmatprep.subr.bf16.mxu0 0
    %5622 = vmatpush1.bf16.msra.mxu0 0
    %5623 = vmatprep.subr.bf16.mxu0 0
    %5624 = vmatpush1.bf16.msra.mxu0 0
    %5625 = vmatprep.subr.bf16.mxu0 0
    %5626 = vmatpush1.bf16.msra.mxu0 0
    %5627 = vmatprep.subr.bf16.mxu0 0
    %5628 = vmatpush1.bf16.msra.mxu0 0
    %5629 = vmatprep.subr.bf16.mxu0 0
    %5630 = vmatpush1.bf16.msra.mxu0 0
    %5631 = vmatprep.subr.bf16.mxu0 0
    %5632 = vmatpush1.bf16.msra.mxu0 0
    %5633 = vmatprep.subr.bf16.mxu0 0
    %5634 = vmatpush1.bf16.msra.mxu0 0
    %5635 = vmatprep.subr.bf16.mxu0 0
    %5636 = vmatpush1.bf16.msra.mxu0 0
    %5637 = vmatprep.subr.bf16.mxu0 0
    %5638 = vmatpush1.bf16.msra.mxu0 0
    %5639 = vmatprep.subr.bf16.mxu0 0
    %5640 = vmatpush1.bf16.msra.mxu0 0
    %5641 = vmatprep.subr.bf16.mxu0 0
    %5642 = vmatpush1.bf16.msra.mxu0 0
    %5643 = vmatprep.mubr.bf16.mxu0 0
    %5644 = vmatmul.mubr.bf16.gmra.mrb[0].mxu0 %v5609
    %v5645 = vpop.f32.mrb[0].mxu0
    %v5646 = vadd.f32 0.0, %v5645
    %v5647 = vpop.f32.mrb[0].mxu0
    %v5648 = vpop.f32.mrb[0].mxu0
    %v5649 = vadd.f32 0.0, %v5648
    %v5650 = vpop.f32.mrb[0].mxu0
    %5651 = vdwg.mxu0
    %5652 = vmatprep.subr.bf16.mxu0 0
    %5653 = vmatpush1.bf16.msra.mxu0 %v516
    %5654 = vmatprep.subr.bf16.mxu0 0
    %5655 = vmatpush1.bf16.msra.mxu0 0
    %5656 = vmatprep.subr.bf16.mxu0 0
    %5657 = vmatpush1.bf16.msra.mxu0 0
    %5658 = vmatprep.subr.bf16.mxu0 0
    %5659 = vmatpush1.bf16.msra.mxu0 0
    %5660 = vmatprep.subr.bf16.mxu0 0
    %5661 = vmatpush1.bf16.msra.mxu0 0
    %5662 = vmatprep.subr.bf16.mxu0 0
    %5663 = vmatpush1.bf16.msra.mxu0 0
    %5664 = vmatprep.subr.bf16.mxu0 0
    %5665 = vmatpush1.bf16.msra.mxu0 0
    %5666 = vmatprep.subr.bf16.mxu0 0
    %5667 = vmatpush1.bf16.msra.mxu0 0
    %5668 = vmatprep.subr.bf16.mxu0 0
    %5669 = vmatpush1.bf16.msra.mxu0 0
    %5670 = vmatprep.subr.bf16.mxu0 0
    %5671 = vmatpush1.bf16.msra.mxu0 0
    %5672 = vmatprep.subr.bf16.mxu0 0
    %5673 = vmatpush1.bf16.msra.mxu0 0
    %5674 = vmatprep.subr.bf16.mxu0 0
    %5675 = vmatpush1.bf16.msra.mxu0 0
    %5676 = vmatprep.subr.bf16.mxu0 0
    %5677 = vmatpush1.bf16.msra.mxu0 0
    %5678 = vmatprep.subr.bf16.mxu0 0
    %5679 = vmatpush1.bf16.msra.mxu0 0
    %5680 = vmatprep.subr.bf16.mxu0 0
    %5681 = vmatpush1.bf16.msra.mxu0 0
    %5682 = vmatprep.subr.bf16.mxu0 0
    %5683 = vmatpush1.bf16.msra.mxu0 0
    %5684 = vmatprep.mubr.bf16.mxu0 0
    %5685 = vmatmul.mubr.bf16.gmra.mrb[0].mxu0 %v5609
    %v5686 = vpop.f32.mrb[0].mxu0
    %v5687 = vadd.f32 0.0, %v5686
    %v5688 = vpop.f32.mrb[0].mxu0
    %v5689 = vpop.f32.mrb[0].mxu0
    %v5690 = vadd.f32 0.0, %v5689
    %v5691 = vpop.f32.mrb[0].mxu0
    %5692 = vdwg.mxu0
    %s5693 = scalar_lea.vmem [#allocation7], 13
    %v5694 = vld [vmem:[%s5693] sm:$0x1]
    %s5695 = scalar_lea.vmem [#allocation9], 13
    %v5696 = vld [vmem:[%s5695] sm:$0x1]
    %v5697 = vsel %vm218, %v5646, 0.0
    %v5698 = vrot.slane %v5697, 4
    %v5699 = vadd.f32 %v5697, %v5698
    %v5700 = vrot.slane %v5699, 2
    %v5701 = vadd.f32 %v5699, %v5700
    %v5702 = vrot.slane %v5701, 1
    %v5703 = vadd.f32 %v5701, %v5702
    %v5704 = vsel %vm218, %v5649, 0.0
    %v5705 = vrot.slane %v5704, 4
    %v5706 = vadd.f32 %v5704, %v5705
    %v5707 = vrot.slane %v5706, 2
    %v5708 = vadd.f32 %v5706, %v5707
    %v5709 = vrot.slane %v5708, 1
    %v5710 = vadd.f32 %v5708, %v5709
    %v5711 = vmul.f32 %v5703, %v326
    %v5712 = vmul.f32 %v5710, %v326
    %v5713 = vmul.f32 %v5646, %v5646
    %v5714 = vmul.f32 %v5649, %v5649
    %v5715 = vsel %vm218, %v5713, 0.0
    %v5716 = vrot.slane %v5715, 4
    %v5717 = vadd.f32 %v5715, %v5716
    %v5718 = vrot.slane %v5717, 2
    %v5719 = vadd.f32 %v5717, %v5718
    %v5720 = vrot.slane %v5719, 1
    %v5721 = vadd.f32 %v5719, %v5720
    %v5722 = vsel %vm218, %v5714, 0.0
    %v5723 = vrot.slane %v5722, 4
    %v5724 = vadd.f32 %v5722, %v5723
    %v5725 = vrot.slane %v5724, 2
    %v5726 = vadd.f32 %v5724, %v5725
    %v5727 = vrot.slane %v5726, 1
    %v5728 = vadd.f32 %v5726, %v5727
    %v5729 = vmul.f32 %v5721, %v326
    %v5730 = vmul.f32 %v5728, %v326
    %v5731 = vmul.f32 %v5711, %v5711
    %v5732 = vmul.f32 %v5712, %v5712
    %v5733 = vsub.f32 %v5729, %v5731
    %v5734 = vsub.f32 %v5730, %v5732
    %v5735 = vmax.f32 %v5733, 0.0
    %v5736 = vmax.f32 %v5734, 0.0
    %v5737 = vsub.f32 %v5646, %v5711
    %v5738 = vsub.f32 %v5649, %v5712
    %v5739 = vadd.f32 %v5735, 1e-05
    %v5740 = vadd.f32 %v5736, 1e-05
    %v5741 = vrsqrt.pop %v5739
    %v5742 = vrsqrt.pop %v5740
    %v5743 = vmul.f32 %v5737, %v5741
    %v5744 = vmul.f32 %v5738, %v5742
    %v5746 = vlaneseq
    %v5747 = vshrl.u32 %v5746, 7
    %v5748 = vsub.s32 0, %v5747
    %v5749 = vrot.slane %v5694, %v5748
    %v5751 = vmul.f32 %v5743, %v5749
    %v5752 = vmul.f32 %v5744, %v5749
    %v5754 = vlaneseq
    %v5755 = vshrl.u32 %v5754, 7
    %v5756 = vsub.s32 0, %v5755
    %v5757 = vrot.slane %v5696, %v5756
    %v5759 = vadd.f32 %v5751, %v5757
    %v5760 = vadd.f32 %v5752, %v5757
    %s5761 = scalar_lea.vmem [#allocation10], 13
    %v5762 = vld [vmem:[%s5761] sm:$0x1]
    %s5763 = scalar_lea.vmem [#allocation12], 13
    %v5764 = vld [vmem:[%s5763] sm:$0x1]
    %v5765 = vsel %vm218, %v5687, 0.0
    %v5766 = vrot.slane %v5765, 4
    %v5767 = vadd.f32 %v5765, %v5766
    %v5768 = vrot.slane %v5767, 2
    %v5769 = vadd.f32 %v5767, %v5768
    %v5770 = vrot.slane %v5769, 1
    %v5771 = vadd.f32 %v5769, %v5770
    %v5772 = vsel %vm218, %v5690, 0.0
    %v5773 = vrot.slane %v5772, 4
    %v5774 = vadd.f32 %v5772, %v5773
    %v5775 = vrot.slane %v5774, 2
    %v5776 = vadd.f32 %v5774, %v5775
    %v5777 = vrot.slane %v5776, 1
    %v5778 = vadd.f32 %v5776, %v5777
    %v5779 = vmul.f32 %v5771, %v326
    %v5780 = vmul.f32 %v5778, %v326
    %v5781 = vmul.f32 %v5687, %v5687
    %v5782 = vmul.f32 %v5690, %v5690
    %v5783 = vsel %vm218, %v5781, 0.0
    %v5784 = vrot.slane %v5783, 4
    %v5785 = vadd.f32 %v5783, %v5784
    %v5786 = vrot.slane %v5785, 2
    %v5787 = vadd.f32 %v5785, %v5786
    %v5788 = vrot.slane %v5787, 1
    %v5789 = vadd.f32 %v5787, %v5788
    %v5790 = vsel %vm218, %v5782, 0.0
    %v5791 = vrot.slane %v5790, 4
    %v5792 = vadd.f32 %v5790, %v5791
    %v5793 = vrot.slane %v5792, 2
    %v5794 = vadd.f32 %v5792, %v5793
    %v5795 = vrot.slane %v5794, 1
    %v5796 = vadd.f32 %v5794, %v5795
    %v5797 = vmul.f32 %v5789, %v326
    %v5798 = vmul.f32 %v5796, %v326
    %v5799 = vmul.f32 %v5779, %v5779
    %v5800 = vmul.f32 %v5780, %v5780
    %v5801 = vsub.f32 %v5797, %v5799
    %v5802 = vsub.f32 %v5798, %v5800
    %v5803 = vmax.f32 %v5801, 0.0
    %v5804 = vmax.f32 %v5802, 0.0
    %v5805 = vsub.f32 %v5687, %v5779
    %v5806 = vsub.f32 %v5690, %v5780
    %v5807 = vadd.f32 %v5803, 1e-05
    %v5808 = vadd.f32 %v5804, 1e-05
    %v5809 = vrsqrt.pop %v5807
    %v5810 = vrsqrt.pop %v5808
    %v5811 = vmul.f32 %v5805, %v5809
    %v5812 = vmul.f32 %v5806, %v5810
    %v5814 = vlaneseq
    %v5815 = vshrl.u32 %v5814, 7
    %v5816 = vsub.s32 0, %v5815
    %v5817 = vrot.slane %v5762, %v5816
    %v5819 = vmul.f32 %v5811, %v5817
    %v5820 = vmul.f32 %v5812, %v5817
    %v5822 = vlaneseq
    %v5823 = vshrl.u32 %v5822, 7
    %v5824 = vsub.s32 0, %v5823
    %v5825 = vrot.slane %v5764, %v5824
    %v5827 = vadd.f32 %v5819, %v5825
    %v5828 = vadd.f32 %v5820, %v5825
    %v5829 = vxor.u32 %v5827, 2147483648
    %v5830 = vxor.u32 %v5828, 2147483648
    %v5831 = vmul.f32 %v5829, 1.442695
    %v5832 = vpow.pop %v5831
    %v5833 = vmul.f32 %v5830, 1.442695
    %v5834 = vpow.pop %v5833
    %v5835 = vadd.f32 %v5832, 1.0
    %v5836 = vadd.f32 %v5834, 1.0
    %v5837 = vrcp.pop %v5835
    %v5838 = vmul.f32 1.0, %v5837
    %v5839 = vrcp.pop %v5836
    %v5840 = vmul.f32 1.0, %v5839
    %v5841 = vmul.f32 %v5759, %v5838
    %v5842 = vmul.f32 %v5760, %v5840
    %v5843 = vadd.f32 %v5605, %v5841
    %v5844 = vadd.f32 %v5606, %v5842
    %v5845 = vmul.f32 %v5843, 0.70710677
    %v5846 = vmul.f32 %v5844, 0.70710677
    %v5847 = vpack.c.bf16 %v5846, %v5845
    %s5848 = scalar_lea.vmem %s5, 56
    %v5849 = vld [vmem:[%s5848] sm:$0xf]
    %v5850 = vld [vmem:[%s5848 + $0x4] sm:$0xf]
    %s5851 = scalar_lea.vmem [#allocation6], 56
    %v5852 = vld [vmem:[%s5851] sm:$0xf]
    %v5853 = vld [vmem:[%s5851 + $0x4] sm:$0xf]
    %v5856 = vunpack.c.l.b16 %v5849
    %v5857 = vunpack.c.l.b16 %v5850
    %v5858 = vpack.c.b16 %v5857, %v5856
    %v5861 = vsel %vm218, %v5847, 0
    %5863 = vmatprep.subr.bf16.mxu0 0
    %5864 = vmatpush1.bf16.msra.mxu0 %v5858
    %5865 = vmatprep.subr.bf16.mxu0 0
    %5866 = vmatpush1.bf16.msra.mxu0 0
    %5867 = vmatprep.subr.bf16.mxu0 0
    %5868 = vmatpush1.bf16.msra.mxu0 0
    %5869 = vmatprep.subr.bf16.mxu0 0
    %5870 = vmatpush1.bf16.msra.mxu0 0
    %5871 = vmatprep.subr.bf16.mxu0 0
    %5872 = vmatpush1.bf16.msra.mxu0 0
    %5873 = vmatprep.subr.bf16.mxu0 0
    %5874 = vmatpush1.bf16.msra.mxu0 0
    %5875 = vmatprep.subr.bf16.mxu0 0
    %5876 = vmatpush1.bf16.msra.mxu0 0
    %5877 = vmatprep.subr.bf16.mxu0 0
    %5878 = vmatpush1.bf16.msra.mxu0 0
    %5879 = vmatprep.subr.bf16.mxu0 0
    %5880 = vmatpush1.bf16.msra.mxu0 0
    %5881 = vmatprep.subr.bf16.mxu0 0
    %5882 = vmatpush1.bf16.msra.mxu0 0
    %5883 = vmatprep.subr.bf16.mxu0 0
    %5884 = vmatpush1.bf16.msra.mxu0 0
    %5885 = vmatprep.subr.bf16.mxu0 0
    %5886 = vmatpush1.bf16.msra.mxu0 0
    %5887 = vmatprep.subr.bf16.mxu0 0
    %5888 = vmatpush1.bf16.msra.mxu0 0
    %5889 = vmatprep.subr.bf16.mxu0 0
    %5890 = vmatpush1.bf16.msra.mxu0 0
    %5891 = vmatprep.subr.bf16.mxu0 0
    %5892 = vmatpush1.bf16.msra.mxu0 0
    %5893 = vmatprep.subr.bf16.mxu0 0
    %5894 = vmatpush1.bf16.msra.mxu0 0
    %5895 = vmatprep.mubr.bf16.mxu0 0
    %5896 = vmatmul.mubr.bf16.gmra.mrb[0].mxu0 %v5861
    %v5897 = vpop.f32.mrb[0].mxu0
    %v5898 = vadd.f32 0.0, %v5897
    %v5899 = vpop.f32.mrb[0].mxu0
    %v5900 = vpop.f32.mrb[0].mxu0
    %v5901 = vadd.f32 0.0, %v5900
    %v5902 = vpop.f32.mrb[0].mxu0
    %5903 = vdwg.mxu0
    %v5906 = vunpack.c.l.b16 %v5852
    %v5907 = vunpack.c.l.b16 %v5853
    %v5908 = vpack.c.b16 %v5907, %v5906
    %5910 = vmatprep.subr.bf16.mxu0 0
    %5911 = vmatpush1.bf16.msra.mxu0 %v5908
    %5912 = vmatprep.subr.bf16.mxu0 0
    %5913 = vmatpush1.bf16.msra.mxu0 0
    %5914 = vmatprep.subr.bf16.mxu0 0
    %5915 = vmatpush1.bf16.msra.mxu0 0
    %5916 = vmatprep.subr.bf16.mxu0 0
    %5917 = vmatpush1.bf16.msra.mxu0 0
    %5918 = vmatprep.subr.bf16.mxu0 0
    %5919 = vmatpush1.bf16.msra.mxu0 0
    %5920 = vmatprep.subr.bf16.mxu0 0
    %5921 = vmatpush1.bf16.msra.mxu0 0
    %5922 = vmatprep.subr.bf16.mxu0 0
    %5923 = vmatpush1.bf16.msra.mxu0 0
    %5924 = vmatprep.subr.bf16.mxu0 0
    %5925 = vmatpush1.bf16.msra.mxu0 0
    %5926 = vmatprep.subr.bf16.mxu0 0
    %5927 = vmatpush1.bf16.msra.mxu0 0
    %5928 = vmatprep.subr.bf16.mxu0 0
    %5929 = vmatpush1.bf16.msra.mxu0 0
    %5930 = vmatprep.subr.bf16.mxu0 0
    %5931 = vmatpush1.bf16.msra.mxu0 0
    %5932 = vmatprep.subr.bf16.mxu0 0
    %5933 = vmatpush1.bf16.msra.mxu0 0
    %5934 = vmatprep.subr.bf16.mxu0 0
    %5935 = vmatpush1.bf16.msra.mxu0 0
    %5936 = vmatprep.subr.bf16.mxu0 0
    %5937 = vmatpush1.bf16.msra.mxu0 0
    %5938 = vmatprep.subr.bf16.mxu0 0
    %5939 = vmatpush1.bf16.msra.mxu0 0
    %5940 = vmatprep.subr.bf16.mxu0 0
    %5941 = vmatpush1.bf16.msra.mxu0 0
    %5942 = vmatprep.mubr.bf16.mxu0 0
    %5943 = vmatmul.mubr.bf16.gmra.mrb[0].mxu0 %v5861
    %v5944 = vpop.f32.mrb[0].mxu0
    %v5945 = vadd.f32 0.0, %v5944
    %v5946 = vpop.f32.mrb[0].mxu0
    %v5947 = vpop.f32.mrb[0].mxu0
    %v5948 = vadd.f32 0.0, %v5947
    %v5949 = vpop.f32.mrb[0].mxu0
    %5950 = vdwg.mxu0
    %s5951 = scalar_lea.vmem [#allocation7], 14
    %v5952 = vld [vmem:[%s5951] sm:$0x1]
    %s5953 = scalar_lea.vmem [#allocation9], 14
    %v5954 = vld [vmem:[%s5953] sm:$0x1]
    %v5955 = vsel %vm218, %v5898, 0.0
    %v5956 = vrot.slane %v5955, 4
    %v5957 = vadd.f32 %v5955, %v5956
    %v5958 = vrot.slane %v5957, 2
    %v5959 = vadd.f32 %v5957, %v5958
    %v5960 = vrot.slane %v5959, 1
    %v5961 = vadd.f32 %v5959, %v5960
    %v5962 = vsel %vm218, %v5901, 0.0
    %v5963 = vrot.slane %v5962, 4
    %v5964 = vadd.f32 %v5962, %v5963
    %v5965 = vrot.slane %v5964, 2
    %v5966 = vadd.f32 %v5964, %v5965
    %v5967 = vrot.slane %v5966, 1
    %v5968 = vadd.f32 %v5966, %v5967
    %v5969 = vmul.f32 %v5961, %v326
    %v5970 = vmul.f32 %v5968, %v326
    %v5971 = vmul.f32 %v5898, %v5898
    %v5972 = vmul.f32 %v5901, %v5901
    %v5973 = vsel %vm218, %v5971, 0.0
    %v5974 = vrot.slane %v5973, 4
    %v5975 = vadd.f32 %v5973, %v5974
    %v5976 = vrot.slane %v5975, 2
    %v5977 = vadd.f32 %v5975, %v5976
    %v5978 = vrot.slane %v5977, 1
    %v5979 = vadd.f32 %v5977, %v5978
    %v5980 = vsel %vm218, %v5972, 0.0
    %v5981 = vrot.slane %v5980, 4
    %v5982 = vadd.f32 %v5980, %v5981
    %v5983 = vrot.slane %v5982, 2
    %v5984 = vadd.f32 %v5982, %v5983
    %v5985 = vrot.slane %v5984, 1
    %v5986 = vadd.f32 %v5984, %v5985
    %v5987 = vmul.f32 %v5979, %v326
    %v5988 = vmul.f32 %v5986, %v326
    %v5989 = vmul.f32 %v5969, %v5969
    %v5990 = vmul.f32 %v5970, %v5970
    %v5991 = vsub.f32 %v5987, %v5989
    %v5992 = vsub.f32 %v5988, %v5990
    %v5993 = vmax.f32 %v5991, 0.0
    %v5994 = vmax.f32 %v5992, 0.0
    %v5995 = vsub.f32 %v5898, %v5969
    %v5996 = vsub.f32 %v5901, %v5970
    %v5997 = vadd.f32 %v5993, 1e-05
    %v5998 = vadd.f32 %v5994, 1e-05
    %v5999 = vrsqrt.pop %v5997
    %v6000 = vrsqrt.pop %v5998
    %v6001 = vmul.f32 %v5995, %v5999
    %v6002 = vmul.f32 %v5996, %v6000
    %v6004 = vlaneseq
    %v6005 = vshrl.u32 %v6004, 7
    %v6006 = vsub.s32 0, %v6005
    %v6007 = vrot.slane %v5952, %v6006
    %v6009 = vmul.f32 %v6001, %v6007
    %v6010 = vmul.f32 %v6002, %v6007
    %v6012 = vlaneseq
    %v6013 = vshrl.u32 %v6012, 7
    %v6014 = vsub.s32 0, %v6013
    %v6015 = vrot.slane %v5954, %v6014
    %v6017 = vadd.f32 %v6009, %v6015
    %v6018 = vadd.f32 %v6010, %v6015
    %s6019 = scalar_lea.vmem [#allocation10], 14
    %v6020 = vld [vmem:[%s6019] sm:$0x1]
    %s6021 = scalar_lea.vmem [#allocation12], 14
    %v6022 = vld [vmem:[%s6021] sm:$0x1]
    %v6023 = vsel %vm218, %v5945, 0.0
    %v6024 = vrot.slane %v6023, 4
    %v6025 = vadd.f32 %v6023, %v6024
    %v6026 = vrot.slane %v6025, 2
    %v6027 = vadd.f32 %v6025, %v6026
    %v6028 = vrot.slane %v6027, 1
    %v6029 = vadd.f32 %v6027, %v6028
    %v6030 = vsel %vm218, %v5948, 0.0
    %v6031 = vrot.slane %v6030, 4
    %v6032 = vadd.f32 %v6030, %v6031
    %v6033 = vrot.slane %v6032, 2
    %v6034 = vadd.f32 %v6032, %v6033
    %v6035 = vrot.slane %v6034, 1
    %v6036 = vadd.f32 %v6034, %v6035
    %v6037 = vmul.f32 %v6029, %v326
    %v6038 = vmul.f32 %v6036, %v326
    %v6039 = vmul.f32 %v5945, %v5945
    %v6040 = vmul.f32 %v5948, %v5948
    %v6041 = vsel %vm218, %v6039, 0.0
    %v6042 = vrot.slane %v6041, 4
    %v6043 = vadd.f32 %v6041, %v6042
    %v6044 = vrot.slane %v6043, 2
    %v6045 = vadd.f32 %v6043, %v6044
    %v6046 = vrot.slane %v6045, 1
    %v6047 = vadd.f32 %v6045, %v6046
    %v6048 = vsel %vm218, %v6040, 0.0
    %v6049 = vrot.slane %v6048, 4
    %v6050 = vadd.f32 %v6048, %v6049
    %v6051 = vrot.slane %v6050, 2
    %v6052 = vadd.f32 %v6050, %v6051
    %v6053 = vrot.slane %v6052, 1
    %v6054 = vadd.f32 %v6052, %v6053
    %v6055 = vmul.f32 %v6047, %v326
    %v6056 = vmul.f32 %v6054, %v326
    %v6057 = vmul.f32 %v6037, %v6037
    %v6058 = vmul.f32 %v6038, %v6038
    %v6059 = vsub.f32 %v6055, %v6057
    %v6060 = vsub.f32 %v6056, %v6058
    %v6061 = vmax.f32 %v6059, 0.0
    %v6062 = vmax.f32 %v6060, 0.0
    %v6063 = vsub.f32 %v5945, %v6037
    %v6064 = vsub.f32 %v5948, %v6038
    %v6065 = vadd.f32 %v6061, 1e-05
    %v6066 = vadd.f32 %v6062, 1e-05
    %v6067 = vrsqrt.pop %v6065
    %v6068 = vrsqrt.pop %v6066
    %v6069 = vmul.f32 %v6063, %v6067
    %v6070 = vmul.f32 %v6064, %v6068
    %v6072 = vlaneseq
    %v6073 = vshrl.u32 %v6072, 7
    %v6074 = vsub.s32 0, %v6073
    %v6075 = vrot.slane %v6020, %v6074
    %v6077 = vmul.f32 %v6069, %v6075
    %v6078 = vmul.f32 %v6070, %v6075
    %v6080 = vlaneseq
    %v6081 = vshrl.u32 %v6080, 7
    %v6082 = vsub.s32 0, %v6081
    %v6083 = vrot.slane %v6022, %v6082
    %v6085 = vadd.f32 %v6077, %v6083
    %v6086 = vadd.f32 %v6078, %v6083
    %v6087 = vxor.u32 %v6085, 2147483648
    %v6088 = vxor.u32 %v6086, 2147483648
    %v6089 = vmul.f32 %v6087, 1.442695
    %v6090 = vpow.pop %v6089
    %v6091 = vmul.f32 %v6088, 1.442695
    %v6092 = vpow.pop %v6091
    %v6093 = vadd.f32 %v6090, 1.0
    %v6094 = vadd.f32 %v6092, 1.0
    %v6095 = vrcp.pop %v6093
    %v6096 = vmul.f32 1.0, %v6095
    %v6097 = vrcp.pop %v6094
    %v6098 = vmul.f32 1.0, %v6097
    %v6099 = vmul.f32 %v6017, %v6096
    %v6100 = vmul.f32 %v6018, %v6098
    %v6101 = vadd.f32 %v5845, %v6099
    %v6102 = vadd.f32 %v5846, %v6100
    %v6103 = vmul.f32 %v6101, 0.70710677
    %v6104 = vmul.f32 %v6102, 0.70710677
    %v6105 = vpack.c.bf16 %v6104, %v6103
    %s6106 = scalar_lea.vmem %s5, 64
    %v6107 = vld [vmem:[%s6106] sm:$0xf]
    %v6108 = vld [vmem:[%s6106 + $0x4] sm:$0xf]
    %s6109 = scalar_lea.vmem [#allocation6], 64
    %v6110 = vld [vmem:[%s6109] sm:$0xf]
    %v6111 = vld [vmem:[%s6109 + $0x4] sm:$0xf]
    %v6114 = vunpack.c.l.b16 %v6107
    %v6115 = vunpack.c.l.b16 %v6108
    %v6116 = vpack.c.b16 %v6115, %v6114
    %v6119 = vsel %vm218, %v6105, 0
    %6121 = vmatprep.subr.bf16.mxu0 0
    %6122 = vmatpush1.bf16.msra.mxu0 %v6116
    %6123 = vmatprep.subr.bf16.mxu0 0
    %6124 = vmatpush1.bf16.msra.mxu0 0
    %6125 = vmatprep.subr.bf16.mxu0 0
    %6126 = vmatpush1.bf16.msra.mxu0 0
    %6127 = vmatprep.subr.bf16.mxu0 0
    %6128 = vmatpush1.bf16.msra.mxu0 0
    %6129 = vmatprep.subr.bf16.mxu0 0
    %6130 = vmatpush1.bf16.msra.mxu0 0
    %6131 = vmatprep.subr.bf16.mxu0 0
    %6132 = vmatpush1.bf16.msra.mxu0 0
    %6133 = vmatprep.subr.bf16.mxu0 0
    %6134 = vmatpush1.bf16.msra.mxu0 0
    %6135 = vmatprep.subr.bf16.mxu0 0
    %6136 = vmatpush1.bf16.msra.mxu0 0
    %6137 = vmatprep.subr.bf16.mxu0 0
    %6138 = vmatpush1.bf16.msra.mxu0 0
    %6139 = vmatprep.subr.bf16.mxu0 0
    %6140 = vmatpush1.bf16.msra.mxu0 0
    %6141 = vmatprep.subr.bf16.mxu0 0
    %6142 = vmatpush1.bf16.msra.mxu0 0
    %6143 = vmatprep.subr.bf16.mxu0 0
    %6144 = vmatpush1.bf16.msra.mxu0 0
    %6145 = vmatprep.subr.bf16.mxu0 0
    %6146 = vmatpush1.bf16.msra.mxu0 0
    %6147 = vmatprep.subr.bf16.mxu0 0
    %6148 = vmatpush1.bf16.msra.mxu0 0
    %6149 = vmatprep.subr.bf16.mxu0 0
    %6150 = vmatpush1.bf16.msra.mxu0 0
    %6151 = vmatprep.subr.bf16.mxu0 0
    %6152 = vmatpush1.bf16.msra.mxu0 0
    %6153 = vmatprep.mubr.bf16.mxu0 0
    %6154 = vmatmul.mubr.bf16.gmra.mrb[0].mxu0 %v6119
    %v6155 = vpop.f32.mrb[0].mxu0
    %v6156 = vadd.f32 0.0, %v6155
    %v6157 = vpop.f32.mrb[0].mxu0
    %v6158 = vpop.f32.mrb[0].mxu0
    %v6159 = vadd.f32 0.0, %v6158
    %v6160 = vpop.f32.mrb[0].mxu0
    %6161 = vdwg.mxu0
    %v6164 = vunpack.c.l.b16 %v6110
    %v6165 = vunpack.c.l.b16 %v6111
    %v6166 = vpack.c.b16 %v6165, %v6164
    %6168 = vmatprep.subr.bf16.mxu0 0
    %6169 = vmatpush1.bf16.msra.mxu0 %v6166
    %6170 = vmatprep.subr.bf16.mxu0 0
    %6171 = vmatpush1.bf16.msra.mxu0 0
    %6172 = vmatprep.subr.bf16.mxu0 0
    %6173 = vmatpush1.bf16.msra.mxu0 0
    %6174 = vmatprep.subr.bf16.mxu0 0
    %6175 = vmatpush1.bf16.msra.mxu0 0
    %6176 = vmatprep.subr.bf16.mxu0 0
    %6177 = vmatpush1.bf16.msra.mxu0 0
    %6178 = vmatprep.subr.bf16.mxu0 0
    %6179 = vmatpush1.bf16.msra.mxu0 0
    %6180 = vmatprep.subr.bf16.mxu0 0
    %6181 = vmatpush1.bf16.msra.mxu0 0
    %6182 = vmatprep.subr.bf16.mxu0 0
    %6183 = vmatpush1.bf16.msra.mxu0 0
    %6184 = vmatprep.subr.bf16.mxu0 0
    %6185 = vmatpush1.bf16.msra.mxu0 0
    %6186 = vmatprep.subr.bf16.mxu0 0
    %6187 = vmatpush1.bf16.msra.mxu0 0
    %6188 = vmatprep.subr.bf16.mxu0 0
    %6189 = vmatpush1.bf16.msra.mxu0 0
    %6190 = vmatprep.subr.bf16.mxu0 0
    %6191 = vmatpush1.bf16.msra.mxu0 0
    %6192 = vmatprep.subr.bf16.mxu0 0
    %6193 = vmatpush1.bf16.msra.mxu0 0
    %6194 = vmatprep.subr.bf16.mxu0 0
    %6195 = vmatpush1.bf16.msra.mxu0 0
    %6196 = vmatprep.subr.bf16.mxu0 0
    %6197 = vmatpush1.bf16.msra.mxu0 0
    %6198 = vmatprep.subr.bf16.mxu0 0
    %6199 = vmatpush1.bf16.msra.mxu0 0
    %6200 = vmatprep.mubr.bf16.mxu0 0
    %6201 = vmatmul.mubr.bf16.gmra.mrb[0].mxu0 %v6119
    %v6202 = vpop.f32.mrb[0].mxu0
    %v6203 = vadd.f32 0.0, %v6202
    %v6204 = vpop.f32.mrb[0].mxu0
    %v6205 = vpop.f32.mrb[0].mxu0
    %v6206 = vadd.f32 0.0, %v6205
    %v6207 = vpop.f32.mrb[0].mxu0
    %6208 = vdwg.mxu0
    %s6209 = scalar_lea.vmem [#allocation7], 15
    %v6210 = vld [vmem:[%s6209] sm:$0x1]
    %s6211 = scalar_lea.vmem [#allocation9], 15
    %v6212 = vld [vmem:[%s6211] sm:$0x1]
    %v6213 = vsel %vm218, %v6156, 0.0
    %v6214 = vrot.slane %v6213, 4
    %v6215 = vadd.f32 %v6213, %v6214
    %v6216 = vrot.slane %v6215, 2
    %v6217 = vadd.f32 %v6215, %v6216
    %v6218 = vrot.slane %v6217, 1
    %v6219 = vadd.f32 %v6217, %v6218
    %v6220 = vsel %vm218, %v6159, 0.0
    %v6221 = vrot.slane %v6220, 4
    %v6222 = vadd.f32 %v6220, %v6221
    %v6223 = vrot.slane %v6222, 2
    %v6224 = vadd.f32 %v6222, %v6223
    %v6225 = vrot.slane %v6224, 1
    %v6226 = vadd.f32 %v6224, %v6225
    %v6227 = vmul.f32 %v6219, %v326
    %v6228 = vmul.f32 %v6226, %v326
    %v6229 = vmul.f32 %v6156, %v6156
    %v6230 = vmul.f32 %v6159, %v6159
    %v6231 = vsel %vm218, %v6229, 0.0
    %v6232 = vrot.slane %v6231, 4
    %v6233 = vadd.f32 %v6231, %v6232
    %v6234 = vrot.slane %v6233, 2
    %v6235 = vadd.f32 %v6233, %v6234
    %v6236 = vrot.slane %v6235, 1
    %v6237 = vadd.f32 %v6235, %v6236
    %v6238 = vsel %vm218, %v6230, 0.0
    %v6239 = vrot.slane %v6238, 4
    %v6240 = vadd.f32 %v6238, %v6239
    %v6241 = vrot.slane %v6240, 2
    %v6242 = vadd.f32 %v6240, %v6241
    %v6243 = vrot.slane %v6242, 1
    %v6244 = vadd.f32 %v6242, %v6243
    %v6245 = vmul.f32 %v6237, %v326
    %v6246 = vmul.f32 %v6244, %v326
    %v6247 = vmul.f32 %v6227, %v6227
    %v6248 = vmul.f32 %v6228, %v6228
    %v6249 = vsub.f32 %v6245, %v6247
    %v6250 = vsub.f32 %v6246, %v6248
    %v6251 = vmax.f32 %v6249, 0.0
    %v6252 = vmax.f32 %v6250, 0.0
    %v6253 = vsub.f32 %v6156, %v6227
    %v6254 = vsub.f32 %v6159, %v6228
    %v6255 = vadd.f32 %v6251, 1e-05
    %v6256 = vadd.f32 %v6252, 1e-05
    %v6257 = vrsqrt.pop %v6255
    %v6258 = vrsqrt.pop %v6256
    %v6259 = vmul.f32 %v6253, %v6257
    %v6260 = vmul.f32 %v6254, %v6258
    %v6262 = vlaneseq
    %v6263 = vshrl.u32 %v6262, 7
    %v6264 = vsub.s32 0, %v6263
    %v6265 = vrot.slane %v6210, %v6264
    %v6267 = vmul.f32 %v6259, %v6265
    %v6268 = vmul.f32 %v6260, %v6265
    %v6270 = vlaneseq
    %v6271 = vshrl.u32 %v6270, 7
    %v6272 = vsub.s32 0, %v6271
    %v6273 = vrot.slane %v6212, %v6272
    %v6275 = vadd.f32 %v6267, %v6273
    %v6276 = vadd.f32 %v6268, %v6273
    %s6277 = scalar_lea.vmem [#allocation10], 15
    %v6278 = vld [vmem:[%s6277] sm:$0x1]
    %s6279 = scalar_lea.vmem [#allocation12], 15
    %v6280 = vld [vmem:[%s6279] sm:$0x1]
    %v6281 = vsel %vm218, %v6203, 0.0
    %v6282 = vrot.slane %v6281, 4
    %v6283 = vadd.f32 %v6281, %v6282
    %v6284 = vrot.slane %v6283, 2
    %v6285 = vadd.f32 %v6283, %v6284
    %v6286 = vrot.slane %v6285, 1
    %v6287 = vadd.f32 %v6285, %v6286
    %v6288 = vsel %vm218, %v6206, 0.0
    %v6289 = vrot.slane %v6288, 4
    %v6290 = vadd.f32 %v6288, %v6289
    %v6291 = vrot.slane %v6290, 2
    %v6292 = vadd.f32 %v6290, %v6291
    %v6293 = vrot.slane %v6292, 1
    %v6294 = vadd.f32 %v6292, %v6293
    %v6295 = vmul.f32 %v6287, %v326
    %v6296 = vmul.f32 %v6294, %v326
    %v6297 = vmul.f32 %v6203, %v6203
    %v6298 = vmul.f32 %v6206, %v6206
    %v6299 = vsel %vm218, %v6297, 0.0
    %v6300 = vrot.slane %v6299, 4
    %v6301 = vadd.f32 %v6299, %v6300
    %v6302 = vrot.slane %v6301, 2
    %v6303 = vadd.f32 %v6301, %v6302
    %v6304 = vrot.slane %v6303, 1
    %v6305 = vadd.f32 %v6303, %v6304
    %v6306 = vsel %vm218, %v6298, 0.0
    %v6307 = vrot.slane %v6306, 4
    %v6308 = vadd.f32 %v6306, %v6307
    %v6309 = vrot.slane %v6308, 2
    %v6310 = vadd.f32 %v6308, %v6309
    %v6311 = vrot.slane %v6310, 1
    %v6312 = vadd.f32 %v6310, %v6311
    %v6313 = vmul.f32 %v6305, %v326
    %v6314 = vmul.f32 %v6312, %v326
    %v6315 = vmul.f32 %v6295, %v6295
    %v6316 = vmul.f32 %v6296, %v6296
    %v6317 = vsub.f32 %v6313, %v6315
    %v6318 = vsub.f32 %v6314, %v6316
    %v6319 = vmax.f32 %v6317, 0.0
    %v6320 = vmax.f32 %v6318, 0.0
    %v6321 = vsub.f32 %v6203, %v6295
    %v6322 = vsub.f32 %v6206, %v6296
    %v6323 = vadd.f32 %v6319, 1e-05
    %v6324 = vadd.f32 %v6320, 1e-05
    %v6325 = vrsqrt.pop %v6323
    %v6326 = vrsqrt.pop %v6324
    %v6327 = vmul.f32 %v6321, %v6325
    %v6328 = vmul.f32 %v6322, %v6326
    %v6330 = vlaneseq
    %v6331 = vshrl.u32 %v6330, 7
    %v6332 = vsub.s32 0, %v6331
    %v6333 = vrot.slane %v6278, %v6332
    %v6335 = vmul.f32 %v6327, %v6333
    %v6336 = vmul.f32 %v6328, %v6333
    %v6338 = vlaneseq
    %v6339 = vshrl.u32 %v6338, 7
    %v6340 = vsub.s32 0, %v6339
    %v6341 = vrot.slane %v6280, %v6340
    %v6343 = vadd.f32 %v6335, %v6341
    %v6344 = vadd.f32 %v6336, %v6341
    %v6345 = vxor.u32 %v6343, 2147483648
    %v6346 = vxor.u32 %v6344, 2147483648
    %v6347 = vmul.f32 %v6345, 1.442695
    %v6348 = vpow.pop %v6347
    %v6349 = vmul.f32 %v6346, 1.442695
    %v6350 = vpow.pop %v6349
    %v6351 = vadd.f32 %v6348, 1.0
    %v6352 = vadd.f32 %v6350, 1.0
    %v6353 = vrcp.pop %v6351
    %v6354 = vmul.f32 1.0, %v6353
    %v6355 = vrcp.pop %v6352
    %v6356 = vmul.f32 1.0, %v6355
    %v6357 = vmul.f32 %v6275, %v6354
    %v6358 = vmul.f32 %v6276, %v6356
    %v6359 = vadd.f32 %v6103, %v6357
    %v6360 = vadd.f32 %v6104, %v6358
    %v6361 = vmul.f32 %v6359, 0.70710677
    %v6362 = vmul.f32 %v6360, 0.70710677
    %v6363 = vmax.f32 %v6361, 0.0
    %v6364 = vmax.f32 %v6362, 0.0
    %v6365 = vadd.f32 %v4653, %v6363
    %v6366 = vadd.f32 %v4654, %v6364
    %v6367 = vpack.c.bf16 %v6366, %v6365
    %v6368 = vld [vmem:[#allocation16] sm:$0xf]
    %v6369 = vld [vmem:[#allocation16 + $0x4] sm:$0xf]
    %v6370 = vlaneseq
    %v6371 = vand.u32 %v6370, 127
    %vm6372 = vcmp.eq.s32.totalorder %v6371, 4
    %v6373 = vsel %vm6372, 1, 0
    %v6374 = vcvt.s32.f32 %v6373
    %v6375 = vmul.f32 %v5367, %v6374
    %v6376 = vmul.f32 %v5368, %v6374
    %v6379 = vunpack.c.l.b16 %v6368
    %v6380 = vunpack.c.l.b16 %v6369
    %v6381 = vpack.c.b16 %v6380, %v6379
    %v6384 = vsel %vm218, %v6367, 0
    %6386 = vmatprep.subr.bf16.mxu0 0
    %6387 = vmatpush1.bf16.msra.mxu0 %v6381
    %6388 = vmatprep.subr.bf16.mxu0 0
    %6389 = vmatpush1.bf16.msra.mxu0 0
    %6390 = vmatprep.subr.bf16.mxu0 0
    %6391 = vmatpush1.bf16.msra.mxu0 0
    %6392 = vmatprep.subr.bf16.mxu0 0
    %6393 = vmatpush1.bf16.msra.mxu0 0
    %6394 = vmatprep.subr.bf16.mxu0 0
    %6395 = vmatpush1.bf16.msra.mxu0 0
    %6396 = vmatprep.subr.bf16.mxu0 0
    %6397 = vmatpush1.bf16.msra.mxu0 0
    %6398 = vmatprep.subr.bf16.mxu0 0
    %6399 = vmatpush1.bf16.msra.mxu0 0
    %6400 = vmatprep.subr.bf16.mxu0 0
    %6401 = vmatpush1.bf16.msra.mxu0 0
    %6402 = vmatprep.subr.bf16.mxu0 0
    %6403 = vmatpush1.bf16.msra.mxu0 0
    %6404 = vmatprep.subr.bf16.mxu0 0
    %6405 = vmatpush1.bf16.msra.mxu0 0
    %6406 = vmatprep.subr.bf16.mxu0 0
    %6407 = vmatpush1.bf16.msra.mxu0 0
    %6408 = vmatprep.subr.bf16.mxu0 0
    %6409 = vmatpush1.bf16.msra.mxu0 0
    %6410 = vmatprep.subr.bf16.mxu0 0
    %6411 = vmatpush1.bf16.msra.mxu0 0
    %6412 = vmatprep.subr.bf16.mxu0 0
    %6413 = vmatpush1.bf16.msra.mxu0 0
    %6414 = vmatprep.subr.bf16.mxu0 0
    %6415 = vmatpush1.bf16.msra.mxu0 0
    %6416 = vmatprep.subr.bf16.mxu0 0
    %6417 = vmatpush1.bf16.msra.mxu0 0
    %6418 = vmatprep.mubr.bf16.mxu0 0
    %6419 = vmatmul.mubr.bf16.gmra.mrb[0].mxu0 %v6384
    %v6420 = vpop.f32.mrb[0].mxu0
    %v6421 = vadd.f32 %v6375, %v6420
    %v6422 = vpop.f32.mrb[0].mxu0
    %v6423 = vpop.f32.mrb[0].mxu0
    %v6424 = vadd.f32 %v6376, %v6423
    %v6425 = vpop.f32.mrb[0].mxu0
    %6426 = vdwg.mxu0
    %6427 = vst [vmem:[%s15] sm:$0xff] %v6421
    %6428 = vst [vmem:[%s15 + $0x8] sm:$0xff] %v6424
    // Predicated region
    $region102: #{fwd.1} parent=1 // pred_check
      _
    $region103: #{fwd.1} parent=1 // pred_check_branch
      %6430 = sbr.rel (0) target = $region105
    $region104: #{fwd.1} parent=1 // pred_region
      _
    $region105: #{fwd.1} parent=1 // pred_fallthru
      _
    // Predicated region
    $region106: #{fwd.1} parent=1 // pred_check
      _
    $region107: #{fwd.1} parent=1 // pred_check_branch
      %6432 = sbr.rel (0) target = $region109
    $region108: #{fwd.1} parent=1 // pred_region
      _
    $region109: #{fwd.1} parent=1 // pred_fallthru
      _
    %6433 = vsyncpa [#allocation3], 1
    %6434 = vsyncpa [#allocation5], 1
    %6435 = vsyncpa [#allocation8], 1
    %6436 = vsyncpa [#allocation11], 1
    %6437 = vsyncpa [#allocation14], 1
    %6438 = vsyncpa [#allocation17], 1

</llo_original>
